<compile_context>
chip_gen: v5e
topology: v5e:2x2
jax: 0.10.0
libtpu: 0.0.40
codegen_flags: <defaults>
</compile_context>

<pallas_src>
import functools
import math

import numpy as np
import jax
import jax.numpy as jnp
from jax.experimental import pallas as pl
from jax.experimental.pallas import tpu as pltpu


def _round_up(x, m):
    return (x + m - 1) // m * m


# ----------------------------------------------------------------------------
# Fused Res_layer kernel
# ----------------------------------------------------------------------------
def _res_layer_kernel(x_ref, w1_ref, sb1_ref, w2_ref, sb2_ref, *rest,
                      H, W, C, has_downsample):
    """grid = (batch, block). Per step: run one BasicBlock on the resident
    activation, keep the new activation in VMEM, accumulate the block sum."""
    if has_downsample:
        wds_ref, sbds_ref, out_ref, act_pad, tmp_pad = rest
    else:
        out_ref, act_pad, tmp_pad = rest

    b = pl.program_id(1)
    HW = H * W

    # ---- per-batch-element init (block 0 only) ------------------------------
    # Interiors are fully overwritten by every block and the 1-px borders are
    # never written, so zero-filling only at b == 0 is sufficient.
    @pl.when(b == 0)
    def _():
        act_pad[...] = jnp.zeros_like(act_pad)
        tmp_pad[...] = jnp.zeros_like(tmp_pad)
        act_pad[1:H + 1, 1:W + 1, :] = x_ref[0].astype(act_pad.dtype)

    def im2col(pad_ref):
        # (H*W, 9*C) bf16 slab: 9 shifted 3x3-tap windows concatenated on the
        # lane axis -> a single K=9*C matmul instead of 9 K=C matmuls.
        taps = [pad_ref[kh:kh + H, kw:kw + W, :].reshape(HW, C).astype(jnp.bfloat16)
                for kh in range(3) for kw in range(3)]
        return jnp.concatenate(taps, axis=-1)

    # current block input (exact f32 copy, used for the residual branch)
    x_int = act_pad[1:H + 1, 1:W + 1, :].reshape(HW, C)

    # ---- conv1 (3x3, pad 1) + BN1 + ReLU : one MXU matmul -------------------
    sb1 = sb1_ref[0]
    acc1 = jnp.dot(im2col(act_pad), w1_ref[0], preferred_element_type=jnp.float32)
    h1 = jnp.maximum(acc1 * sb1[0:1, :] + sb1[1:2, :], 0.0)
    # TODO(synk): the offset-(1,1) halo store is sublane-unaligned; a
    # pltpu.roll-based shift (zero columns kept on the right) would avoid the
    # masked store at the cost of extra XLU work.
    tmp_pad[1:H + 1, 1:W + 1, :] = h1.reshape(H, W, C).astype(tmp_pad.dtype)

    # ---- conv2 (3x3, pad 1) + BN2 -------------------------------------------
    sb2 = sb2_ref[0]
    acc2 = jnp.dot(im2col(tmp_pad), w2_ref[0], preferred_element_type=jnp.float32)
    out2 = acc2 * sb2[0:1, :] + sb2[1:2, :]

    # ---- residual branch ----------------------------------------------------
    ident = x_int
    if has_downsample:
        # The 1x1-conv downsample only applies to block 0.  An arithmetic blend
        # selects it without a vector-valued branch; the extra 1x1 matmul on
        # b > 0 is ~1/18 of a block's MXU work.
        ds = jnp.dot(x_int.astype(jnp.bfloat16), wds_ref[...],
                     preferred_element_type=jnp.float32)
        ds = ds * sbds_ref[0:1, :] + sbds_ref[1:2, :]
        is0 = (b == 0).astype(jnp.float32)
        ident = is0 * ds + (1.0 - is0) * x_int

    y = jnp.maximum(out2 + ident, 0.0)          # this block's output, f32
    y_hwc = y.reshape(H, W, C)

    # next block's input stays resident in VMEM (skip the store on the last block)
    @pl.when(b < pl.num_programs(1) - 1)
    def _():
        act_pad[1:H + 1, 1:W + 1, :] = y_hwc.astype(act_pad.dtype)

    # fused running sum over blocks; the output block is resident along b.
    @pl.when(b == 0)
    def _():
        out_ref[0] = y_hwc

    @pl.when(b > 0)
    def _():
        out_ref[0] += y_hwc


# ----------------------------------------------------------------------------
# Wrapper
# ----------------------------------------------------------------------------
def _vmem_limit_bytes(H, W, C):
    blk_in = H * W * C * 2                      # x block (bf16)
    blk_out = H * W * C * 4                     # output accumulator (f32)
    blk_w = 2 * 9 * C * C * 2 + C * C * 2       # w1 + w2 + wds (bf16)
    blk_sb = 3 * 2 * C * 4                      # folded BN scale/bias (f32)
    pipeline = 2 * (blk_in + blk_out + blk_w + blk_sb)          # double buffered
    scratch = 2 * (H + 2) * _round_up(W + 2, 8) * C * 4         # padded scratches
    temps = 2 * H * W * 9 * C * 2 + 6 * H * W * C * 4           # im2col slabs + f32 temps
    est = pipeline + scratch + temps
    # explicit scoped-VMEM budget; capped at 48 MiB so it also fits v7x (64 MiB VMEM)
    return int(min(max(2 * est, 32 * 2 ** 20), 48 * 2 ** 20))


def res_layer_forward(x_nchw, packed, stride=1):
    """Pallas implementation of Res_layer.forward (input/output NCHW)."""
    if stride != 1:
        # TODO(synk): stride>1 needs strided window extraction for the first
        # block (handled at the DMA/BlockSpec level, not a strided VMEM slice);
        # fail loudly instead of silently computing the wrong window.
        raise NotImplementedError("res_layer_forward currently supports stride == 1 only")

    N, Cin, H, W = x_nchw.shape
    C = packed["C"]
    nb = packed["nb"]
    cout = packed["cout"]
    has_ds = packed["has_downsample"]

    x = jnp.transpose(x_nchw, (0, 2, 3, 1))                       # NCHW -> NHWC
    if Cin < C:                                                   # lane-dense channels
        x = jnp.pad(x, ((0, 0), (0, 0), (0, 0), (0, C - Cin)))
    x = x.astype(jnp.bfloat16)

    kernel = functools.partial(_res_layer_kernel, H=H, W=W, C=C,
                               has_downsample=has_ds)

    in_specs = [
        pl.BlockSpec((1, H, W, C), lambda n, b: (n, 0, 0, 0)),    # x (read once per n)
        pl.BlockSpec((1, 9 * C, C), lambda n, b: (b, 0, 0)),      # conv1 weights, per block
        pl.BlockSpec((1, 2, C), lambda n, b: (b, 0, 0)),          # bn1 scale/bias
        pl.BlockSpec((1, 9 * C, C), lambda n, b: (b, 0, 0)),      # conv2 weights
        pl.BlockSpec((1, 2, C), lambda n, b: (b, 0, 0)),          # bn2 scale/bias
    ]
    inputs = [x, packed["W1"], packed["SB1"], packed["W2"], packed["SB2"]]
    if has_ds:
        in_specs += [pl.BlockSpec((C, C), lambda n, b: (0, 0)),   # downsample 1x1 conv
                     pl.BlockSpec((2, C), lambda n, b: (0, 0))]   # downsample bn
        inputs += [packed["WDS"], packed["SBDS"]]

    out = pl.pallas_call(
        kernel,
        out_shape=jax.ShapeDtypeStruct((N, H, W, C), jnp.float32),
        grid=(N, nb),
        in_specs=in_specs,
        out_specs=pl.BlockSpec((1, H, W, C), lambda n, b: (n, 0, 0, 0)),
        scratch_shapes=[pltpu.VMEM((H + 2, W + 2, C), jnp.float32),   # resident activation (padded)
                        pltpu.VMEM((H + 2, W + 2, C), jnp.float32)],  # conv1 output (padded)
        compiler_params=pltpu.CompilerParams(
            dimension_semantics=("parallel", "arbitrary"),
            vmem_limit_bytes=_vmem_limit_bytes(H, W, C)),
    )(*inputs)

    out = out[..., :cout]                                         # strip channel padding
    return jnp.transpose(out, (0, 3, 1, 2))                       # NHWC -> NCHW


# ----------------------------------------------------------------------------
# Deterministic synthetic parameters (folded BN) + packing for the kernel
# ----------------------------------------------------------------------------
def _folded_bn(key, c):
    k1, k2, k3, k4 = jax.random.split(key, 4)
    gamma = 1.0 + 0.1 * jax.random.normal(k1, (c,), jnp.float32)
    beta = 0.1 * jax.random.normal(k2, (c,), jnp.float32)
    mean = 0.1 * jax.random.normal(k3, (c,), jnp.float32)
    var = jax.random.uniform(k4, (c,), jnp.float32, 0.5, 1.5)
    scale = gamma / jnp.sqrt(var + 1e-5)
    bias = beta - mean * scale
    return jnp.stack([scale, bias], axis=0)  # (2, c)


def make_block_params(key, cin, planes, has_downsample):
    ks = jax.random.split(key, 6)
    w1 = jax.random.normal(ks[0], (3, 3, cin, planes), jnp.float32) / math.sqrt(9 * cin)
    w2 = jax.random.normal(ks[1], (3, 3, planes, planes), jnp.float32) / math.sqrt(9 * planes)
    p = {"w1_hwio": w1, "sb1": _folded_bn(ks[2], planes),
         "w2_hwio": w2, "sb2": _folded_bn(ks[3], planes),
         "has_downsample": has_downsample}
    if has_downsample:
        wds = jax.random.normal(ks[4], (1, 1, cin, planes), jnp.float32) / math.sqrt(cin)
        p["wds_hwio"] = wds
        p["sbds"] = _folded_bn(ks[5], planes)
    return p


def build_res_layer_params(key, inplanes, planes, blocks, stride, expansion=1):
    keys = jax.random.split(key, blocks)
    need_ds = (stride != 1) or (inplanes != planes * expansion)
    params = [make_block_params(keys[0], inplanes, planes, need_ds)]
    cin = planes * expansion
    for i in range(1, blocks):
        params.append(make_block_params(keys[i], cin, planes, False))
    return params


def pack_layer_params(block_params, planes, expansion=1):
    """Zero-pad channels to a lane-dense multiple of 128, stack per-block weights."""
    nb = len(block_params)
    cout = planes * expansion
    cins = [p["w1_hwio"].shape[2] for p in block_params]
    C = _round_up(max(max(cins), cout), 128)

    def pad_conv(w):                     # (3,3,ci,co) -> (9*C, C) bf16
        ci, co = w.shape[2], w.shape[3]
        wp = jnp.zeros((3, 3, C, C), jnp.float32).at[:, :, :ci, :co].set(w)
        return wp.reshape(9 * C, C).astype(jnp.bfloat16)

    def pad_sb(sb):                      # (2, c) -> (2, C) f32 (scale->1, bias->0 in pad)
        c = sb.shape[1]
        base = jnp.concatenate([jnp.ones((1, C), jnp.float32),
                                jnp.zeros((1, C), jnp.float32)], axis=0)
        return base.at[:, :c].set(sb)

    packed = {
        "C": C, "nb": nb, "cout": cout,
        "has_downsample": bool(block_params[0]["has_downsample"]),
        "W1": jnp.stack([pad_conv(p["w1_hwio"]) for p in block_params]),
        "SB1": jnp.stack([pad_sb(p["sb1"]) for p in block_params]),
        "W2": jnp.stack([pad_conv(p["w2_hwio"]) for p in block_params]),
        "SB2": jnp.stack([pad_sb(p["sb2"]) for p in block_params]),
    }
    if packed["has_downsample"]:
        wds = block_params[0]["wds_hwio"][0, 0]              # (ci, co)
        ci, co = wds.shape
        wp = jnp.zeros((C, C), jnp.float32).at[:ci, :co].set(wds)
        packed["WDS"] = wp.astype(jnp.bfloat16)
        packed["SBDS"] = pad_sb(block_params[0]["sbds"])
    return packed


# ----------------------------------------------------------------------------
# Pure-JAX f32 reference (module semantics, correctness check only)
# ----------------------------------------------------------------------------
def _ref_conv(x, w, stride, pad):
    return jax.lax.conv_general_dilated(
        x, w, (stride, stride), ((pad, pad), (pad, pad)),
        dimension_numbers=("NHWC", "HWIO", "NHWC"),
        precision=jax.lax.Precision.HIGHEST)


def _ref_basic_block(x, p, stride):
    out = _ref_conv(x, p["w1_hwio"], stride, 1) * p["sb1"][0] + p["sb1"][1]
    out = jnp.maximum(out, 0.0)
    out = _ref_conv(out, p["w2_hwio"], 1, 1) * p["sb2"][0] + p["sb2"][1]
    if p["has_downsample"]:
        ident = _ref_conv(x, p["wds_hwio"], stride, 0) * p["sbds"][0] + p["sbds"][1]
    else:
        ident = x
    return jnp.maximum(out + ident, 0.0)


def res_layer_ref(x_nchw, block_params, stride):
    x = jnp.transpose(x_nchw, (0, 2, 3, 1))
    outs = []
    for i, p in enumerate(block_params):
        s = stride if i == 0 else 1
        x = _ref_basic_block(x, p, s)
        outs.append(x)
    result = outs[0]
    for o in outs[1:]:
        result = result + o
    return jnp.transpose(result, (0, 3, 1, 2))


# ----------------------------------------------------------------------------
if __name__ == "__main__":
    N, Cin, H, W = 2, 4, 16, 16
    planes, num_blocks, stride = 8, 2, 1   # first block gets a 1x1-conv downsample (4 != 8)

    key = jax.random.PRNGKey(0)
    kx, kp = jax.random.split(key)
    x_nchw = jax.random.normal(kx, (N, Cin, H, W), jnp.float32)

    params = build_res_layer_params(kp, Cin, planes, num_blocks, stride)
    packed = pack_layer_params(params, planes)

    out = res_layer_forward(x_nchw, packed, stride)
    out = jax.block_until_ready(out)

    # Reference is full f32; the kernel uses bf16 MXU inputs with f32
    # accumulation, hence the relaxed tolerance.
    ref = res_layer_ref(x_nchw, params, stride)
    np.testing.assert_allclose(np.asarray(out), np.asarray(ref), rtol=5e-2, atol=5e-2)
    print("KERNEL_OK")
</pallas_src>

<mosaic_0001>
module attributes {stable_mosaic.version = 11 : i64} {
  func.func @_res_layer_kernel(%arg0: i32, %arg1: i32, %arg2: memref<1x16x16x128xbf16, #tpu.memory_space<vmem>>, %arg3: memref<1x1152x128xbf16, #tpu.memory_space<vmem>>, %arg4: memref<1x2x128xf32, #tpu.memory_space<vmem>>, %arg5: memref<1x1152x128xbf16, #tpu.memory_space<vmem>>, %arg6: memref<1x2x128xf32, #tpu.memory_space<vmem>>, %arg7: memref<128x128xbf16, #tpu.memory_space<vmem>>, %arg8: memref<2x128xf32, #tpu.memory_space<vmem>>, %arg9: memref<1x16x16x128xf32, #tpu.memory_space<vmem>>, %arg10: memref<18x18x128xf32, #tpu.memory_space<vmem>>, %arg11: memref<18x18x128xf32, #tpu.memory_space<vmem>>) attributes {dimension_semantics = [#tpu.dimension_semantics<parallel>, #tpu.dimension_semantics<arbitrary>], iteration_bounds = array<i64: 2, 2>, scalar_prefetch = 0 : i64, scratch_operands = 2 : i64, tpu.core_type = #tpu.core_type<tc>, window_params = [{transform_indices = @transform_0, window_bounds = array<i64: 1, 16, 16, 128>}, {transform_indices = @transform_1, window_bounds = array<i64: 1, 1152, 128>}, {transform_indices = @transform_2, window_bounds = array<i64: 1, 2, 128>}, {transform_indices = @transform_3, window_bounds = array<i64: 1, 1152, 128>}, {transform_indices = @transform_4, window_bounds = array<i64: 1, 2, 128>}, {pipeline_mode = #tpu.pipeline_mode<synchronous>, transform_indices = @transform_5, window_bounds = array<i64: 128, 128>}, {pipeline_mode = #tpu.pipeline_mode<synchronous>, transform_indices = @transform_6, window_bounds = array<i64: 2, 128>}, {transform_indices = @transform_7, window_bounds = array<i64: 1, 16, 16, 128>}]} {
    %c0_i32 = arith.constant 0 : i32
    %0 = arith.cmpi eq, %arg1, %c0_i32 : i32
    %1 = arith.extui %0 : i1 to i32
    %c0_i32_0 = arith.constant 0 : i32
    %2 = arith.cmpi ne, %1, %c0_i32_0 : i32
    scf.if %2 {
      %cst_87 = arith.constant 0.000000e+00 : f32
      %118 = vector.broadcast %cst_87 : f32 to vector<18x18x128xf32>
      %c0_88 = arith.constant 0 : index
      %c0_89 = arith.constant 0 : index
      %c0_90 = arith.constant 0 : index
      %119 = vector.load %arg10[%c0_88, %c0_89, %c0_90] : memref<18x18x128xf32, #tpu.memory_space<vmem>>, vector<18x18x128xf32>
      tpu.vector_store %arg10[%c0_88, %c0_89, %c0_90], %118 {strides = array<i32>} : memref<18x18x128xf32, #tpu.memory_space<vmem>>, vector<18x18x128xf32>,
      %cst_91 = arith.constant 0.000000e+00 : f32
      %120 = vector.broadcast %cst_91 : f32 to vector<18x18x128xf32>
      %c0_92 = arith.constant 0 : index
      %c0_93 = arith.constant 0 : index
      %c0_94 = arith.constant 0 : index
      %121 = vector.load %arg11[%c0_92, %c0_93, %c0_94] : memref<18x18x128xf32, #tpu.memory_space<vmem>>, vector<18x18x128xf32>
      tpu.vector_store %arg11[%c0_92, %c0_93, %c0_94], %120 {strides = array<i32>} : memref<18x18x128xf32, #tpu.memory_space<vmem>>, vector<18x18x128xf32>,
      %c0_95 = arith.constant 0 : index
      %c0_96 = arith.constant 0 : index
      %c0_97 = arith.constant 0 : index
      %c0_98 = arith.constant 0 : index
      %122 = vector.load %arg2[%c0_95, %c0_96, %c0_97, %c0_98] : memref<1x16x16x128xbf16, #tpu.memory_space<vmem>>, vector<1x16x16x128xbf16>
      %123 = vector.shape_cast %122 : vector<1x16x16x128xbf16> to vector<16x16x128xbf16>
      %124 = arith.extf %123 : vector<16x16x128xbf16> to vector<16x16x128xf32>
      %c1_99 = arith.constant 1 : index
      %c1_100 = arith.constant 1 : index
      %c0_101 = arith.constant 0 : index
      %125 = vector.load %arg10[%c1_99, %c1_100, %c0_101] : memref<18x18x128xf32, #tpu.memory_space<vmem>>, vector<16x16x128xf32>
      tpu.vector_store %arg10[%c1_99, %c1_100, %c0_101], %124 {strides = array<i32>} : memref<18x18x128xf32, #tpu.memory_space<vmem>>, vector<16x16x128xf32>,
    } else {
    }
    %c1 = arith.constant 1 : index
    %c1_1 = arith.constant 1 : index
    %c0 = arith.constant 0 : index
    %3 = vector.load %arg10[%c1, %c1_1, %c0] : memref<18x18x128xf32, #tpu.memory_space<vmem>>, vector<16x16x128xf32>
    %4 = vector.shape_cast %3 : vector<16x16x128xf32> to vector<256x128xf32>
    %c0_2 = arith.constant 0 : index
    %c0_3 = arith.constant 0 : index
    %c0_4 = arith.constant 0 : index
    %5 = vector.load %arg4[%c0_2, %c0_3, %c0_4] : memref<1x2x128xf32, #tpu.memory_space<vmem>>, vector<1x2x128xf32>
    %6 = vector.shape_cast %5 : vector<1x2x128xf32> to vector<2x128xf32>
    %c0_5 = arith.constant 0 : index
    %c0_6 = arith.constant 0 : index
    %c0_7 = arith.constant 0 : index
    %7 = vector.load %arg10[%c0_5, %c0_6, %c0_7] : memref<18x18x128xf32, #tpu.memory_space<vmem>>, vector<16x16x128xf32>
    %8 = vector.shape_cast %7 : vector<16x16x128xf32> to vector<256x128xf32>
    %9 = arith.truncf %8 : vector<256x128xf32> to vector<256x128xbf16>
    %c0_8 = arith.constant 0 : index
    %c1_9 = arith.constant 1 : index
    %c0_10 = arith.constant 0 : index
    %10 = vector.load %arg10[%c0_8, %c1_9, %c0_10] : memref<18x18x128xf32, #tpu.memory_space<vmem>>, vector<16x16x128xf32>
    %11 = vector.shape_cast %10 : vector<16x16x128xf32> to vector<256x128xf32>
    %12 = arith.truncf %11 : vector<256x128xf32> to vector<256x128xbf16>
    %c0_11 = arith.constant 0 : index
    %c2 = arith.constant 2 : index
    %c0_12 = arith.constant 0 : index
    %13 = vector.load %arg10[%c0_11, %c2, %c0_12] : memref<18x18x128xf32, #tpu.memory_space<vmem>>, vector<16x16x128xf32>
    %14 = vector.shape_cast %13 : vector<16x16x128xf32> to vector<256x128xf32>
    %15 = arith.truncf %14 : vector<256x128xf32> to vector<256x128xbf16>
    %c1_13 = arith.constant 1 : index
    %c0_14 = arith.constant 0 : index
    %c0_15 = arith.constant 0 : index
    %16 = vector.load %arg10[%c1_13, %c0_14, %c0_15] : memref<18x18x128xf32, #tpu.memory_space<vmem>>, vector<16x16x128xf32>
    %17 = vector.shape_cast %16 : vector<16x16x128xf32> to vector<256x128xf32>
    %18 = arith.truncf %17 : vector<256x128xf32> to vector<256x128xbf16>
    %c1_16 = arith.constant 1 : index
    %c1_17 = arith.constant 1 : index
    %c0_18 = arith.constant 0 : index
    %19 = vector.load %arg10[%c1_16, %c1_17, %c0_18] : memref<18x18x128xf32, #tpu.memory_space<vmem>>, vector<16x16x128xf32>
    %20 = vector.shape_cast %19 : vector<16x16x128xf32> to vector<256x128xf32>
    %21 = arith.truncf %20 : vector<256x128xf32> to vector<256x128xbf16>
    %c1_19 = arith.constant 1 : index
    %c2_20 = arith.constant 2 : index
    %c0_21 = arith.constant 0 : index
    %22 = vector.load %arg10[%c1_19, %c2_20, %c0_21] : memref<18x18x128xf32, #tpu.memory_space<vmem>>, vector<16x16x128xf32>
    %23 = vector.shape_cast %22 : vector<16x16x128xf32> to vector<256x128xf32>
    %24 = arith.truncf %23 : vector<256x128xf32> to vector<256x128xbf16>
    %c2_22 = arith.constant 2 : index
    %c0_23 = arith.constant 0 : index
    %c0_24 = arith.constant 0 : index
    %25 = vector.load %arg10[%c2_22, %c0_23, %c0_24] : memref<18x18x128xf32, #tpu.memory_space<vmem>>, vector<16x16x128xf32>
    %26 = vector.shape_cast %25 : vector<16x16x128xf32> to vector<256x128xf32>
    %27 = arith.truncf %26 : vector<256x128xf32> to vector<256x128xbf16>
    %c2_25 = arith.constant 2 : index
    %c1_26 = arith.constant 1 : index
    %c0_27 = arith.constant 0 : index
    %28 = vector.load %arg10[%c2_25, %c1_26, %c0_27] : memref<18x18x128xf32, #tpu.memory_space<vmem>>, vector<16x16x128xf32>
    %29 = vector.shape_cast %28 : vector<16x16x128xf32> to vector<256x128xf32>
    %30 = arith.truncf %29 : vector<256x128xf32> to vector<256x128xbf16>
    %c2_28 = arith.constant 2 : index
    %c2_29 = arith.constant 2 : index
    %c0_30 = arith.constant 0 : index
    %31 = vector.load %arg10[%c2_28, %c2_29, %c0_30] : memref<18x18x128xf32, #tpu.memory_space<vmem>>, vector<16x16x128xf32>
    %32 = vector.shape_cast %31 : vector<16x16x128xf32> to vector<256x128xf32>
    %33 = arith.truncf %32 : vector<256x128xf32> to vector<256x128xbf16>
    %34 = tpu.concatenate %9, %12, %15, %18, %21, %24, %27, %30, %33 in 1 : vector<256x128xbf16>, vector<256x128xbf16>, vector<256x128xbf16>, vector<256x128xbf16>, vector<256x128xbf16>, vector<256x128xbf16>, vector<256x128xbf16>, vector<256x128xbf16>, vector<256x128xbf16> -> vector<256x1152xbf16>
    %c0_31 = arith.constant 0 : index
    %c0_32 = arith.constant 0 : index
    %c0_33 = arith.constant 0 : index
    %35 = vector.load %arg3[%c0_31, %c0_32, %c0_33] : memref<1x1152x128xbf16, #tpu.memory_space<vmem>>, vector<1x1152x128xbf16>
    %36 = vector.shape_cast %35 : vector<1x1152x128xbf16> to vector<1152x128xbf16>
    %cst = arith.constant dense<0.000000e+00> : vector<256x128xf32>
    %37 = tpu.matmul %34, %36, %cst {dimension_numbers = #tpu.dot_dimension_numbers<[1], [0], [0], [1], [0, 0, 1, 1], [], []>} : vector<256x1152xbf16>, vector<1152x128xbf16>, vector<256x128xf32> -> vector<256x128xf32>
    %38 = vector.extract_strided_slice %6 {offsets = [0, 0], sizes = [1, 128], strides = [1, 1]} : vector<2x128xf32> to vector<1x128xf32>
    %39 = vector.broadcast %38 : vector<1x128xf32> to vector<256x128xf32>
    %40 = arith.mulf %37, %39 : vector<256x128xf32>
    %41 = vector.extract_strided_slice %6 {offsets = [1, 0], sizes = [1, 128], strides = [1, 1]} : vector<2x128xf32> to vector<1x128xf32>
    %42 = vector.broadcast %41 : vector<1x128xf32> to vector<256x128xf32>
    %43 = arith.addf %40, %42 : vector<256x128xf32>
    %cst_34 = arith.constant 0.000000e+00 : f32
    %44 = vector.broadcast %cst_34 : f32 to vector<256x128xf32>
    %45 = arith.maximumf %43, %44 : vector<256x128xf32>
    %46 = vector.shape_cast %45 : vector<256x128xf32> to vector<16x16x128xf32>
    %c1_35 = arith.constant 1 : index
    %c1_36 = arith.constant 1 : index
    %c0_37 = arith.constant 0 : index
    %47 = vector.load %arg11[%c1_35, %c1_36, %c0_37] : memref<18x18x128xf32, #tpu.memory_space<vmem>>, vector<16x16x128xf32>
    tpu.vector_store %arg11[%c1_35, %c1_36, %c0_37], %46 {strides = array<i32>} : memref<18x18x128xf32, #tpu.memory_space<vmem>>, vector<16x16x128xf32>,
    %c0_38 = arith.constant 0 : index
    %c0_39 = arith.constant 0 : index
    %c0_40 = arith.constant 0 : index
    %48 = vector.load %arg6[%c0_38, %c0_39, %c0_40] : memref<1x2x128xf32, #tpu.memory_space<vmem>>, vector<1x2x128xf32>
    %49 = vector.shape_cast %48 : vector<1x2x128xf32> to vector<2x128xf32>
    %c0_41 = arith.constant 0 : index
    %c0_42 = arith.constant 0 : index
    %c0_43 = arith.constant 0 : index
    %50 = vector.load %arg11[%c0_41, %c0_42, %c0_43] : memref<18x18x128xf32, #tpu.memory_space<vmem>>, vector<16x16x128xf32>
    %51 = vector.shape_cast %50 : vector<16x16x128xf32> to vector<256x128xf32>
    %52 = arith.truncf %51 : vector<256x128xf32> to vector<256x128xbf16>
    %c0_44 = arith.constant 0 : index
    %c1_45 = arith.constant 1 : index
    %c0_46 = arith.constant 0 : index
    %53 = vector.load %arg11[%c0_44, %c1_45, %c0_46] : memref<18x18x128xf32, #tpu.memory_space<vmem>>, vector<16x16x128xf32>
    %54 = vector.shape_cast %53 : vector<16x16x128xf32> to vector<256x128xf32>
    %55 = arith.truncf %54 : vector<256x128xf32> to vector<256x128xbf16>
    %c0_47 = arith.constant 0 : index
    %c2_48 = arith.constant 2 : index
    %c0_49 = arith.constant 0 : index
    %56 = vector.load %arg11[%c0_47, %c2_48, %c0_49] : memref<18x18x128xf32, #tpu.memory_space<vmem>>, vector<16x16x128xf32>
    %57 = vector.shape_cast %56 : vector<16x16x128xf32> to vector<256x128xf32>
    %58 = arith.truncf %57 : vector<256x128xf32> to vector<256x128xbf16>
    %c1_50 = arith.constant 1 : index
    %c0_51 = arith.constant 0 : index
    %c0_52 = arith.constant 0 : index
    %59 = vector.load %arg11[%c1_50, %c0_51, %c0_52] : memref<18x18x128xf32, #tpu.memory_space<vmem>>, vector<16x16x128xf32>
    %60 = vector.shape_cast %59 : vector<16x16x128xf32> to vector<256x128xf32>
    %61 = arith.truncf %60 : vector<256x128xf32> to vector<256x128xbf16>
    %c1_53 = arith.constant 1 : index
    %c1_54 = arith.constant 1 : index
    %c0_55 = arith.constant 0 : index
    %62 = vector.load %arg11[%c1_53, %c1_54, %c0_55] : memref<18x18x128xf32, #tpu.memory_space<vmem>>, vector<16x16x128xf32>
    %63 = vector.shape_cast %62 : vector<16x16x128xf32> to vector<256x128xf32>
    %64 = arith.truncf %63 : vector<256x128xf32> to vector<256x128xbf16>
    %c1_56 = arith.constant 1 : index
    %c2_57 = arith.constant 2 : index
    %c0_58 = arith.constant 0 : index
    %65 = vector.load %arg11[%c1_56, %c2_57, %c0_58] : memref<18x18x128xf32, #tpu.memory_space<vmem>>, vector<16x16x128xf32>
    %66 = vector.shape_cast %65 : vector<16x16x128xf32> to vector<256x128xf32>
    %67 = arith.truncf %66 : vector<256x128xf32> to vector<256x128xbf16>
    %c2_59 = arith.constant 2 : index
    %c0_60 = arith.constant 0 : index
    %c0_61 = arith.constant 0 : index
    %68 = vector.load %arg11[%c2_59, %c0_60, %c0_61] : memref<18x18x128xf32, #tpu.memory_space<vmem>>, vector<16x16x128xf32>
    %69 = vector.shape_cast %68 : vector<16x16x128xf32> to vector<256x128xf32>
    %70 = arith.truncf %69 : vector<256x128xf32> to vector<256x128xbf16>
    %c2_62 = arith.constant 2 : index
    %c1_63 = arith.constant 1 : index
    %c0_64 = arith.constant 0 : index
    %71 = vector.load %arg11[%c2_62, %c1_63, %c0_64] : memref<18x18x128xf32, #tpu.memory_space<vmem>>, vector<16x16x128xf32>
    %72 = vector.shape_cast %71 : vector<16x16x128xf32> to vector<256x128xf32>
    %73 = arith.truncf %72 : vector<256x128xf32> to vector<256x128xbf16>
    %c2_65 = arith.constant 2 : index
    %c2_66 = arith.constant 2 : index
    %c0_67 = arith.constant 0 : index
    %74 = vector.load %arg11[%c2_65, %c2_66, %c0_67] : memref<18x18x128xf32, #tpu.memory_space<vmem>>, vector<16x16x128xf32>
    %75 = vector.shape_cast %74 : vector<16x16x128xf32> to vector<256x128xf32>
    %76 = arith.truncf %75 : vector<256x128xf32> to vector<256x128xbf16>
    %77 = tpu.concatenate %52, %55, %58, %61, %64, %67, %70, %73, %76 in 1 : vector<256x128xbf16>, vector<256x128xbf16>, vector<256x128xbf16>, vector<256x128xbf16>, vector<256x128xbf16>, vector<256x128xbf16>, vector<256x128xbf16>, vector<256x128xbf16>, vector<256x128xbf16> -> vector<256x1152xbf16>
    %c0_68 = arith.constant 0 : index
    %c0_69 = arith.constant 0 : index
    %c0_70 = arith.constant 0 : index
    %78 = vector.load %arg5[%c0_68, %c0_69, %c0_70] : memref<1x1152x128xbf16, #tpu.memory_space<vmem>>, vector<1x1152x128xbf16>
    %79 = vector.shape_cast %78 : vector<1x1152x128xbf16> to vector<1152x128xbf16>
    %cst_71 = arith.constant dense<0.000000e+00> : vector<256x128xf32>
    %80 = tpu.matmul %77, %79, %cst_71 {dimension_numbers = #tpu.dot_dimension_numbers<[1], [0], [0], [1], [0, 0, 1, 1], [], []>} : vector<256x1152xbf16>, vector<1152x128xbf16>, vector<256x128xf32> -> vector<256x128xf32>
    %81 = vector.extract_strided_slice %49 {offsets = [0, 0], sizes = [1, 128], strides = [1, 1]} : vector<2x128xf32> to vector<1x128xf32>
    %82 = vector.broadcast %81 : vector<1x128xf32> to vector<256x128xf32>
    %83 = arith.mulf %80, %82 : vector<256x128xf32>
    %84 = vector.extract_strided_slice %49 {offsets = [1, 0], sizes = [1, 128], strides = [1, 1]} : vector<2x128xf32> to vector<1x128xf32>
    %85 = vector.broadcast %84 : vector<1x128xf32> to vector<256x128xf32>
    %86 = arith.addf %83, %85 : vector<256x128xf32>
    %87 = arith.truncf %4 : vector<256x128xf32> to vector<256x128xbf16>
    %c0_72 = arith.constant 0 : index
    %c0_73 = arith.constant 0 : index
    %88 = vector.load %arg7[%c0_72, %c0_73] : memref<128x128xbf16, #tpu.memory_space<vmem>>, vector<128x128xbf16>
    %cst_74 = arith.constant dense<0.000000e+00> : vector<256x128xf32>
    %89 = tpu.matmul %87, %88, %cst_74 {dimension_numbers = #tpu.dot_dimension_numbers<[1], [0], [0], [1], [0, 0, 1, 1], [], []>} : vector<256x128xbf16>, vector<128x128xbf16>, vector<256x128xf32> -> vector<256x128xf32>
    %c0_75 = arith.constant 0 : index
    %c0_76 = arith.constant 0 : index
    %90 = vector.load %arg8[%c0_75, %c0_76] : memref<2x128xf32, #tpu.memory_space<vmem>>, vector<1x128xf32>
    %91 = vector.broadcast %90 : vector<1x128xf32> to vector<256x128xf32>
    %92 = arith.mulf %89, %91 : vector<256x128xf32>
    %c1_77 = arith.constant 1 : index
    %c0_78 = arith.constant 0 : index
    %93 = vector.load %arg8[%c1_77, %c0_78] : memref<2x128xf32, #tpu.memory_space<vmem>>, vector<1x128xf32>
    %94 = vector.broadcast %93 : vector<1x128xf32> to vector<256x128xf32>
    %95 = arith.addf %92, %94 : vector<256x128xf32>
    %c0_i32_79 = arith.constant 0 : i32
    %96 = arith.cmpi eq, %arg1, %c0_i32_79 : i32
    %97 = arith.extui %96 : i1 to i32
    %98 = arith.sitofp %97 : i32 to f32
    %99 = vector.broadcast %98 : f32 to vector<256x128xf32>
    %100 = arith.mulf %99, %95 : vector<256x128xf32>
    %cst_80 = arith.constant 1.000000e+00 : f32
    %101 = arith.subf %cst_80, %98 : f32
    %102 = vector.broadcast %101 : f32 to vector<256x128xf32>
    %103 = arith.mulf %102, %4 : vector<256x128xf32>
    %104 = arith.addf %100, %103 : vector<256x128xf32>
    %105 = arith.addf %86, %104 : vector<256x128xf32>
    %cst_81 = arith.constant 0.000000e+00 : f32
    %106 = vector.broadcast %cst_81 : f32 to vector<256x128xf32>
    %107 = arith.maximumf %105, %106 : vector<256x128xf32>
    %108 = vector.shape_cast %107 : vector<256x128xf32> to vector<16x16x128xf32>
    %c1_i32 = arith.constant 1 : i32
    %109 = arith.cmpi slt, %arg1, %c1_i32 : i32
    %110 = arith.extui %109 : i1 to i32
    %c0_i32_82 = arith.constant 0 : i32
    %111 = arith.cmpi ne, %110, %c0_i32_82 : i32
    scf.if %111 {
      %c1_87 = arith.constant 1 : index
      %c1_88 = arith.constant 1 : index
      %c0_89 = arith.constant 0 : index
      %118 = vector.load %arg10[%c1_87, %c1_88, %c0_89] : memref<18x18x128xf32, #tpu.memory_space<vmem>>, vector<16x16x128xf32>
      tpu.vector_store %arg10[%c1_87, %c1_88, %c0_89], %108 {strides = array<i32>} : memref<18x18x128xf32, #tpu.memory_space<vmem>>, vector<16x16x128xf32>,
    } else {
    }
    %c0_i32_83 = arith.constant 0 : i32
    %112 = arith.cmpi eq, %arg1, %c0_i32_83 : i32
    %113 = arith.extui %112 : i1 to i32
    %c0_i32_84 = arith.constant 0 : i32
    %114 = arith.cmpi ne, %113, %c0_i32_84 : i32
    scf.if %114 {
      %c0_87 = arith.constant 0 : index
      %c0_88 = arith.constant 0 : index
      %c0_89 = arith.constant 0 : index
      %c0_90 = arith.constant 0 : index
      %118 = vector.load %arg9[%c0_87, %c0_88, %c0_89, %c0_90] : memref<1x16x16x128xf32, #tpu.memory_space<vmem>>, vector<1x16x16x128xf32>
      %119 = vector.shape_cast %118 : vector<1x16x16x128xf32> to vector<16x16x128xf32>
      %120 = vector.shape_cast %108 : vector<16x16x128xf32> to vector<1x16x16x128xf32>
      tpu.vector_store %arg9[%c0_87, %c0_88, %c0_89, %c0_90], %120 {strides = array<i32>} : memref<1x16x16x128xf32, #tpu.memory_space<vmem>>, vector<1x16x16x128xf32>,
    } else {
    }
    %c0_i32_85 = arith.constant 0 : i32
    %115 = arith.cmpi sgt, %arg1, %c0_i32_85 : i32
    %116 = arith.extui %115 : i1 to i32
    %c0_i32_86 = arith.constant 0 : i32
    %117 = arith.cmpi ne, %116, %c0_i32_86 : i32
    scf.if %117 {
      %c0_87 = arith.constant 0 : index
      %c0_88 = arith.constant 0 : index
      %c0_89 = arith.constant 0 : index
      %c0_90 = arith.constant 0 : index
      %118 = vector.load %arg9[%c0_87, %c0_88, %c0_89, %c0_90] : memref<1x16x16x128xf32, #tpu.memory_space<vmem>>, vector<1x16x16x128xf32>
      %119 = vector.shape_cast %118 : vector<1x16x16x128xf32> to vector<16x16x128xf32>
      %120 = arith.addf %119, %108 : vector<16x16x128xf32>
      %c0_91 = arith.constant 0 : index
      %c0_92 = arith.constant 0 : index
      %c0_93 = arith.constant 0 : index
      %c0_94 = arith.constant 0 : index
      %121 = vector.load %arg9[%c0_91, %c0_92, %c0_93, %c0_94] : memref<1x16x16x128xf32, #tpu.memory_space<vmem>>, vector<1x16x16x128xf32>
      %122 = vector.shape_cast %121 : vector<1x16x16x128xf32> to vector<16x16x128xf32>
      %123 = vector.shape_cast %120 : vector<16x16x128xf32> to vector<1x16x16x128xf32>
      tpu.vector_store %arg9[%c0_91, %c0_92, %c0_93, %c0_94], %123 {strides = array<i32>} : memref<1x16x16x128xf32, #tpu.memory_space<vmem>>, vector<1x16x16x128xf32>,
    } else {
    }
    return
  }
  func.func @transform_0(%arg0: i32, %arg1: i32) -> (i32, i32, i32, i32) {
    %c0_i32 = arith.constant 0 : i32
    %c0_i32_0 = arith.constant 0 : i32
    %c0_i32_1 = arith.constant 0 : i32
    %c0_i32_2 = arith.constant 0 : i32
    return %arg0, %c0_i32, %c0_i32_0, %c0_i32_1 : i32, i32, i32, i32
  }
  func.func @transform_1(%arg0: i32, %arg1: i32) -> (i32, i32, i32) {
    %c0_i32 = arith.constant 0 : i32
    %c0_i32_0 = arith.constant 0 : i32
    %c0_i32_1 = arith.constant 0 : i32
    return %arg1, %c0_i32, %c0_i32_0 : i32, i32, i32
  }
  func.func @transform_2(%arg0: i32, %arg1: i32) -> (i32, i32, i32) {
    %c0_i32 = arith.constant 0 : i32
    %c0_i32_0 = arith.constant 0 : i32
    %c0_i32_1 = arith.constant 0 : i32
    return %arg1, %c0_i32, %c0_i32_0 : i32, i32, i32
  }
  func.func @transform_3(%arg0: i32, %arg1: i32) -> (i32, i32, i32) {
    %c0_i32 = arith.constant 0 : i32
    %c0_i32_0 = arith.constant 0 : i32
    %c0_i32_1 = arith.constant 0 : i32
    return %arg1, %c0_i32, %c0_i32_0 : i32, i32, i32
  }
  func.func @transform_4(%arg0: i32, %arg1: i32) -> (i32, i32, i32) {
    %c0_i32 = arith.constant 0 : i32
    %c0_i32_0 = arith.constant 0 : i32
    %c0_i32_1 = arith.constant 0 : i32
    return %arg1, %c0_i32, %c0_i32_0 : i32, i32, i32
  }
  func.func @transform_5(%arg0: i32, %arg1: i32) -> (i32, i32) {
    %c0_i32 = arith.constant 0 : i32
    %c0_i32_0 = arith.constant 0 : i32
    %c0_i32_1 = arith.constant 0 : i32
    return %c0_i32, %c0_i32_0 : i32, i32
  }
  func.func @transform_6(%arg0: i32, %arg1: i32) -> (i32, i32) {
    %c0_i32 = arith.constant 0 : i32
    %c0_i32_0 = arith.constant 0 : i32
    %c0_i32_1 = arith.constant 0 : i32
    return %c0_i32, %c0_i32_0 : i32, i32
  }
  func.func @transform_7(%arg0: i32, %arg1: i32) -> (i32, i32, i32, i32) {
    %c0_i32 = arith.constant 0 : i32
    %c0_i32_0 = arith.constant 0 : i32
    %c0_i32_1 = arith.constant 0 : i32
    %c0_i32_2 = arith.constant 0 : i32
    return %arg0, %c0_i32, %c0_i32_0, %c0_i32_1 : i32, i32, i32, i32
  }
}

</mosaic_0001>

<llo_original>
// kernel: tpu_custom_call.1
$region0: #{tpu_custom_call.1}
  #allocation0 [shape = 'u32[]', space=smem, size = 0x4, offset = 0x4, fixed_abs, tag = 'smem constant byte address 0x4 - core index']
  #allocation1 [shape = 'u32[72,128]{1,0:T(1,128)}', space=vmem, size = 0x9000, scoped, tag = 'internal scratch']
  #allocation2 [shape = 'f32[18,18,128]{2,1,0:T(8,128)}', space=vmem, size = 0x36000, scoped, tag = 'scratch operand']
  #allocation3 [shape = 'f32[18,18,128]{2,1,0:T(8,128)}', space=vmem, size = 0x36000, scoped, tag = 'scratch operand']
  %s0 = inlined_call_operand.hbm [shape: bf16[2,16,16,128], index: 0, kind: input, shape index: {}]
  %s1 = inlined_call_operand.hbm [shape: bf16[2,1152,128], index: 1, kind: input, shape index: {}]
  %s2 = inlined_call_operand.hbm [shape: f32[2,2,128], index: 2, kind: input, shape index: {}]
  %s3 = inlined_call_operand.hbm [shape: bf16[2,1152,128], index: 3, kind: input, shape index: {}]
  %s4 = inlined_call_operand.hbm [shape: f32[2,2,128], index: 4, kind: input, shape index: {}]
  %s5 = inlined_call_operand.hbm [shape: bf16[128,128], index: 5, kind: input, shape index: {}]
  %s6 = inlined_call_operand.vmem [shape: f32[2,128], index: 6, kind: input, shape index: {}]
  %s7 = inlined_call_operand.hbm [shape: f32[2,16,16,128], index: 7, kind: output, shape index: {}]
  %s8 = sld [smem:[#allocation0]]
  $region101: #{tpu_custom_call.1} parent=0
    _
  %s10 = ssub.s32 1, %s8
  %s11 = scalar_select 0, %s10, %s8
  $region1: #{tpu_custom_call.1} parent=0
    #allocation4 [shape = 'u8[131072]{0}', space=vmem, size = 0x20000, scoped, tag = 'input window, operand 0']
    #allocation5 [shape = 's32[2]{0}', space=sflag, size = 0x8, scoped, tag = 'scoped memory for tpu_custom_call.1']
    #allocation6 [shape = 's32[2]{0}', space=sflag, size = 0x8, scoped, tag = 'scoped memory for tpu_custom_call.1']
    #allocation7 [shape = 'u8[589824]{0}', space=vmem, size = 0x90000, scoped, tag = 'input window, operand 1']
    #allocation8 [shape = 's32[2]{0}', space=sflag, size = 0x8, scoped, tag = 'scoped memory for tpu_custom_call.1']
    #allocation9 [shape = 'u8[2048]{0}', space=vmem, size = 0x800, scoped, tag = 'input window, operand 2']
    #allocation10 [shape = 'u8[589824]{0}', space=vmem, size = 0x90000, scoped, tag = 'input window, operand 3']
    #allocation11 [shape = 's32[2]{0}', space=sflag, size = 0x8, scoped, tag = 'scoped memory for tpu_custom_call.1']
    #allocation12 [shape = 'u8[2048]{0}', space=vmem, size = 0x800, scoped, tag = 'input window, operand 4']
    #allocation13 [shape = 'u8[32768]{0}', space=vmem, size = 0x8000, scoped, tag = 'input window, operand 5, single buffered']
    #allocation14 [shape = 's32[1]{0}', space=sflag, size = 0x4, scoped, tag = 'scoped memory for tpu_custom_call.1']
    #allocation15 [shape = 'u8[262144]{0}', space=vmem, size = 0x40000, scoped, tag = 'output window, operand 0']
    %12 = vsyncpa [#allocation5], 0
    %s13 = scalar_lea.sflag [#allocation5], 1
    %14 = vsyncpa %s13, 0
    %15 = vsyncpa [#allocation8], 0
    %s16 = scalar_lea.sflag [#allocation8], 1
    %17 = vsyncpa %s16, 0
    %18 = vsyncpa [#allocation11], 0
    %s19 = scalar_lea.sflag [#allocation11], 1
    %20 = vsyncpa %s19, 0
    %21 = vsyncpa [#allocation14], 0
    %22 = vsyncpa [#allocation6], 0
    %s23 = scalar_lea.sflag [#allocation6], 1
    %24 = vsyncpa %s23, 0
    loop: start=0, step=1, limit=6
    $region2: #{tpu_custom_call.1} parent=1 // loop_pre_header
      _
    $region3: #{tpu_custom_call.1} parent=1 // loop_header
      %s26 = sphi 0, %s30
      %p27 = scmp.ge.s32.totalorder %s26, 6
      %s33 = sphi 0, %s45
      %s34 = sphi 0, %s41
      %s35 = sphi 0, %s33
      %s36 = sphi 0, %s34
      %s37 = sphi 0, %s35
      %s38 = sphi 0, %s36
      %s48 = sphi 0, %s50
      %s51 = sphi 0, %s48
      %s52 = sphi 0, %s51
      %s68 = sphi 0, %s52
      %s74 = sphi 0, %s76
      %s77 = sphi 0, %s74
      %s78 = sphi 0, %s77
      %s94 = sphi 0, %s78
      %s100 = sphi 0, %s102
      %s103 = sphi 0, %s100
      %s104 = sphi 0, %s103
      %s120 = sphi 0, %s104
      %s126 = sphi 0, %s128
      %s129 = sphi 0, %s126
      %s130 = sphi 0, %s129
      %s146 = sphi 0, %s130
      %s152 = sphi 0, %s154
      %s155 = sphi 0, %s152
      %s156 = sphi 0, %s155
      %s172 = sphi 0, %s156
      %s176 = sphi 0, %s176
      %s178 = sphi 0, %s176
      %s179 = sphi 0, %s178
      %s193 = sphi 0, %s179
      %s197 = sphi 0, %s197
      %s199 = sphi 0, %s197
      %s200 = sphi 0, %s199
      %s214 = sphi 0, %s200
      %s220 = sphi 0, %s222
      %s223 = sphi 0, %s220
      %s224 = sphi 0, %s223
      %s240 = sphi 0, %s224
    $region4: #{tpu_custom_call.1} parent=1 // loop_header_branch
      %29 = sbr.rel (%p27) target = $region8
    $region5: #{tpu_custom_call.1} parent=1 // loop_body
      %s31 = ssub.s32 %s26, 1
      %s32 = ssub.s32 %s26, 2
      %s39 = sadd.s32 1, %s34
      %p40 = scmp.ge.s32.totalorder %s39, 2
      %s41 = scalar_select %p40, 0, %s39
      %s42 = sadd.s32 1, %s33
      %s43 = scalar_select %p40, %s42, %s33
      %p44 = scmp.ge.s32.totalorder %s43, 2
      %s45 = scalar_select %p44, 0, %s43
      %s46 = ssub.s32 %s33, %s45
      %p47 = scmp.eq.s32.totalorder %s46, 0
      %s49 = sadd.s32 %s48, 1
      %s50 = scalar_select %p47, %s48, %s49
      %p53 = pneg %p47
      %p54 = scmp.eq.s32.totalorder %s26, 3
      %p55 = por %p53, %p54
      %p56 = scmp.ne.s32.totalorder %s48, %s51
      %p57 = scmp.eq.s32.totalorder %s26, 0
      %p58 = por %p56, %p57
      %p59 = scmp.ne.s32.totalorder %s48, %s51
      %p60 = scmp.eq.s32.totalorder %s31, 3
      %p61 = por %p59, %p60
      %p62 = scmp.ne.s32.totalorder %s51, %s52
      %p63 = scmp.eq.s32.totalorder %s31, 0
      %p64 = por %p62, %p63
      %p65 = scmp.ne.s32.totalorder %s51, %s52
      %p66 = scmp.eq.s32.totalorder %s32, 3
      %p67 = por %p65, %p66
      %p69 = scmp.ne.s32.totalorder %s52, %s68
      %p70 = scmp.eq.s32.totalorder %s32, 0
      %p71 = por %p69, %p70
      %s72 = ssub.s32 %s34, %s41
      %p73 = scmp.eq.s32.totalorder %s72, 0
      %s75 = sadd.s32 %s74, 1
      %s76 = scalar_select %p73, %s74, %s75
      %p79 = pneg %p73
      %p80 = scmp.eq.s32.totalorder %s26, 3
      %p81 = por %p79, %p80
      %p82 = scmp.ne.s32.totalorder %s74, %s77
      %p83 = scmp.eq.s32.totalorder %s26, 0
      %p84 = por %p82, %p83
      %p85 = scmp.ne.s32.totalorder %s74, %s77
      %p86 = scmp.eq.s32.totalorder %s31, 3
      %p87 = por %p85, %p86
      %p88 = scmp.ne.s32.totalorder %s77, %s78
      %p89 = scmp.eq.s32.totalorder %s31, 0
      %p90 = por %p88, %p89
      %p91 = scmp.ne.s32.totalorder %s77, %s78
      %p92 = scmp.eq.s32.totalorder %s32, 3
      %p93 = por %p91, %p92
      %p95 = scmp.ne.s32.totalorder %s78, %s94
      %p96 = scmp.eq.s32.totalorder %s32, 0
      %p97 = por %p95, %p96
      %s98 = ssub.s32 %s34, %s41
      %p99 = scmp.eq.s32.totalorder %s98, 0
      %s101 = sadd.s32 %s100, 1
      %s102 = scalar_select %p99, %s100, %s101
      %p105 = pneg %p99
      %p106 = scmp.eq.s32.totalorder %s26, 3
      %p107 = por %p105, %p106
      %p108 = scmp.ne.s32.totalorder %s100, %s103
      %p109 = scmp.eq.s32.totalorder %s26, 0
      %p110 = por %p108, %p109
      %p111 = scmp.ne.s32.totalorder %s100, %s103
      %p112 = scmp.eq.s32.totalorder %s31, 3
      %p113 = por %p111, %p112
      %p114 = scmp.ne.s32.totalorder %s103, %s104
      %p115 = scmp.eq.s32.totalorder %s31, 0
      %p116 = por %p114, %p115
      %p117 = scmp.ne.s32.totalorder %s103, %s104
      %p118 = scmp.eq.s32.totalorder %s32, 3
      %p119 = por %p117, %p118
      %p121 = scmp.ne.s32.totalorder %s104, %s120
      %p122 = scmp.eq.s32.totalorder %s32, 0
      %p123 = por %p121, %p122
      %s124 = ssub.s32 %s34, %s41
      %p125 = scmp.eq.s32.totalorder %s124, 0
      %s127 = sadd.s32 %s126, 1
      %s128 = scalar_select %p125, %s126, %s127
      %p131 = pneg %p125
      %p132 = scmp.eq.s32.totalorder %s26, 3
      %p133 = por %p131, %p132
      %p134 = scmp.ne.s32.totalorder %s126, %s129
      %p135 = scmp.eq.s32.totalorder %s26, 0
      %p136 = por %p134, %p135
      %p137 = scmp.ne.s32.totalorder %s126, %s129
      %p138 = scmp.eq.s32.totalorder %s31, 3
      %p139 = por %p137, %p138
      %p140 = scmp.ne.s32.totalorder %s129, %s130
      %p141 = scmp.eq.s32.totalorder %s31, 0
      %p142 = por %p140, %p141
      %p143 = scmp.ne.s32.totalorder %s129, %s130
      %p144 = scmp.eq.s32.totalorder %s32, 3
      %p145 = por %p143, %p144
      %p147 = scmp.ne.s32.totalorder %s130, %s146
      %p148 = scmp.eq.s32.totalorder %s32, 0
      %p149 = por %p147, %p148
      %s150 = ssub.s32 %s34, %s41
      %p151 = scmp.eq.s32.totalorder %s150, 0
      %s153 = sadd.s32 %s152, 1
      %s154 = scalar_select %p151, %s152, %s153
      %p157 = pneg %p151
      %p158 = scmp.eq.s32.totalorder %s26, 3
      %p159 = por %p157, %p158
      %p160 = scmp.ne.s32.totalorder %s152, %s155
      %p161 = scmp.eq.s32.totalorder %s26, 0
      %p162 = por %p160, %p161
      %p163 = scmp.ne.s32.totalorder %s152, %s155
      %p164 = scmp.eq.s32.totalorder %s31, 3
      %p165 = por %p163, %p164
      %p166 = scmp.ne.s32.totalorder %s155, %s156
      %p167 = scmp.eq.s32.totalorder %s31, 0
      %p168 = por %p166, %p167
      %p169 = scmp.ne.s32.totalorder %s155, %s156
      %p170 = scmp.eq.s32.totalorder %s32, 3
      %p171 = por %p169, %p170
      %p173 = scmp.ne.s32.totalorder %s156, %s172
      %p174 = scmp.eq.s32.totalorder %s32, 0
      %p175 = por %p173, %p174
      %s177 = sadd.s32 %s176, 1
      %p180 = scmp.eq.s32.totalorder %s26, 3
      %p181 = scmp.ne.s32.totalorder %s176, %s178
      %p182 = scmp.eq.s32.totalorder %s26, 0
      %p183 = por %p181, %p182
      %p184 = scmp.ne.s32.totalorder %s176, %s178
      %p185 = scmp.eq.s32.totalorder %s31, 3
      %p186 = por %p184, %p185
      %p187 = scmp.ne.s32.totalorder %s178, %s179
      %p188 = scmp.eq.s32.totalorder %s31, 0
      %p189 = por %p187, %p188
      %p190 = scmp.ne.s32.totalorder %s178, %s179
      %p191 = scmp.eq.s32.totalorder %s32, 3
      %p192 = por %p190, %p191
      %p194 = scmp.ne.s32.totalorder %s179, %s193
      %p195 = scmp.eq.s32.totalorder %s32, 0
      %p196 = por %p194, %p195
      %s198 = sadd.s32 %s197, 1
      %p201 = scmp.eq.s32.totalorder %s26, 3
      %p202 = scmp.ne.s32.totalorder %s197, %s199
      %p203 = scmp.eq.s32.totalorder %s26, 0
      %p204 = por %p202, %p203
      %p205 = scmp.ne.s32.totalorder %s197, %s199
      %p206 = scmp.eq.s32.totalorder %s31, 3
      %p207 = por %p205, %p206
      %p208 = scmp.ne.s32.totalorder %s199, %s200
      %p209 = scmp.eq.s32.totalorder %s31, 0
      %p210 = por %p208, %p209
      %p211 = scmp.ne.s32.totalorder %s199, %s200
      %p212 = scmp.eq.s32.totalorder %s32, 3
      %p213 = por %p211, %p212
      %p215 = scmp.ne.s32.totalorder %s200, %s214
      %p216 = scmp.eq.s32.totalorder %s32, 0
      %p217 = por %p215, %p216
      %s218 = ssub.s32 %s33, %s45
      %p219 = scmp.eq.s32.totalorder %s218, 0
      %s221 = sadd.s32 %s220, 1
      %s222 = scalar_select %p219, %s220, %s221
      %p225 = pneg %p219
      %p226 = scmp.eq.s32.totalorder %s26, 3
      %p227 = por %p225, %p226
      %p228 = scmp.ne.s32.totalorder %s220, %s223
      %p229 = scmp.eq.s32.totalorder %s26, 0
      %p230 = por %p228, %p229
      %p231 = scmp.ne.s32.totalorder %s220, %s223
      %p232 = scmp.eq.s32.totalorder %s31, 3
      %p233 = por %p231, %p232
      %p234 = scmp.ne.s32.totalorder %s223, %s224
      %p235 = scmp.eq.s32.totalorder %s31, 0
      %p236 = por %p234, %p235
      %p237 = scmp.ne.s32.totalorder %s223, %s224
      %p238 = scmp.eq.s32.totalorder %s32, 3
      %p239 = por %p237, %p238
      %p241 = scmp.ne.s32.totalorder %s224, %s240
      %p242 = scmp.eq.s32.totalorder %s32, 0
      %p243 = por %p241, %p242
      %p244 = scmp.le.s32.totalorder 1, %s26
      %p245 = scmp.lt.s32.totalorder %s26, 5
      %p246 = pnand %p244, %p245
      %p247 = pneg %p246
      // Predicated region
      $region9: #{tpu_custom_call.1} parent=5 // pred_check
        _
      $region10: #{tpu_custom_call.1} parent=5 // pred_check_branch
        %249 = sbr.rel (%p246) target = $region12
      $region11: #{tpu_custom_call.1} parent=5 // pred_region
        %s250 = ssub.s32 %s26, 1
        // Predicated region
        $region13: #{tpu_custom_call.1} parent=11 // pred_check
          %p251 = pneg %p189
        $region14: #{tpu_custom_call.1} parent=11 // pred_check_branch
          %253 = sbr.rel (%p251) target = $region16
        $region15: #{tpu_custom_call.1} parent=11 // pred_region
          %255 = vsyncadd [#allocation14], 0
          %s256 = sshll.u32 %s5, 4
          %s257 = int_to_ptr.hbm [resolvable:$true] %s256
          %s258 = sshll.u32 [#allocation13], 4
          %s259 = int_to_ptr.vmem [resolvable:$true] %s258
          %264 = dma.hbm_to_vmem [thread:$0]  %s257, 1024, %s259, [#allocation14], 64, 64, 4
        $region16: #{tpu_custom_call.1} parent=11 // pred_fallthru
          _
        // Predicated region
        $region17: #{tpu_custom_call.1} parent=11 // pred_check
          %p265 = pneg %p210
        $region18: #{tpu_custom_call.1} parent=11 // pred_check_branch
          %267 = sbr.rel (%p265) target = $region20
        $region19: #{tpu_custom_call.1} parent=11 // pred_region
          _
        $region20: #{tpu_custom_call.1} parent=11 // pred_fallthru
          _
      $region12: #{tpu_custom_call.1} parent=5 // pred_fallthru
        _
      %p268 = scmp.lt.s32.totalorder %s26, 4
      // Predicated region
      $region21: #{tpu_custom_call.1} parent=5 // pred_check
        %p269 = pneg %p268
      $region22: #{tpu_custom_call.1} parent=5 // pred_check_branch
        %271 = sbr.rel (%p269) target = $region24
      $region23: #{tpu_custom_call.1} parent=5 // pred_region
        // Predicated region
        $region25: #{tpu_custom_call.1} parent=23 // pred_check
          %p272 = pneg %p58
        $region26: #{tpu_custom_call.1} parent=23 // pred_check_branch
          %274 = sbr.rel (%p272) target = $region28
        $region27: #{tpu_custom_call.1} parent=23 // pred_region
          %s275 = sand.u32 %s48, 1
          %s276 = scalar_lea.sflag [#allocation5], %s275
          %s277 = sand.u32 %s48, 1
          %s278 = smul.addr %s277, 128
          %s279 = scalar_lea.vmem [#allocation4], %s278
          %281 = vsyncadd %s276, 0
          %s282 = smul.addr %s33, 32
          %s283 = smul.addr %s282, 4
          %s284 = scalar_lea.hbm %s0, %s283
          %s285 = sshll.u32 %s284, 4
          %s286 = int_to_ptr.hbm [resolvable:$true] %s285
          %s287 = sshll.u32 %s279, 4
          %s288 = int_to_ptr.vmem [resolvable:$true] %s287
          %293 = dma.hbm_to_vmem [thread:$0]  %s286, 2048, %s288, %s276, 64, 64, 4
        $region28: #{tpu_custom_call.1} parent=23 // pred_fallthru
          _
        // Predicated region
        $region29: #{tpu_custom_call.1} parent=23 // pred_check
          %p294 = pneg %p84
        $region30: #{tpu_custom_call.1} parent=23 // pred_check_branch
          %296 = sbr.rel (%p294) target = $region32
        $region31: #{tpu_custom_call.1} parent=23 // pred_region
          %s297 = sand.u32 %s26, 1
          %s298 = scalar_lea.sflag [#allocation8], %s297
          %s299 = sand.u32 %s74, 1
          %s300 = smul.addr %s299, 576
          %s301 = scalar_lea.vmem [#allocation7], %s300
          %303 = vsyncadd %s298, 0
          %s304 = smul.addr %s34, 144
          %s305 = smul.addr %s304, 4
          %s306 = scalar_lea.hbm %s1, %s305
          %s307 = sshll.u32 %s306, 4
          %s308 = int_to_ptr.hbm [resolvable:$true] %s307
          %s309 = sshll.u32 %s301, 4
          %s310 = int_to_ptr.vmem [resolvable:$true] %s309
          %315 = dma.hbm_to_vmem [thread:$0]  %s308, 9216, %s310, %s298, 64, 64, 4
        $region32: #{tpu_custom_call.1} parent=23 // pred_fallthru
          _
        // Predicated region
        $region33: #{tpu_custom_call.1} parent=23 // pred_check
          %p316 = pneg %p110
        $region34: #{tpu_custom_call.1} parent=23 // pred_check_branch
          %318 = sbr.rel (%p316) target = $region36
        $region35: #{tpu_custom_call.1} parent=23 // pred_region
          %s319 = sand.u32 %s26, 1
          %s320 = scalar_lea.sflag [#allocation8], %s319
          %s321 = sand.u32 %s100, 1
          %s322 = smul.addr %s321, 2
          %s323 = scalar_lea.vmem [#allocation9], %s322
          %325 = vsyncadd %s320, 0
          %s326 = smul.addr %s34, 2
          %s327 = scalar_lea.hbm %s2, %s326
          %s329 = sshll.u32 %s327, 4
          %s330 = int_to_ptr.hbm [resolvable:$true] %s329
          %s331 = sshll.u32 %s323, 4
          %s332 = int_to_ptr.vmem [resolvable:$true] %s331
          %334 = dma.hbm_to_vmem [thread:$0]  %s330, 32, %s332, %s320
        $region36: #{tpu_custom_call.1} parent=23 // pred_fallthru
          _
        // Predicated region
        $region37: #{tpu_custom_call.1} parent=23 // pred_check
          %p335 = pneg %p136
        $region38: #{tpu_custom_call.1} parent=23 // pred_check_branch
          %337 = sbr.rel (%p335) target = $region40
        $region39: #{tpu_custom_call.1} parent=23 // pred_region
          %s338 = sand.u32 %s26, 1
          %s339 = scalar_lea.sflag [#allocation11], %s338
          %s340 = sand.u32 %s126, 1
          %s341 = smul.addr %s340, 576
          %s342 = scalar_lea.vmem [#allocation10], %s341
          %344 = vsyncadd %s339, 0
          %s345 = smul.addr %s34, 144
          %s346 = smul.addr %s345, 4
          %s347 = scalar_lea.hbm %s3, %s346
          %s348 = sshll.u32 %s347, 4
          %s349 = int_to_ptr.hbm [resolvable:$true] %s348
          %s350 = sshll.u32 %s342, 4
          %s351 = int_to_ptr.vmem [resolvable:$true] %s350
          %356 = dma.hbm_to_vmem [thread:$0]  %s349, 9216, %s351, %s339, 64, 64, 4
        $region40: #{tpu_custom_call.1} parent=23 // pred_fallthru
          _
        // Predicated region
        $region41: #{tpu_custom_call.1} parent=23 // pred_check
          %p357 = pneg %p162
        $region42: #{tpu_custom_call.1} parent=23 // pred_check_branch
          %359 = sbr.rel (%p357) target = $region44
        $region43: #{tpu_custom_call.1} parent=23 // pred_region
          %s360 = sand.u32 %s26, 1
          %s361 = scalar_lea.sflag [#allocation11], %s360
          %s362 = sand.u32 %s152, 1
          %s363 = smul.addr %s362, 2
          %s364 = scalar_lea.vmem [#allocation12], %s363
          %366 = vsyncadd %s361, 0
          %s367 = smul.addr %s34, 2
          %s368 = scalar_lea.hbm %s4, %s367
          %s370 = sshll.u32 %s368, 4
          %s371 = int_to_ptr.hbm [resolvable:$true] %s370
          %s372 = sshll.u32 %s364, 4
          %s373 = int_to_ptr.vmem [resolvable:$true] %s372
          %375 = dma.hbm_to_vmem [thread:$0]  %s371, 32, %s373, %s361
        $region44: #{tpu_custom_call.1} parent=23 // pred_fallthru
          _
      $region24: #{tpu_custom_call.1} parent=5 // pred_fallthru
        _
      %p376 = scmp.le.s32.totalorder 1, %s26
      %p377 = scmp.lt.s32.totalorder %s26, 5
      %p378 = pnand %p376, %p377
      %p379 = pneg %p378
      // Predicated region
      $region45: #{tpu_custom_call.1} parent=5 // pred_check
        _
      $region46: #{tpu_custom_call.1} parent=5 // pred_check_branch
        %381 = sbr.rel (%p378) target = $region48
      $region47: #{tpu_custom_call.1} parent=5 // pred_region
        %s382 = ssub.s32 %s26, 1
        %s383 = sand.u32 %s51, 1
        %s384 = scalar_lea.sflag [#allocation5], %s383
        %s385 = sand.u32 %s51, 1
        %s386 = smul.addr %s385, 128
        %s387 = scalar_lea.vmem [#allocation4], %s386
        // Predicated region
        $region49: #{tpu_custom_call.1} parent=47 // pred_check
          %p388 = pneg %p64
        $region50: #{tpu_custom_call.1} parent=47 // pred_check_branch
          %390 = sbr.rel (%p388) target = $region52
        $region51: #{tpu_custom_call.1} parent=47 // pred_region
          %392 = dma.done %s384, 2048
        $region52: #{tpu_custom_call.1} parent=47 // pred_fallthru
          _
        %s393 = sand.u32 %s31, 1
        %s394 = scalar_lea.sflag [#allocation8], %s393
        %s395 = sand.u32 %s77, 1
        %s396 = smul.addr %s395, 576
        %s397 = scalar_lea.vmem [#allocation7], %s396
        // Predicated region
        $region53: #{tpu_custom_call.1} parent=47 // pred_check
          %p398 = pneg %p90
        $region54: #{tpu_custom_call.1} parent=47 // pred_check_branch
          %400 = sbr.rel (%p398) target = $region56
        $region55: #{tpu_custom_call.1} parent=47 // pred_region
          %402 = dma.done %s394, 9216
        $region56: #{tpu_custom_call.1} parent=47 // pred_fallthru
          _
        %s403 = sand.u32 %s31, 1
        %s404 = scalar_lea.sflag [#allocation8], %s403
        %s405 = sand.u32 %s103, 1
        %s406 = smul.addr %s405, 2
        %s407 = scalar_lea.vmem [#allocation9], %s406
        // Predicated region
        $region57: #{tpu_custom_call.1} parent=47 // pred_check
          %p408 = pneg %p116
        $region58: #{tpu_custom_call.1} parent=47 // pred_check_branch
          %410 = sbr.rel (%p408) target = $region60
        $region59: #{tpu_custom_call.1} parent=47 // pred_region
          %412 = dma.done %s404, 32
        $region60: #{tpu_custom_call.1} parent=47 // pred_fallthru
          _
        %s413 = sand.u32 %s31, 1
        %s414 = scalar_lea.sflag [#allocation11], %s413
        %s415 = sand.u32 %s129, 1
        %s416 = smul.addr %s415, 576
        %s417 = scalar_lea.vmem [#allocation10], %s416
        // Predicated region
        $region61: #{tpu_custom_call.1} parent=47 // pred_check
          %p418 = pneg %p142
        $region62: #{tpu_custom_call.1} parent=47 // pred_check_branch
          %420 = sbr.rel (%p418) target = $region64
        $region63: #{tpu_custom_call.1} parent=47 // pred_region
          %422 = dma.done %s414, 9216
        $region64: #{tpu_custom_call.1} parent=47 // pred_fallthru
          _
        %s423 = sand.u32 %s31, 1
        %s424 = scalar_lea.sflag [#allocation11], %s423
        %s425 = sand.u32 %s155, 1
        %s426 = smul.addr %s425, 2
        %s427 = scalar_lea.vmem [#allocation12], %s426
        // Predicated region
        $region65: #{tpu_custom_call.1} parent=47 // pred_check
          %p428 = pneg %p168
        $region66: #{tpu_custom_call.1} parent=47 // pred_check_branch
          %430 = sbr.rel (%p428) target = $region68
        $region67: #{tpu_custom_call.1} parent=47 // pred_region
          %432 = dma.done %s424, 32
        $region68: #{tpu_custom_call.1} parent=47 // pred_fallthru
          _
        // Predicated region
        $region69: #{tpu_custom_call.1} parent=47 // pred_check
          %p433 = pneg %p189
        $region70: #{tpu_custom_call.1} parent=47 // pred_check_branch
          %435 = sbr.rel (%p433) target = $region72
        $region71: #{tpu_custom_call.1} parent=47 // pred_region
          %437 = dma.done [#allocation14], 1024
        $region72: #{tpu_custom_call.1} parent=47 // pred_fallthru
          _
        %s438 = sand.u32 %s51, 1
        %s439 = scalar_lea.sflag [#allocation5], %s438
        %s440 = sand.u32 %s51, 1
        %s441 = smul.addr %s440, 128
        %s442 = scalar_lea.vmem [#allocation4], %s441
        %p443 = pneg %p64
        %p444 = pneg %p61
        %s445 = sand.u32 %s31, 1
        %s446 = scalar_lea.sflag [#allocation8], %s445
        %s447 = sand.u32 %s77, 1
        %s448 = smul.addr %s447, 576
        %s449 = scalar_lea.vmem [#allocation7], %s448
        %p450 = pneg %p90
        %p451 = pneg %p87
        %s452 = sand.u32 %s31, 1
        %s453 = scalar_lea.sflag [#allocation8], %s452
        %s454 = sand.u32 %s103, 1
        %s455 = smul.addr %s454, 2
        %s456 = scalar_lea.vmem [#allocation9], %s455
        %p457 = pneg %p116
        %p458 = pneg %p113
        %s459 = sand.u32 %s31, 1
        %s460 = scalar_lea.sflag [#allocation11], %s459
        %s461 = sand.u32 %s129, 1
        %s462 = smul.addr %s461, 576
        %s463 = scalar_lea.vmem [#allocation10], %s462
        %p464 = pneg %p142
        %p465 = pneg %p139
        %s466 = sand.u32 %s31, 1
        %s467 = scalar_lea.sflag [#allocation11], %s466
        %s468 = sand.u32 %s155, 1
        %s469 = smul.addr %s468, 2
        %s470 = scalar_lea.vmem [#allocation12], %s469
        %p471 = pneg %p168
        %p472 = pneg %p165
        %p473 = pneg %p189
        %p474 = pneg %p186
        %p475 = pneg %p210
        %p476 = pneg %p207
        %p477 = pneg %p236
        %p478 = pneg %p233
        %s479 = sand.u32 %s223, 1
        %s480 = scalar_lea.sflag [#allocation6], %s479
        %s481 = sand.u32 %s223, 1
        %s482 = smul.addr %s481, 256
        %s483 = scalar_lea.vmem [#allocation15], %s482
        %p484 = scmp.eq.s32.totalorder %s36, 0
        // Predicated region
        $region73: #{tpu_custom_call.1} parent=47 // pred_check
          %p485 = pneg %p484
        $region74: #{tpu_custom_call.1} parent=47 // pred_check_branch
          %487 = sbr.rel (%p485) target = $region76
        $region75: #{tpu_custom_call.1} parent=47 // pred_region
          %488 = vst [vmem:[#allocation2] sm:$0xff] 0.0
          %489 = vst [vmem:[#allocation2 + $0x8] sm:$0xff] 0.0
          %490 = vst [vmem:[#allocation2 + $0x10] sm:$0x3] 0.0
          %491 = vst [vmem:[#allocation2 + $0x18] sm:$0xff] 0.0
          %492 = vst [vmem:[#allocation2 + $0x20] sm:$0xff] 0.0
          %493 = vst [vmem:[#allocation2 + $0x28] sm:$0x3] 0.0
          %494 = vst [vmem:[#allocation2 + $0x30] sm:$0xff] 0.0
          %495 = vst [vmem:[#allocation2 + $0x38] sm:$0xff] 0.0
          %496 = vst [vmem:[#allocation2 + $0x40] sm:$0x3] 0.0
          %497 = vst [vmem:[#allocation2 + $0x48] sm:$0xff] 0.0
          %498 = vst [vmem:[#allocation2 + $0x50] sm:$0xff] 0.0
          %499 = vst [vmem:[#allocation2 + $0x58] sm:$0x3] 0.0
          %500 = vst [vmem:[#allocation2 + $0x60] sm:$0xff] 0.0
          %501 = vst [vmem:[#allocation2 + $0x68] sm:$0xff] 0.0
          %502 = vst [vmem:[#allocation2 + $0x70] sm:$0x3] 0.0
          %503 = vst [vmem:[#allocation2 + $0x78] sm:$0xff] 0.0
          %504 = vst [vmem:[#allocation2 + $0x80] sm:$0xff] 0.0
          %505 = vst [vmem:[#allocation2 + $0x88] sm:$0x3] 0.0
          %506 = vst [vmem:[#allocation2 + $0x90] sm:$0xff] 0.0
          %507 = vst [vmem:[#allocation2 + $0x98] sm:$0xff] 0.0
          %508 = vst [vmem:[#allocation2 + $0xa0] sm:$0x3] 0.0
          %509 = vst [vmem:[#allocation2 + $0xa8] sm:$0xff] 0.0
          %510 = vst [vmem:[#allocation2 + $0xb0] sm:$0xff] 0.0
          %511 = vst [vmem:[#allocation2 + $0xb8] sm:$0x3] 0.0
          %512 = vst [vmem:[#allocation2 + $0xc0] sm:$0xff] 0.0
          %513 = vst [vmem:[#allocation2 + $0xc8] sm:$0xff] 0.0
          %514 = vst [vmem:[#allocation2 + $0xd0] sm:$0x3] 0.0
          %515 = vst [vmem:[#allocation2 + $0xd8] sm:$0xff] 0.0
          %516 = vst [vmem:[#allocation2 + $0xe0] sm:$0xff] 0.0
          %517 = vst [vmem:[#allocation2 + $0xe8] sm:$0x3] 0.0
          %518 = vst [vmem:[#allocation2 + $0xf0] sm:$0xff] 0.0
          %519 = vst [vmem:[#allocation2 + $0xf8] sm:$0xff] 0.0
          %520 = vst [vmem:[#allocation2 + $0x100] sm:$0x3] 0.0
          %521 = vst [vmem:[#allocation2 + $0x108] sm:$0xff] 0.0
          %522 = vst [vmem:[#allocation2 + $0x110] sm:$0xff] 0.0
          %523 = vst [vmem:[#allocation2 + $0x118] sm:$0x3] 0.0
          %524 = vst [vmem:[#allocation2 + $0x120] sm:$0xff] 0.0
          %525 = vst [vmem:[#allocation2 + $0x128] sm:$0xff] 0.0
          %526 = vst [vmem:[#allocation2 + $0x130] sm:$0x3] 0.0
          %527 = vst [vmem:[#allocation2 + $0x138] sm:$0xff] 0.0
          %528 = vst [vmem:[#allocation2 + $0x140] sm:$0xff] 0.0
          %529 = vst [vmem:[#allocation2 + $0x148] sm:$0x3] 0.0
          %530 = vst [vmem:[#allocation2 + $0x150] sm:$0xff] 0.0
          %531 = vst [vmem:[#allocation2 + $0x158] sm:$0xff] 0.0
          %532 = vst [vmem:[#allocation2 + $0x160] sm:$0x3] 0.0
          %533 = vst [vmem:[#allocation2 + $0x168] sm:$0xff] 0.0
          %534 = vst [vmem:[#allocation2 + $0x170] sm:$0xff] 0.0
          %535 = vst [vmem:[#allocation2 + $0x178] sm:$0x3] 0.0
          %536 = vst [vmem:[#allocation2 + $0x180] sm:$0xff] 0.0
          %537 = vst [vmem:[#allocation2 + $0x188] sm:$0xff] 0.0
          %538 = vst [vmem:[#allocation2 + $0x190] sm:$0x3] 0.0
          %539 = vst [vmem:[#allocation2 + $0x198] sm:$0xff] 0.0
          %540 = vst [vmem:[#allocation2 + $0x1a0] sm:$0xff] 0.0
          %541 = vst [vmem:[#allocation2 + $0x1a8] sm:$0x3] 0.0
          %542 = vst [vmem:[#allocation3] sm:$0xff] 0.0
          %543 = vst [vmem:[#allocation3 + $0x8] sm:$0xff] 0.0
          %544 = vst [vmem:[#allocation3 + $0x10] sm:$0x3] 0.0
          %545 = vst [vmem:[#allocation3 + $0x18] sm:$0xff] 0.0
          %546 = vst [vmem:[#allocation3 + $0x20] sm:$0xff] 0.0
          %547 = vst [vmem:[#allocation3 + $0x28] sm:$0x3] 0.0
          %548 = vst [vmem:[#allocation3 + $0x30] sm:$0xff] 0.0
          %549 = vst [vmem:[#allocation3 + $0x38] sm:$0xff] 0.0
          %550 = vst [vmem:[#allocation3 + $0x40] sm:$0x3] 0.0
          %551 = vst [vmem:[#allocation3 + $0x48] sm:$0xff] 0.0
          %552 = vst [vmem:[#allocation3 + $0x50] sm:$0xff] 0.0
          %553 = vst [vmem:[#allocation3 + $0x58] sm:$0x3] 0.0
          %554 = vst [vmem:[#allocation3 + $0x60] sm:$0xff] 0.0
          %555 = vst [vmem:[#allocation3 + $0x68] sm:$0xff] 0.0
          %556 = vst [vmem:[#allocation3 + $0x70] sm:$0x3] 0.0
          %557 = vst [vmem:[#allocation3 + $0x78] sm:$0xff] 0.0
          %558 = vst [vmem:[#allocation3 + $0x80] sm:$0xff] 0.0
          %559 = vst [vmem:[#allocation3 + $0x88] sm:$0x3] 0.0
          %560 = vst [vmem:[#allocation3 + $0x90] sm:$0xff] 0.0
          %561 = vst [vmem:[#allocation3 + $0x98] sm:$0xff] 0.0
          %562 = vst [vmem:[#allocation3 + $0xa0] sm:$0x3] 0.0
          %563 = vst [vmem:[#allocation3 + $0xa8] sm:$0xff] 0.0
          %564 = vst [vmem:[#allocation3 + $0xb0] sm:$0xff] 0.0
          %565 = vst [vmem:[#allocation3 + $0xb8] sm:$0x3] 0.0
          %566 = vst [vmem:[#allocation3 + $0xc0] sm:$0xff] 0.0
          %567 = vst [vmem:[#allocation3 + $0xc8] sm:$0xff] 0.0
          %568 = vst [vmem:[#allocation3 + $0xd0] sm:$0x3] 0.0
          %569 = vst [vmem:[#allocation3 + $0xd8] sm:$0xff] 0.0
          %570 = vst [vmem:[#allocation3 + $0xe0] sm:$0xff] 0.0
          %571 = vst [vmem:[#allocation3 + $0xe8] sm:$0x3] 0.0
          %572 = vst [vmem:[#allocation3 + $0xf0] sm:$0xff] 0.0
          %573 = vst [vmem:[#allocation3 + $0xf8] sm:$0xff] 0.0
          %574 = vst [vmem:[#allocation3 + $0x100] sm:$0x3] 0.0
          %575 = vst [vmem:[#allocation3 + $0x108] sm:$0xff] 0.0
          %576 = vst [vmem:[#allocation3 + $0x110] sm:$0xff] 0.0
          %577 = vst [vmem:[#allocation3 + $0x118] sm:$0x3] 0.0
          %578 = vst [vmem:[#allocation3 + $0x120] sm:$0xff] 0.0
          %579 = vst [vmem:[#allocation3 + $0x128] sm:$0xff] 0.0
          %580 = vst [vmem:[#allocation3 + $0x130] sm:$0x3] 0.0
          %581 = vst [vmem:[#allocation3 + $0x138] sm:$0xff] 0.0
          %582 = vst [vmem:[#allocation3 + $0x140] sm:$0xff] 0.0
          %583 = vst [vmem:[#allocation3 + $0x148] sm:$0x3] 0.0
          %584 = vst [vmem:[#allocation3 + $0x150] sm:$0xff] 0.0
          %585 = vst [vmem:[#allocation3 + $0x158] sm:$0xff] 0.0
          %586 = vst [vmem:[#allocation3 + $0x160] sm:$0x3] 0.0
          %587 = vst [vmem:[#allocation3 + $0x168] sm:$0xff] 0.0
          %588 = vst [vmem:[#allocation3 + $0x170] sm:$0xff] 0.0
          %589 = vst [vmem:[#allocation3 + $0x178] sm:$0x3] 0.0
          %590 = vst [vmem:[#allocation3 + $0x180] sm:$0xff] 0.0
          %591 = vst [vmem:[#allocation3 + $0x188] sm:$0xff] 0.0
          %592 = vst [vmem:[#allocation3 + $0x190] sm:$0x3] 0.0
          %593 = vst [vmem:[#allocation3 + $0x198] sm:$0xff] 0.0
          %594 = vst [vmem:[#allocation3 + $0x1a0] sm:$0xff] 0.0
          %595 = vst [vmem:[#allocation3 + $0x1a8] sm:$0x3] 0.0
          %v596 = vld [vmem:[%s387] sm:$0xf]
          %v597 = vld [vmem:[%s387 + $0x4] sm:$0xf]
          %v598 = vld [vmem:[%s387 + $0x8] sm:$0xf]
          %v599 = vld [vmem:[%s387 + $0xc] sm:$0xf]
          %v600 = vld [vmem:[%s387 + $0x10] sm:$0xf]
          %v601 = vld [vmem:[%s387 + $0x14] sm:$0xf]
          %v602 = vld [vmem:[%s387 + $0x18] sm:$0xf]
          %v603 = vld [vmem:[%s387 + $0x1c] sm:$0xf]
          %v604 = vld [vmem:[%s387 + $0x20] sm:$0xf]
          %v605 = vld [vmem:[%s387 + $0x24] sm:$0xf]
          %v606 = vld [vmem:[%s387 + $0x28] sm:$0xf]
          %v607 = vld [vmem:[%s387 + $0x2c] sm:$0xf]
          %v608 = vld [vmem:[%s387 + $0x30] sm:$0xf]
          %v609 = vld [vmem:[%s387 + $0x34] sm:$0xf]
          %v610 = vld [vmem:[%s387 + $0x38] sm:$0xf]
          %v611 = vld [vmem:[%s387 + $0x3c] sm:$0xf]
          %v612 = vld [vmem:[%s387 + $0x40] sm:$0xf]
          %v613 = vld [vmem:[%s387 + $0x44] sm:$0xf]
          %v614 = vld [vmem:[%s387 + $0x48] sm:$0xf]
          %v615 = vld [vmem:[%s387 + $0x4c] sm:$0xf]
          %v616 = vld [vmem:[%s387 + $0x50] sm:$0xf]
          %v617 = vld [vmem:[%s387 + $0x54] sm:$0xf]
          %v618 = vld [vmem:[%s387 + $0x58] sm:$0xf]
          %v619 = vld [vmem:[%s387 + $0x5c] sm:$0xf]
          %v620 = vld [vmem:[%s387 + $0x60] sm:$0xf]
          %v621 = vld [vmem:[%s387 + $0x64] sm:$0xf]
          %v622 = vld [vmem:[%s387 + $0x68] sm:$0xf]
          %v623 = vld [vmem:[%s387 + $0x6c] sm:$0xf]
          %v624 = vld [vmem:[%s387 + $0x70] sm:$0xf]
          %v625 = vld [vmem:[%s387 + $0x74] sm:$0xf]
          %v626 = vld [vmem:[%s387 + $0x78] sm:$0xf]
          %v627 = vld [vmem:[%s387 + $0x7c] sm:$0xf]
          %v628 = vunpack.c.l.bf16 %v596
          %v629 = vunpack.c.l.bf16 %v597
          %v630 = vunpack.c.l.bf16 %v598
          %v631 = vunpack.c.l.bf16 %v599
          %v632 = vunpack.c.l.bf16 %v600
          %v633 = vunpack.c.l.bf16 %v601
          %v634 = vunpack.c.l.bf16 %v602
          %v635 = vunpack.c.l.bf16 %v603
          %v636 = vunpack.c.l.bf16 %v604
          %v637 = vunpack.c.l.bf16 %v605
          %v638 = vunpack.c.l.bf16 %v606
          %v639 = vunpack.c.l.bf16 %v607
          %v640 = vunpack.c.l.bf16 %v608
          %v641 = vunpack.c.l.bf16 %v609
          %v642 = vunpack.c.l.bf16 %v610
          %v643 = vunpack.c.l.bf16 %v611
          %v644 = vunpack.c.l.bf16 %v612
          %v645 = vunpack.c.l.bf16 %v613
          %v646 = vunpack.c.l.bf16 %v614
          %v647 = vunpack.c.l.bf16 %v615
          %v648 = vunpack.c.l.bf16 %v616
          %v649 = vunpack.c.l.bf16 %v617
          %v650 = vunpack.c.l.bf16 %v618
          %v651 = vunpack.c.l.bf16 %v619
          %v652 = vunpack.c.l.bf16 %v620
          %v653 = vunpack.c.l.bf16 %v621
          %v654 = vunpack.c.l.bf16 %v622
          %v655 = vunpack.c.l.bf16 %v623
          %v656 = vunpack.c.l.bf16 %v624
          %v657 = vunpack.c.l.bf16 %v625
          %v658 = vunpack.c.l.bf16 %v626
          %v659 = vunpack.c.l.bf16 %v627
          %s660 = scalar_lea.vmem [#allocation2], 24
          %661 = vst [vmem:[%s660 + $0x1] sm:$0xff] %v628
          %662 = vst [vmem:[%s660 + $0x9] sm:$0xff] %v629
          %663 = vst [vmem:[%s660 + $0x19] sm:$0xff] %v630
          %664 = vst [vmem:[%s660 + $0x21] sm:$0xff] %v631
          %665 = vst [vmem:[%s660 + $0x31] sm:$0xff] %v632
          %666 = vst [vmem:[%s660 + $0x39] sm:$0xff] %v633
          %667 = vst [vmem:[%s660 + $0x49] sm:$0xff] %v634
          %668 = vst [vmem:[%s660 + $0x51] sm:$0xff] %v635
          %669 = vst [vmem:[%s660 + $0x61] sm:$0xff] %v636
          %670 = vst [vmem:[%s660 + $0x69] sm:$0xff] %v637
          %671 = vst [vmem:[%s660 + $0x79] sm:$0xff] %v638
          %672 = vst [vmem:[%s660 + $0x81] sm:$0xff] %v639
          %673 = vst [vmem:[%s660 + $0x91] sm:$0xff] %v640
          %674 = vst [vmem:[%s660 + $0x99] sm:$0xff] %v641
          %675 = vst [vmem:[%s660 + $0xa9] sm:$0xff] %v642
          %676 = vst [vmem:[%s660 + $0xb1] sm:$0xff] %v643
          %677 = vst [vmem:[%s660 + $0xc1] sm:$0xff] %v644
          %678 = vst [vmem:[%s660 + $0xc9] sm:$0xff] %v645
          %679 = vst [vmem:[%s660 + $0xd9] sm:$0xff] %v646
          %680 = vst [vmem:[%s660 + $0xe1] sm:$0xff] %v647
          %681 = vst [vmem:[%s660 + $0xf1] sm:$0xff] %v648
          %682 = vst [vmem:[%s660 + $0xf9] sm:$0xff] %v649
          %683 = vst [vmem:[%s660 + $0x109] sm:$0xff] %v650
          %684 = vst [vmem:[%s660 + $0x111] sm:$0xff] %v651
          %685 = vst [vmem:[%s660 + $0x121] sm:$0xff] %v652
          %686 = vst [vmem:[%s660 + $0x129] sm:$0xff] %v653
          %687 = vst [vmem:[%s660 + $0x139] sm:$0xff] %v654
          %688 = vst [vmem:[%s660 + $0x141] sm:$0xff] %v655
          %689 = vst [vmem:[%s660 + $0x151] sm:$0xff] %v656
          %690 = vst [vmem:[%s660 + $0x159] sm:$0xff] %v657
          %691 = vst [vmem:[%s660 + $0x169] sm:$0xff] %v658
          %692 = vst [vmem:[%s660 + $0x171] sm:$0xff] %v659
        $region76: #{tpu_custom_call.1} parent=47 // pred_fallthru
          _
        %s693 = scalar_lea.vmem [#allocation2], 24
        %v694 = vld [vmem:[%s693 + $0x1] sm:$0xff]
        %v695 = vld [vmem:[%s693 + $0x9] sm:$0xff]
        %v696 = vld [vmem:[%s693 + $0x19] sm:$0xff]
        %v697 = vld [vmem:[%s693 + $0x21] sm:$0xff]
        %v698 = vld [vmem:[%s693 + $0x31] sm:$0xff]
        %v699 = vld [vmem:[%s693 + $0x39] sm:$0xff]
        %v700 = vld [vmem:[%s693 + $0x49] sm:$0xff]
        %v701 = vld [vmem:[%s693 + $0x51] sm:$0xff]
        %v702 = vld [vmem:[%s693 + $0x61] sm:$0xff]
        %v703 = vld [vmem:[%s693 + $0x69] sm:$0xff]
        %v704 = vld [vmem:[%s693 + $0x79] sm:$0xff]
        %v705 = vld [vmem:[%s693 + $0x81] sm:$0xff]
        %v706 = vld [vmem:[%s693 + $0x91] sm:$0xff]
        %v707 = vld [vmem:[%s693 + $0x99] sm:$0xff]
        %v708 = vld [vmem:[%s693 + $0xa9] sm:$0xff]
        %v709 = vld [vmem:[%s693 + $0xb1] sm:$0xff]
        %v710 = vld [vmem:[%s693 + $0xc1] sm:$0xff]
        %v711 = vld [vmem:[%s693 + $0xc9] sm:$0xff]
        %v712 = vld [vmem:[%s693 + $0xd9] sm:$0xff]
        %v713 = vld [vmem:[%s693 + $0xe1] sm:$0xff]
        %v714 = vld [vmem:[%s693 + $0xf1] sm:$0xff]
        %v715 = vld [vmem:[%s693 + $0xf9] sm:$0xff]
        %v716 = vld [vmem:[%s693 + $0x109] sm:$0xff]
        %v717 = vld [vmem:[%s693 + $0x111] sm:$0xff]
        %v718 = vld [vmem:[%s693 + $0x121] sm:$0xff]
        %v719 = vld [vmem:[%s693 + $0x129] sm:$0xff]
        %v720 = vld [vmem:[%s693 + $0x139] sm:$0xff]
        %v721 = vld [vmem:[%s693 + $0x141] sm:$0xff]
        %v722 = vld [vmem:[%s693 + $0x151] sm:$0xff]
        %v723 = vld [vmem:[%s693 + $0x159] sm:$0xff]
        %v724 = vld [vmem:[%s693 + $0x169] sm:$0xff]
        %v725 = vld [vmem:[%s693 + $0x171] sm:$0xff]
        %v726 = vld [vmem:[%s407] sm:$0x3]
        %v727 = vld [vmem:[#allocation2] sm:$0xff]
        %v728 = vld [vmem:[#allocation2 + $0x8] sm:$0xff]
        %v729 = vld [vmem:[#allocation2 + $0x18] sm:$0xff]
        %v730 = vld [vmem:[#allocation2 + $0x20] sm:$0xff]
        %v731 = vld [vmem:[#allocation2 + $0x30] sm:$0xff]
        %v732 = vld [vmem:[#allocation2 + $0x38] sm:$0xff]
        %v733 = vld [vmem:[#allocation2 + $0x48] sm:$0xff]
        %v734 = vld [vmem:[#allocation2 + $0x50] sm:$0xff]
        %v735 = vld [vmem:[#allocation2 + $0x60] sm:$0xff]
        %v736 = vld [vmem:[#allocation2 + $0x68] sm:$0xff]
        %v737 = vld [vmem:[#allocation2 + $0x78] sm:$0xff]
        %v738 = vld [vmem:[#allocation2 + $0x80] sm:$0xff]
        %v739 = vld [vmem:[#allocation2 + $0x90] sm:$0xff]
        %v740 = vld [vmem:[#allocation2 + $0x98] sm:$0xff]
        %v741 = vld [vmem:[#allocation2 + $0xa8] sm:$0xff]
        %v742 = vld [vmem:[#allocation2 + $0xb0] sm:$0xff]
        %v743 = vld [vmem:[#allocation2 + $0xc0] sm:$0xff]
        %v744 = vld [vmem:[#allocation2 + $0xc8] sm:$0xff]
        %v745 = vld [vmem:[#allocation2 + $0xd8] sm:$0xff]
        %v746 = vld [vmem:[#allocation2 + $0xe0] sm:$0xff]
        %v747 = vld [vmem:[#allocation2 + $0xf0] sm:$0xff]
        %v748 = vld [vmem:[#allocation2 + $0xf8] sm:$0xff]
        %v749 = vld [vmem:[#allocation2 + $0x108] sm:$0xff]
        %v750 = vld [vmem:[#allocation2 + $0x110] sm:$0xff]
        %v751 = vld [vmem:[#allocation2 + $0x120] sm:$0xff]
        %v752 = vld [vmem:[#allocation2 + $0x128] sm:$0xff]
        %v753 = vld [vmem:[#allocation2 + $0x138] sm:$0xff]
        %v754 = vld [vmem:[#allocation2 + $0x140] sm:$0xff]
        %v755 = vld [vmem:[#allocation2 + $0x150] sm:$0xff]
        %v756 = vld [vmem:[#allocation2 + $0x158] sm:$0xff]
        %v757 = vld [vmem:[#allocation2 + $0x168] sm:$0xff]
        %v758 = vld [vmem:[#allocation2 + $0x170] sm:$0xff]
        %v759 = vpack.c.bf16 %v727, %v727
        %v760 = vpack.c.bf16 %v728, %v728
        %v761 = vpack.c.bf16 %v729, %v729
        %v762 = vpack.c.bf16 %v730, %v730
        %v763 = vpack.c.bf16 %v731, %v731
        %v764 = vpack.c.bf16 %v732, %v732
        %v765 = vpack.c.bf16 %v733, %v733
        %v766 = vpack.c.bf16 %v734, %v734
        %v767 = vpack.c.bf16 %v735, %v735
        %v768 = vpack.c.bf16 %v736, %v736
        %v769 = vpack.c.bf16 %v737, %v737
        %v770 = vpack.c.bf16 %v738, %v738
        %v771 = vpack.c.bf16 %v739, %v739
        %v772 = vpack.c.bf16 %v740, %v740
        %v773 = vpack.c.bf16 %v741, %v741
        %v774 = vpack.c.bf16 %v742, %v742
        %v775 = vpack.c.bf16 %v743, %v743
        %v776 = vpack.c.bf16 %v744, %v744
        %v777 = vpack.c.bf16 %v745, %v745
        %v778 = vpack.c.bf16 %v746, %v746
        %v779 = vpack.c.bf16 %v747, %v747
        %v780 = vpack.c.bf16 %v748, %v748
        %v781 = vpack.c.bf16 %v749, %v749
        %v782 = vpack.c.bf16 %v750, %v750
        %v783 = vpack.c.bf16 %v751, %v751
        %v784 = vpack.c.bf16 %v752, %v752
        %v785 = vpack.c.bf16 %v753, %v753
        %v786 = vpack.c.bf16 %v754, %v754
        %v787 = vpack.c.bf16 %v755, %v755
        %v788 = vpack.c.bf16 %v756, %v756
        %v789 = vpack.c.bf16 %v757, %v757
        %v790 = vpack.c.bf16 %v758, %v758
        %v791 = vld [vmem:[#allocation2 + $0x1] sm:$0xff]
        %v792 = vld [vmem:[#allocation2 + $0x9] sm:$0xff]
        %v793 = vld [vmem:[#allocation2 + $0x19] sm:$0xff]
        %v794 = vld [vmem:[#allocation2 + $0x21] sm:$0xff]
        %v795 = vld [vmem:[#allocation2 + $0x31] sm:$0xff]
        %v796 = vld [vmem:[#allocation2 + $0x39] sm:$0xff]
        %v797 = vld [vmem:[#allocation2 + $0x49] sm:$0xff]
        %v798 = vld [vmem:[#allocation2 + $0x51] sm:$0xff]
        %v799 = vld [vmem:[#allocation2 + $0x61] sm:$0xff]
        %v800 = vld [vmem:[#allocation2 + $0x69] sm:$0xff]
        %v801 = vld [vmem:[#allocation2 + $0x79] sm:$0xff]
        %v802 = vld [vmem:[#allocation2 + $0x81] sm:$0xff]
        %v803 = vld [vmem:[#allocation2 + $0x91] sm:$0xff]
        %v804 = vld [vmem:[#allocation2 + $0x99] sm:$0xff]
        %v805 = vld [vmem:[#allocation2 + $0xa9] sm:$0xff]
        %v806 = vld [vmem:[#allocation2 + $0xb1] sm:$0xff]
        %v807 = vld [vmem:[#allocation2 + $0xc1] sm:$0xff]
        %v808 = vld [vmem:[#allocation2 + $0xc9] sm:$0xff]
        %v809 = vld [vmem:[#allocation2 + $0xd9] sm:$0xff]
        %v810 = vld [vmem:[#allocation2 + $0xe1] sm:$0xff]
        %v811 = vld [vmem:[#allocation2 + $0xf1] sm:$0xff]
        %v812 = vld [vmem:[#allocation2 + $0xf9] sm:$0xff]
        %v813 = vld [vmem:[#allocation2 + $0x109] sm:$0xff]
        %v814 = vld [vmem:[#allocation2 + $0x111] sm:$0xff]
        %v815 = vld [vmem:[#allocation2 + $0x121] sm:$0xff]
        %v816 = vld [vmem:[#allocation2 + $0x129] sm:$0xff]
        %v817 = vld [vmem:[#allocation2 + $0x139] sm:$0xff]
        %v818 = vld [vmem:[#allocation2 + $0x141] sm:$0xff]
        %v819 = vld [vmem:[#allocation2 + $0x151] sm:$0xff]
        %v820 = vld [vmem:[#allocation2 + $0x159] sm:$0xff]
        %v821 = vld [vmem:[#allocation2 + $0x169] sm:$0xff]
        %v822 = vld [vmem:[#allocation2 + $0x171] sm:$0xff]
        %v823 = vpack.c.bf16 %v791, %v791
        %v824 = vpack.c.bf16 %v792, %v792
        %v825 = vpack.c.bf16 %v793, %v793
        %v826 = vpack.c.bf16 %v794, %v794
        %v827 = vpack.c.bf16 %v795, %v795
        %v828 = vpack.c.bf16 %v796, %v796
        %v829 = vpack.c.bf16 %v797, %v797
        %v830 = vpack.c.bf16 %v798, %v798
        %v831 = vpack.c.bf16 %v799, %v799
        %v832 = vpack.c.bf16 %v800, %v800
        %v833 = vpack.c.bf16 %v801, %v801
        %v834 = vpack.c.bf16 %v802, %v802
        %v835 = vpack.c.bf16 %v803, %v803
        %v836 = vpack.c.bf16 %v804, %v804
        %v837 = vpack.c.bf16 %v805, %v805
        %v838 = vpack.c.bf16 %v806, %v806
        %v839 = vpack.c.bf16 %v807, %v807
        %v840 = vpack.c.bf16 %v808, %v808
        %v841 = vpack.c.bf16 %v809, %v809
        %v842 = vpack.c.bf16 %v810, %v810
        %v843 = vpack.c.bf16 %v811, %v811
        %v844 = vpack.c.bf16 %v812, %v812
        %v845 = vpack.c.bf16 %v813, %v813
        %v846 = vpack.c.bf16 %v814, %v814
        %v847 = vpack.c.bf16 %v815, %v815
        %v848 = vpack.c.bf16 %v816, %v816
        %v849 = vpack.c.bf16 %v817, %v817
        %v850 = vpack.c.bf16 %v818, %v818
        %v851 = vpack.c.bf16 %v819, %v819
        %v852 = vpack.c.bf16 %v820, %v820
        %v853 = vpack.c.bf16 %v821, %v821
        %v854 = vpack.c.bf16 %v822, %v822
        %v855 = vld [vmem:[#allocation2 + $0x2] sm:$0xff]
        %v856 = vld [vmem:[#allocation2 + $0xa] sm:$0xff]
        %v857 = vld [vmem:[#allocation2 + $0x1a] sm:$0xff]
        %v858 = vld [vmem:[#allocation2 + $0x22] sm:$0xff]
        %v859 = vld [vmem:[#allocation2 + $0x32] sm:$0xff]
        %v860 = vld [vmem:[#allocation2 + $0x3a] sm:$0xff]
        %v861 = vld [vmem:[#allocation2 + $0x4a] sm:$0xff]
        %v862 = vld [vmem:[#allocation2 + $0x52] sm:$0xff]
        %v863 = vld [vmem:[#allocation2 + $0x62] sm:$0xff]
        %v864 = vld [vmem:[#allocation2 + $0x6a] sm:$0xff]
        %v865 = vld [vmem:[#allocation2 + $0x7a] sm:$0xff]
        %v866 = vld [vmem:[#allocation2 + $0x82] sm:$0xff]
        %v867 = vld [vmem:[#allocation2 + $0x92] sm:$0xff]
        %v868 = vld [vmem:[#allocation2 + $0x9a] sm:$0xff]
        %v869 = vld [vmem:[#allocation2 + $0xaa] sm:$0xff]
        %v870 = vld [vmem:[#allocation2 + $0xb2] sm:$0xff]
        %v871 = vld [vmem:[#allocation2 + $0xc2] sm:$0xff]
        %v872 = vld [vmem:[#allocation2 + $0xca] sm:$0xff]
        %v873 = vld [vmem:[#allocation2 + $0xda] sm:$0xff]
        %v874 = vld [vmem:[#allocation2 + $0xe2] sm:$0xff]
        %v875 = vld [vmem:[#allocation2 + $0xf2] sm:$0xff]
        %v876 = vld [vmem:[#allocation2 + $0xfa] sm:$0xff]
        %v877 = vld [vmem:[#allocation2 + $0x10a] sm:$0xff]
        %v878 = vld [vmem:[#allocation2 + $0x112] sm:$0xff]
        %v879 = vld [vmem:[#allocation2 + $0x122] sm:$0xff]
        %v880 = vld [vmem:[#allocation2 + $0x12a] sm:$0xff]
        %v881 = vld [vmem:[#allocation2 + $0x13a] sm:$0xff]
        %v882 = vld [vmem:[#allocation2 + $0x142] sm:$0xff]
        %v883 = vld [vmem:[#allocation2 + $0x152] sm:$0xff]
        %v884 = vld [vmem:[#allocation2 + $0x15a] sm:$0xff]
        %v885 = vld [vmem:[#allocation2 + $0x16a] sm:$0xff]
        %v886 = vld [vmem:[#allocation2 + $0x172] sm:$0xff]
        %v887 = vpack.c.bf16 %v855, %v855
        %v888 = vpack.c.bf16 %v856, %v856
        %v889 = vpack.c.bf16 %v857, %v857
        %v890 = vpack.c.bf16 %v858, %v858
        %v891 = vpack.c.bf16 %v859, %v859
        %v892 = vpack.c.bf16 %v860, %v860
        %v893 = vpack.c.bf16 %v861, %v861
        %v894 = vpack.c.bf16 %v862, %v862
        %v895 = vpack.c.bf16 %v863, %v863
        %v896 = vpack.c.bf16 %v864, %v864
        %v897 = vpack.c.bf16 %v865, %v865
        %v898 = vpack.c.bf16 %v866, %v866
        %v899 = vpack.c.bf16 %v867, %v867
        %v900 = vpack.c.bf16 %v868, %v868
        %v901 = vpack.c.bf16 %v869, %v869
        %v902 = vpack.c.bf16 %v870, %v870
        %v903 = vpack.c.bf16 %v871, %v871
        %v904 = vpack.c.bf16 %v872, %v872
        %v905 = vpack.c.bf16 %v873, %v873
        %v906 = vpack.c.bf16 %v874, %v874
        %v907 = vpack.c.bf16 %v875, %v875
        %v908 = vpack.c.bf16 %v876, %v876
        %v909 = vpack.c.bf16 %v877, %v877
        %v910 = vpack.c.bf16 %v878, %v878
        %v911 = vpack.c.bf16 %v879, %v879
        %v912 = vpack.c.bf16 %v880, %v880
        %v913 = vpack.c.bf16 %v881, %v881
        %v914 = vpack.c.bf16 %v882, %v882
        %v915 = vpack.c.bf16 %v883, %v883
        %v916 = vpack.c.bf16 %v884, %v884
        %v917 = vpack.c.bf16 %v885, %v885
        %v918 = vpack.c.bf16 %v886, %v886
        %v919 = vld [vmem:[%s693] sm:$0xff]
        %v920 = vld [vmem:[%s693 + $0x8] sm:$0xff]
        %v921 = vld [vmem:[%s693 + $0x18] sm:$0xff]
        %v922 = vld [vmem:[%s693 + $0x20] sm:$0xff]
        %v923 = vld [vmem:[%s693 + $0x30] sm:$0xff]
        %v924 = vld [vmem:[%s693 + $0x38] sm:$0xff]
        %v925 = vld [vmem:[%s693 + $0x48] sm:$0xff]
        %v926 = vld [vmem:[%s693 + $0x50] sm:$0xff]
        %v927 = vld [vmem:[%s693 + $0x60] sm:$0xff]
        %v928 = vld [vmem:[%s693 + $0x68] sm:$0xff]
        %v929 = vld [vmem:[%s693 + $0x78] sm:$0xff]
        %v930 = vld [vmem:[%s693 + $0x80] sm:$0xff]
        %v931 = vld [vmem:[%s693 + $0x90] sm:$0xff]
        %v932 = vld [vmem:[%s693 + $0x98] sm:$0xff]
        %v933 = vld [vmem:[%s693 + $0xa8] sm:$0xff]
        %v934 = vld [vmem:[%s693 + $0xb0] sm:$0xff]
        %v935 = vld [vmem:[%s693 + $0xc0] sm:$0xff]
        %v936 = vld [vmem:[%s693 + $0xc8] sm:$0xff]
        %v937 = vld [vmem:[%s693 + $0xd8] sm:$0xff]
        %v938 = vld [vmem:[%s693 + $0xe0] sm:$0xff]
        %v939 = vld [vmem:[%s693 + $0xf0] sm:$0xff]
        %v940 = vld [vmem:[%s693 + $0xf8] sm:$0xff]
        %v941 = vld [vmem:[%s693 + $0x108] sm:$0xff]
        %v942 = vld [vmem:[%s693 + $0x110] sm:$0xff]
        %v943 = vld [vmem:[%s693 + $0x120] sm:$0xff]
        %v944 = vld [vmem:[%s693 + $0x128] sm:$0xff]
        %v945 = vld [vmem:[%s693 + $0x138] sm:$0xff]
        %v946 = vld [vmem:[%s693 + $0x140] sm:$0xff]
        %v947 = vld [vmem:[%s693 + $0x150] sm:$0xff]
        %v948 = vld [vmem:[%s693 + $0x158] sm:$0xff]
        %v949 = vld [vmem:[%s693 + $0x168] sm:$0xff]
        %v950 = vld [vmem:[%s693 + $0x170] sm:$0xff]
        %v951 = vpack.c.bf16 %v919, %v919
        %v952 = vpack.c.bf16 %v920, %v920
        %v953 = vpack.c.bf16 %v921, %v921
        %v954 = vpack.c.bf16 %v922, %v922
        %v955 = vpack.c.bf16 %v923, %v923
        %v956 = vpack.c.bf16 %v924, %v924
        %v957 = vpack.c.bf16 %v925, %v925
        %v958 = vpack.c.bf16 %v926, %v926
        %v959 = vpack.c.bf16 %v927, %v927
        %v960 = vpack.c.bf16 %v928, %v928
        %v961 = vpack.c.bf16 %v929, %v929
        %v962 = vpack.c.bf16 %v930, %v930
        %v963 = vpack.c.bf16 %v931, %v931
        %v964 = vpack.c.bf16 %v932, %v932
        %v965 = vpack.c.bf16 %v933, %v933
        %v966 = vpack.c.bf16 %v934, %v934
        %v967 = vpack.c.bf16 %v935, %v935
        %v968 = vpack.c.bf16 %v936, %v936
        %v969 = vpack.c.bf16 %v937, %v937
        %v970 = vpack.c.bf16 %v938, %v938
        %v971 = vpack.c.bf16 %v939, %v939
        %v972 = vpack.c.bf16 %v940, %v940
        %v973 = vpack.c.bf16 %v941, %v941
        %v974 = vpack.c.bf16 %v942, %v942
        %v975 = vpack.c.bf16 %v943, %v943
        %v976 = vpack.c.bf16 %v944, %v944
        %v977 = vpack.c.bf16 %v945, %v945
        %v978 = vpack.c.bf16 %v946, %v946
        %v979 = vpack.c.bf16 %v947, %v947
        %v980 = vpack.c.bf16 %v948, %v948
        %v981 = vpack.c.bf16 %v949, %v949
        %v982 = vpack.c.bf16 %v950, %v950
        %v983 = vpack.c.bf16 %v694, %v694
        %v984 = vpack.c.bf16 %v695, %v695
        %v985 = vpack.c.bf16 %v696, %v696
        %v986 = vpack.c.bf16 %v697, %v697
        %v987 = vpack.c.bf16 %v698, %v698
        %v988 = vpack.c.bf16 %v699, %v699
        %v989 = vpack.c.bf16 %v700, %v700
        %v990 = vpack.c.bf16 %v701, %v701
        %v991 = vpack.c.bf16 %v702, %v702
        %v992 = vpack.c.bf16 %v703, %v703
        %v993 = vpack.c.bf16 %v704, %v704
        %v994 = vpack.c.bf16 %v705, %v705
        %v995 = vpack.c.bf16 %v706, %v706
        %v996 = vpack.c.bf16 %v707, %v707
        %v997 = vpack.c.bf16 %v708, %v708
        %v998 = vpack.c.bf16 %v709, %v709
        %v999 = vpack.c.bf16 %v710, %v710
        %v1000 = vpack.c.bf16 %v711, %v711
        %v1001 = vpack.c.bf16 %v712, %v712
        %v1002 = vpack.c.bf16 %v713, %v713
        %v1003 = vpack.c.bf16 %v714, %v714
        %v1004 = vpack.c.bf16 %v715, %v715
        %v1005 = vpack.c.bf16 %v716, %v716
        %v1006 = vpack.c.bf16 %v717, %v717
        %v1007 = vpack.c.bf16 %v718, %v718
        %v1008 = vpack.c.bf16 %v719, %v719
        %v1009 = vpack.c.bf16 %v720, %v720
        %v1010 = vpack.c.bf16 %v721, %v721
        %v1011 = vpack.c.bf16 %v722, %v722
        %v1012 = vpack.c.bf16 %v723, %v723
        %v1013 = vpack.c.bf16 %v724, %v724
        %v1014 = vpack.c.bf16 %v725, %v725
        %v1015 = vld [vmem:[%s693 + $0x2] sm:$0xff]
        %v1016 = vld [vmem:[%s693 + $0xa] sm:$0xff]
        %v1017 = vld [vmem:[%s693 + $0x1a] sm:$0xff]
        %v1018 = vld [vmem:[%s693 + $0x22] sm:$0xff]
        %v1019 = vld [vmem:[%s693 + $0x32] sm:$0xff]
        %v1020 = vld [vmem:[%s693 + $0x3a] sm:$0xff]
        %v1021 = vld [vmem:[%s693 + $0x4a] sm:$0xff]
        %v1022 = vld [vmem:[%s693 + $0x52] sm:$0xff]
        %v1023 = vld [vmem:[%s693 + $0x62] sm:$0xff]
        %v1024 = vld [vmem:[%s693 + $0x6a] sm:$0xff]
        %v1025 = vld [vmem:[%s693 + $0x7a] sm:$0xff]
        %v1026 = vld [vmem:[%s693 + $0x82] sm:$0xff]
        %v1027 = vld [vmem:[%s693 + $0x92] sm:$0xff]
        %v1028 = vld [vmem:[%s693 + $0x9a] sm:$0xff]
        %v1029 = vld [vmem:[%s693 + $0xaa] sm:$0xff]
        %v1030 = vld [vmem:[%s693 + $0xb2] sm:$0xff]
        %v1031 = vld [vmem:[%s693 + $0xc2] sm:$0xff]
        %v1032 = vld [vmem:[%s693 + $0xca] sm:$0xff]
        %v1033 = vld [vmem:[%s693 + $0xda] sm:$0xff]
        %v1034 = vld [vmem:[%s693 + $0xe2] sm:$0xff]
        %v1035 = vld [vmem:[%s693 + $0xf2] sm:$0xff]
        %v1036 = vld [vmem:[%s693 + $0xfa] sm:$0xff]
        %v1037 = vld [vmem:[%s693 + $0x10a] sm:$0xff]
        %v1038 = vld [vmem:[%s693 + $0x112] sm:$0xff]
        %v1039 = vld [vmem:[%s693 + $0x122] sm:$0xff]
        %v1040 = vld [vmem:[%s693 + $0x12a] sm:$0xff]
        %v1041 = vld [vmem:[%s693 + $0x13a] sm:$0xff]
        %v1042 = vld [vmem:[%s693 + $0x142] sm:$0xff]
        %v1043 = vld [vmem:[%s693 + $0x152] sm:$0xff]
        %v1044 = vld [vmem:[%s693 + $0x15a] sm:$0xff]
        %v1045 = vld [vmem:[%s693 + $0x16a] sm:$0xff]
        %v1046 = vld [vmem:[%s693 + $0x172] sm:$0xff]
        %v1047 = vpack.c.bf16 %v1015, %v1015
        %v1048 = vpack.c.bf16 %v1016, %v1016
        %v1049 = vpack.c.bf16 %v1017, %v1017
        %v1050 = vpack.c.bf16 %v1018, %v1018
        %v1051 = vpack.c.bf16 %v1019, %v1019
        %v1052 = vpack.c.bf16 %v1020, %v1020
        %v1053 = vpack.c.bf16 %v1021, %v1021
        %v1054 = vpack.c.bf16 %v1022, %v1022
        %v1055 = vpack.c.bf16 %v1023, %v1023
        %v1056 = vpack.c.bf16 %v1024, %v1024
        %v1057 = vpack.c.bf16 %v1025, %v1025
        %v1058 = vpack.c.bf16 %v1026, %v1026
        %v1059 = vpack.c.bf16 %v1027, %v1027
        %v1060 = vpack.c.bf16 %v1028, %v1028
        %v1061 = vpack.c.bf16 %v1029, %v1029
        %v1062 = vpack.c.bf16 %v1030, %v1030
        %v1063 = vpack.c.bf16 %v1031, %v1031
        %v1064 = vpack.c.bf16 %v1032, %v1032
        %v1065 = vpack.c.bf16 %v1033, %v1033
        %v1066 = vpack.c.bf16 %v1034, %v1034
        %v1067 = vpack.c.bf16 %v1035, %v1035
        %v1068 = vpack.c.bf16 %v1036, %v1036
        %v1069 = vpack.c.bf16 %v1037, %v1037
        %v1070 = vpack.c.bf16 %v1038, %v1038
        %v1071 = vpack.c.bf16 %v1039, %v1039
        %v1072 = vpack.c.bf16 %v1040, %v1040
        %v1073 = vpack.c.bf16 %v1041, %v1041
        %v1074 = vpack.c.bf16 %v1042, %v1042
        %v1075 = vpack.c.bf16 %v1043, %v1043
        %v1076 = vpack.c.bf16 %v1044, %v1044
        %v1077 = vpack.c.bf16 %v1045, %v1045
        %v1078 = vpack.c.bf16 %v1046, %v1046
        %s1079 = scalar_lea.vmem [#allocation2], 48
        %v1080 = vld [vmem:[%s1079] sm:$0xff]
        %v1081 = vld [vmem:[%s1079 + $0x8] sm:$0xff]
        %v1082 = vld [vmem:[%s1079 + $0x18] sm:$0xff]
        %v1083 = vld [vmem:[%s1079 + $0x20] sm:$0xff]
        %v1084 = vld [vmem:[%s1079 + $0x30] sm:$0xff]
        %v1085 = vld [vmem:[%s1079 + $0x38] sm:$0xff]
        %v1086 = vld [vmem:[%s1079 + $0x48] sm:$0xff]
        %v1087 = vld [vmem:[%s1079 + $0x50] sm:$0xff]
        %v1088 = vld [vmem:[%s1079 + $0x60] sm:$0xff]
        %v1089 = vld [vmem:[%s1079 + $0x68] sm:$0xff]
        %v1090 = vld [vmem:[%s1079 + $0x78] sm:$0xff]
        %v1091 = vld [vmem:[%s1079 + $0x80] sm:$0xff]
        %v1092 = vld [vmem:[%s1079 + $0x90] sm:$0xff]
        %v1093 = vld [vmem:[%s1079 + $0x98] sm:$0xff]
        %v1094 = vld [vmem:[%s1079 + $0xa8] sm:$0xff]
        %v1095 = vld [vmem:[%s1079 + $0xb0] sm:$0xff]
        %v1096 = vld [vmem:[%s1079 + $0xc0] sm:$0xff]
        %v1097 = vld [vmem:[%s1079 + $0xc8] sm:$0xff]
        %v1098 = vld [vmem:[%s1079 + $0xd8] sm:$0xff]
        %v1099 = vld [vmem:[%s1079 + $0xe0] sm:$0xff]
        %v1100 = vld [vmem:[%s1079 + $0xf0] sm:$0xff]
        %v1101 = vld [vmem:[%s1079 + $0xf8] sm:$0xff]
        %v1102 = vld [vmem:[%s1079 + $0x108] sm:$0xff]
        %v1103 = vld [vmem:[%s1079 + $0x110] sm:$0xff]
        %v1104 = vld [vmem:[%s1079 + $0x120] sm:$0xff]
        %v1105 = vld [vmem:[%s1079 + $0x128] sm:$0xff]
        %v1106 = vld [vmem:[%s1079 + $0x138] sm:$0xff]
        %v1107 = vld [vmem:[%s1079 + $0x140] sm:$0xff]
        %v1108 = vld [vmem:[%s1079 + $0x150] sm:$0xff]
        %v1109 = vld [vmem:[%s1079 + $0x158] sm:$0xff]
        %v1110 = vld [vmem:[%s1079 + $0x168] sm:$0xff]
        %v1111 = vld [vmem:[%s1079 + $0x170] sm:$0xff]
        %v1112 = vpack.c.bf16 %v1080, %v1080
        %v1113 = vpack.c.bf16 %v1081, %v1081
        %v1114 = vpack.c.bf16 %v1082, %v1082
        %v1115 = vpack.c.bf16 %v1083, %v1083
        %v1116 = vpack.c.bf16 %v1084, %v1084
        %v1117 = vpack.c.bf16 %v1085, %v1085
        %v1118 = vpack.c.bf16 %v1086, %v1086
        %v1119 = vpack.c.bf16 %v1087, %v1087
        %v1120 = vpack.c.bf16 %v1088, %v1088
        %v1121 = vpack.c.bf16 %v1089, %v1089
        %v1122 = vpack.c.bf16 %v1090, %v1090
        %v1123 = vpack.c.bf16 %v1091, %v1091
        %v1124 = vpack.c.bf16 %v1092, %v1092
        %v1125 = vpack.c.bf16 %v1093, %v1093
        %v1126 = vpack.c.bf16 %v1094, %v1094
        %v1127 = vpack.c.bf16 %v1095, %v1095
        %v1128 = vpack.c.bf16 %v1096, %v1096
        %v1129 = vpack.c.bf16 %v1097, %v1097
        %v1130 = vpack.c.bf16 %v1098, %v1098
        %v1131 = vpack.c.bf16 %v1099, %v1099
        %v1132 = vpack.c.bf16 %v1100, %v1100
        %v1133 = vpack.c.bf16 %v1101, %v1101
        %v1134 = vpack.c.bf16 %v1102, %v1102
        %v1135 = vpack.c.bf16 %v1103, %v1103
        %v1136 = vpack.c.bf16 %v1104, %v1104
        %v1137 = vpack.c.bf16 %v1105, %v1105
        %v1138 = vpack.c.bf16 %v1106, %v1106
        %v1139 = vpack.c.bf16 %v1107, %v1107
        %v1140 = vpack.c.bf16 %v1108, %v1108
        %v1141 = vpack.c.bf16 %v1109, %v1109
        %v1142 = vpack.c.bf16 %v1110, %v1110
        %v1143 = vpack.c.bf16 %v1111, %v1111
        %v1144 = vld [vmem:[%s1079 + $0x1] sm:$0xff]
        %v1145 = vld [vmem:[%s1079 + $0x9] sm:$0xff]
        %v1146 = vld [vmem:[%s1079 + $0x19] sm:$0xff]
        %v1147 = vld [vmem:[%s1079 + $0x21] sm:$0xff]
        %v1148 = vld [vmem:[%s1079 + $0x31] sm:$0xff]
        %v1149 = vld [vmem:[%s1079 + $0x39] sm:$0xff]
        %v1150 = vld [vmem:[%s1079 + $0x49] sm:$0xff]
        %v1151 = vld [vmem:[%s1079 + $0x51] sm:$0xff]
        %v1152 = vld [vmem:[%s1079 + $0x61] sm:$0xff]
        %v1153 = vld [vmem:[%s1079 + $0x69] sm:$0xff]
        %v1154 = vld [vmem:[%s1079 + $0x79] sm:$0xff]
        %v1155 = vld [vmem:[%s1079 + $0x81] sm:$0xff]
        %v1156 = vld [vmem:[%s1079 + $0x91] sm:$0xff]
        %v1157 = vld [vmem:[%s1079 + $0x99] sm:$0xff]
        %v1158 = vld [vmem:[%s1079 + $0xa9] sm:$0xff]
        %v1159 = vld [vmem:[%s1079 + $0xb1] sm:$0xff]
        %v1160 = vld [vmem:[%s1079 + $0xc1] sm:$0xff]
        %v1161 = vld [vmem:[%s1079 + $0xc9] sm:$0xff]
        %v1162 = vld [vmem:[%s1079 + $0xd9] sm:$0xff]
        %v1163 = vld [vmem:[%s1079 + $0xe1] sm:$0xff]
        %v1164 = vld [vmem:[%s1079 + $0xf1] sm:$0xff]
        %v1165 = vld [vmem:[%s1079 + $0xf9] sm:$0xff]
        %v1166 = vld [vmem:[%s1079 + $0x109] sm:$0xff]
        %v1167 = vld [vmem:[%s1079 + $0x111] sm:$0xff]
        %v1168 = vld [vmem:[%s1079 + $0x121] sm:$0xff]
        %v1169 = vld [vmem:[%s1079 + $0x129] sm:$0xff]
        %v1170 = vld [vmem:[%s1079 + $0x139] sm:$0xff]
        %v1171 = vld [vmem:[%s1079 + $0x141] sm:$0xff]
        %v1172 = vld [vmem:[%s1079 + $0x151] sm:$0xff]
        %v1173 = vld [vmem:[%s1079 + $0x159] sm:$0xff]
        %v1174 = vld [vmem:[%s1079 + $0x169] sm:$0xff]
        %v1175 = vld [vmem:[%s1079 + $0x171] sm:$0xff]
        %v1176 = vpack.c.bf16 %v1144, %v1144
        %v1177 = vpack.c.bf16 %v1145, %v1145
        %v1178 = vpack.c.bf16 %v1146, %v1146
        %v1179 = vpack.c.bf16 %v1147, %v1147
        %v1180 = vpack.c.bf16 %v1148, %v1148
        %v1181 = vpack.c.bf16 %v1149, %v1149
        %v1182 = vpack.c.bf16 %v1150, %v1150
        %v1183 = vpack.c.bf16 %v1151, %v1151
        %v1184 = vpack.c.bf16 %v1152, %v1152
        %v1185 = vpack.c.bf16 %v1153, %v1153
        %v1186 = vpack.c.bf16 %v1154, %v1154
        %v1187 = vpack.c.bf16 %v1155, %v1155
        %v1188 = vpack.c.bf16 %v1156, %v1156
        %v1189 = vpack.c.bf16 %v1157, %v1157
        %v1190 = vpack.c.bf16 %v1158, %v1158
        %v1191 = vpack.c.bf16 %v1159, %v1159
        %v1192 = vpack.c.bf16 %v1160, %v1160
        %v1193 = vpack.c.bf16 %v1161, %v1161
        %v1194 = vpack.c.bf16 %v1162, %v1162
        %v1195 = vpack.c.bf16 %v1163, %v1163
        %v1196 = vpack.c.bf16 %v1164, %v1164
        %v1197 = vpack.c.bf16 %v1165, %v1165
        %v1198 = vpack.c.bf16 %v1166, %v1166
        %v1199 = vpack.c.bf16 %v1167, %v1167
        %v1200 = vpack.c.bf16 %v1168, %v1168
        %v1201 = vpack.c.bf16 %v1169, %v1169
        %v1202 = vpack.c.bf16 %v1170, %v1170
        %v1203 = vpack.c.bf16 %v1171, %v1171
        %v1204 = vpack.c.bf16 %v1172, %v1172
        %v1205 = vpack.c.bf16 %v1173, %v1173
        %v1206 = vpack.c.bf16 %v1174, %v1174
        %v1207 = vpack.c.bf16 %v1175, %v1175
        %v1208 = vld [vmem:[%s1079 + $0x2] sm:$0xff]
        %v1209 = vld [vmem:[%s1079 + $0xa] sm:$0xff]
        %v1210 = vld [vmem:[%s1079 + $0x1a] sm:$0xff]
        %v1211 = vld [vmem:[%s1079 + $0x22] sm:$0xff]
        %v1212 = vld [vmem:[%s1079 + $0x32] sm:$0xff]
        %v1213 = vld [vmem:[%s1079 + $0x3a] sm:$0xff]
        %v1214 = vld [vmem:[%s1079 + $0x4a] sm:$0xff]
        %v1215 = vld [vmem:[%s1079 + $0x52] sm:$0xff]
        %v1216 = vld [vmem:[%s1079 + $0x62] sm:$0xff]
        %v1217 = vld [vmem:[%s1079 + $0x6a] sm:$0xff]
        %v1218 = vld [vmem:[%s1079 + $0x7a] sm:$0xff]
        %v1219 = vld [vmem:[%s1079 + $0x82] sm:$0xff]
        %v1220 = vld [vmem:[%s1079 + $0x92] sm:$0xff]
        %v1221 = vld [vmem:[%s1079 + $0x9a] sm:$0xff]
        %v1222 = vld [vmem:[%s1079 + $0xaa] sm:$0xff]
        %v1223 = vld [vmem:[%s1079 + $0xb2] sm:$0xff]
        %v1224 = vld [vmem:[%s1079 + $0xc2] sm:$0xff]
        %v1225 = vld [vmem:[%s1079 + $0xca] sm:$0xff]
        %v1226 = vld [vmem:[%s1079 + $0xda] sm:$0xff]
        %v1227 = vld [vmem:[%s1079 + $0xe2] sm:$0xff]
        %v1228 = vld [vmem:[%s1079 + $0xf2] sm:$0xff]
        %v1229 = vld [vmem:[%s1079 + $0xfa] sm:$0xff]
        %v1230 = vld [vmem:[%s1079 + $0x10a] sm:$0xff]
        %v1231 = vld [vmem:[%s1079 + $0x112] sm:$0xff]
        %v1232 = vld [vmem:[%s1079 + $0x122] sm:$0xff]
        %v1233 = vld [vmem:[%s1079 + $0x12a] sm:$0xff]
        %v1234 = vld [vmem:[%s1079 + $0x13a] sm:$0xff]
        %v1235 = vld [vmem:[%s1079 + $0x142] sm:$0xff]
        %v1236 = vld [vmem:[%s1079 + $0x152] sm:$0xff]
        %v1237 = vld [vmem:[%s1079 + $0x15a] sm:$0xff]
        %v1238 = vld [vmem:[%s1079 + $0x16a] sm:$0xff]
        %v1239 = vld [vmem:[%s1079 + $0x172] sm:$0xff]
        %v1240 = vpack.c.bf16 %v1208, %v1208
        %v1241 = vpack.c.bf16 %v1209, %v1209
        %v1242 = vpack.c.bf16 %v1210, %v1210
        %v1243 = vpack.c.bf16 %v1211, %v1211
        %v1244 = vpack.c.bf16 %v1212, %v1212
        %v1245 = vpack.c.bf16 %v1213, %v1213
        %v1246 = vpack.c.bf16 %v1214, %v1214
        %v1247 = vpack.c.bf16 %v1215, %v1215
        %v1248 = vpack.c.bf16 %v1216, %v1216
        %v1249 = vpack.c.bf16 %v1217, %v1217
        %v1250 = vpack.c.bf16 %v1218, %v1218
        %v1251 = vpack.c.bf16 %v1219, %v1219
        %v1252 = vpack.c.bf16 %v1220, %v1220
        %v1253 = vpack.c.bf16 %v1221, %v1221
        %v1254 = vpack.c.bf16 %v1222, %v1222
        %v1255 = vpack.c.bf16 %v1223, %v1223
        %v1256 = vpack.c.bf16 %v1224, %v1224
        %v1257 = vpack.c.bf16 %v1225, %v1225
        %v1258 = vpack.c.bf16 %v1226, %v1226
        %v1259 = vpack.c.bf16 %v1227, %v1227
        %v1260 = vpack.c.bf16 %v1228, %v1228
        %v1261 = vpack.c.bf16 %v1229, %v1229
        %v1262 = vpack.c.bf16 %v1230, %v1230
        %v1263 = vpack.c.bf16 %v1231, %v1231
        %v1264 = vpack.c.bf16 %v1232, %v1232
        %v1265 = vpack.c.bf16 %v1233, %v1233
        %v1266 = vpack.c.bf16 %v1234, %v1234
        %v1267 = vpack.c.bf16 %v1235, %v1235
        %v1268 = vpack.c.bf16 %v1236, %v1236
        %v1269 = vpack.c.bf16 %v1237, %v1237
        %v1270 = vpack.c.bf16 %v1238, %v1238
        %v1271 = vpack.c.bf16 %v1239, %v1239
        %v1304 = vunpack.c.l.b16 %v759
        %v1305 = vunpack.c.l.b16 %v760
        %v1306 = vunpack.c.l.b16 %v761
        %v1307 = vunpack.c.l.b16 %v762
        %v1308 = vunpack.c.l.b16 %v763
        %v1309 = vunpack.c.l.b16 %v764
        %v1310 = vunpack.c.l.b16 %v765
        %v1311 = vunpack.c.l.b16 %v766
        %v1312 = vunpack.c.l.b16 %v767
        %v1313 = vunpack.c.l.b16 %v768
        %v1314 = vunpack.c.l.b16 %v769
        %v1315 = vunpack.c.l.b16 %v770
        %v1316 = vunpack.c.l.b16 %v771
        %v1317 = vunpack.c.l.b16 %v772
        %v1318 = vunpack.c.l.b16 %v773
        %v1319 = vunpack.c.l.b16 %v774
        %v1320 = vunpack.c.l.b16 %v775
        %v1321 = vunpack.c.l.b16 %v776
        %v1322 = vunpack.c.l.b16 %v777
        %v1323 = vunpack.c.l.b16 %v778
        %v1324 = vunpack.c.l.b16 %v779
        %v1325 = vunpack.c.l.b16 %v780
        %v1326 = vunpack.c.l.b16 %v781
        %v1327 = vunpack.c.l.b16 %v782
        %v1328 = vunpack.c.l.b16 %v783
        %v1329 = vunpack.c.l.b16 %v784
        %v1330 = vunpack.c.l.b16 %v785
        %v1331 = vunpack.c.l.b16 %v786
        %v1332 = vunpack.c.l.b16 %v787
        %v1333 = vunpack.c.l.b16 %v788
        %v1334 = vunpack.c.l.b16 %v789
        %v1335 = vunpack.c.l.b16 %v790
        %v1336 = vpack.c.b16 %v1305, %v1304
        %v1337 = vpack.c.b16 %v1307, %v1306
        %v1338 = vpack.c.b16 %v1309, %v1308
        %v1339 = vpack.c.b16 %v1311, %v1310
        %v1340 = vpack.c.b16 %v1313, %v1312
        %v1341 = vpack.c.b16 %v1315, %v1314
        %v1342 = vpack.c.b16 %v1317, %v1316
        %v1343 = vpack.c.b16 %v1319, %v1318
        %v1344 = vpack.c.b16 %v1321, %v1320
        %v1345 = vpack.c.b16 %v1323, %v1322
        %v1346 = vpack.c.b16 %v1325, %v1324
        %v1347 = vpack.c.b16 %v1327, %v1326
        %v1348 = vpack.c.b16 %v1329, %v1328
        %v1349 = vpack.c.b16 %v1331, %v1330
        %v1350 = vpack.c.b16 %v1333, %v1332
        %v1351 = vpack.c.b16 %v1335, %v1334
        %v1400 = vunpack.c.l.b16 %v823
        %v1401 = vunpack.c.l.b16 %v824
        %v1402 = vunpack.c.l.b16 %v825
        %v1403 = vunpack.c.l.b16 %v826
        %v1404 = vunpack.c.l.b16 %v827
        %v1405 = vunpack.c.l.b16 %v828
        %v1406 = vunpack.c.l.b16 %v829
        %v1407 = vunpack.c.l.b16 %v830
        %v1408 = vunpack.c.l.b16 %v831
        %v1409 = vunpack.c.l.b16 %v832
        %v1410 = vunpack.c.l.b16 %v833
        %v1411 = vunpack.c.l.b16 %v834
        %v1412 = vunpack.c.l.b16 %v835
        %v1413 = vunpack.c.l.b16 %v836
        %v1414 = vunpack.c.l.b16 %v837
        %v1415 = vunpack.c.l.b16 %v838
        %v1416 = vunpack.c.l.b16 %v839
        %v1417 = vunpack.c.l.b16 %v840
        %v1418 = vunpack.c.l.b16 %v841
        %v1419 = vunpack.c.l.b16 %v842
        %v1420 = vunpack.c.l.b16 %v843
        %v1421 = vunpack.c.l.b16 %v844
        %v1422 = vunpack.c.l.b16 %v845
        %v1423 = vunpack.c.l.b16 %v846
        %v1424 = vunpack.c.l.b16 %v847
        %v1425 = vunpack.c.l.b16 %v848
        %v1426 = vunpack.c.l.b16 %v849
        %v1427 = vunpack.c.l.b16 %v850
        %v1428 = vunpack.c.l.b16 %v851
        %v1429 = vunpack.c.l.b16 %v852
        %v1430 = vunpack.c.l.b16 %v853
        %v1431 = vunpack.c.l.b16 %v854
        %v1432 = vpack.c.b16 %v1401, %v1400
        %v1433 = vpack.c.b16 %v1403, %v1402
        %v1434 = vpack.c.b16 %v1405, %v1404
        %v1435 = vpack.c.b16 %v1407, %v1406
        %v1436 = vpack.c.b16 %v1409, %v1408
        %v1437 = vpack.c.b16 %v1411, %v1410
        %v1438 = vpack.c.b16 %v1413, %v1412
        %v1439 = vpack.c.b16 %v1415, %v1414
        %v1440 = vpack.c.b16 %v1417, %v1416
        %v1441 = vpack.c.b16 %v1419, %v1418
        %v1442 = vpack.c.b16 %v1421, %v1420
        %v1443 = vpack.c.b16 %v1423, %v1422
        %v1444 = vpack.c.b16 %v1425, %v1424
        %v1445 = vpack.c.b16 %v1427, %v1426
        %v1446 = vpack.c.b16 %v1429, %v1428
        %v1447 = vpack.c.b16 %v1431, %v1430
        %v1496 = vunpack.c.l.b16 %v887
        %v1497 = vunpack.c.l.b16 %v888
        %v1498 = vunpack.c.l.b16 %v889
        %v1499 = vunpack.c.l.b16 %v890
        %v1500 = vunpack.c.l.b16 %v891
        %v1501 = vunpack.c.l.b16 %v892
        %v1502 = vunpack.c.l.b16 %v893
        %v1503 = vunpack.c.l.b16 %v894
        %v1504 = vunpack.c.l.b16 %v895
        %v1505 = vunpack.c.l.b16 %v896
        %v1506 = vunpack.c.l.b16 %v897
        %v1507 = vunpack.c.l.b16 %v898
        %v1508 = vunpack.c.l.b16 %v899
        %v1509 = vunpack.c.l.b16 %v900
        %v1510 = vunpack.c.l.b16 %v901
        %v1511 = vunpack.c.l.b16 %v902
        %v1512 = vunpack.c.l.b16 %v903
        %v1513 = vunpack.c.l.b16 %v904
        %v1514 = vunpack.c.l.b16 %v905
        %v1515 = vunpack.c.l.b16 %v906
        %v1516 = vunpack.c.l.b16 %v907
        %v1517 = vunpack.c.l.b16 %v908
        %v1518 = vunpack.c.l.b16 %v909
        %v1519 = vunpack.c.l.b16 %v910
        %v1520 = vunpack.c.l.b16 %v911
        %v1521 = vunpack.c.l.b16 %v912
        %v1522 = vunpack.c.l.b16 %v913
        %v1523 = vunpack.c.l.b16 %v914
        %v1524 = vunpack.c.l.b16 %v915
        %v1525 = vunpack.c.l.b16 %v916
        %v1526 = vunpack.c.l.b16 %v917
        %v1527 = vunpack.c.l.b16 %v918
        %v1528 = vpack.c.b16 %v1497, %v1496
        %v1529 = vpack.c.b16 %v1499, %v1498
        %v1530 = vpack.c.b16 %v1501, %v1500
        %v1531 = vpack.c.b16 %v1503, %v1502
        %v1532 = vpack.c.b16 %v1505, %v1504
        %v1533 = vpack.c.b16 %v1507, %v1506
        %v1534 = vpack.c.b16 %v1509, %v1508
        %v1535 = vpack.c.b16 %v1511, %v1510
        %v1536 = vpack.c.b16 %v1513, %v1512
        %v1537 = vpack.c.b16 %v1515, %v1514
        %v1538 = vpack.c.b16 %v1517, %v1516
        %v1539 = vpack.c.b16 %v1519, %v1518
        %v1540 = vpack.c.b16 %v1521, %v1520
        %v1541 = vpack.c.b16 %v1523, %v1522
        %v1542 = vpack.c.b16 %v1525, %v1524
        %v1543 = vpack.c.b16 %v1527, %v1526
        %v1592 = vunpack.c.l.b16 %v951
        %v1593 = vunpack.c.l.b16 %v952
        %v1594 = vunpack.c.l.b16 %v953
        %v1595 = vunpack.c.l.b16 %v954
        %v1596 = vunpack.c.l.b16 %v955
        %v1597 = vunpack.c.l.b16 %v956
        %v1598 = vunpack.c.l.b16 %v957
        %v1599 = vunpack.c.l.b16 %v958
        %v1600 = vunpack.c.l.b16 %v959
        %v1601 = vunpack.c.l.b16 %v960
        %v1602 = vunpack.c.l.b16 %v961
        %v1603 = vunpack.c.l.b16 %v962
        %v1604 = vunpack.c.l.b16 %v963
        %v1605 = vunpack.c.l.b16 %v964
        %v1606 = vunpack.c.l.b16 %v965
        %v1607 = vunpack.c.l.b16 %v966
        %v1608 = vunpack.c.l.b16 %v967
        %v1609 = vunpack.c.l.b16 %v968
        %v1610 = vunpack.c.l.b16 %v969
        %v1611 = vunpack.c.l.b16 %v970
        %v1612 = vunpack.c.l.b16 %v971
        %v1613 = vunpack.c.l.b16 %v972
        %v1614 = vunpack.c.l.b16 %v973
        %v1615 = vunpack.c.l.b16 %v974
        %v1616 = vunpack.c.l.b16 %v975
        %v1617 = vunpack.c.l.b16 %v976
        %v1618 = vunpack.c.l.b16 %v977
        %v1619 = vunpack.c.l.b16 %v978
        %v1620 = vunpack.c.l.b16 %v979
        %v1621 = vunpack.c.l.b16 %v980
        %v1622 = vunpack.c.l.b16 %v981
        %v1623 = vunpack.c.l.b16 %v982
        %v1624 = vpack.c.b16 %v1593, %v1592
        %v1625 = vpack.c.b16 %v1595, %v1594
        %v1626 = vpack.c.b16 %v1597, %v1596
        %v1627 = vpack.c.b16 %v1599, %v1598
        %v1628 = vpack.c.b16 %v1601, %v1600
        %v1629 = vpack.c.b16 %v1603, %v1602
        %v1630 = vpack.c.b16 %v1605, %v1604
        %v1631 = vpack.c.b16 %v1607, %v1606
        %v1632 = vpack.c.b16 %v1609, %v1608
        %v1633 = vpack.c.b16 %v1611, %v1610
        %v1634 = vpack.c.b16 %v1613, %v1612
        %v1635 = vpack.c.b16 %v1615, %v1614
        %v1636 = vpack.c.b16 %v1617, %v1616
        %v1637 = vpack.c.b16 %v1619, %v1618
        %v1638 = vpack.c.b16 %v1621, %v1620
        %v1639 = vpack.c.b16 %v1623, %v1622
        %v1688 = vunpack.c.l.b16 %v983
        %v1689 = vunpack.c.l.b16 %v984
        %v1690 = vunpack.c.l.b16 %v985
        %v1691 = vunpack.c.l.b16 %v986
        %v1692 = vunpack.c.l.b16 %v987
        %v1693 = vunpack.c.l.b16 %v988
        %v1694 = vunpack.c.l.b16 %v989
        %v1695 = vunpack.c.l.b16 %v990
        %v1696 = vunpack.c.l.b16 %v991
        %v1697 = vunpack.c.l.b16 %v992
        %v1698 = vunpack.c.l.b16 %v993
        %v1699 = vunpack.c.l.b16 %v994
        %v1700 = vunpack.c.l.b16 %v995
        %v1701 = vunpack.c.l.b16 %v996
        %v1702 = vunpack.c.l.b16 %v997
        %v1703 = vunpack.c.l.b16 %v998
        %v1704 = vunpack.c.l.b16 %v999
        %v1705 = vunpack.c.l.b16 %v1000
        %v1706 = vunpack.c.l.b16 %v1001
        %v1707 = vunpack.c.l.b16 %v1002
        %v1708 = vunpack.c.l.b16 %v1003
        %v1709 = vunpack.c.l.b16 %v1004
        %v1710 = vunpack.c.l.b16 %v1005
        %v1711 = vunpack.c.l.b16 %v1006
        %v1712 = vunpack.c.l.b16 %v1007
        %v1713 = vunpack.c.l.b16 %v1008
        %v1714 = vunpack.c.l.b16 %v1009
        %v1715 = vunpack.c.l.b16 %v1010
        %v1716 = vunpack.c.l.b16 %v1011
        %v1717 = vunpack.c.l.b16 %v1012
        %v1718 = vunpack.c.l.b16 %v1013
        %v1719 = vunpack.c.l.b16 %v1014
        %v1720 = vpack.c.b16 %v1689, %v1688
        %v1721 = vpack.c.b16 %v1691, %v1690
        %v1722 = vpack.c.b16 %v1693, %v1692
        %v1723 = vpack.c.b16 %v1695, %v1694
        %v1724 = vpack.c.b16 %v1697, %v1696
        %v1725 = vpack.c.b16 %v1699, %v1698
        %v1726 = vpack.c.b16 %v1701, %v1700
        %v1727 = vpack.c.b16 %v1703, %v1702
        %v1728 = vpack.c.b16 %v1705, %v1704
        %v1729 = vpack.c.b16 %v1707, %v1706
        %v1730 = vpack.c.b16 %v1709, %v1708
        %v1731 = vpack.c.b16 %v1711, %v1710
        %v1732 = vpack.c.b16 %v1713, %v1712
        %v1733 = vpack.c.b16 %v1715, %v1714
        %v1734 = vpack.c.b16 %v1717, %v1716
        %v1735 = vpack.c.b16 %v1719, %v1718
        %v1784 = vunpack.c.l.b16 %v1047
        %v1785 = vunpack.c.l.b16 %v1048
        %v1786 = vunpack.c.l.b16 %v1049
        %v1787 = vunpack.c.l.b16 %v1050
        %v1788 = vunpack.c.l.b16 %v1051
        %v1789 = vunpack.c.l.b16 %v1052
        %v1790 = vunpack.c.l.b16 %v1053
        %v1791 = vunpack.c.l.b16 %v1054
        %v1792 = vunpack.c.l.b16 %v1055
        %v1793 = vunpack.c.l.b16 %v1056
        %v1794 = vunpack.c.l.b16 %v1057
        %v1795 = vunpack.c.l.b16 %v1058
        %v1796 = vunpack.c.l.b16 %v1059
        %v1797 = vunpack.c.l.b16 %v1060
        %v1798 = vunpack.c.l.b16 %v1061
        %v1799 = vunpack.c.l.b16 %v1062
        %v1800 = vunpack.c.l.b16 %v1063
        %v1801 = vunpack.c.l.b16 %v1064
        %v1802 = vunpack.c.l.b16 %v1065
        %v1803 = vunpack.c.l.b16 %v1066
        %v1804 = vunpack.c.l.b16 %v1067
        %v1805 = vunpack.c.l.b16 %v1068
        %v1806 = vunpack.c.l.b16 %v1069
        %v1807 = vunpack.c.l.b16 %v1070
        %v1808 = vunpack.c.l.b16 %v1071
        %v1809 = vunpack.c.l.b16 %v1072
        %v1810 = vunpack.c.l.b16 %v1073
        %v1811 = vunpack.c.l.b16 %v1074
        %v1812 = vunpack.c.l.b16 %v1075
        %v1813 = vunpack.c.l.b16 %v1076
        %v1814 = vunpack.c.l.b16 %v1077
        %v1815 = vunpack.c.l.b16 %v1078
        %v1816 = vpack.c.b16 %v1785, %v1784
        %v1817 = vpack.c.b16 %v1787, %v1786
        %v1818 = vpack.c.b16 %v1789, %v1788
        %v1819 = vpack.c.b16 %v1791, %v1790
        %v1820 = vpack.c.b16 %v1793, %v1792
        %v1821 = vpack.c.b16 %v1795, %v1794
        %v1822 = vpack.c.b16 %v1797, %v1796
        %v1823 = vpack.c.b16 %v1799, %v1798
        %v1824 = vpack.c.b16 %v1801, %v1800
        %v1825 = vpack.c.b16 %v1803, %v1802
        %v1826 = vpack.c.b16 %v1805, %v1804
        %v1827 = vpack.c.b16 %v1807, %v1806
        %v1828 = vpack.c.b16 %v1809, %v1808
        %v1829 = vpack.c.b16 %v1811, %v1810
        %v1830 = vpack.c.b16 %v1813, %v1812
        %v1831 = vpack.c.b16 %v1815, %v1814
        %v1880 = vunpack.c.l.b16 %v1112
        %v1881 = vunpack.c.l.b16 %v1113
        %v1882 = vunpack.c.l.b16 %v1114
        %v1883 = vunpack.c.l.b16 %v1115
        %v1884 = vunpack.c.l.b16 %v1116
        %v1885 = vunpack.c.l.b16 %v1117
        %v1886 = vunpack.c.l.b16 %v1118
        %v1887 = vunpack.c.l.b16 %v1119
        %v1888 = vunpack.c.l.b16 %v1120
        %v1889 = vunpack.c.l.b16 %v1121
        %v1890 = vunpack.c.l.b16 %v1122
        %v1891 = vunpack.c.l.b16 %v1123
        %v1892 = vunpack.c.l.b16 %v1124
        %v1893 = vunpack.c.l.b16 %v1125
        %v1894 = vunpack.c.l.b16 %v1126
        %v1895 = vunpack.c.l.b16 %v1127
        %v1896 = vunpack.c.l.b16 %v1128
        %v1897 = vunpack.c.l.b16 %v1129
        %v1898 = vunpack.c.l.b16 %v1130
        %v1899 = vunpack.c.l.b16 %v1131
        %v1900 = vunpack.c.l.b16 %v1132
        %v1901 = vunpack.c.l.b16 %v1133
        %v1902 = vunpack.c.l.b16 %v1134
        %v1903 = vunpack.c.l.b16 %v1135
        %v1904 = vunpack.c.l.b16 %v1136
        %v1905 = vunpack.c.l.b16 %v1137
        %v1906 = vunpack.c.l.b16 %v1138
        %v1907 = vunpack.c.l.b16 %v1139
        %v1908 = vunpack.c.l.b16 %v1140
        %v1909 = vunpack.c.l.b16 %v1141
        %v1910 = vunpack.c.l.b16 %v1142
        %v1911 = vunpack.c.l.b16 %v1143
        %v1912 = vpack.c.b16 %v1881, %v1880
        %v1913 = vpack.c.b16 %v1883, %v1882
        %v1914 = vpack.c.b16 %v1885, %v1884
        %v1915 = vpack.c.b16 %v1887, %v1886
        %v1916 = vpack.c.b16 %v1889, %v1888
        %v1917 = vpack.c.b16 %v1891, %v1890
        %v1918 = vpack.c.b16 %v1893, %v1892
        %v1919 = vpack.c.b16 %v1895, %v1894
        %v1920 = vpack.c.b16 %v1897, %v1896
        %v1921 = vpack.c.b16 %v1899, %v1898
        %v1922 = vpack.c.b16 %v1901, %v1900
        %v1923 = vpack.c.b16 %v1903, %v1902
        %v1924 = vpack.c.b16 %v1905, %v1904
        %v1925 = vpack.c.b16 %v1907, %v1906
        %v1926 = vpack.c.b16 %v1909, %v1908
        %v1927 = vpack.c.b16 %v1911, %v1910
        %v1976 = vunpack.c.l.b16 %v1176
        %v1977 = vunpack.c.l.b16 %v1177
        %v1978 = vunpack.c.l.b16 %v1178
        %v1979 = vunpack.c.l.b16 %v1179
        %v1980 = vunpack.c.l.b16 %v1180
        %v1981 = vunpack.c.l.b16 %v1181
        %v1982 = vunpack.c.l.b16 %v1182
        %v1983 = vunpack.c.l.b16 %v1183
        %v1984 = vunpack.c.l.b16 %v1184
        %v1985 = vunpack.c.l.b16 %v1185
        %v1986 = vunpack.c.l.b16 %v1186
        %v1987 = vunpack.c.l.b16 %v1187
        %v1988 = vunpack.c.l.b16 %v1188
        %v1989 = vunpack.c.l.b16 %v1189
        %v1990 = vunpack.c.l.b16 %v1190
        %v1991 = vunpack.c.l.b16 %v1191
        %v1992 = vunpack.c.l.b16 %v1192
        %v1993 = vunpack.c.l.b16 %v1193
        %v1994 = vunpack.c.l.b16 %v1194
        %v1995 = vunpack.c.l.b16 %v1195
        %v1996 = vunpack.c.l.b16 %v1196
        %v1997 = vunpack.c.l.b16 %v1197
        %v1998 = vunpack.c.l.b16 %v1198
        %v1999 = vunpack.c.l.b16 %v1199
        %v2000 = vunpack.c.l.b16 %v1200
        %v2001 = vunpack.c.l.b16 %v1201
        %v2002 = vunpack.c.l.b16 %v1202
        %v2003 = vunpack.c.l.b16 %v1203
        %v2004 = vunpack.c.l.b16 %v1204
        %v2005 = vunpack.c.l.b16 %v1205
        %v2006 = vunpack.c.l.b16 %v1206
        %v2007 = vunpack.c.l.b16 %v1207
        %v2008 = vpack.c.b16 %v1977, %v1976
        %v2009 = vpack.c.b16 %v1979, %v1978
        %v2010 = vpack.c.b16 %v1981, %v1980
        %v2011 = vpack.c.b16 %v1983, %v1982
        %v2012 = vpack.c.b16 %v1985, %v1984
        %v2013 = vpack.c.b16 %v1987, %v1986
        %v2014 = vpack.c.b16 %v1989, %v1988
        %v2015 = vpack.c.b16 %v1991, %v1990
        %v2016 = vpack.c.b16 %v1993, %v1992
        %v2017 = vpack.c.b16 %v1995, %v1994
        %v2018 = vpack.c.b16 %v1997, %v1996
        %v2019 = vpack.c.b16 %v1999, %v1998
        %v2020 = vpack.c.b16 %v2001, %v2000
        %v2021 = vpack.c.b16 %v2003, %v2002
        %v2022 = vpack.c.b16 %v2005, %v2004
        %v2023 = vpack.c.b16 %v2007, %v2006
        %v2072 = vunpack.c.l.b16 %v1240
        %v2073 = vunpack.c.l.b16 %v1241
        %v2074 = vunpack.c.l.b16 %v1242
        %v2075 = vunpack.c.l.b16 %v1243
        %v2076 = vunpack.c.l.b16 %v1244
        %v2077 = vunpack.c.l.b16 %v1245
        %v2078 = vunpack.c.l.b16 %v1246
        %v2079 = vunpack.c.l.b16 %v1247
        %v2080 = vunpack.c.l.b16 %v1248
        %v2081 = vunpack.c.l.b16 %v1249
        %v2082 = vunpack.c.l.b16 %v1250
        %v2083 = vunpack.c.l.b16 %v1251
        %v2084 = vunpack.c.l.b16 %v1252
        %v2085 = vunpack.c.l.b16 %v1253
        %v2086 = vunpack.c.l.b16 %v1254
        %v2087 = vunpack.c.l.b16 %v1255
        %v2088 = vunpack.c.l.b16 %v1256
        %v2089 = vunpack.c.l.b16 %v1257
        %v2090 = vunpack.c.l.b16 %v1258
        %v2091 = vunpack.c.l.b16 %v1259
        %v2092 = vunpack.c.l.b16 %v1260
        %v2093 = vunpack.c.l.b16 %v1261
        %v2094 = vunpack.c.l.b16 %v1262
        %v2095 = vunpack.c.l.b16 %v1263
        %v2096 = vunpack.c.l.b16 %v1264
        %v2097 = vunpack.c.l.b16 %v1265
        %v2098 = vunpack.c.l.b16 %v1266
        %v2099 = vunpack.c.l.b16 %v1267
        %v2100 = vunpack.c.l.b16 %v1268
        %v2101 = vunpack.c.l.b16 %v1269
        %v2102 = vunpack.c.l.b16 %v1270
        %v2103 = vunpack.c.l.b16 %v1271
        %v2104 = vpack.c.b16 %v2073, %v2072
        %v2105 = vpack.c.b16 %v2075, %v2074
        %v2106 = vpack.c.b16 %v2077, %v2076
        %v2107 = vpack.c.b16 %v2079, %v2078
        %v2108 = vpack.c.b16 %v2081, %v2080
        %v2109 = vpack.c.b16 %v2083, %v2082
        %v2110 = vpack.c.b16 %v2085, %v2084
        %v2111 = vpack.c.b16 %v2087, %v2086
        %v2112 = vpack.c.b16 %v2089, %v2088
        %v2113 = vpack.c.b16 %v2091, %v2090
        %v2114 = vpack.c.b16 %v2093, %v2092
        %v2115 = vpack.c.b16 %v2095, %v2094
        %v2116 = vpack.c.b16 %v2097, %v2096
        %v2117 = vpack.c.b16 %v2099, %v2098
        %v2118 = vpack.c.b16 %v2101, %v2100
        %v2119 = vpack.c.b16 %v2103, %v2102
        %v2136 = vld [vmem:[%s397] sm:$0xf]
        %v2137 = vld [vmem:[%s397 + $0x4] sm:$0xf]
        %v2138 = vld [vmem:[%s397 + $0x8] sm:$0xf]
        %v2139 = vld [vmem:[%s397 + $0xc] sm:$0xf]
        %v2140 = vld [vmem:[%s397 + $0x10] sm:$0xf]
        %v2141 = vld [vmem:[%s397 + $0x14] sm:$0xf]
        %v2142 = vld [vmem:[%s397 + $0x18] sm:$0xf]
        %v2143 = vld [vmem:[%s397 + $0x1c] sm:$0xf]
        %v2144 = vld [vmem:[%s397 + $0x20] sm:$0xf]
        %v2145 = vld [vmem:[%s397 + $0x24] sm:$0xf]
        %v2146 = vld [vmem:[%s397 + $0x28] sm:$0xf]
        %v2147 = vld [vmem:[%s397 + $0x2c] sm:$0xf]
        %v2148 = vld [vmem:[%s397 + $0x30] sm:$0xf]
        %v2149 = vld [vmem:[%s397 + $0x34] sm:$0xf]
        %v2150 = vld [vmem:[%s397 + $0x38] sm:$0xf]
        %v2151 = vld [vmem:[%s397 + $0x3c] sm:$0xf]
        %v2152 = vld [vmem:[%s397 + $0x40] sm:$0xf]
        %v2153 = vld [vmem:[%s397 + $0x44] sm:$0xf]
        %v2154 = vld [vmem:[%s397 + $0x48] sm:$0xf]
        %v2155 = vld [vmem:[%s397 + $0x4c] sm:$0xf]
        %v2156 = vld [vmem:[%s397 + $0x50] sm:$0xf]
        %v2157 = vld [vmem:[%s397 + $0x54] sm:$0xf]
        %v2158 = vld [vmem:[%s397 + $0x58] sm:$0xf]
        %v2159 = vld [vmem:[%s397 + $0x5c] sm:$0xf]
        %v2160 = vld [vmem:[%s397 + $0x60] sm:$0xf]
        %v2161 = vld [vmem:[%s397 + $0x64] sm:$0xf]
        %v2162 = vld [vmem:[%s397 + $0x68] sm:$0xf]
        %v2163 = vld [vmem:[%s397 + $0x6c] sm:$0xf]
        %v2164 = vld [vmem:[%s397 + $0x70] sm:$0xf]
        %v2165 = vld [vmem:[%s397 + $0x74] sm:$0xf]
        %v2166 = vld [vmem:[%s397 + $0x78] sm:$0xf]
        %v2167 = vld [vmem:[%s397 + $0x7c] sm:$0xf]
        %v2168 = vld [vmem:[%s397 + $0x80] sm:$0xf]
        %v2169 = vld [vmem:[%s397 + $0x84] sm:$0xf]
        %v2170 = vld [vmem:[%s397 + $0x88] sm:$0xf]
        %v2171 = vld [vmem:[%s397 + $0x8c] sm:$0xf]
        %v2172 = vld [vmem:[%s397 + $0x90] sm:$0xf]
        %v2173 = vld [vmem:[%s397 + $0x94] sm:$0xf]
        %v2174 = vld [vmem:[%s397 + $0x98] sm:$0xf]
        %v2175 = vld [vmem:[%s397 + $0x9c] sm:$0xf]
        %v2176 = vld [vmem:[%s397 + $0xa0] sm:$0xf]
        %v2177 = vld [vmem:[%s397 + $0xa4] sm:$0xf]
        %v2178 = vld [vmem:[%s397 + $0xa8] sm:$0xf]
        %v2179 = vld [vmem:[%s397 + $0xac] sm:$0xf]
        %v2180 = vld [vmem:[%s397 + $0xb0] sm:$0xf]
        %v2181 = vld [vmem:[%s397 + $0xb4] sm:$0xf]
        %v2182 = vld [vmem:[%s397 + $0xb8] sm:$0xf]
        %v2183 = vld [vmem:[%s397 + $0xbc] sm:$0xf]
        %v2184 = vld [vmem:[%s397 + $0xc0] sm:$0xf]
        %v2185 = vld [vmem:[%s397 + $0xc4] sm:$0xf]
        %v2186 = vld [vmem:[%s397 + $0xc8] sm:$0xf]
        %v2187 = vld [vmem:[%s397 + $0xcc] sm:$0xf]
        %v2188 = vld [vmem:[%s397 + $0xd0] sm:$0xf]
        %v2189 = vld [vmem:[%s397 + $0xd4] sm:$0xf]
        %v2190 = vld [vmem:[%s397 + $0xd8] sm:$0xf]
        %v2191 = vld [vmem:[%s397 + $0xdc] sm:$0xf]
        %v2192 = vld [vmem:[%s397 + $0xe0] sm:$0xf]
        %v2193 = vld [vmem:[%s397 + $0xe4] sm:$0xf]
        %v2194 = vld [vmem:[%s397 + $0xe8] sm:$0xf]
        %v2195 = vld [vmem:[%s397 + $0xec] sm:$0xf]
        %v2196 = vld [vmem:[%s397 + $0xf0] sm:$0xf]
        %v2197 = vld [vmem:[%s397 + $0xf4] sm:$0xf]
        %v2198 = vld [vmem:[%s397 + $0xf8] sm:$0xf]
        %v2199 = vld [vmem:[%s397 + $0xfc] sm:$0xf]
        %v2200 = vld [vmem:[%s397 + $0x100] sm:$0xf]
        %v2201 = vld [vmem:[%s397 + $0x104] sm:$0xf]
        %v2202 = vld [vmem:[%s397 + $0x108] sm:$0xf]
        %v2203 = vld [vmem:[%s397 + $0x10c] sm:$0xf]
        %v2204 = vld [vmem:[%s397 + $0x110] sm:$0xf]
        %v2205 = vld [vmem:[%s397 + $0x114] sm:$0xf]
        %v2206 = vld [vmem:[%s397 + $0x118] sm:$0xf]
        %v2207 = vld [vmem:[%s397 + $0x11c] sm:$0xf]
        %v2208 = vld [vmem:[%s397 + $0x120] sm:$0xf]
        %v2209 = vld [vmem:[%s397 + $0x124] sm:$0xf]
        %v2210 = vld [vmem:[%s397 + $0x128] sm:$0xf]
        %v2211 = vld [vmem:[%s397 + $0x12c] sm:$0xf]
        %v2212 = vld [vmem:[%s397 + $0x130] sm:$0xf]
        %v2213 = vld [vmem:[%s397 + $0x134] sm:$0xf]
        %v2214 = vld [vmem:[%s397 + $0x138] sm:$0xf]
        %v2215 = vld [vmem:[%s397 + $0x13c] sm:$0xf]
        %v2216 = vld [vmem:[%s397 + $0x140] sm:$0xf]
        %v2217 = vld [vmem:[%s397 + $0x144] sm:$0xf]
        %v2218 = vld [vmem:[%s397 + $0x148] sm:$0xf]
        %v2219 = vld [vmem:[%s397 + $0x14c] sm:$0xf]
        %v2220 = vld [vmem:[%s397 + $0x150] sm:$0xf]
        %v2221 = vld [vmem:[%s397 + $0x154] sm:$0xf]
        %v2222 = vld [vmem:[%s397 + $0x158] sm:$0xf]
        %v2223 = vld [vmem:[%s397 + $0x15c] sm:$0xf]
        %v2224 = vld [vmem:[%s397 + $0x160] sm:$0xf]
        %v2225 = vld [vmem:[%s397 + $0x164] sm:$0xf]
        %v2226 = vld [vmem:[%s397 + $0x168] sm:$0xf]
        %v2227 = vld [vmem:[%s397 + $0x16c] sm:$0xf]
        %v2228 = vld [vmem:[%s397 + $0x170] sm:$0xf]
        %v2229 = vld [vmem:[%s397 + $0x174] sm:$0xf]
        %v2230 = vld [vmem:[%s397 + $0x178] sm:$0xf]
        %v2231 = vld [vmem:[%s397 + $0x17c] sm:$0xf]
        %v2232 = vld [vmem:[%s397 + $0x180] sm:$0xf]
        %v2233 = vld [vmem:[%s397 + $0x184] sm:$0xf]
        %v2234 = vld [vmem:[%s397 + $0x188] sm:$0xf]
        %v2235 = vld [vmem:[%s397 + $0x18c] sm:$0xf]
        %v2236 = vld [vmem:[%s397 + $0x190] sm:$0xf]
        %v2237 = vld [vmem:[%s397 + $0x194] sm:$0xf]
        %v2238 = vld [vmem:[%s397 + $0x198] sm:$0xf]
        %v2239 = vld [vmem:[%s397 + $0x19c] sm:$0xf]
        %v2240 = vld [vmem:[%s397 + $0x1a0] sm:$0xf]
        %v2241 = vld [vmem:[%s397 + $0x1a4] sm:$0xf]
        %v2242 = vld [vmem:[%s397 + $0x1a8] sm:$0xf]
        %v2243 = vld [vmem:[%s397 + $0x1ac] sm:$0xf]
        %v2244 = vld [vmem:[%s397 + $0x1b0] sm:$0xf]
        %v2245 = vld [vmem:[%s397 + $0x1b4] sm:$0xf]
        %v2246 = vld [vmem:[%s397 + $0x1b8] sm:$0xf]
        %v2247 = vld [vmem:[%s397 + $0x1bc] sm:$0xf]
        %v2248 = vld [vmem:[%s397 + $0x1c0] sm:$0xf]
        %v2249 = vld [vmem:[%s397 + $0x1c4] sm:$0xf]
        %v2250 = vld [vmem:[%s397 + $0x1c8] sm:$0xf]
        %v2251 = vld [vmem:[%s397 + $0x1cc] sm:$0xf]
        %v2252 = vld [vmem:[%s397 + $0x1d0] sm:$0xf]
        %v2253 = vld [vmem:[%s397 + $0x1d4] sm:$0xf]
        %v2254 = vld [vmem:[%s397 + $0x1d8] sm:$0xf]
        %v2255 = vld [vmem:[%s397 + $0x1dc] sm:$0xf]
        %v2256 = vld [vmem:[%s397 + $0x1e0] sm:$0xf]
        %v2257 = vld [vmem:[%s397 + $0x1e4] sm:$0xf]
        %v2258 = vld [vmem:[%s397 + $0x1e8] sm:$0xf]
        %v2259 = vld [vmem:[%s397 + $0x1ec] sm:$0xf]
        %v2260 = vld [vmem:[%s397 + $0x1f0] sm:$0xf]
        %v2261 = vld [vmem:[%s397 + $0x1f4] sm:$0xf]
        %v2262 = vld [vmem:[%s397 + $0x1f8] sm:$0xf]
        %v2263 = vld [vmem:[%s397 + $0x1fc] sm:$0xf]
        %v2264 = vld [vmem:[%s397 + $0x200] sm:$0xf]
        %v2265 = vld [vmem:[%s397 + $0x204] sm:$0xf]
        %v2266 = vld [vmem:[%s397 + $0x208] sm:$0xf]
        %v2267 = vld [vmem:[%s397 + $0x20c] sm:$0xf]
        %v2268 = vld [vmem:[%s397 + $0x210] sm:$0xf]
        %v2269 = vld [vmem:[%s397 + $0x214] sm:$0xf]
        %v2270 = vld [vmem:[%s397 + $0x218] sm:$0xf]
        %v2271 = vld [vmem:[%s397 + $0x21c] sm:$0xf]
        %v2272 = vld [vmem:[%s397 + $0x220] sm:$0xf]
        %v2273 = vld [vmem:[%s397 + $0x224] sm:$0xf]
        %v2274 = vld [vmem:[%s397 + $0x228] sm:$0xf]
        %v2275 = vld [vmem:[%s397 + $0x22c] sm:$0xf]
        %v2276 = vld [vmem:[%s397 + $0x230] sm:$0xf]
        %v2277 = vld [vmem:[%s397 + $0x234] sm:$0xf]
        %v2278 = vld [vmem:[%s397 + $0x238] sm:$0xf]
        %v2279 = vld [vmem:[%s397 + $0x23c] sm:$0xf]
        %v2424 = vunpack.c.l.b16 %v2136
        %v2425 = vunpack.c.l.b16 %v2137
        %v2426 = vunpack.c.l.b16 %v2138
        %v2427 = vunpack.c.l.b16 %v2139
        %v2428 = vunpack.c.l.b16 %v2140
        %v2429 = vunpack.c.l.b16 %v2141
        %v2430 = vunpack.c.l.b16 %v2142
        %v2431 = vunpack.c.l.b16 %v2143
        %v2432 = vunpack.c.l.b16 %v2144
        %v2433 = vunpack.c.l.b16 %v2145
        %v2434 = vunpack.c.l.b16 %v2146
        %v2435 = vunpack.c.l.b16 %v2147
        %v2436 = vunpack.c.l.b16 %v2148
        %v2437 = vunpack.c.l.b16 %v2149
        %v2438 = vunpack.c.l.b16 %v2150
        %v2439 = vunpack.c.l.b16 %v2151
        %v2440 = vunpack.c.l.b16 %v2152
        %v2441 = vunpack.c.l.b16 %v2153
        %v2442 = vunpack.c.l.b16 %v2154
        %v2443 = vunpack.c.l.b16 %v2155
        %v2444 = vunpack.c.l.b16 %v2156
        %v2445 = vunpack.c.l.b16 %v2157
        %v2446 = vunpack.c.l.b16 %v2158
        %v2447 = vunpack.c.l.b16 %v2159
        %v2448 = vunpack.c.l.b16 %v2160
        %v2449 = vunpack.c.l.b16 %v2161
        %v2450 = vunpack.c.l.b16 %v2162
        %v2451 = vunpack.c.l.b16 %v2163
        %v2452 = vunpack.c.l.b16 %v2164
        %v2453 = vunpack.c.l.b16 %v2165
        %v2454 = vunpack.c.l.b16 %v2166
        %v2455 = vunpack.c.l.b16 %v2167
        %v2456 = vunpack.c.l.b16 %v2168
        %v2457 = vunpack.c.l.b16 %v2169
        %v2458 = vunpack.c.l.b16 %v2170
        %v2459 = vunpack.c.l.b16 %v2171
        %v2460 = vunpack.c.l.b16 %v2172
        %v2461 = vunpack.c.l.b16 %v2173
        %v2462 = vunpack.c.l.b16 %v2174
        %v2463 = vunpack.c.l.b16 %v2175
        %v2464 = vunpack.c.l.b16 %v2176
        %v2465 = vunpack.c.l.b16 %v2177
        %v2466 = vunpack.c.l.b16 %v2178
        %v2467 = vunpack.c.l.b16 %v2179
        %v2468 = vunpack.c.l.b16 %v2180
        %v2469 = vunpack.c.l.b16 %v2181
        %v2470 = vunpack.c.l.b16 %v2182
        %v2471 = vunpack.c.l.b16 %v2183
        %v2472 = vunpack.c.l.b16 %v2184
        %v2473 = vunpack.c.l.b16 %v2185
        %v2474 = vunpack.c.l.b16 %v2186
        %v2475 = vunpack.c.l.b16 %v2187
        %v2476 = vunpack.c.l.b16 %v2188
        %v2477 = vunpack.c.l.b16 %v2189
        %v2478 = vunpack.c.l.b16 %v2190
        %v2479 = vunpack.c.l.b16 %v2191
        %v2480 = vunpack.c.l.b16 %v2192
        %v2481 = vunpack.c.l.b16 %v2193
        %v2482 = vunpack.c.l.b16 %v2194
        %v2483 = vunpack.c.l.b16 %v2195
        %v2484 = vunpack.c.l.b16 %v2196
        %v2485 = vunpack.c.l.b16 %v2197
        %v2486 = vunpack.c.l.b16 %v2198
        %v2487 = vunpack.c.l.b16 %v2199
        %v2488 = vunpack.c.l.b16 %v2200
        %v2489 = vunpack.c.l.b16 %v2201
        %v2490 = vunpack.c.l.b16 %v2202
        %v2491 = vunpack.c.l.b16 %v2203
        %v2492 = vunpack.c.l.b16 %v2204
        %v2493 = vunpack.c.l.b16 %v2205
        %v2494 = vunpack.c.l.b16 %v2206
        %v2495 = vunpack.c.l.b16 %v2207
        %v2496 = vunpack.c.l.b16 %v2208
        %v2497 = vunpack.c.l.b16 %v2209
        %v2498 = vunpack.c.l.b16 %v2210
        %v2499 = vunpack.c.l.b16 %v2211
        %v2500 = vunpack.c.l.b16 %v2212
        %v2501 = vunpack.c.l.b16 %v2213
        %v2502 = vunpack.c.l.b16 %v2214
        %v2503 = vunpack.c.l.b16 %v2215
        %v2504 = vunpack.c.l.b16 %v2216
        %v2505 = vunpack.c.l.b16 %v2217
        %v2506 = vunpack.c.l.b16 %v2218
        %v2507 = vunpack.c.l.b16 %v2219
        %v2508 = vunpack.c.l.b16 %v2220
        %v2509 = vunpack.c.l.b16 %v2221
        %v2510 = vunpack.c.l.b16 %v2222
        %v2511 = vunpack.c.l.b16 %v2223
        %v2512 = vunpack.c.l.b16 %v2224
        %v2513 = vunpack.c.l.b16 %v2225
        %v2514 = vunpack.c.l.b16 %v2226
        %v2515 = vunpack.c.l.b16 %v2227
        %v2516 = vunpack.c.l.b16 %v2228
        %v2517 = vunpack.c.l.b16 %v2229
        %v2518 = vunpack.c.l.b16 %v2230
        %v2519 = vunpack.c.l.b16 %v2231
        %v2520 = vunpack.c.l.b16 %v2232
        %v2521 = vunpack.c.l.b16 %v2233
        %v2522 = vunpack.c.l.b16 %v2234
        %v2523 = vunpack.c.l.b16 %v2235
        %v2524 = vunpack.c.l.b16 %v2236
        %v2525 = vunpack.c.l.b16 %v2237
        %v2526 = vunpack.c.l.b16 %v2238
        %v2527 = vunpack.c.l.b16 %v2239
        %v2528 = vunpack.c.l.b16 %v2240
        %v2529 = vunpack.c.l.b16 %v2241
        %v2530 = vunpack.c.l.b16 %v2242
        %v2531 = vunpack.c.l.b16 %v2243
        %v2532 = vunpack.c.l.b16 %v2244
        %v2533 = vunpack.c.l.b16 %v2245
        %v2534 = vunpack.c.l.b16 %v2246
        %v2535 = vunpack.c.l.b16 %v2247
        %v2536 = vunpack.c.l.b16 %v2248
        %v2537 = vunpack.c.l.b16 %v2249
        %v2538 = vunpack.c.l.b16 %v2250
        %v2539 = vunpack.c.l.b16 %v2251
        %v2540 = vunpack.c.l.b16 %v2252
        %v2541 = vunpack.c.l.b16 %v2253
        %v2542 = vunpack.c.l.b16 %v2254
        %v2543 = vunpack.c.l.b16 %v2255
        %v2544 = vunpack.c.l.b16 %v2256
        %v2545 = vunpack.c.l.b16 %v2257
        %v2546 = vunpack.c.l.b16 %v2258
        %v2547 = vunpack.c.l.b16 %v2259
        %v2548 = vunpack.c.l.b16 %v2260
        %v2549 = vunpack.c.l.b16 %v2261
        %v2550 = vunpack.c.l.b16 %v2262
        %v2551 = vunpack.c.l.b16 %v2263
        %v2552 = vunpack.c.l.b16 %v2264
        %v2553 = vunpack.c.l.b16 %v2265
        %v2554 = vunpack.c.l.b16 %v2266
        %v2555 = vunpack.c.l.b16 %v2267
        %v2556 = vunpack.c.l.b16 %v2268
        %v2557 = vunpack.c.l.b16 %v2269
        %v2558 = vunpack.c.l.b16 %v2270
        %v2559 = vunpack.c.l.b16 %v2271
        %v2560 = vunpack.c.l.b16 %v2272
        %v2561 = vunpack.c.l.b16 %v2273
        %v2562 = vunpack.c.l.b16 %v2274
        %v2563 = vunpack.c.l.b16 %v2275
        %v2564 = vunpack.c.l.b16 %v2276
        %v2565 = vunpack.c.l.b16 %v2277
        %v2566 = vunpack.c.l.b16 %v2278
        %v2567 = vunpack.c.l.b16 %v2279
        %v2568 = vpack.c.b16 %v2425, %v2424
        %v2569 = vpack.c.b16 %v2427, %v2426
        %v2570 = vpack.c.b16 %v2429, %v2428
        %v2571 = vpack.c.b16 %v2431, %v2430
        %v2572 = vpack.c.b16 %v2433, %v2432
        %v2573 = vpack.c.b16 %v2435, %v2434
        %v2574 = vpack.c.b16 %v2437, %v2436
        %v2575 = vpack.c.b16 %v2439, %v2438
        %v2576 = vpack.c.b16 %v2441, %v2440
        %v2577 = vpack.c.b16 %v2443, %v2442
        %v2578 = vpack.c.b16 %v2445, %v2444
        %v2579 = vpack.c.b16 %v2447, %v2446
        %v2580 = vpack.c.b16 %v2449, %v2448
        %v2581 = vpack.c.b16 %v2451, %v2450
        %v2582 = vpack.c.b16 %v2453, %v2452
        %v2583 = vpack.c.b16 %v2455, %v2454
        %v2584 = vpack.c.b16 %v2457, %v2456
        %v2585 = vpack.c.b16 %v2459, %v2458
        %v2586 = vpack.c.b16 %v2461, %v2460
        %v2587 = vpack.c.b16 %v2463, %v2462
        %v2588 = vpack.c.b16 %v2465, %v2464
        %v2589 = vpack.c.b16 %v2467, %v2466
        %v2590 = vpack.c.b16 %v2469, %v2468
        %v2591 = vpack.c.b16 %v2471, %v2470
        %v2592 = vpack.c.b16 %v2473, %v2472
        %v2593 = vpack.c.b16 %v2475, %v2474
        %v2594 = vpack.c.b16 %v2477, %v2476
        %v2595 = vpack.c.b16 %v2479, %v2478
        %v2596 = vpack.c.b16 %v2481, %v2480
        %v2597 = vpack.c.b16 %v2483, %v2482
        %v2598 = vpack.c.b16 %v2485, %v2484
        %v2599 = vpack.c.b16 %v2487, %v2486
        %v2600 = vpack.c.b16 %v2489, %v2488
        %v2601 = vpack.c.b16 %v2491, %v2490
        %v2602 = vpack.c.b16 %v2493, %v2492
        %v2603 = vpack.c.b16 %v2495, %v2494
        %v2604 = vpack.c.b16 %v2497, %v2496
        %v2605 = vpack.c.b16 %v2499, %v2498
        %v2606 = vpack.c.b16 %v2501, %v2500
        %v2607 = vpack.c.b16 %v2503, %v2502
        %v2608 = vpack.c.b16 %v2505, %v2504
        %v2609 = vpack.c.b16 %v2507, %v2506
        %v2610 = vpack.c.b16 %v2509, %v2508
        %v2611 = vpack.c.b16 %v2511, %v2510
        %v2612 = vpack.c.b16 %v2513, %v2512
        %v2613 = vpack.c.b16 %v2515, %v2514
        %v2614 = vpack.c.b16 %v2517, %v2516
        %v2615 = vpack.c.b16 %v2519, %v2518
        %v2616 = vpack.c.b16 %v2521, %v2520
        %v2617 = vpack.c.b16 %v2523, %v2522
        %v2618 = vpack.c.b16 %v2525, %v2524
        %v2619 = vpack.c.b16 %v2527, %v2526
        %v2620 = vpack.c.b16 %v2529, %v2528
        %v2621 = vpack.c.b16 %v2531, %v2530
        %v2622 = vpack.c.b16 %v2533, %v2532
        %v2623 = vpack.c.b16 %v2535, %v2534
        %v2624 = vpack.c.b16 %v2537, %v2536
        %v2625 = vpack.c.b16 %v2539, %v2538
        %v2626 = vpack.c.b16 %v2541, %v2540
        %v2627 = vpack.c.b16 %v2543, %v2542
        %v2628 = vpack.c.b16 %v2545, %v2544
        %v2629 = vpack.c.b16 %v2547, %v2546
        %v2630 = vpack.c.b16 %v2549, %v2548
        %v2631 = vpack.c.b16 %v2551, %v2550
        %v2632 = vpack.c.b16 %v2553, %v2552
        %v2633 = vpack.c.b16 %v2555, %v2554
        %v2634 = vpack.c.b16 %v2557, %v2556
        %v2635 = vpack.c.b16 %v2559, %v2558
        %v2636 = vpack.c.b16 %v2561, %v2560
        %v2637 = vpack.c.b16 %v2563, %v2562
        %v2638 = vpack.c.b16 %v2565, %v2564
        %v2639 = vpack.c.b16 %v2567, %v2566
        %2712 = vmatpush.bf16.msra.mxu0 %v2575
        %2713 = vmatpush.bf16.msra.mxu0 %v2574
        %2714 = vmatpush.bf16.msra.mxu0 %v2573
        %2715 = vmatpush.bf16.msra.mxu0 %v2572
        %2716 = vmatpush.bf16.msra.mxu0 %v2571
        %2717 = vmatpush.bf16.msra.mxu0 %v2570
        %2718 = vmatpush.bf16.msra.mxu0 %v2569
        %2719 = vmatpush.bf16.msra.mxu0 %v2568
        %2720 = vmatmul.bf16.gmra.mxu0 %v1336
        %v2721 = vpop.f32.mrf.mxu0
        %v2722 = vadd.f32 0.0, %v2721
        %v2723 = vpop.f32.mrf.mxu0
        %v2724 = vadd.f32 0.0, %v2723
        %2725 = vmatmul.bf16.gmra.mxu0 %v1337
        %v2726 = vpop.f32.mrf.mxu0
        %v2727 = vadd.f32 0.0, %v2726
        %v2728 = vpop.f32.mrf.mxu0
        %v2729 = vadd.f32 0.0, %v2728
        %2730 = vmatmul.bf16.gmra.mxu0 %v1338
        %v2731 = vpop.f32.mrf.mxu0
        %v2732 = vadd.f32 0.0, %v2731
        %v2733 = vpop.f32.mrf.mxu0
        %v2734 = vadd.f32 0.0, %v2733
        %2735 = vmatmul.bf16.gmra.mxu0 %v1339
        %v2736 = vpop.f32.mrf.mxu0
        %v2737 = vadd.f32 0.0, %v2736
        %v2738 = vpop.f32.mrf.mxu0
        %v2739 = vadd.f32 0.0, %v2738
        %2740 = vmatmul.bf16.gmra.mxu0 %v1340
        %v2741 = vpop.f32.mrf.mxu0
        %v2742 = vadd.f32 0.0, %v2741
        %v2743 = vpop.f32.mrf.mxu0
        %v2744 = vadd.f32 0.0, %v2743
        %2745 = vmatmul.bf16.gmra.mxu0 %v1341
        %v2746 = vpop.f32.mrf.mxu0
        %v2747 = vadd.f32 0.0, %v2746
        %v2748 = vpop.f32.mrf.mxu0
        %v2749 = vadd.f32 0.0, %v2748
        %2750 = vmatmul.bf16.gmra.mxu0 %v1342
        %v2751 = vpop.f32.mrf.mxu0
        %v2752 = vadd.f32 0.0, %v2751
        %v2753 = vpop.f32.mrf.mxu0
        %v2754 = vadd.f32 0.0, %v2753
        %2755 = vmatmul.bf16.gmra.mxu0 %v1343
        %v2756 = vpop.f32.mrf.mxu0
        %v2757 = vadd.f32 0.0, %v2756
        %v2758 = vpop.f32.mrf.mxu0
        %v2759 = vadd.f32 0.0, %v2758
        %2760 = vmatmul.bf16.gmra.mxu0 %v1344
        %v2761 = vpop.f32.mrf.mxu0
        %v2762 = vadd.f32 0.0, %v2761
        %v2763 = vpop.f32.mrf.mxu0
        %v2764 = vadd.f32 0.0, %v2763
        %2765 = vmatmul.bf16.gmra.mxu0 %v1345
        %v2766 = vpop.f32.mrf.mxu0
        %v2767 = vadd.f32 0.0, %v2766
        %v2768 = vpop.f32.mrf.mxu0
        %v2769 = vadd.f32 0.0, %v2768
        %2770 = vmatmul.bf16.gmra.mxu0 %v1346
        %v2771 = vpop.f32.mrf.mxu0
        %v2772 = vadd.f32 0.0, %v2771
        %v2773 = vpop.f32.mrf.mxu0
        %v2774 = vadd.f32 0.0, %v2773
        %2775 = vmatmul.bf16.gmra.mxu0 %v1347
        %v2776 = vpop.f32.mrf.mxu0
        %v2777 = vadd.f32 0.0, %v2776
        %v2778 = vpop.f32.mrf.mxu0
        %v2779 = vadd.f32 0.0, %v2778
        %2780 = vmatmul.bf16.gmra.mxu0 %v1348
        %v2781 = vpop.f32.mrf.mxu0
        %v2782 = vadd.f32 0.0, %v2781
        %v2783 = vpop.f32.mrf.mxu0
        %v2784 = vadd.f32 0.0, %v2783
        %2785 = vmatmul.bf16.gmra.mxu0 %v1349
        %v2786 = vpop.f32.mrf.mxu0
        %v2787 = vadd.f32 0.0, %v2786
        %v2788 = vpop.f32.mrf.mxu0
        %v2789 = vadd.f32 0.0, %v2788
        %2790 = vmatmul.bf16.gmra.mxu0 %v1350
        %v2791 = vpop.f32.mrf.mxu0
        %v2792 = vadd.f32 0.0, %v2791
        %v2793 = vpop.f32.mrf.mxu0
        %v2794 = vadd.f32 0.0, %v2793
        %2795 = vmatmul.bf16.gmra.mxu0 %v1351
        %v2796 = vpop.f32.mrf.mxu0
        %v2797 = vadd.f32 0.0, %v2796
        %v2798 = vpop.f32.mrf.mxu0
        %v2799 = vadd.f32 0.0, %v2798
        %2800 = vdwg.mxu0
        %2801 = vmatpush.bf16.msra.mxu0 %v2583
        %2802 = vmatpush.bf16.msra.mxu0 %v2582
        %2803 = vmatpush.bf16.msra.mxu0 %v2581
        %2804 = vmatpush.bf16.msra.mxu0 %v2580
        %2805 = vmatpush.bf16.msra.mxu0 %v2579
        %2806 = vmatpush.bf16.msra.mxu0 %v2578
        %2807 = vmatpush.bf16.msra.mxu0 %v2577
        %2808 = vmatpush.bf16.msra.mxu0 %v2576
        %2809 = vmatmul.bf16.gmra.mxu0 %v1432
        %v2810 = vpop.f32.mrf.mxu0
        %v2811 = vadd.f32 %v2722, %v2810
        %v2812 = vpop.f32.mrf.mxu0
        %v2813 = vadd.f32 %v2724, %v2812
        %2814 = vmatmul.bf16.gmra.mxu0 %v1433
        %v2815 = vpop.f32.mrf.mxu0
        %v2816 = vadd.f32 %v2727, %v2815
        %v2817 = vpop.f32.mrf.mxu0
        %v2818 = vadd.f32 %v2729, %v2817
        %2819 = vmatmul.bf16.gmra.mxu0 %v1434
        %v2820 = vpop.f32.mrf.mxu0
        %v2821 = vadd.f32 %v2732, %v2820
        %v2822 = vpop.f32.mrf.mxu0
        %v2823 = vadd.f32 %v2734, %v2822
        %2824 = vmatmul.bf16.gmra.mxu0 %v1435
        %v2825 = vpop.f32.mrf.mxu0
        %v2826 = vadd.f32 %v2737, %v2825
        %v2827 = vpop.f32.mrf.mxu0
        %v2828 = vadd.f32 %v2739, %v2827
        %2829 = vmatmul.bf16.gmra.mxu0 %v1436
        %v2830 = vpop.f32.mrf.mxu0
        %v2831 = vadd.f32 %v2742, %v2830
        %v2832 = vpop.f32.mrf.mxu0
        %v2833 = vadd.f32 %v2744, %v2832
        %2834 = vmatmul.bf16.gmra.mxu0 %v1437
        %v2835 = vpop.f32.mrf.mxu0
        %v2836 = vadd.f32 %v2747, %v2835
        %v2837 = vpop.f32.mrf.mxu0
        %v2838 = vadd.f32 %v2749, %v2837
        %2839 = vmatmul.bf16.gmra.mxu0 %v1438
        %v2840 = vpop.f32.mrf.mxu0
        %v2841 = vadd.f32 %v2752, %v2840
        %v2842 = vpop.f32.mrf.mxu0
        %v2843 = vadd.f32 %v2754, %v2842
        %2844 = vmatmul.bf16.gmra.mxu0 %v1439
        %v2845 = vpop.f32.mrf.mxu0
        %v2846 = vadd.f32 %v2757, %v2845
        %v2847 = vpop.f32.mrf.mxu0
        %v2848 = vadd.f32 %v2759, %v2847
        %2849 = vmatmul.bf16.gmra.mxu0 %v1440
        %v2850 = vpop.f32.mrf.mxu0
        %v2851 = vadd.f32 %v2762, %v2850
        %v2852 = vpop.f32.mrf.mxu0
        %v2853 = vadd.f32 %v2764, %v2852
        %2854 = vmatmul.bf16.gmra.mxu0 %v1441
        %v2855 = vpop.f32.mrf.mxu0
        %v2856 = vadd.f32 %v2767, %v2855
        %v2857 = vpop.f32.mrf.mxu0
        %v2858 = vadd.f32 %v2769, %v2857
        %2859 = vmatmul.bf16.gmra.mxu0 %v1442
        %v2860 = vpop.f32.mrf.mxu0
        %v2861 = vadd.f32 %v2772, %v2860
        %v2862 = vpop.f32.mrf.mxu0
        %v2863 = vadd.f32 %v2774, %v2862
        %2864 = vmatmul.bf16.gmra.mxu0 %v1443
        %v2865 = vpop.f32.mrf.mxu0
        %v2866 = vadd.f32 %v2777, %v2865
        %v2867 = vpop.f32.mrf.mxu0
        %v2868 = vadd.f32 %v2779, %v2867
        %2869 = vmatmul.bf16.gmra.mxu0 %v1444
        %v2870 = vpop.f32.mrf.mxu0
        %v2871 = vadd.f32 %v2782, %v2870
        %v2872 = vpop.f32.mrf.mxu0
        %v2873 = vadd.f32 %v2784, %v2872
        %2874 = vmatmul.bf16.gmra.mxu0 %v1445
        %v2875 = vpop.f32.mrf.mxu0
        %v2876 = vadd.f32 %v2787, %v2875
        %v2877 = vpop.f32.mrf.mxu0
        %v2878 = vadd.f32 %v2789, %v2877
        %2879 = vmatmul.bf16.gmra.mxu0 %v1446
        %v2880 = vpop.f32.mrf.mxu0
        %v2881 = vadd.f32 %v2792, %v2880
        %v2882 = vpop.f32.mrf.mxu0
        %v2883 = vadd.f32 %v2794, %v2882
        %2884 = vmatmul.bf16.gmra.mxu0 %v1447
        %v2885 = vpop.f32.mrf.mxu0
        %v2886 = vadd.f32 %v2797, %v2885
        %v2887 = vpop.f32.mrf.mxu0
        %v2888 = vadd.f32 %v2799, %v2887
        %2889 = vdwg.mxu0
        %2890 = vmatpush.bf16.msra.mxu0 %v2591
        %2891 = vmatpush.bf16.msra.mxu0 %v2590
        %2892 = vmatpush.bf16.msra.mxu0 %v2589
        %2893 = vmatpush.bf16.msra.mxu0 %v2588
        %2894 = vmatpush.bf16.msra.mxu0 %v2587
        %2895 = vmatpush.bf16.msra.mxu0 %v2586
        %2896 = vmatpush.bf16.msra.mxu0 %v2585
        %2897 = vmatpush.bf16.msra.mxu0 %v2584
        %2898 = vmatmul.bf16.gmra.mxu0 %v1528
        %v2899 = vpop.f32.mrf.mxu0
        %v2900 = vadd.f32 %v2811, %v2899
        %v2901 = vpop.f32.mrf.mxu0
        %v2902 = vadd.f32 %v2813, %v2901
        %2903 = vmatmul.bf16.gmra.mxu0 %v1529
        %v2904 = vpop.f32.mrf.mxu0
        %v2905 = vadd.f32 %v2816, %v2904
        %v2906 = vpop.f32.mrf.mxu0
        %v2907 = vadd.f32 %v2818, %v2906
        %2908 = vmatmul.bf16.gmra.mxu0 %v1530
        %v2909 = vpop.f32.mrf.mxu0
        %v2910 = vadd.f32 %v2821, %v2909
        %v2911 = vpop.f32.mrf.mxu0
        %v2912 = vadd.f32 %v2823, %v2911
        %2913 = vmatmul.bf16.gmra.mxu0 %v1531
        %v2914 = vpop.f32.mrf.mxu0
        %v2915 = vadd.f32 %v2826, %v2914
        %v2916 = vpop.f32.mrf.mxu0
        %v2917 = vadd.f32 %v2828, %v2916
        %2918 = vmatmul.bf16.gmra.mxu0 %v1532
        %v2919 = vpop.f32.mrf.mxu0
        %v2920 = vadd.f32 %v2831, %v2919
        %v2921 = vpop.f32.mrf.mxu0
        %v2922 = vadd.f32 %v2833, %v2921
        %2923 = vmatmul.bf16.gmra.mxu0 %v1533
        %v2924 = vpop.f32.mrf.mxu0
        %v2925 = vadd.f32 %v2836, %v2924
        %v2926 = vpop.f32.mrf.mxu0
        %v2927 = vadd.f32 %v2838, %v2926
        %2928 = vmatmul.bf16.gmra.mxu0 %v1534
        %v2929 = vpop.f32.mrf.mxu0
        %v2930 = vadd.f32 %v2841, %v2929
        %v2931 = vpop.f32.mrf.mxu0
        %v2932 = vadd.f32 %v2843, %v2931
        %2933 = vmatmul.bf16.gmra.mxu0 %v1535
        %v2934 = vpop.f32.mrf.mxu0
        %v2935 = vadd.f32 %v2846, %v2934
        %v2936 = vpop.f32.mrf.mxu0
        %v2937 = vadd.f32 %v2848, %v2936
        %2938 = vmatmul.bf16.gmra.mxu0 %v1536
        %v2939 = vpop.f32.mrf.mxu0
        %v2940 = vadd.f32 %v2851, %v2939
        %v2941 = vpop.f32.mrf.mxu0
        %v2942 = vadd.f32 %v2853, %v2941
        %2943 = vmatmul.bf16.gmra.mxu0 %v1537
        %v2944 = vpop.f32.mrf.mxu0
        %v2945 = vadd.f32 %v2856, %v2944
        %v2946 = vpop.f32.mrf.mxu0
        %v2947 = vadd.f32 %v2858, %v2946
        %2948 = vmatmul.bf16.gmra.mxu0 %v1538
        %v2949 = vpop.f32.mrf.mxu0
        %v2950 = vadd.f32 %v2861, %v2949
        %v2951 = vpop.f32.mrf.mxu0
        %v2952 = vadd.f32 %v2863, %v2951
        %2953 = vmatmul.bf16.gmra.mxu0 %v1539
        %v2954 = vpop.f32.mrf.mxu0
        %v2955 = vadd.f32 %v2866, %v2954
        %v2956 = vpop.f32.mrf.mxu0
        %v2957 = vadd.f32 %v2868, %v2956
        %2958 = vmatmul.bf16.gmra.mxu0 %v1540
        %v2959 = vpop.f32.mrf.mxu0
        %v2960 = vadd.f32 %v2871, %v2959
        %v2961 = vpop.f32.mrf.mxu0
        %v2962 = vadd.f32 %v2873, %v2961
        %2963 = vmatmul.bf16.gmra.mxu0 %v1541
        %v2964 = vpop.f32.mrf.mxu0
        %v2965 = vadd.f32 %v2876, %v2964
        %v2966 = vpop.f32.mrf.mxu0
        %v2967 = vadd.f32 %v2878, %v2966
        %2968 = vmatmul.bf16.gmra.mxu0 %v1542
        %v2969 = vpop.f32.mrf.mxu0
        %v2970 = vadd.f32 %v2881, %v2969
        %v2971 = vpop.f32.mrf.mxu0
        %v2972 = vadd.f32 %v2883, %v2971
        %2973 = vmatmul.bf16.gmra.mxu0 %v1543
        %v2974 = vpop.f32.mrf.mxu0
        %v2975 = vadd.f32 %v2886, %v2974
        %v2976 = vpop.f32.mrf.mxu0
        %v2977 = vadd.f32 %v2888, %v2976
        %2978 = vdwg.mxu0
        %2979 = vmatpush.bf16.msra.mxu0 %v2599
        %2980 = vmatpush.bf16.msra.mxu0 %v2598
        %2981 = vmatpush.bf16.msra.mxu0 %v2597
        %2982 = vmatpush.bf16.msra.mxu0 %v2596
        %2983 = vmatpush.bf16.msra.mxu0 %v2595
        %2984 = vmatpush.bf16.msra.mxu0 %v2594
        %2985 = vmatpush.bf16.msra.mxu0 %v2593
        %2986 = vmatpush.bf16.msra.mxu0 %v2592
        %2987 = vmatmul.bf16.gmra.mxu0 %v1624
        %v2988 = vpop.f32.mrf.mxu0
        %v2989 = vadd.f32 %v2900, %v2988
        %v2990 = vpop.f32.mrf.mxu0
        %v2991 = vadd.f32 %v2902, %v2990
        %2992 = vmatmul.bf16.gmra.mxu0 %v1625
        %v2993 = vpop.f32.mrf.mxu0
        %v2994 = vadd.f32 %v2905, %v2993
        %v2995 = vpop.f32.mrf.mxu0
        %v2996 = vadd.f32 %v2907, %v2995
        %2997 = vmatmul.bf16.gmra.mxu0 %v1626
        %v2998 = vpop.f32.mrf.mxu0
        %v2999 = vadd.f32 %v2910, %v2998
        %v3000 = vpop.f32.mrf.mxu0
        %v3001 = vadd.f32 %v2912, %v3000
        %3002 = vmatmul.bf16.gmra.mxu0 %v1627
        %v3003 = vpop.f32.mrf.mxu0
        %v3004 = vadd.f32 %v2915, %v3003
        %v3005 = vpop.f32.mrf.mxu0
        %v3006 = vadd.f32 %v2917, %v3005
        %3007 = vmatmul.bf16.gmra.mxu0 %v1628
        %v3008 = vpop.f32.mrf.mxu0
        %v3009 = vadd.f32 %v2920, %v3008
        %v3010 = vpop.f32.mrf.mxu0
        %v3011 = vadd.f32 %v2922, %v3010
        %3012 = vmatmul.bf16.gmra.mxu0 %v1629
        %v3013 = vpop.f32.mrf.mxu0
        %v3014 = vadd.f32 %v2925, %v3013
        %v3015 = vpop.f32.mrf.mxu0
        %v3016 = vadd.f32 %v2927, %v3015
        %3017 = vmatmul.bf16.gmra.mxu0 %v1630
        %v3018 = vpop.f32.mrf.mxu0
        %v3019 = vadd.f32 %v2930, %v3018
        %v3020 = vpop.f32.mrf.mxu0
        %v3021 = vadd.f32 %v2932, %v3020
        %3022 = vmatmul.bf16.gmra.mxu0 %v1631
        %v3023 = vpop.f32.mrf.mxu0
        %v3024 = vadd.f32 %v2935, %v3023
        %v3025 = vpop.f32.mrf.mxu0
        %v3026 = vadd.f32 %v2937, %v3025
        %3027 = vmatmul.bf16.gmra.mxu0 %v1632
        %v3028 = vpop.f32.mrf.mxu0
        %v3029 = vadd.f32 %v2940, %v3028
        %v3030 = vpop.f32.mrf.mxu0
        %v3031 = vadd.f32 %v2942, %v3030
        %3032 = vmatmul.bf16.gmra.mxu0 %v1633
        %v3033 = vpop.f32.mrf.mxu0
        %v3034 = vadd.f32 %v2945, %v3033
        %v3035 = vpop.f32.mrf.mxu0
        %v3036 = vadd.f32 %v2947, %v3035
        %3037 = vmatmul.bf16.gmra.mxu0 %v1634
        %v3038 = vpop.f32.mrf.mxu0
        %v3039 = vadd.f32 %v2950, %v3038
        %v3040 = vpop.f32.mrf.mxu0
        %v3041 = vadd.f32 %v2952, %v3040
        %3042 = vmatmul.bf16.gmra.mxu0 %v1635
        %v3043 = vpop.f32.mrf.mxu0
        %v3044 = vadd.f32 %v2955, %v3043
        %v3045 = vpop.f32.mrf.mxu0
        %v3046 = vadd.f32 %v2957, %v3045
        %3047 = vmatmul.bf16.gmra.mxu0 %v1636
        %v3048 = vpop.f32.mrf.mxu0
        %v3049 = vadd.f32 %v2960, %v3048
        %v3050 = vpop.f32.mrf.mxu0
        %v3051 = vadd.f32 %v2962, %v3050
        %3052 = vmatmul.bf16.gmra.mxu0 %v1637
        %v3053 = vpop.f32.mrf.mxu0
        %v3054 = vadd.f32 %v2965, %v3053
        %v3055 = vpop.f32.mrf.mxu0
        %v3056 = vadd.f32 %v2967, %v3055
        %3057 = vmatmul.bf16.gmra.mxu0 %v1638
        %v3058 = vpop.f32.mrf.mxu0
        %v3059 = vadd.f32 %v2970, %v3058
        %v3060 = vpop.f32.mrf.mxu0
        %v3061 = vadd.f32 %v2972, %v3060
        %3062 = vmatmul.bf16.gmra.mxu0 %v1639
        %v3063 = vpop.f32.mrf.mxu0
        %v3064 = vadd.f32 %v2975, %v3063
        %v3065 = vpop.f32.mrf.mxu0
        %v3066 = vadd.f32 %v2977, %v3065
        %3067 = vdwg.mxu0
        %3068 = vmatpush.bf16.msra.mxu0 %v2607
        %3069 = vmatpush.bf16.msra.mxu0 %v2606
        %3070 = vmatpush.bf16.msra.mxu0 %v2605
        %3071 = vmatpush.bf16.msra.mxu0 %v2604
        %3072 = vmatpush.bf16.msra.mxu0 %v2603
        %3073 = vmatpush.bf16.msra.mxu0 %v2602
        %3074 = vmatpush.bf16.msra.mxu0 %v2601
        %3075 = vmatpush.bf16.msra.mxu0 %v2600
        %3076 = vmatmul.bf16.gmra.mxu0 %v1720
        %v3077 = vpop.f32.mrf.mxu0
        %v3078 = vadd.f32 %v2989, %v3077
        %v3079 = vpop.f32.mrf.mxu0
        %v3080 = vadd.f32 %v2991, %v3079
        %3081 = vmatmul.bf16.gmra.mxu0 %v1721
        %v3082 = vpop.f32.mrf.mxu0
        %v3083 = vadd.f32 %v2994, %v3082
        %v3084 = vpop.f32.mrf.mxu0
        %v3085 = vadd.f32 %v2996, %v3084
        %3086 = vmatmul.bf16.gmra.mxu0 %v1722
        %v3087 = vpop.f32.mrf.mxu0
        %v3088 = vadd.f32 %v2999, %v3087
        %v3089 = vpop.f32.mrf.mxu0
        %v3090 = vadd.f32 %v3001, %v3089
        %3091 = vmatmul.bf16.gmra.mxu0 %v1723
        %v3092 = vpop.f32.mrf.mxu0
        %v3093 = vadd.f32 %v3004, %v3092
        %v3094 = vpop.f32.mrf.mxu0
        %v3095 = vadd.f32 %v3006, %v3094
        %3096 = vmatmul.bf16.gmra.mxu0 %v1724
        %v3097 = vpop.f32.mrf.mxu0
        %v3098 = vadd.f32 %v3009, %v3097
        %v3099 = vpop.f32.mrf.mxu0
        %v3100 = vadd.f32 %v3011, %v3099
        %3101 = vmatmul.bf16.gmra.mxu0 %v1725
        %v3102 = vpop.f32.mrf.mxu0
        %v3103 = vadd.f32 %v3014, %v3102
        %v3104 = vpop.f32.mrf.mxu0
        %v3105 = vadd.f32 %v3016, %v3104
        %3106 = vmatmul.bf16.gmra.mxu0 %v1726
        %v3107 = vpop.f32.mrf.mxu0
        %v3108 = vadd.f32 %v3019, %v3107
        %v3109 = vpop.f32.mrf.mxu0
        %v3110 = vadd.f32 %v3021, %v3109
        %3111 = vmatmul.bf16.gmra.mxu0 %v1727
        %v3112 = vpop.f32.mrf.mxu0
        %v3113 = vadd.f32 %v3024, %v3112
        %v3114 = vpop.f32.mrf.mxu0
        %v3115 = vadd.f32 %v3026, %v3114
        %3116 = vmatmul.bf16.gmra.mxu0 %v1728
        %v3117 = vpop.f32.mrf.mxu0
        %v3118 = vadd.f32 %v3029, %v3117
        %v3119 = vpop.f32.mrf.mxu0
        %v3120 = vadd.f32 %v3031, %v3119
        %3121 = vmatmul.bf16.gmra.mxu0 %v1729
        %v3122 = vpop.f32.mrf.mxu0
        %v3123 = vadd.f32 %v3034, %v3122
        %v3124 = vpop.f32.mrf.mxu0
        %v3125 = vadd.f32 %v3036, %v3124
        %3126 = vmatmul.bf16.gmra.mxu0 %v1730
        %v3127 = vpop.f32.mrf.mxu0
        %v3128 = vadd.f32 %v3039, %v3127
        %v3129 = vpop.f32.mrf.mxu0
        %v3130 = vadd.f32 %v3041, %v3129
        %3131 = vmatmul.bf16.gmra.mxu0 %v1731
        %v3132 = vpop.f32.mrf.mxu0
        %v3133 = vadd.f32 %v3044, %v3132
        %v3134 = vpop.f32.mrf.mxu0
        %v3135 = vadd.f32 %v3046, %v3134
        %3136 = vmatmul.bf16.gmra.mxu0 %v1732
        %v3137 = vpop.f32.mrf.mxu0
        %v3138 = vadd.f32 %v3049, %v3137
        %v3139 = vpop.f32.mrf.mxu0
        %v3140 = vadd.f32 %v3051, %v3139
        %3141 = vmatmul.bf16.gmra.mxu0 %v1733
        %v3142 = vpop.f32.mrf.mxu0
        %v3143 = vadd.f32 %v3054, %v3142
        %v3144 = vpop.f32.mrf.mxu0
        %v3145 = vadd.f32 %v3056, %v3144
        %3146 = vmatmul.bf16.gmra.mxu0 %v1734
        %v3147 = vpop.f32.mrf.mxu0
        %v3148 = vadd.f32 %v3059, %v3147
        %v3149 = vpop.f32.mrf.mxu0
        %v3150 = vadd.f32 %v3061, %v3149
        %3151 = vmatmul.bf16.gmra.mxu0 %v1735
        %v3152 = vpop.f32.mrf.mxu0
        %v3153 = vadd.f32 %v3064, %v3152
        %v3154 = vpop.f32.mrf.mxu0
        %v3155 = vadd.f32 %v3066, %v3154
        %3156 = vdwg.mxu0
        %3157 = vmatpush.bf16.msra.mxu0 %v2615
        %3158 = vmatpush.bf16.msra.mxu0 %v2614
        %3159 = vmatpush.bf16.msra.mxu0 %v2613
        %3160 = vmatpush.bf16.msra.mxu0 %v2612
        %3161 = vmatpush.bf16.msra.mxu0 %v2611
        %3162 = vmatpush.bf16.msra.mxu0 %v2610
        %3163 = vmatpush.bf16.msra.mxu0 %v2609
        %3164 = vmatpush.bf16.msra.mxu0 %v2608
        %3165 = vmatmul.bf16.gmra.mxu0 %v1816
        %v3166 = vpop.f32.mrf.mxu0
        %v3167 = vadd.f32 %v3078, %v3166
        %v3168 = vpop.f32.mrf.mxu0
        %v3169 = vadd.f32 %v3080, %v3168
        %3170 = vmatmul.bf16.gmra.mxu0 %v1817
        %v3171 = vpop.f32.mrf.mxu0
        %v3172 = vadd.f32 %v3083, %v3171
        %v3173 = vpop.f32.mrf.mxu0
        %v3174 = vadd.f32 %v3085, %v3173
        %3175 = vmatmul.bf16.gmra.mxu0 %v1818
        %v3176 = vpop.f32.mrf.mxu0
        %v3177 = vadd.f32 %v3088, %v3176
        %v3178 = vpop.f32.mrf.mxu0
        %v3179 = vadd.f32 %v3090, %v3178
        %3180 = vmatmul.bf16.gmra.mxu0 %v1819
        %v3181 = vpop.f32.mrf.mxu0
        %v3182 = vadd.f32 %v3093, %v3181
        %v3183 = vpop.f32.mrf.mxu0
        %v3184 = vadd.f32 %v3095, %v3183
        %3185 = vmatmul.bf16.gmra.mxu0 %v1820
        %v3186 = vpop.f32.mrf.mxu0
        %v3187 = vadd.f32 %v3098, %v3186
        %v3188 = vpop.f32.mrf.mxu0
        %v3189 = vadd.f32 %v3100, %v3188
        %3190 = vmatmul.bf16.gmra.mxu0 %v1821
        %v3191 = vpop.f32.mrf.mxu0
        %v3192 = vadd.f32 %v3103, %v3191
        %v3193 = vpop.f32.mrf.mxu0
        %v3194 = vadd.f32 %v3105, %v3193
        %3195 = vmatmul.bf16.gmra.mxu0 %v1822
        %v3196 = vpop.f32.mrf.mxu0
        %v3197 = vadd.f32 %v3108, %v3196
        %v3198 = vpop.f32.mrf.mxu0
        %v3199 = vadd.f32 %v3110, %v3198
        %3200 = vmatmul.bf16.gmra.mxu0 %v1823
        %v3201 = vpop.f32.mrf.mxu0
        %v3202 = vadd.f32 %v3113, %v3201
        %v3203 = vpop.f32.mrf.mxu0
        %v3204 = vadd.f32 %v3115, %v3203
        %3205 = vmatmul.bf16.gmra.mxu0 %v1824
        %v3206 = vpop.f32.mrf.mxu0
        %v3207 = vadd.f32 %v3118, %v3206
        %v3208 = vpop.f32.mrf.mxu0
        %v3209 = vadd.f32 %v3120, %v3208
        %3210 = vmatmul.bf16.gmra.mxu0 %v1825
        %v3211 = vpop.f32.mrf.mxu0
        %v3212 = vadd.f32 %v3123, %v3211
        %v3213 = vpop.f32.mrf.mxu0
        %v3214 = vadd.f32 %v3125, %v3213
        %3215 = vmatmul.bf16.gmra.mxu0 %v1826
        %v3216 = vpop.f32.mrf.mxu0
        %v3217 = vadd.f32 %v3128, %v3216
        %v3218 = vpop.f32.mrf.mxu0
        %v3219 = vadd.f32 %v3130, %v3218
        %3220 = vmatmul.bf16.gmra.mxu0 %v1827
        %v3221 = vpop.f32.mrf.mxu0
        %v3222 = vadd.f32 %v3133, %v3221
        %v3223 = vpop.f32.mrf.mxu0
        %v3224 = vadd.f32 %v3135, %v3223
        %3225 = vmatmul.bf16.gmra.mxu0 %v1828
        %v3226 = vpop.f32.mrf.mxu0
        %v3227 = vadd.f32 %v3138, %v3226
        %v3228 = vpop.f32.mrf.mxu0
        %v3229 = vadd.f32 %v3140, %v3228
        %3230 = vmatmul.bf16.gmra.mxu0 %v1829
        %v3231 = vpop.f32.mrf.mxu0
        %v3232 = vadd.f32 %v3143, %v3231
        %v3233 = vpop.f32.mrf.mxu0
        %v3234 = vadd.f32 %v3145, %v3233
        %3235 = vmatmul.bf16.gmra.mxu0 %v1830
        %v3236 = vpop.f32.mrf.mxu0
        %v3237 = vadd.f32 %v3148, %v3236
        %v3238 = vpop.f32.mrf.mxu0
        %v3239 = vadd.f32 %v3150, %v3238
        %3240 = vmatmul.bf16.gmra.mxu0 %v1831
        %v3241 = vpop.f32.mrf.mxu0
        %v3242 = vadd.f32 %v3153, %v3241
        %v3243 = vpop.f32.mrf.mxu0
        %v3244 = vadd.f32 %v3155, %v3243
        %3245 = vdwg.mxu0
        %3246 = vmatpush.bf16.msra.mxu0 %v2623
        %3247 = vmatpush.bf16.msra.mxu0 %v2622
        %3248 = vmatpush.bf16.msra.mxu0 %v2621
        %3249 = vmatpush.bf16.msra.mxu0 %v2620
        %3250 = vmatpush.bf16.msra.mxu0 %v2619
        %3251 = vmatpush.bf16.msra.mxu0 %v2618
        %3252 = vmatpush.bf16.msra.mxu0 %v2617
        %3253 = vmatpush.bf16.msra.mxu0 %v2616
        %3254 = vmatmul.bf16.gmra.mxu0 %v1912
        %v3255 = vpop.f32.mrf.mxu0
        %v3256 = vadd.f32 %v3167, %v3255
        %v3257 = vpop.f32.mrf.mxu0
        %v3258 = vadd.f32 %v3169, %v3257
        %3259 = vmatmul.bf16.gmra.mxu0 %v1913
        %v3260 = vpop.f32.mrf.mxu0
        %v3261 = vadd.f32 %v3172, %v3260
        %v3262 = vpop.f32.mrf.mxu0
        %v3263 = vadd.f32 %v3174, %v3262
        %3264 = vmatmul.bf16.gmra.mxu0 %v1914
        %v3265 = vpop.f32.mrf.mxu0
        %v3266 = vadd.f32 %v3177, %v3265
        %v3267 = vpop.f32.mrf.mxu0
        %v3268 = vadd.f32 %v3179, %v3267
        %3269 = vmatmul.bf16.gmra.mxu0 %v1915
        %v3270 = vpop.f32.mrf.mxu0
        %v3271 = vadd.f32 %v3182, %v3270
        %v3272 = vpop.f32.mrf.mxu0
        %v3273 = vadd.f32 %v3184, %v3272
        %3274 = vmatmul.bf16.gmra.mxu0 %v1916
        %v3275 = vpop.f32.mrf.mxu0
        %v3276 = vadd.f32 %v3187, %v3275
        %v3277 = vpop.f32.mrf.mxu0
        %v3278 = vadd.f32 %v3189, %v3277
        %3279 = vmatmul.bf16.gmra.mxu0 %v1917
        %v3280 = vpop.f32.mrf.mxu0
        %v3281 = vadd.f32 %v3192, %v3280
        %v3282 = vpop.f32.mrf.mxu0
        %v3283 = vadd.f32 %v3194, %v3282
        %3284 = vmatmul.bf16.gmra.mxu0 %v1918
        %v3285 = vpop.f32.mrf.mxu0
        %v3286 = vadd.f32 %v3197, %v3285
        %v3287 = vpop.f32.mrf.mxu0
        %v3288 = vadd.f32 %v3199, %v3287
        %3289 = vmatmul.bf16.gmra.mxu0 %v1919
        %v3290 = vpop.f32.mrf.mxu0
        %v3291 = vadd.f32 %v3202, %v3290
        %v3292 = vpop.f32.mrf.mxu0
        %v3293 = vadd.f32 %v3204, %v3292
        %3294 = vmatmul.bf16.gmra.mxu0 %v1920
        %v3295 = vpop.f32.mrf.mxu0
        %v3296 = vadd.f32 %v3207, %v3295
        %v3297 = vpop.f32.mrf.mxu0
        %v3298 = vadd.f32 %v3209, %v3297
        %3299 = vmatmul.bf16.gmra.mxu0 %v1921
        %v3300 = vpop.f32.mrf.mxu0
        %v3301 = vadd.f32 %v3212, %v3300
        %v3302 = vpop.f32.mrf.mxu0
        %v3303 = vadd.f32 %v3214, %v3302
        %3304 = vmatmul.bf16.gmra.mxu0 %v1922
        %v3305 = vpop.f32.mrf.mxu0
        %v3306 = vadd.f32 %v3217, %v3305
        %v3307 = vpop.f32.mrf.mxu0
        %v3308 = vadd.f32 %v3219, %v3307
        %3309 = vmatmul.bf16.gmra.mxu0 %v1923
        %v3310 = vpop.f32.mrf.mxu0
        %v3311 = vadd.f32 %v3222, %v3310
        %v3312 = vpop.f32.mrf.mxu0
        %v3313 = vadd.f32 %v3224, %v3312
        %3314 = vmatmul.bf16.gmra.mxu0 %v1924
        %v3315 = vpop.f32.mrf.mxu0
        %v3316 = vadd.f32 %v3227, %v3315
        %v3317 = vpop.f32.mrf.mxu0
        %v3318 = vadd.f32 %v3229, %v3317
        %3319 = vmatmul.bf16.gmra.mxu0 %v1925
        %v3320 = vpop.f32.mrf.mxu0
        %v3321 = vadd.f32 %v3232, %v3320
        %v3322 = vpop.f32.mrf.mxu0
        %v3323 = vadd.f32 %v3234, %v3322
        %3324 = vmatmul.bf16.gmra.mxu0 %v1926
        %v3325 = vpop.f32.mrf.mxu0
        %v3326 = vadd.f32 %v3237, %v3325
        %v3327 = vpop.f32.mrf.mxu0
        %v3328 = vadd.f32 %v3239, %v3327
        %3329 = vmatmul.bf16.gmra.mxu0 %v1927
        %v3330 = vpop.f32.mrf.mxu0
        %v3331 = vadd.f32 %v3242, %v3330
        %v3332 = vpop.f32.mrf.mxu0
        %v3333 = vadd.f32 %v3244, %v3332
        %3334 = vdwg.mxu0
        %3335 = vmatpush.bf16.msra.mxu0 %v2631
        %3336 = vmatpush.bf16.msra.mxu0 %v2630
        %3337 = vmatpush.bf16.msra.mxu0 %v2629
        %3338 = vmatpush.bf16.msra.mxu0 %v2628
        %3339 = vmatpush.bf16.msra.mxu0 %v2627
        %3340 = vmatpush.bf16.msra.mxu0 %v2626
        %3341 = vmatpush.bf16.msra.mxu0 %v2625
        %3342 = vmatpush.bf16.msra.mxu0 %v2624
        %3343 = vmatmul.bf16.gmra.mxu0 %v2008
        %v3344 = vpop.f32.mrf.mxu0
        %v3345 = vadd.f32 %v3256, %v3344
        %v3346 = vpop.f32.mrf.mxu0
        %v3347 = vadd.f32 %v3258, %v3346
        %3348 = vmatmul.bf16.gmra.mxu0 %v2009
        %v3349 = vpop.f32.mrf.mxu0
        %v3350 = vadd.f32 %v3261, %v3349
        %v3351 = vpop.f32.mrf.mxu0
        %v3352 = vadd.f32 %v3263, %v3351
        %3353 = vmatmul.bf16.gmra.mxu0 %v2010
        %v3354 = vpop.f32.mrf.mxu0
        %v3355 = vadd.f32 %v3266, %v3354
        %v3356 = vpop.f32.mrf.mxu0
        %v3357 = vadd.f32 %v3268, %v3356
        %3358 = vmatmul.bf16.gmra.mxu0 %v2011
        %v3359 = vpop.f32.mrf.mxu0
        %v3360 = vadd.f32 %v3271, %v3359
        %v3361 = vpop.f32.mrf.mxu0
        %v3362 = vadd.f32 %v3273, %v3361
        %3363 = vmatmul.bf16.gmra.mxu0 %v2012
        %v3364 = vpop.f32.mrf.mxu0
        %v3365 = vadd.f32 %v3276, %v3364
        %v3366 = vpop.f32.mrf.mxu0
        %v3367 = vadd.f32 %v3278, %v3366
        %3368 = vmatmul.bf16.gmra.mxu0 %v2013
        %v3369 = vpop.f32.mrf.mxu0
        %v3370 = vadd.f32 %v3281, %v3369
        %v3371 = vpop.f32.mrf.mxu0
        %v3372 = vadd.f32 %v3283, %v3371
        %3373 = vmatmul.bf16.gmra.mxu0 %v2014
        %v3374 = vpop.f32.mrf.mxu0
        %v3375 = vadd.f32 %v3286, %v3374
        %v3376 = vpop.f32.mrf.mxu0
        %v3377 = vadd.f32 %v3288, %v3376
        %3378 = vmatmul.bf16.gmra.mxu0 %v2015
        %v3379 = vpop.f32.mrf.mxu0
        %v3380 = vadd.f32 %v3291, %v3379
        %v3381 = vpop.f32.mrf.mxu0
        %v3382 = vadd.f32 %v3293, %v3381
        %3383 = vmatmul.bf16.gmra.mxu0 %v2016
        %v3384 = vpop.f32.mrf.mxu0
        %v3385 = vadd.f32 %v3296, %v3384
        %v3386 = vpop.f32.mrf.mxu0
        %v3387 = vadd.f32 %v3298, %v3386
        %3388 = vmatmul.bf16.gmra.mxu0 %v2017
        %v3389 = vpop.f32.mrf.mxu0
        %v3390 = vadd.f32 %v3301, %v3389
        %v3391 = vpop.f32.mrf.mxu0
        %v3392 = vadd.f32 %v3303, %v3391
        %3393 = vmatmul.bf16.gmra.mxu0 %v2018
        %v3394 = vpop.f32.mrf.mxu0
        %v3395 = vadd.f32 %v3306, %v3394
        %v3396 = vpop.f32.mrf.mxu0
        %v3397 = vadd.f32 %v3308, %v3396
        %3398 = vmatmul.bf16.gmra.mxu0 %v2019
        %v3399 = vpop.f32.mrf.mxu0
        %v3400 = vadd.f32 %v3311, %v3399
        %v3401 = vpop.f32.mrf.mxu0
        %v3402 = vadd.f32 %v3313, %v3401
        %3403 = vmatmul.bf16.gmra.mxu0 %v2020
        %v3404 = vpop.f32.mrf.mxu0
        %v3405 = vadd.f32 %v3316, %v3404
        %v3406 = vpop.f32.mrf.mxu0
        %v3407 = vadd.f32 %v3318, %v3406
        %3408 = vmatmul.bf16.gmra.mxu0 %v2021
        %v3409 = vpop.f32.mrf.mxu0
        %v3410 = vadd.f32 %v3321, %v3409
        %v3411 = vpop.f32.mrf.mxu0
        %v3412 = vadd.f32 %v3323, %v3411
        %3413 = vmatmul.bf16.gmra.mxu0 %v2022
        %v3414 = vpop.f32.mrf.mxu0
        %v3415 = vadd.f32 %v3326, %v3414
        %v3416 = vpop.f32.mrf.mxu0
        %v3417 = vadd.f32 %v3328, %v3416
        %3418 = vmatmul.bf16.gmra.mxu0 %v2023
        %v3419 = vpop.f32.mrf.mxu0
        %v3420 = vadd.f32 %v3331, %v3419
        %v3421 = vpop.f32.mrf.mxu0
        %v3422 = vadd.f32 %v3333, %v3421
        %3423 = vdwg.mxu0
        %3424 = vmatpush.bf16.msra.mxu0 %v2639
        %3425 = vmatpush.bf16.msra.mxu0 %v2638
        %3426 = vmatpush.bf16.msra.mxu0 %v2637
        %3427 = vmatpush.bf16.msra.mxu0 %v2636
        %3428 = vmatpush.bf16.msra.mxu0 %v2635
        %3429 = vmatpush.bf16.msra.mxu0 %v2634
        %3430 = vmatpush.bf16.msra.mxu0 %v2633
        %3431 = vmatpush.bf16.msra.mxu0 %v2632
        %3432 = vmatmul.bf16.gmra.mxu0 %v2104
        %v3433 = vpop.f32.mrf.mxu0
        %v3434 = vadd.f32 %v3345, %v3433
        %v3435 = vpop.f32.mrf.mxu0
        %v3436 = vadd.f32 %v3347, %v3435
        %3437 = vmatmul.bf16.gmra.mxu0 %v2105
        %v3438 = vpop.f32.mrf.mxu0
        %v3439 = vadd.f32 %v3350, %v3438
        %v3440 = vpop.f32.mrf.mxu0
        %v3441 = vadd.f32 %v3352, %v3440
        %3442 = vmatmul.bf16.gmra.mxu0 %v2106
        %v3443 = vpop.f32.mrf.mxu0
        %v3444 = vadd.f32 %v3355, %v3443
        %v3445 = vpop.f32.mrf.mxu0
        %v3446 = vadd.f32 %v3357, %v3445
        %3447 = vmatmul.bf16.gmra.mxu0 %v2107
        %v3448 = vpop.f32.mrf.mxu0
        %v3449 = vadd.f32 %v3360, %v3448
        %v3450 = vpop.f32.mrf.mxu0
        %v3451 = vadd.f32 %v3362, %v3450
        %3452 = vmatmul.bf16.gmra.mxu0 %v2108
        %v3453 = vpop.f32.mrf.mxu0
        %v3454 = vadd.f32 %v3365, %v3453
        %v3455 = vpop.f32.mrf.mxu0
        %v3456 = vadd.f32 %v3367, %v3455
        %3457 = vmatmul.bf16.gmra.mxu0 %v2109
        %v3458 = vpop.f32.mrf.mxu0
        %v3459 = vadd.f32 %v3370, %v3458
        %v3460 = vpop.f32.mrf.mxu0
        %v3461 = vadd.f32 %v3372, %v3460
        %3462 = vmatmul.bf16.gmra.mxu0 %v2110
        %v3463 = vpop.f32.mrf.mxu0
        %v3464 = vadd.f32 %v3375, %v3463
        %v3465 = vpop.f32.mrf.mxu0
        %v3466 = vadd.f32 %v3377, %v3465
        %3467 = vmatmul.bf16.gmra.mxu0 %v2111
        %v3468 = vpop.f32.mrf.mxu0
        %v3469 = vadd.f32 %v3380, %v3468
        %v3470 = vpop.f32.mrf.mxu0
        %v3471 = vadd.f32 %v3382, %v3470
        %3472 = vmatmul.bf16.gmra.mxu0 %v2112
        %v3473 = vpop.f32.mrf.mxu0
        %v3474 = vadd.f32 %v3385, %v3473
        %v3475 = vpop.f32.mrf.mxu0
        %v3476 = vadd.f32 %v3387, %v3475
        %3477 = vmatmul.bf16.gmra.mxu0 %v2113
        %v3478 = vpop.f32.mrf.mxu0
        %v3479 = vadd.f32 %v3390, %v3478
        %v3480 = vpop.f32.mrf.mxu0
        %v3481 = vadd.f32 %v3392, %v3480
        %3482 = vmatmul.bf16.gmra.mxu0 %v2114
        %v3483 = vpop.f32.mrf.mxu0
        %v3484 = vadd.f32 %v3395, %v3483
        %v3485 = vpop.f32.mrf.mxu0
        %v3486 = vadd.f32 %v3397, %v3485
        %3487 = vmatmul.bf16.gmra.mxu0 %v2115
        %v3488 = vpop.f32.mrf.mxu0
        %v3489 = vadd.f32 %v3400, %v3488
        %v3490 = vpop.f32.mrf.mxu0
        %v3491 = vadd.f32 %v3402, %v3490
        %3492 = vmatmul.bf16.gmra.mxu0 %v2116
        %v3493 = vpop.f32.mrf.mxu0
        %v3494 = vadd.f32 %v3405, %v3493
        %v3495 = vpop.f32.mrf.mxu0
        %v3496 = vadd.f32 %v3407, %v3495
        %3497 = vmatmul.bf16.gmra.mxu0 %v2117
        %v3498 = vpop.f32.mrf.mxu0
        %v3499 = vadd.f32 %v3410, %v3498
        %v3500 = vpop.f32.mrf.mxu0
        %v3501 = vadd.f32 %v3412, %v3500
        %3502 = vmatmul.bf16.gmra.mxu0 %v2118
        %v3503 = vpop.f32.mrf.mxu0
        %v3504 = vadd.f32 %v3415, %v3503
        %v3505 = vpop.f32.mrf.mxu0
        %v3506 = vadd.f32 %v3417, %v3505
        %3507 = vmatmul.bf16.gmra.mxu0 %v2119
        %v3508 = vpop.f32.mrf.mxu0
        %v3509 = vadd.f32 %v3420, %v3508
        %v3510 = vpop.f32.mrf.mxu0
        %v3511 = vadd.f32 %v3422, %v3510
        %3512 = vdwg.mxu0
        %v3513 = vperm.slane %v726, 0
        %v3514 = vmul.f32 %v3434, %v3513
        %v3515 = vmul.f32 %v3436, %v3513
        %v3516 = vmul.f32 %v3439, %v3513
        %v3517 = vmul.f32 %v3441, %v3513
        %v3518 = vmul.f32 %v3444, %v3513
        %v3519 = vmul.f32 %v3446, %v3513
        %v3520 = vmul.f32 %v3449, %v3513
        %v3521 = vmul.f32 %v3451, %v3513
        %v3522 = vmul.f32 %v3454, %v3513
        %v3523 = vmul.f32 %v3456, %v3513
        %v3524 = vmul.f32 %v3459, %v3513
        %v3525 = vmul.f32 %v3461, %v3513
        %v3526 = vmul.f32 %v3464, %v3513
        %v3527 = vmul.f32 %v3466, %v3513
        %v3528 = vmul.f32 %v3469, %v3513
        %v3529 = vmul.f32 %v3471, %v3513
        %v3530 = vmul.f32 %v3474, %v3513
        %v3531 = vmul.f32 %v3476, %v3513
        %v3532 = vmul.f32 %v3479, %v3513
        %v3533 = vmul.f32 %v3481, %v3513
        %v3534 = vmul.f32 %v3484, %v3513
        %v3535 = vmul.f32 %v3486, %v3513
        %v3536 = vmul.f32 %v3489, %v3513
        %v3537 = vmul.f32 %v3491, %v3513
        %v3538 = vmul.f32 %v3494, %v3513
        %v3539 = vmul.f32 %v3496, %v3513
        %v3540 = vmul.f32 %v3499, %v3513
        %v3541 = vmul.f32 %v3501, %v3513
        %v3542 = vmul.f32 %v3504, %v3513
        %v3543 = vmul.f32 %v3506, %v3513
        %v3544 = vmul.f32 %v3509, %v3513
        %v3545 = vmul.f32 %v3511, %v3513
        %v3546 = vperm.slane %v726, 1
        %v3547 = vadd.f32 %v3514, %v3546
        %v3548 = vadd.f32 %v3515, %v3546
        %v3549 = vadd.f32 %v3516, %v3546
        %v3550 = vadd.f32 %v3517, %v3546
        %v3551 = vadd.f32 %v3518, %v3546
        %v3552 = vadd.f32 %v3519, %v3546
        %v3553 = vadd.f32 %v3520, %v3546
        %v3554 = vadd.f32 %v3521, %v3546
        %v3555 = vadd.f32 %v3522, %v3546
        %v3556 = vadd.f32 %v3523, %v3546
        %v3557 = vadd.f32 %v3524, %v3546
        %v3558 = vadd.f32 %v3525, %v3546
        %v3559 = vadd.f32 %v3526, %v3546
        %v3560 = vadd.f32 %v3527, %v3546
        %v3561 = vadd.f32 %v3528, %v3546
        %v3562 = vadd.f32 %v3529, %v3546
        %v3563 = vadd.f32 %v3530, %v3546
        %v3564 = vadd.f32 %v3531, %v3546
        %v3565 = vadd.f32 %v3532, %v3546
        %v3566 = vadd.f32 %v3533, %v3546
        %v3567 = vadd.f32 %v3534, %v3546
        %v3568 = vadd.f32 %v3535, %v3546
        %v3569 = vadd.f32 %v3536, %v3546
        %v3570 = vadd.f32 %v3537, %v3546
        %v3571 = vadd.f32 %v3538, %v3546
        %v3572 = vadd.f32 %v3539, %v3546
        %v3573 = vadd.f32 %v3540, %v3546
        %v3574 = vadd.f32 %v3541, %v3546
        %v3575 = vadd.f32 %v3542, %v3546
        %v3576 = vadd.f32 %v3543, %v3546
        %v3577 = vadd.f32 %v3544, %v3546
        %v3578 = vadd.f32 %v3545, %v3546
        %v3579 = vmax.f32 %v3547, 0.0
        %v3580 = vmax.f32 %v3548, 0.0
        %v3581 = vmax.f32 %v3549, 0.0
        %v3582 = vmax.f32 %v3550, 0.0
        %v3583 = vmax.f32 %v3551, 0.0
        %v3584 = vmax.f32 %v3552, 0.0
        %v3585 = vmax.f32 %v3553, 0.0
        %v3586 = vmax.f32 %v3554, 0.0
        %v3587 = vmax.f32 %v3555, 0.0
        %v3588 = vmax.f32 %v3556, 0.0
        %v3589 = vmax.f32 %v3557, 0.0
        %v3590 = vmax.f32 %v3558, 0.0
        %v3591 = vmax.f32 %v3559, 0.0
        %v3592 = vmax.f32 %v3560, 0.0
        %v3593 = vmax.f32 %v3561, 0.0
        %v3594 = vmax.f32 %v3562, 0.0
        %v3595 = vmax.f32 %v3563, 0.0
        %v3596 = vmax.f32 %v3564, 0.0
        %v3597 = vmax.f32 %v3565, 0.0
        %v3598 = vmax.f32 %v3566, 0.0
        %v3599 = vmax.f32 %v3567, 0.0
        %v3600 = vmax.f32 %v3568, 0.0
        %v3601 = vmax.f32 %v3569, 0.0
        %v3602 = vmax.f32 %v3570, 0.0
        %v3603 = vmax.f32 %v3571, 0.0
        %v3604 = vmax.f32 %v3572, 0.0
        %v3605 = vmax.f32 %v3573, 0.0
        %v3606 = vmax.f32 %v3574, 0.0
        %v3607 = vmax.f32 %v3575, 0.0
        %v3608 = vmax.f32 %v3576, 0.0
        %v3609 = vmax.f32 %v3577, 0.0
        %v3610 = vmax.f32 %v3578, 0.0
        %s3611 = scalar_lea.vmem [#allocation3], 24
        %3612 = vst [vmem:[%s3611 + $0x1] sm:$0xff] %v3579
        %3613 = vst [vmem:[%s3611 + $0x9] sm:$0xff] %v3580
        %3614 = vst [vmem:[%s3611 + $0x19] sm:$0xff] %v3581
        %3615 = vst [vmem:[%s3611 + $0x21] sm:$0xff] %v3582
        %3616 = vst [vmem:[%s3611 + $0x31] sm:$0xff] %v3583
        %3617 = vst [vmem:[%s3611 + $0x39] sm:$0xff] %v3584
        %3618 = vst [vmem:[%s3611 + $0x49] sm:$0xff] %v3585
        %3619 = vst [vmem:[%s3611 + $0x51] sm:$0xff] %v3586
        %3620 = vst [vmem:[%s3611 + $0x61] sm:$0xff] %v3587
        %3621 = vst [vmem:[%s3611 + $0x69] sm:$0xff] %v3588
        %3622 = vst [vmem:[%s3611 + $0x79] sm:$0xff] %v3589
        %3623 = vst [vmem:[%s3611 + $0x81] sm:$0xff] %v3590
        %3624 = vst [vmem:[%s3611 + $0x91] sm:$0xff] %v3591
        %3625 = vst [vmem:[%s3611 + $0x99] sm:$0xff] %v3592
        %3626 = vst [vmem:[%s3611 + $0xa9] sm:$0xff] %v3593
        %3627 = vst [vmem:[%s3611 + $0xb1] sm:$0xff] %v3594
        %3628 = vst [vmem:[%s3611 + $0xc1] sm:$0xff] %v3595
        %3629 = vst [vmem:[%s3611 + $0xc9] sm:$0xff] %v3596
        %3630 = vst [vmem:[%s3611 + $0xd9] sm:$0xff] %v3597
        %3631 = vst [vmem:[%s3611 + $0xe1] sm:$0xff] %v3598
        %3632 = vst [vmem:[%s3611 + $0xf1] sm:$0xff] %v3599
        %3633 = vst [vmem:[%s3611 + $0xf9] sm:$0xff] %v3600
        %3634 = vst [vmem:[%s3611 + $0x109] sm:$0xff] %v3601
        %3635 = vst [vmem:[%s3611 + $0x111] sm:$0xff] %v3602
        %3636 = vst [vmem:[%s3611 + $0x121] sm:$0xff] %v3603
        %3637 = vst [vmem:[%s3611 + $0x129] sm:$0xff] %v3604
        %3638 = vst [vmem:[%s3611 + $0x139] sm:$0xff] %v3605
        %3639 = vst [vmem:[%s3611 + $0x141] sm:$0xff] %v3606
        %3640 = vst [vmem:[%s3611 + $0x151] sm:$0xff] %v3607
        %3641 = vst [vmem:[%s3611 + $0x159] sm:$0xff] %v3608
        %3642 = vst [vmem:[%s3611 + $0x169] sm:$0xff] %v3609
        %3643 = vst [vmem:[%s3611 + $0x171] sm:$0xff] %v3610
        %v3644 = vld [vmem:[%s427] sm:$0x3]
        %v3645 = vld [vmem:[#allocation3] sm:$0xff]
        %v3646 = vld [vmem:[#allocation3 + $0x8] sm:$0xff]
        %v3647 = vld [vmem:[#allocation3 + $0x18] sm:$0xff]
        %v3648 = vld [vmem:[#allocation3 + $0x20] sm:$0xff]
        %v3649 = vld [vmem:[#allocation3 + $0x30] sm:$0xff]
        %v3650 = vld [vmem:[#allocation3 + $0x38] sm:$0xff]
        %v3651 = vld [vmem:[#allocation3 + $0x48] sm:$0xff]
        %v3652 = vld [vmem:[#allocation3 + $0x50] sm:$0xff]
        %v3653 = vld [vmem:[#allocation3 + $0x60] sm:$0xff]
        %v3654 = vld [vmem:[#allocation3 + $0x68] sm:$0xff]
        %v3655 = vld [vmem:[#allocation3 + $0x78] sm:$0xff]
        %v3656 = vld [vmem:[#allocation3 + $0x80] sm:$0xff]
        %v3657 = vld [vmem:[#allocation3 + $0x90] sm:$0xff]
        %v3658 = vld [vmem:[#allocation3 + $0x98] sm:$0xff]
        %v3659 = vld [vmem:[#allocation3 + $0xa8] sm:$0xff]
        %v3660 = vld [vmem:[#allocation3 + $0xb0] sm:$0xff]
        %v3661 = vld [vmem:[#allocation3 + $0xc0] sm:$0xff]
        %v3662 = vld [vmem:[#allocation3 + $0xc8] sm:$0xff]
        %v3663 = vld [vmem:[#allocation3 + $0xd8] sm:$0xff]
        %v3664 = vld [vmem:[#allocation3 + $0xe0] sm:$0xff]
        %v3665 = vld [vmem:[#allocation3 + $0xf0] sm:$0xff]
        %v3666 = vld [vmem:[#allocation3 + $0xf8] sm:$0xff]
        %v3667 = vld [vmem:[#allocation3 + $0x108] sm:$0xff]
        %v3668 = vld [vmem:[#allocation3 + $0x110] sm:$0xff]
        %v3669 = vld [vmem:[#allocation3 + $0x120] sm:$0xff]
        %v3670 = vld [vmem:[#allocation3 + $0x128] sm:$0xff]
        %v3671 = vld [vmem:[#allocation3 + $0x138] sm:$0xff]
        %v3672 = vld [vmem:[#allocation3 + $0x140] sm:$0xff]
        %v3673 = vld [vmem:[#allocation3 + $0x150] sm:$0xff]
        %v3674 = vld [vmem:[#allocation3 + $0x158] sm:$0xff]
        %v3675 = vld [vmem:[#allocation3 + $0x168] sm:$0xff]
        %v3676 = vld [vmem:[#allocation3 + $0x170] sm:$0xff]
        %v3677 = vpack.c.bf16 %v3645, %v3645
        %v3678 = vpack.c.bf16 %v3646, %v3646
        %v3679 = vpack.c.bf16 %v3647, %v3647
        %v3680 = vpack.c.bf16 %v3648, %v3648
        %v3681 = vpack.c.bf16 %v3649, %v3649
        %v3682 = vpack.c.bf16 %v3650, %v3650
        %v3683 = vpack.c.bf16 %v3651, %v3651
        %v3684 = vpack.c.bf16 %v3652, %v3652
        %v3685 = vpack.c.bf16 %v3653, %v3653
        %v3686 = vpack.c.bf16 %v3654, %v3654
        %v3687 = vpack.c.bf16 %v3655, %v3655
        %v3688 = vpack.c.bf16 %v3656, %v3656
        %v3689 = vpack.c.bf16 %v3657, %v3657
        %v3690 = vpack.c.bf16 %v3658, %v3658
        %v3691 = vpack.c.bf16 %v3659, %v3659
        %v3692 = vpack.c.bf16 %v3660, %v3660
        %v3693 = vpack.c.bf16 %v3661, %v3661
        %v3694 = vpack.c.bf16 %v3662, %v3662
        %v3695 = vpack.c.bf16 %v3663, %v3663
        %v3696 = vpack.c.bf16 %v3664, %v3664
        %v3697 = vpack.c.bf16 %v3665, %v3665
        %v3698 = vpack.c.bf16 %v3666, %v3666
        %v3699 = vpack.c.bf16 %v3667, %v3667
        %v3700 = vpack.c.bf16 %v3668, %v3668
        %v3701 = vpack.c.bf16 %v3669, %v3669
        %v3702 = vpack.c.bf16 %v3670, %v3670
        %v3703 = vpack.c.bf16 %v3671, %v3671
        %v3704 = vpack.c.bf16 %v3672, %v3672
        %v3705 = vpack.c.bf16 %v3673, %v3673
        %v3706 = vpack.c.bf16 %v3674, %v3674
        %v3707 = vpack.c.bf16 %v3675, %v3675
        %v3708 = vpack.c.bf16 %v3676, %v3676
        %v3709 = vld [vmem:[#allocation3 + $0x1] sm:$0xff]
        %v3710 = vld [vmem:[#allocation3 + $0x9] sm:$0xff]
        %v3711 = vld [vmem:[#allocation3 + $0x19] sm:$0xff]
        %v3712 = vld [vmem:[#allocation3 + $0x21] sm:$0xff]
        %v3713 = vld [vmem:[#allocation3 + $0x31] sm:$0xff]
        %v3714 = vld [vmem:[#allocation3 + $0x39] sm:$0xff]
        %v3715 = vld [vmem:[#allocation3 + $0x49] sm:$0xff]
        %v3716 = vld [vmem:[#allocation3 + $0x51] sm:$0xff]
        %v3717 = vld [vmem:[#allocation3 + $0x61] sm:$0xff]
        %v3718 = vld [vmem:[#allocation3 + $0x69] sm:$0xff]
        %v3719 = vld [vmem:[#allocation3 + $0x79] sm:$0xff]
        %v3720 = vld [vmem:[#allocation3 + $0x81] sm:$0xff]
        %v3721 = vld [vmem:[#allocation3 + $0x91] sm:$0xff]
        %v3722 = vld [vmem:[#allocation3 + $0x99] sm:$0xff]
        %v3723 = vld [vmem:[#allocation3 + $0xa9] sm:$0xff]
        %v3724 = vld [vmem:[#allocation3 + $0xb1] sm:$0xff]
        %v3725 = vld [vmem:[#allocation3 + $0xc1] sm:$0xff]
        %v3726 = vld [vmem:[#allocation3 + $0xc9] sm:$0xff]
        %v3727 = vld [vmem:[#allocation3 + $0xd9] sm:$0xff]
        %v3728 = vld [vmem:[#allocation3 + $0xe1] sm:$0xff]
        %v3729 = vld [vmem:[#allocation3 + $0xf1] sm:$0xff]
        %v3730 = vld [vmem:[#allocation3 + $0xf9] sm:$0xff]
        %v3731 = vld [vmem:[#allocation3 + $0x109] sm:$0xff]
        %v3732 = vld [vmem:[#allocation3 + $0x111] sm:$0xff]
        %v3733 = vld [vmem:[#allocation3 + $0x121] sm:$0xff]
        %v3734 = vld [vmem:[#allocation3 + $0x129] sm:$0xff]
        %v3735 = vld [vmem:[#allocation3 + $0x139] sm:$0xff]
        %v3736 = vld [vmem:[#allocation3 + $0x141] sm:$0xff]
        %v3737 = vld [vmem:[#allocation3 + $0x151] sm:$0xff]
        %v3738 = vld [vmem:[#allocation3 + $0x159] sm:$0xff]
        %v3739 = vld [vmem:[#allocation3 + $0x169] sm:$0xff]
        %v3740 = vld [vmem:[#allocation3 + $0x171] sm:$0xff]
        %v3741 = vpack.c.bf16 %v3709, %v3709
        %v3742 = vpack.c.bf16 %v3710, %v3710
        %v3743 = vpack.c.bf16 %v3711, %v3711
        %v3744 = vpack.c.bf16 %v3712, %v3712
        %v3745 = vpack.c.bf16 %v3713, %v3713
        %v3746 = vpack.c.bf16 %v3714, %v3714
        %v3747 = vpack.c.bf16 %v3715, %v3715
        %v3748 = vpack.c.bf16 %v3716, %v3716
        %v3749 = vpack.c.bf16 %v3717, %v3717
        %v3750 = vpack.c.bf16 %v3718, %v3718
        %v3751 = vpack.c.bf16 %v3719, %v3719
        %v3752 = vpack.c.bf16 %v3720, %v3720
        %v3753 = vpack.c.bf16 %v3721, %v3721
        %v3754 = vpack.c.bf16 %v3722, %v3722
        %v3755 = vpack.c.bf16 %v3723, %v3723
        %v3756 = vpack.c.bf16 %v3724, %v3724
        %v3757 = vpack.c.bf16 %v3725, %v3725
        %v3758 = vpack.c.bf16 %v3726, %v3726
        %v3759 = vpack.c.bf16 %v3727, %v3727
        %v3760 = vpack.c.bf16 %v3728, %v3728
        %v3761 = vpack.c.bf16 %v3729, %v3729
        %v3762 = vpack.c.bf16 %v3730, %v3730
        %v3763 = vpack.c.bf16 %v3731, %v3731
        %v3764 = vpack.c.bf16 %v3732, %v3732
        %v3765 = vpack.c.bf16 %v3733, %v3733
        %v3766 = vpack.c.bf16 %v3734, %v3734
        %v3767 = vpack.c.bf16 %v3735, %v3735
        %v3768 = vpack.c.bf16 %v3736, %v3736
        %v3769 = vpack.c.bf16 %v3737, %v3737
        %v3770 = vpack.c.bf16 %v3738, %v3738
        %v3771 = vpack.c.bf16 %v3739, %v3739
        %v3772 = vpack.c.bf16 %v3740, %v3740
        %v3773 = vld [vmem:[#allocation3 + $0x2] sm:$0xff]
        %v3774 = vld [vmem:[#allocation3 + $0xa] sm:$0xff]
        %v3775 = vld [vmem:[#allocation3 + $0x1a] sm:$0xff]
        %v3776 = vld [vmem:[#allocation3 + $0x22] sm:$0xff]
        %v3777 = vld [vmem:[#allocation3 + $0x32] sm:$0xff]
        %v3778 = vld [vmem:[#allocation3 + $0x3a] sm:$0xff]
        %v3779 = vld [vmem:[#allocation3 + $0x4a] sm:$0xff]
        %v3780 = vld [vmem:[#allocation3 + $0x52] sm:$0xff]
        %v3781 = vld [vmem:[#allocation3 + $0x62] sm:$0xff]
        %v3782 = vld [vmem:[#allocation3 + $0x6a] sm:$0xff]
        %v3783 = vld [vmem:[#allocation3 + $0x7a] sm:$0xff]
        %v3784 = vld [vmem:[#allocation3 + $0x82] sm:$0xff]
        %v3785 = vld [vmem:[#allocation3 + $0x92] sm:$0xff]
        %v3786 = vld [vmem:[#allocation3 + $0x9a] sm:$0xff]
        %v3787 = vld [vmem:[#allocation3 + $0xaa] sm:$0xff]
        %v3788 = vld [vmem:[#allocation3 + $0xb2] sm:$0xff]
        %v3789 = vld [vmem:[#allocation3 + $0xc2] sm:$0xff]
        %v3790 = vld [vmem:[#allocation3 + $0xca] sm:$0xff]
        %v3791 = vld [vmem:[#allocation3 + $0xda] sm:$0xff]
        %v3792 = vld [vmem:[#allocation3 + $0xe2] sm:$0xff]
        %v3793 = vld [vmem:[#allocation3 + $0xf2] sm:$0xff]
        %v3794 = vld [vmem:[#allocation3 + $0xfa] sm:$0xff]
        %v3795 = vld [vmem:[#allocation3 + $0x10a] sm:$0xff]
        %v3796 = vld [vmem:[#allocation3 + $0x112] sm:$0xff]
        %v3797 = vld [vmem:[#allocation3 + $0x122] sm:$0xff]
        %v3798 = vld [vmem:[#allocation3 + $0x12a] sm:$0xff]
        %v3799 = vld [vmem:[#allocation3 + $0x13a] sm:$0xff]
        %v3800 = vld [vmem:[#allocation3 + $0x142] sm:$0xff]
        %v3801 = vld [vmem:[#allocation3 + $0x152] sm:$0xff]
        %v3802 = vld [vmem:[#allocation3 + $0x15a] sm:$0xff]
        %v3803 = vld [vmem:[#allocation3 + $0x16a] sm:$0xff]
        %v3804 = vld [vmem:[#allocation3 + $0x172] sm:$0xff]
        %v3805 = vpack.c.bf16 %v3773, %v3773
        %v3806 = vpack.c.bf16 %v3774, %v3774
        %v3807 = vpack.c.bf16 %v3775, %v3775
        %v3808 = vpack.c.bf16 %v3776, %v3776
        %v3809 = vpack.c.bf16 %v3777, %v3777
        %v3810 = vpack.c.bf16 %v3778, %v3778
        %v3811 = vpack.c.bf16 %v3779, %v3779
        %v3812 = vpack.c.bf16 %v3780, %v3780
        %v3813 = vpack.c.bf16 %v3781, %v3781
        %v3814 = vpack.c.bf16 %v3782, %v3782
        %v3815 = vpack.c.bf16 %v3783, %v3783
        %v3816 = vpack.c.bf16 %v3784, %v3784
        %v3817 = vpack.c.bf16 %v3785, %v3785
        %v3818 = vpack.c.bf16 %v3786, %v3786
        %v3819 = vpack.c.bf16 %v3787, %v3787
        %v3820 = vpack.c.bf16 %v3788, %v3788
        %v3821 = vpack.c.bf16 %v3789, %v3789
        %v3822 = vpack.c.bf16 %v3790, %v3790
        %v3823 = vpack.c.bf16 %v3791, %v3791
        %v3824 = vpack.c.bf16 %v3792, %v3792
        %v3825 = vpack.c.bf16 %v3793, %v3793
        %v3826 = vpack.c.bf16 %v3794, %v3794
        %v3827 = vpack.c.bf16 %v3795, %v3795
        %v3828 = vpack.c.bf16 %v3796, %v3796
        %v3829 = vpack.c.bf16 %v3797, %v3797
        %v3830 = vpack.c.bf16 %v3798, %v3798
        %v3831 = vpack.c.bf16 %v3799, %v3799
        %v3832 = vpack.c.bf16 %v3800, %v3800
        %v3833 = vpack.c.bf16 %v3801, %v3801
        %v3834 = vpack.c.bf16 %v3802, %v3802
        %v3835 = vpack.c.bf16 %v3803, %v3803
        %v3836 = vpack.c.bf16 %v3804, %v3804
        %v3837 = vld [vmem:[%s3611] sm:$0xff]
        %v3838 = vld [vmem:[%s3611 + $0x8] sm:$0xff]
        %v3839 = vld [vmem:[%s3611 + $0x18] sm:$0xff]
        %v3840 = vld [vmem:[%s3611 + $0x20] sm:$0xff]
        %v3841 = vld [vmem:[%s3611 + $0x30] sm:$0xff]
        %v3842 = vld [vmem:[%s3611 + $0x38] sm:$0xff]
        %v3843 = vld [vmem:[%s3611 + $0x48] sm:$0xff]
        %v3844 = vld [vmem:[%s3611 + $0x50] sm:$0xff]
        %v3845 = vld [vmem:[%s3611 + $0x60] sm:$0xff]
        %v3846 = vld [vmem:[%s3611 + $0x68] sm:$0xff]
        %v3847 = vld [vmem:[%s3611 + $0x78] sm:$0xff]
        %v3848 = vld [vmem:[%s3611 + $0x80] sm:$0xff]
        %v3849 = vld [vmem:[%s3611 + $0x90] sm:$0xff]
        %v3850 = vld [vmem:[%s3611 + $0x98] sm:$0xff]
        %v3851 = vld [vmem:[%s3611 + $0xa8] sm:$0xff]
        %v3852 = vld [vmem:[%s3611 + $0xb0] sm:$0xff]
        %v3853 = vld [vmem:[%s3611 + $0xc0] sm:$0xff]
        %v3854 = vld [vmem:[%s3611 + $0xc8] sm:$0xff]
        %v3855 = vld [vmem:[%s3611 + $0xd8] sm:$0xff]
        %v3856 = vld [vmem:[%s3611 + $0xe0] sm:$0xff]
        %v3857 = vld [vmem:[%s3611 + $0xf0] sm:$0xff]
        %v3858 = vld [vmem:[%s3611 + $0xf8] sm:$0xff]
        %v3859 = vld [vmem:[%s3611 + $0x108] sm:$0xff]
        %v3860 = vld [vmem:[%s3611 + $0x110] sm:$0xff]
        %v3861 = vld [vmem:[%s3611 + $0x120] sm:$0xff]
        %v3862 = vld [vmem:[%s3611 + $0x128] sm:$0xff]
        %v3863 = vld [vmem:[%s3611 + $0x138] sm:$0xff]
        %v3864 = vld [vmem:[%s3611 + $0x140] sm:$0xff]
        %v3865 = vld [vmem:[%s3611 + $0x150] sm:$0xff]
        %v3866 = vld [vmem:[%s3611 + $0x158] sm:$0xff]
        %v3867 = vld [vmem:[%s3611 + $0x168] sm:$0xff]
        %v3868 = vld [vmem:[%s3611 + $0x170] sm:$0xff]
        %v3869 = vpack.c.bf16 %v3837, %v3837
        %v3870 = vpack.c.bf16 %v3838, %v3838
        %v3871 = vpack.c.bf16 %v3839, %v3839
        %v3872 = vpack.c.bf16 %v3840, %v3840
        %v3873 = vpack.c.bf16 %v3841, %v3841
        %v3874 = vpack.c.bf16 %v3842, %v3842
        %v3875 = vpack.c.bf16 %v3843, %v3843
        %v3876 = vpack.c.bf16 %v3844, %v3844
        %v3877 = vpack.c.bf16 %v3845, %v3845
        %v3878 = vpack.c.bf16 %v3846, %v3846
        %v3879 = vpack.c.bf16 %v3847, %v3847
        %v3880 = vpack.c.bf16 %v3848, %v3848
        %v3881 = vpack.c.bf16 %v3849, %v3849
        %v3882 = vpack.c.bf16 %v3850, %v3850
        %v3883 = vpack.c.bf16 %v3851, %v3851
        %v3884 = vpack.c.bf16 %v3852, %v3852
        %v3885 = vpack.c.bf16 %v3853, %v3853
        %v3886 = vpack.c.bf16 %v3854, %v3854
        %v3887 = vpack.c.bf16 %v3855, %v3855
        %v3888 = vpack.c.bf16 %v3856, %v3856
        %v3889 = vpack.c.bf16 %v3857, %v3857
        %v3890 = vpack.c.bf16 %v3858, %v3858
        %v3891 = vpack.c.bf16 %v3859, %v3859
        %v3892 = vpack.c.bf16 %v3860, %v3860
        %v3893 = vpack.c.bf16 %v3861, %v3861
        %v3894 = vpack.c.bf16 %v3862, %v3862
        %v3895 = vpack.c.bf16 %v3863, %v3863
        %v3896 = vpack.c.bf16 %v3864, %v3864
        %v3897 = vpack.c.bf16 %v3865, %v3865
        %v3898 = vpack.c.bf16 %v3866, %v3866
        %v3899 = vpack.c.bf16 %v3867, %v3867
        %v3900 = vpack.c.bf16 %v3868, %v3868
        %v3901 = vld [vmem:[%s3611 + $0x1] sm:$0xff]
        %v3902 = vld [vmem:[%s3611 + $0x9] sm:$0xff]
        %v3903 = vld [vmem:[%s3611 + $0x19] sm:$0xff]
        %v3904 = vld [vmem:[%s3611 + $0x21] sm:$0xff]
        %v3905 = vld [vmem:[%s3611 + $0x31] sm:$0xff]
        %v3906 = vld [vmem:[%s3611 + $0x39] sm:$0xff]
        %v3907 = vld [vmem:[%s3611 + $0x49] sm:$0xff]
        %v3908 = vld [vmem:[%s3611 + $0x51] sm:$0xff]
        %v3909 = vld [vmem:[%s3611 + $0x61] sm:$0xff]
        %v3910 = vld [vmem:[%s3611 + $0x69] sm:$0xff]
        %v3911 = vld [vmem:[%s3611 + $0x79] sm:$0xff]
        %v3912 = vld [vmem:[%s3611 + $0x81] sm:$0xff]
        %v3913 = vld [vmem:[%s3611 + $0x91] sm:$0xff]
        %v3914 = vld [vmem:[%s3611 + $0x99] sm:$0xff]
        %v3915 = vld [vmem:[%s3611 + $0xa9] sm:$0xff]
        %v3916 = vld [vmem:[%s3611 + $0xb1] sm:$0xff]
        %v3917 = vld [vmem:[%s3611 + $0xc1] sm:$0xff]
        %v3918 = vld [vmem:[%s3611 + $0xc9] sm:$0xff]
        %v3919 = vld [vmem:[%s3611 + $0xd9] sm:$0xff]
        %v3920 = vld [vmem:[%s3611 + $0xe1] sm:$0xff]
        %v3921 = vld [vmem:[%s3611 + $0xf1] sm:$0xff]
        %v3922 = vld [vmem:[%s3611 + $0xf9] sm:$0xff]
        %v3923 = vld [vmem:[%s3611 + $0x109] sm:$0xff]
        %v3924 = vld [vmem:[%s3611 + $0x111] sm:$0xff]
        %v3925 = vld [vmem:[%s3611 + $0x121] sm:$0xff]
        %v3926 = vld [vmem:[%s3611 + $0x129] sm:$0xff]
        %v3927 = vld [vmem:[%s3611 + $0x139] sm:$0xff]
        %v3928 = vld [vmem:[%s3611 + $0x141] sm:$0xff]
        %v3929 = vld [vmem:[%s3611 + $0x151] sm:$0xff]
        %v3930 = vld [vmem:[%s3611 + $0x159] sm:$0xff]
        %v3931 = vld [vmem:[%s3611 + $0x169] sm:$0xff]
        %v3932 = vld [vmem:[%s3611 + $0x171] sm:$0xff]
        %v3933 = vpack.c.bf16 %v3901, %v3901
        %v3934 = vpack.c.bf16 %v3902, %v3902
        %v3935 = vpack.c.bf16 %v3903, %v3903
        %v3936 = vpack.c.bf16 %v3904, %v3904
        %v3937 = vpack.c.bf16 %v3905, %v3905
        %v3938 = vpack.c.bf16 %v3906, %v3906
        %v3939 = vpack.c.bf16 %v3907, %v3907
        %v3940 = vpack.c.bf16 %v3908, %v3908
        %v3941 = vpack.c.bf16 %v3909, %v3909
        %v3942 = vpack.c.bf16 %v3910, %v3910
        %v3943 = vpack.c.bf16 %v3911, %v3911
        %v3944 = vpack.c.bf16 %v3912, %v3912
        %v3945 = vpack.c.bf16 %v3913, %v3913
        %v3946 = vpack.c.bf16 %v3914, %v3914
        %v3947 = vpack.c.bf16 %v3915, %v3915
        %v3948 = vpack.c.bf16 %v3916, %v3916
        %v3949 = vpack.c.bf16 %v3917, %v3917
        %v3950 = vpack.c.bf16 %v3918, %v3918
        %v3951 = vpack.c.bf16 %v3919, %v3919
        %v3952 = vpack.c.bf16 %v3920, %v3920
        %v3953 = vpack.c.bf16 %v3921, %v3921
        %v3954 = vpack.c.bf16 %v3922, %v3922
        %v3955 = vpack.c.bf16 %v3923, %v3923
        %v3956 = vpack.c.bf16 %v3924, %v3924
        %v3957 = vpack.c.bf16 %v3925, %v3925
        %v3958 = vpack.c.bf16 %v3926, %v3926
        %v3959 = vpack.c.bf16 %v3927, %v3927
        %v3960 = vpack.c.bf16 %v3928, %v3928
        %v3961 = vpack.c.bf16 %v3929, %v3929
        %v3962 = vpack.c.bf16 %v3930, %v3930
        %v3963 = vpack.c.bf16 %v3931, %v3931
        %v3964 = vpack.c.bf16 %v3932, %v3932
        %v3965 = vld [vmem:[%s3611 + $0x2] sm:$0xff]
        %v3966 = vld [vmem:[%s3611 + $0xa] sm:$0xff]
        %v3967 = vld [vmem:[%s3611 + $0x1a] sm:$0xff]
        %v3968 = vld [vmem:[%s3611 + $0x22] sm:$0xff]
        %v3969 = vld [vmem:[%s3611 + $0x32] sm:$0xff]
        %v3970 = vld [vmem:[%s3611 + $0x3a] sm:$0xff]
        %v3971 = vld [vmem:[%s3611 + $0x4a] sm:$0xff]
        %v3972 = vld [vmem:[%s3611 + $0x52] sm:$0xff]
        %v3973 = vld [vmem:[%s3611 + $0x62] sm:$0xff]
        %v3974 = vld [vmem:[%s3611 + $0x6a] sm:$0xff]
        %v3975 = vld [vmem:[%s3611 + $0x7a] sm:$0xff]
        %v3976 = vld [vmem:[%s3611 + $0x82] sm:$0xff]
        %v3977 = vld [vmem:[%s3611 + $0x92] sm:$0xff]
        %v3978 = vld [vmem:[%s3611 + $0x9a] sm:$0xff]
        %v3979 = vld [vmem:[%s3611 + $0xaa] sm:$0xff]
        %v3980 = vld [vmem:[%s3611 + $0xb2] sm:$0xff]
        %v3981 = vld [vmem:[%s3611 + $0xc2] sm:$0xff]
        %v3982 = vld [vmem:[%s3611 + $0xca] sm:$0xff]
        %v3983 = vld [vmem:[%s3611 + $0xda] sm:$0xff]
        %v3984 = vld [vmem:[%s3611 + $0xe2] sm:$0xff]
        %v3985 = vld [vmem:[%s3611 + $0xf2] sm:$0xff]
        %v3986 = vld [vmem:[%s3611 + $0xfa] sm:$0xff]
        %v3987 = vld [vmem:[%s3611 + $0x10a] sm:$0xff]
        %v3988 = vld [vmem:[%s3611 + $0x112] sm:$0xff]
        %v3989 = vld [vmem:[%s3611 + $0x122] sm:$0xff]
        %v3990 = vld [vmem:[%s3611 + $0x12a] sm:$0xff]
        %v3991 = vld [vmem:[%s3611 + $0x13a] sm:$0xff]
        %v3992 = vld [vmem:[%s3611 + $0x142] sm:$0xff]
        %v3993 = vld [vmem:[%s3611 + $0x152] sm:$0xff]
        %v3994 = vld [vmem:[%s3611 + $0x15a] sm:$0xff]
        %v3995 = vld [vmem:[%s3611 + $0x16a] sm:$0xff]
        %v3996 = vld [vmem:[%s3611 + $0x172] sm:$0xff]
        %v3997 = vpack.c.bf16 %v3965, %v3965
        %v3998 = vpack.c.bf16 %v3966, %v3966
        %v3999 = vpack.c.bf16 %v3967, %v3967
        %v4000 = vpack.c.bf16 %v3968, %v3968
        %v4001 = vpack.c.bf16 %v3969, %v3969
        %v4002 = vpack.c.bf16 %v3970, %v3970
        %v4003 = vpack.c.bf16 %v3971, %v3971
        %v4004 = vpack.c.bf16 %v3972, %v3972
        %v4005 = vpack.c.bf16 %v3973, %v3973
        %v4006 = vpack.c.bf16 %v3974, %v3974
        %v4007 = vpack.c.bf16 %v3975, %v3975
        %v4008 = vpack.c.bf16 %v3976, %v3976
        %v4009 = vpack.c.bf16 %v3977, %v3977
        %v4010 = vpack.c.bf16 %v3978, %v3978
        %v4011 = vpack.c.bf16 %v3979, %v3979
        %v4012 = vpack.c.bf16 %v3980, %v3980
        %v4013 = vpack.c.bf16 %v3981, %v3981
        %v4014 = vpack.c.bf16 %v3982, %v3982
        %v4015 = vpack.c.bf16 %v3983, %v3983
        %v4016 = vpack.c.bf16 %v3984, %v3984
        %v4017 = vpack.c.bf16 %v3985, %v3985
        %v4018 = vpack.c.bf16 %v3986, %v3986
        %v4019 = vpack.c.bf16 %v3987, %v3987
        %v4020 = vpack.c.bf16 %v3988, %v3988
        %v4021 = vpack.c.bf16 %v3989, %v3989
        %v4022 = vpack.c.bf16 %v3990, %v3990
        %v4023 = vpack.c.bf16 %v3991, %v3991
        %v4024 = vpack.c.bf16 %v3992, %v3992
        %v4025 = vpack.c.bf16 %v3993, %v3993
        %v4026 = vpack.c.bf16 %v3994, %v3994
        %v4027 = vpack.c.bf16 %v3995, %v3995
        %v4028 = vpack.c.bf16 %v3996, %v3996
        %s4029 = scalar_lea.vmem [#allocation3], 48
        %v4030 = vld [vmem:[%s4029] sm:$0xff]
        %v4031 = vld [vmem:[%s4029 + $0x8] sm:$0xff]
        %v4032 = vld [vmem:[%s4029 + $0x18] sm:$0xff]
        %v4033 = vld [vmem:[%s4029 + $0x20] sm:$0xff]
        %v4034 = vld [vmem:[%s4029 + $0x30] sm:$0xff]
        %v4035 = vld [vmem:[%s4029 + $0x38] sm:$0xff]
        %v4036 = vld [vmem:[%s4029 + $0x48] sm:$0xff]
        %v4037 = vld [vmem:[%s4029 + $0x50] sm:$0xff]
        %v4038 = vld [vmem:[%s4029 + $0x60] sm:$0xff]
        %v4039 = vld [vmem:[%s4029 + $0x68] sm:$0xff]
        %v4040 = vld [vmem:[%s4029 + $0x78] sm:$0xff]
        %v4041 = vld [vmem:[%s4029 + $0x80] sm:$0xff]
        %v4042 = vld [vmem:[%s4029 + $0x90] sm:$0xff]
        %v4043 = vld [vmem:[%s4029 + $0x98] sm:$0xff]
        %v4044 = vld [vmem:[%s4029 + $0xa8] sm:$0xff]
        %v4045 = vld [vmem:[%s4029 + $0xb0] sm:$0xff]
        %v4046 = vld [vmem:[%s4029 + $0xc0] sm:$0xff]
        %v4047 = vld [vmem:[%s4029 + $0xc8] sm:$0xff]
        %v4048 = vld [vmem:[%s4029 + $0xd8] sm:$0xff]
        %v4049 = vld [vmem:[%s4029 + $0xe0] sm:$0xff]
        %v4050 = vld [vmem:[%s4029 + $0xf0] sm:$0xff]
        %v4051 = vld [vmem:[%s4029 + $0xf8] sm:$0xff]
        %v4052 = vld [vmem:[%s4029 + $0x108] sm:$0xff]
        %v4053 = vld [vmem:[%s4029 + $0x110] sm:$0xff]
        %v4054 = vld [vmem:[%s4029 + $0x120] sm:$0xff]
        %v4055 = vld [vmem:[%s4029 + $0x128] sm:$0xff]
        %v4056 = vld [vmem:[%s4029 + $0x138] sm:$0xff]
        %v4057 = vld [vmem:[%s4029 + $0x140] sm:$0xff]
        %v4058 = vld [vmem:[%s4029 + $0x150] sm:$0xff]
        %v4059 = vld [vmem:[%s4029 + $0x158] sm:$0xff]
        %v4060 = vld [vmem:[%s4029 + $0x168] sm:$0xff]
        %v4061 = vld [vmem:[%s4029 + $0x170] sm:$0xff]
        %v4062 = vpack.c.bf16 %v4030, %v4030
        %v4063 = vpack.c.bf16 %v4031, %v4031
        %v4064 = vpack.c.bf16 %v4032, %v4032
        %v4065 = vpack.c.bf16 %v4033, %v4033
        %v4066 = vpack.c.bf16 %v4034, %v4034
        %v4067 = vpack.c.bf16 %v4035, %v4035
        %v4068 = vpack.c.bf16 %v4036, %v4036
        %v4069 = vpack.c.bf16 %v4037, %v4037
        %v4070 = vpack.c.bf16 %v4038, %v4038
        %v4071 = vpack.c.bf16 %v4039, %v4039
        %v4072 = vpack.c.bf16 %v4040, %v4040
        %v4073 = vpack.c.bf16 %v4041, %v4041
        %v4074 = vpack.c.bf16 %v4042, %v4042
        %v4075 = vpack.c.bf16 %v4043, %v4043
        %v4076 = vpack.c.bf16 %v4044, %v4044
        %v4077 = vpack.c.bf16 %v4045, %v4045
        %v4078 = vpack.c.bf16 %v4046, %v4046
        %v4079 = vpack.c.bf16 %v4047, %v4047
        %v4080 = vpack.c.bf16 %v4048, %v4048
        %v4081 = vpack.c.bf16 %v4049, %v4049
        %v4082 = vpack.c.bf16 %v4050, %v4050
        %v4083 = vpack.c.bf16 %v4051, %v4051
        %v4084 = vpack.c.bf16 %v4052, %v4052
        %v4085 = vpack.c.bf16 %v4053, %v4053
        %v4086 = vpack.c.bf16 %v4054, %v4054
        %v4087 = vpack.c.bf16 %v4055, %v4055
        %v4088 = vpack.c.bf16 %v4056, %v4056
        %v4089 = vpack.c.bf16 %v4057, %v4057
        %v4090 = vpack.c.bf16 %v4058, %v4058
        %v4091 = vpack.c.bf16 %v4059, %v4059
        %v4092 = vpack.c.bf16 %v4060, %v4060
        %v4093 = vpack.c.bf16 %v4061, %v4061
        %v4094 = vld [vmem:[%s4029 + $0x1] sm:$0xff]
        %v4095 = vld [vmem:[%s4029 + $0x9] sm:$0xff]
        %v4096 = vld [vmem:[%s4029 + $0x19] sm:$0xff]
        %v4097 = vld [vmem:[%s4029 + $0x21] sm:$0xff]
        %v4098 = vld [vmem:[%s4029 + $0x31] sm:$0xff]
        %v4099 = vld [vmem:[%s4029 + $0x39] sm:$0xff]
        %v4100 = vld [vmem:[%s4029 + $0x49] sm:$0xff]
        %v4101 = vld [vmem:[%s4029 + $0x51] sm:$0xff]
        %v4102 = vld [vmem:[%s4029 + $0x61] sm:$0xff]
        %v4103 = vld [vmem:[%s4029 + $0x69] sm:$0xff]
        %v4104 = vld [vmem:[%s4029 + $0x79] sm:$0xff]
        %v4105 = vld [vmem:[%s4029 + $0x81] sm:$0xff]
        %v4106 = vld [vmem:[%s4029 + $0x91] sm:$0xff]
        %v4107 = vld [vmem:[%s4029 + $0x99] sm:$0xff]
        %v4108 = vld [vmem:[%s4029 + $0xa9] sm:$0xff]
        %v4109 = vld [vmem:[%s4029 + $0xb1] sm:$0xff]
        %v4110 = vld [vmem:[%s4029 + $0xc1] sm:$0xff]
        %v4111 = vld [vmem:[%s4029 + $0xc9] sm:$0xff]
        %v4112 = vld [vmem:[%s4029 + $0xd9] sm:$0xff]
        %v4113 = vld [vmem:[%s4029 + $0xe1] sm:$0xff]
        %v4114 = vld [vmem:[%s4029 + $0xf1] sm:$0xff]
        %v4115 = vld [vmem:[%s4029 + $0xf9] sm:$0xff]
        %v4116 = vld [vmem:[%s4029 + $0x109] sm:$0xff]
        %v4117 = vld [vmem:[%s4029 + $0x111] sm:$0xff]
        %v4118 = vld [vmem:[%s4029 + $0x121] sm:$0xff]
        %v4119 = vld [vmem:[%s4029 + $0x129] sm:$0xff]
        %v4120 = vld [vmem:[%s4029 + $0x139] sm:$0xff]
        %v4121 = vld [vmem:[%s4029 + $0x141] sm:$0xff]
        %v4122 = vld [vmem:[%s4029 + $0x151] sm:$0xff]
        %v4123 = vld [vmem:[%s4029 + $0x159] sm:$0xff]
        %v4124 = vld [vmem:[%s4029 + $0x169] sm:$0xff]
        %v4125 = vld [vmem:[%s4029 + $0x171] sm:$0xff]
        %v4126 = vpack.c.bf16 %v4094, %v4094
        %v4127 = vpack.c.bf16 %v4095, %v4095
        %v4128 = vpack.c.bf16 %v4096, %v4096
        %v4129 = vpack.c.bf16 %v4097, %v4097
        %v4130 = vpack.c.bf16 %v4098, %v4098
        %v4131 = vpack.c.bf16 %v4099, %v4099
        %v4132 = vpack.c.bf16 %v4100, %v4100
        %v4133 = vpack.c.bf16 %v4101, %v4101
        %v4134 = vpack.c.bf16 %v4102, %v4102
        %v4135 = vpack.c.bf16 %v4103, %v4103
        %v4136 = vpack.c.bf16 %v4104, %v4104
        %v4137 = vpack.c.bf16 %v4105, %v4105
        %v4138 = vpack.c.bf16 %v4106, %v4106
        %v4139 = vpack.c.bf16 %v4107, %v4107
        %v4140 = vpack.c.bf16 %v4108, %v4108
        %v4141 = vpack.c.bf16 %v4109, %v4109
        %v4142 = vpack.c.bf16 %v4110, %v4110
        %v4143 = vpack.c.bf16 %v4111, %v4111
        %v4144 = vpack.c.bf16 %v4112, %v4112
        %v4145 = vpack.c.bf16 %v4113, %v4113
        %v4146 = vpack.c.bf16 %v4114, %v4114
        %v4147 = vpack.c.bf16 %v4115, %v4115
        %v4148 = vpack.c.bf16 %v4116, %v4116
        %v4149 = vpack.c.bf16 %v4117, %v4117
        %v4150 = vpack.c.bf16 %v4118, %v4118
        %v4151 = vpack.c.bf16 %v4119, %v4119
        %v4152 = vpack.c.bf16 %v4120, %v4120
        %v4153 = vpack.c.bf16 %v4121, %v4121
        %v4154 = vpack.c.bf16 %v4122, %v4122
        %v4155 = vpack.c.bf16 %v4123, %v4123
        %v4156 = vpack.c.bf16 %v4124, %v4124
        %v4157 = vpack.c.bf16 %v4125, %v4125
        %v4158 = vld [vmem:[%s4029 + $0x2] sm:$0xff]
        %v4159 = vld [vmem:[%s4029 + $0xa] sm:$0xff]
        %v4160 = vld [vmem:[%s4029 + $0x1a] sm:$0xff]
        %v4161 = vld [vmem:[%s4029 + $0x22] sm:$0xff]
        %v4162 = vld [vmem:[%s4029 + $0x32] sm:$0xff]
        %v4163 = vld [vmem:[%s4029 + $0x3a] sm:$0xff]
        %v4164 = vld [vmem:[%s4029 + $0x4a] sm:$0xff]
        %v4165 = vld [vmem:[%s4029 + $0x52] sm:$0xff]
        %v4166 = vld [vmem:[%s4029 + $0x62] sm:$0xff]
        %v4167 = vld [vmem:[%s4029 + $0x6a] sm:$0xff]
        %v4168 = vld [vmem:[%s4029 + $0x7a] sm:$0xff]
        %v4169 = vld [vmem:[%s4029 + $0x82] sm:$0xff]
        %v4170 = vld [vmem:[%s4029 + $0x92] sm:$0xff]
        %v4171 = vld [vmem:[%s4029 + $0x9a] sm:$0xff]
        %v4172 = vld [vmem:[%s4029 + $0xaa] sm:$0xff]
        %v4173 = vld [vmem:[%s4029 + $0xb2] sm:$0xff]
        %v4174 = vld [vmem:[%s4029 + $0xc2] sm:$0xff]
        %v4175 = vld [vmem:[%s4029 + $0xca] sm:$0xff]
        %v4176 = vld [vmem:[%s4029 + $0xda] sm:$0xff]
        %v4177 = vld [vmem:[%s4029 + $0xe2] sm:$0xff]
        %v4178 = vld [vmem:[%s4029 + $0xf2] sm:$0xff]
        %v4179 = vld [vmem:[%s4029 + $0xfa] sm:$0xff]
        %v4180 = vld [vmem:[%s4029 + $0x10a] sm:$0xff]
        %v4181 = vld [vmem:[%s4029 + $0x112] sm:$0xff]
        %v4182 = vld [vmem:[%s4029 + $0x122] sm:$0xff]
        %v4183 = vld [vmem:[%s4029 + $0x12a] sm:$0xff]
        %v4184 = vld [vmem:[%s4029 + $0x13a] sm:$0xff]
        %v4185 = vld [vmem:[%s4029 + $0x142] sm:$0xff]
        %v4186 = vld [vmem:[%s4029 + $0x152] sm:$0xff]
        %v4187 = vld [vmem:[%s4029 + $0x15a] sm:$0xff]
        %v4188 = vld [vmem:[%s4029 + $0x16a] sm:$0xff]
        %v4189 = vld [vmem:[%s4029 + $0x172] sm:$0xff]
        %v4190 = vpack.c.bf16 %v4158, %v4158
        %v4191 = vpack.c.bf16 %v4159, %v4159
        %v4192 = vpack.c.bf16 %v4160, %v4160
        %v4193 = vpack.c.bf16 %v4161, %v4161
        %v4194 = vpack.c.bf16 %v4162, %v4162
        %v4195 = vpack.c.bf16 %v4163, %v4163
        %v4196 = vpack.c.bf16 %v4164, %v4164
        %v4197 = vpack.c.bf16 %v4165, %v4165
        %v4198 = vpack.c.bf16 %v4166, %v4166
        %v4199 = vpack.c.bf16 %v4167, %v4167
        %v4200 = vpack.c.bf16 %v4168, %v4168
        %v4201 = vpack.c.bf16 %v4169, %v4169
        %v4202 = vpack.c.bf16 %v4170, %v4170
        %v4203 = vpack.c.bf16 %v4171, %v4171
        %v4204 = vpack.c.bf16 %v4172, %v4172
        %v4205 = vpack.c.bf16 %v4173, %v4173
        %v4206 = vpack.c.bf16 %v4174, %v4174
        %v4207 = vpack.c.bf16 %v4175, %v4175
        %v4208 = vpack.c.bf16 %v4176, %v4176
        %v4209 = vpack.c.bf16 %v4177, %v4177
        %v4210 = vpack.c.bf16 %v4178, %v4178
        %v4211 = vpack.c.bf16 %v4179, %v4179
        %v4212 = vpack.c.bf16 %v4180, %v4180
        %v4213 = vpack.c.bf16 %v4181, %v4181
        %v4214 = vpack.c.bf16 %v4182, %v4182
        %v4215 = vpack.c.bf16 %v4183, %v4183
        %v4216 = vpack.c.bf16 %v4184, %v4184
        %v4217 = vpack.c.bf16 %v4185, %v4185
        %v4218 = vpack.c.bf16 %v4186, %v4186
        %v4219 = vpack.c.bf16 %v4187, %v4187
        %v4220 = vpack.c.bf16 %v4188, %v4188
        %v4221 = vpack.c.bf16 %v4189, %v4189
        %v4254 = vunpack.c.l.b16 %v3677
        %v4255 = vunpack.c.l.b16 %v3678
        %v4256 = vunpack.c.l.b16 %v3679
        %v4257 = vunpack.c.l.b16 %v3680
        %v4258 = vunpack.c.l.b16 %v3681
        %v4259 = vunpack.c.l.b16 %v3682
        %v4260 = vunpack.c.l.b16 %v3683
        %v4261 = vunpack.c.l.b16 %v3684
        %v4262 = vunpack.c.l.b16 %v3685
        %v4263 = vunpack.c.l.b16 %v3686
        %v4264 = vunpack.c.l.b16 %v3687
        %v4265 = vunpack.c.l.b16 %v3688
        %v4266 = vunpack.c.l.b16 %v3689
        %v4267 = vunpack.c.l.b16 %v3690
        %v4268 = vunpack.c.l.b16 %v3691
        %v4269 = vunpack.c.l.b16 %v3692
        %v4270 = vunpack.c.l.b16 %v3693
        %v4271 = vunpack.c.l.b16 %v3694
        %v4272 = vunpack.c.l.b16 %v3695
        %v4273 = vunpack.c.l.b16 %v3696
        %v4274 = vunpack.c.l.b16 %v3697
        %v4275 = vunpack.c.l.b16 %v3698
        %v4276 = vunpack.c.l.b16 %v3699
        %v4277 = vunpack.c.l.b16 %v3700
        %v4278 = vunpack.c.l.b16 %v3701
        %v4279 = vunpack.c.l.b16 %v3702
        %v4280 = vunpack.c.l.b16 %v3703
        %v4281 = vunpack.c.l.b16 %v3704
        %v4282 = vunpack.c.l.b16 %v3705
        %v4283 = vunpack.c.l.b16 %v3706
        %v4284 = vunpack.c.l.b16 %v3707
        %v4285 = vunpack.c.l.b16 %v3708
        %v4286 = vpack.c.b16 %v4255, %v4254
        %v4287 = vpack.c.b16 %v4257, %v4256
        %v4288 = vpack.c.b16 %v4259, %v4258
        %v4289 = vpack.c.b16 %v4261, %v4260
        %v4290 = vpack.c.b16 %v4263, %v4262
        %v4291 = vpack.c.b16 %v4265, %v4264
        %v4292 = vpack.c.b16 %v4267, %v4266
        %v4293 = vpack.c.b16 %v4269, %v4268
        %v4294 = vpack.c.b16 %v4271, %v4270
        %v4295 = vpack.c.b16 %v4273, %v4272
        %v4296 = vpack.c.b16 %v4275, %v4274
        %v4297 = vpack.c.b16 %v4277, %v4276
        %v4298 = vpack.c.b16 %v4279, %v4278
        %v4299 = vpack.c.b16 %v4281, %v4280
        %v4300 = vpack.c.b16 %v4283, %v4282
        %v4301 = vpack.c.b16 %v4285, %v4284
        %v4350 = vunpack.c.l.b16 %v3741
        %v4351 = vunpack.c.l.b16 %v3742
        %v4352 = vunpack.c.l.b16 %v3743
        %v4353 = vunpack.c.l.b16 %v3744
        %v4354 = vunpack.c.l.b16 %v3745
        %v4355 = vunpack.c.l.b16 %v3746
        %v4356 = vunpack.c.l.b16 %v3747
        %v4357 = vunpack.c.l.b16 %v3748
        %v4358 = vunpack.c.l.b16 %v3749
        %v4359 = vunpack.c.l.b16 %v3750
        %v4360 = vunpack.c.l.b16 %v3751
        %v4361 = vunpack.c.l.b16 %v3752
        %v4362 = vunpack.c.l.b16 %v3753
        %v4363 = vunpack.c.l.b16 %v3754
        %v4364 = vunpack.c.l.b16 %v3755
        %v4365 = vunpack.c.l.b16 %v3756
        %v4366 = vunpack.c.l.b16 %v3757
        %v4367 = vunpack.c.l.b16 %v3758
        %v4368 = vunpack.c.l.b16 %v3759
        %v4369 = vunpack.c.l.b16 %v3760
        %v4370 = vunpack.c.l.b16 %v3761
        %v4371 = vunpack.c.l.b16 %v3762
        %v4372 = vunpack.c.l.b16 %v3763
        %v4373 = vunpack.c.l.b16 %v3764
        %v4374 = vunpack.c.l.b16 %v3765
        %v4375 = vunpack.c.l.b16 %v3766
        %v4376 = vunpack.c.l.b16 %v3767
        %v4377 = vunpack.c.l.b16 %v3768
        %v4378 = vunpack.c.l.b16 %v3769
        %v4379 = vunpack.c.l.b16 %v3770
        %v4380 = vunpack.c.l.b16 %v3771
        %v4381 = vunpack.c.l.b16 %v3772
        %v4382 = vpack.c.b16 %v4351, %v4350
        %v4383 = vpack.c.b16 %v4353, %v4352
        %v4384 = vpack.c.b16 %v4355, %v4354
        %v4385 = vpack.c.b16 %v4357, %v4356
        %v4386 = vpack.c.b16 %v4359, %v4358
        %v4387 = vpack.c.b16 %v4361, %v4360
        %v4388 = vpack.c.b16 %v4363, %v4362
        %v4389 = vpack.c.b16 %v4365, %v4364
        %v4390 = vpack.c.b16 %v4367, %v4366
        %v4391 = vpack.c.b16 %v4369, %v4368
        %v4392 = vpack.c.b16 %v4371, %v4370
        %v4393 = vpack.c.b16 %v4373, %v4372
        %v4394 = vpack.c.b16 %v4375, %v4374
        %v4395 = vpack.c.b16 %v4377, %v4376
        %v4396 = vpack.c.b16 %v4379, %v4378
        %v4397 = vpack.c.b16 %v4381, %v4380
        %v4446 = vunpack.c.l.b16 %v3805
        %v4447 = vunpack.c.l.b16 %v3806
        %v4448 = vunpack.c.l.b16 %v3807
        %v4449 = vunpack.c.l.b16 %v3808
        %v4450 = vunpack.c.l.b16 %v3809
        %v4451 = vunpack.c.l.b16 %v3810
        %v4452 = vunpack.c.l.b16 %v3811
        %v4453 = vunpack.c.l.b16 %v3812
        %v4454 = vunpack.c.l.b16 %v3813
        %v4455 = vunpack.c.l.b16 %v3814
        %v4456 = vunpack.c.l.b16 %v3815
        %v4457 = vunpack.c.l.b16 %v3816
        %v4458 = vunpack.c.l.b16 %v3817
        %v4459 = vunpack.c.l.b16 %v3818
        %v4460 = vunpack.c.l.b16 %v3819
        %v4461 = vunpack.c.l.b16 %v3820
        %v4462 = vunpack.c.l.b16 %v3821
        %v4463 = vunpack.c.l.b16 %v3822
        %v4464 = vunpack.c.l.b16 %v3823
        %v4465 = vunpack.c.l.b16 %v3824
        %v4466 = vunpack.c.l.b16 %v3825
        %v4467 = vunpack.c.l.b16 %v3826
        %v4468 = vunpack.c.l.b16 %v3827
        %v4469 = vunpack.c.l.b16 %v3828
        %v4470 = vunpack.c.l.b16 %v3829
        %v4471 = vunpack.c.l.b16 %v3830
        %v4472 = vunpack.c.l.b16 %v3831
        %v4473 = vunpack.c.l.b16 %v3832
        %v4474 = vunpack.c.l.b16 %v3833
        %v4475 = vunpack.c.l.b16 %v3834
        %v4476 = vunpack.c.l.b16 %v3835
        %v4477 = vunpack.c.l.b16 %v3836
        %v4478 = vpack.c.b16 %v4447, %v4446
        %v4479 = vpack.c.b16 %v4449, %v4448
        %v4480 = vpack.c.b16 %v4451, %v4450
        %v4481 = vpack.c.b16 %v4453, %v4452
        %v4482 = vpack.c.b16 %v4455, %v4454
        %v4483 = vpack.c.b16 %v4457, %v4456
        %v4484 = vpack.c.b16 %v4459, %v4458
        %v4485 = vpack.c.b16 %v4461, %v4460
        %v4486 = vpack.c.b16 %v4463, %v4462
        %v4487 = vpack.c.b16 %v4465, %v4464
        %v4488 = vpack.c.b16 %v4467, %v4466
        %v4489 = vpack.c.b16 %v4469, %v4468
        %v4490 = vpack.c.b16 %v4471, %v4470
        %v4491 = vpack.c.b16 %v4473, %v4472
        %v4492 = vpack.c.b16 %v4475, %v4474
        %v4493 = vpack.c.b16 %v4477, %v4476
        %v4542 = vunpack.c.l.b16 %v3869
        %v4543 = vunpack.c.l.b16 %v3870
        %v4544 = vunpack.c.l.b16 %v3871
        %v4545 = vunpack.c.l.b16 %v3872
        %v4546 = vunpack.c.l.b16 %v3873
        %v4547 = vunpack.c.l.b16 %v3874
        %v4548 = vunpack.c.l.b16 %v3875
        %v4549 = vunpack.c.l.b16 %v3876
        %v4550 = vunpack.c.l.b16 %v3877
        %v4551 = vunpack.c.l.b16 %v3878
        %v4552 = vunpack.c.l.b16 %v3879
        %v4553 = vunpack.c.l.b16 %v3880
        %v4554 = vunpack.c.l.b16 %v3881
        %v4555 = vunpack.c.l.b16 %v3882
        %v4556 = vunpack.c.l.b16 %v3883
        %v4557 = vunpack.c.l.b16 %v3884
        %v4558 = vunpack.c.l.b16 %v3885
        %v4559 = vunpack.c.l.b16 %v3886
        %v4560 = vunpack.c.l.b16 %v3887
        %v4561 = vunpack.c.l.b16 %v3888
        %v4562 = vunpack.c.l.b16 %v3889
        %v4563 = vunpack.c.l.b16 %v3890
        %v4564 = vunpack.c.l.b16 %v3891
        %v4565 = vunpack.c.l.b16 %v3892
        %v4566 = vunpack.c.l.b16 %v3893
        %v4567 = vunpack.c.l.b16 %v3894
        %v4568 = vunpack.c.l.b16 %v3895
        %v4569 = vunpack.c.l.b16 %v3896
        %v4570 = vunpack.c.l.b16 %v3897
        %v4571 = vunpack.c.l.b16 %v3898
        %v4572 = vunpack.c.l.b16 %v3899
        %v4573 = vunpack.c.l.b16 %v3900
        %v4574 = vpack.c.b16 %v4543, %v4542
        %v4575 = vpack.c.b16 %v4545, %v4544
        %v4576 = vpack.c.b16 %v4547, %v4546
        %v4577 = vpack.c.b16 %v4549, %v4548
        %v4578 = vpack.c.b16 %v4551, %v4550
        %v4579 = vpack.c.b16 %v4553, %v4552
        %v4580 = vpack.c.b16 %v4555, %v4554
        %v4581 = vpack.c.b16 %v4557, %v4556
        %v4582 = vpack.c.b16 %v4559, %v4558
        %v4583 = vpack.c.b16 %v4561, %v4560
        %v4584 = vpack.c.b16 %v4563, %v4562
        %v4585 = vpack.c.b16 %v4565, %v4564
        %v4586 = vpack.c.b16 %v4567, %v4566
        %v4587 = vpack.c.b16 %v4569, %v4568
        %v4588 = vpack.c.b16 %v4571, %v4570
        %v4589 = vpack.c.b16 %v4573, %v4572
        %v4638 = vunpack.c.l.b16 %v3933
        %v4639 = vunpack.c.l.b16 %v3934
        %v4640 = vunpack.c.l.b16 %v3935
        %v4641 = vunpack.c.l.b16 %v3936
        %v4642 = vunpack.c.l.b16 %v3937
        %v4643 = vunpack.c.l.b16 %v3938
        %v4644 = vunpack.c.l.b16 %v3939
        %v4645 = vunpack.c.l.b16 %v3940
        %v4646 = vunpack.c.l.b16 %v3941
        %v4647 = vunpack.c.l.b16 %v3942
        %v4648 = vunpack.c.l.b16 %v3943
        %v4649 = vunpack.c.l.b16 %v3944
        %v4650 = vunpack.c.l.b16 %v3945
        %v4651 = vunpack.c.l.b16 %v3946
        %v4652 = vunpack.c.l.b16 %v3947
        %v4653 = vunpack.c.l.b16 %v3948
        %v4654 = vunpack.c.l.b16 %v3949
        %v4655 = vunpack.c.l.b16 %v3950
        %v4656 = vunpack.c.l.b16 %v3951
        %v4657 = vunpack.c.l.b16 %v3952
        %v4658 = vunpack.c.l.b16 %v3953
        %v4659 = vunpack.c.l.b16 %v3954
        %v4660 = vunpack.c.l.b16 %v3955
        %v4661 = vunpack.c.l.b16 %v3956
        %v4662 = vunpack.c.l.b16 %v3957
        %v4663 = vunpack.c.l.b16 %v3958
        %v4664 = vunpack.c.l.b16 %v3959
        %v4665 = vunpack.c.l.b16 %v3960
        %v4666 = vunpack.c.l.b16 %v3961
        %v4667 = vunpack.c.l.b16 %v3962
        %v4668 = vunpack.c.l.b16 %v3963
        %v4669 = vunpack.c.l.b16 %v3964
        %v4670 = vpack.c.b16 %v4639, %v4638
        %v4671 = vpack.c.b16 %v4641, %v4640
        %v4672 = vpack.c.b16 %v4643, %v4642
        %v4673 = vpack.c.b16 %v4645, %v4644
        %v4674 = vpack.c.b16 %v4647, %v4646
        %v4675 = vpack.c.b16 %v4649, %v4648
        %v4676 = vpack.c.b16 %v4651, %v4650
        %v4677 = vpack.c.b16 %v4653, %v4652
        %v4678 = vpack.c.b16 %v4655, %v4654
        %v4679 = vpack.c.b16 %v4657, %v4656
        %v4680 = vpack.c.b16 %v4659, %v4658
        %v4681 = vpack.c.b16 %v4661, %v4660
        %v4682 = vpack.c.b16 %v4663, %v4662
        %v4683 = vpack.c.b16 %v4665, %v4664
        %v4684 = vpack.c.b16 %v4667, %v4666
        %v4685 = vpack.c.b16 %v4669, %v4668
        %v4734 = vunpack.c.l.b16 %v3997
        %v4735 = vunpack.c.l.b16 %v3998
        %v4736 = vunpack.c.l.b16 %v3999
        %v4737 = vunpack.c.l.b16 %v4000
        %v4738 = vunpack.c.l.b16 %v4001
        %v4739 = vunpack.c.l.b16 %v4002
        %v4740 = vunpack.c.l.b16 %v4003
        %v4741 = vunpack.c.l.b16 %v4004
        %v4742 = vunpack.c.l.b16 %v4005
        %v4743 = vunpack.c.l.b16 %v4006
        %v4744 = vunpack.c.l.b16 %v4007
        %v4745 = vunpack.c.l.b16 %v4008
        %v4746 = vunpack.c.l.b16 %v4009
        %v4747 = vunpack.c.l.b16 %v4010
        %v4748 = vunpack.c.l.b16 %v4011
        %v4749 = vunpack.c.l.b16 %v4012
        %v4750 = vunpack.c.l.b16 %v4013
        %v4751 = vunpack.c.l.b16 %v4014
        %v4752 = vunpack.c.l.b16 %v4015
        %v4753 = vunpack.c.l.b16 %v4016
        %v4754 = vunpack.c.l.b16 %v4017
        %v4755 = vunpack.c.l.b16 %v4018
        %v4756 = vunpack.c.l.b16 %v4019
        %v4757 = vunpack.c.l.b16 %v4020
        %v4758 = vunpack.c.l.b16 %v4021
        %v4759 = vunpack.c.l.b16 %v4022
        %v4760 = vunpack.c.l.b16 %v4023
        %v4761 = vunpack.c.l.b16 %v4024
        %v4762 = vunpack.c.l.b16 %v4025
        %v4763 = vunpack.c.l.b16 %v4026
        %v4764 = vunpack.c.l.b16 %v4027
        %v4765 = vunpack.c.l.b16 %v4028
        %v4766 = vpack.c.b16 %v4735, %v4734
        %v4767 = vpack.c.b16 %v4737, %v4736
        %v4768 = vpack.c.b16 %v4739, %v4738
        %v4769 = vpack.c.b16 %v4741, %v4740
        %v4770 = vpack.c.b16 %v4743, %v4742
        %v4771 = vpack.c.b16 %v4745, %v4744
        %v4772 = vpack.c.b16 %v4747, %v4746
        %v4773 = vpack.c.b16 %v4749, %v4748
        %v4774 = vpack.c.b16 %v4751, %v4750
        %v4775 = vpack.c.b16 %v4753, %v4752
        %v4776 = vpack.c.b16 %v4755, %v4754
        %v4777 = vpack.c.b16 %v4757, %v4756
        %v4778 = vpack.c.b16 %v4759, %v4758
        %v4779 = vpack.c.b16 %v4761, %v4760
        %v4780 = vpack.c.b16 %v4763, %v4762
        %v4781 = vpack.c.b16 %v4765, %v4764
        %v4830 = vunpack.c.l.b16 %v4062
        %v4831 = vunpack.c.l.b16 %v4063
        %v4832 = vunpack.c.l.b16 %v4064
        %v4833 = vunpack.c.l.b16 %v4065
        %v4834 = vunpack.c.l.b16 %v4066
        %v4835 = vunpack.c.l.b16 %v4067
        %v4836 = vunpack.c.l.b16 %v4068
        %v4837 = vunpack.c.l.b16 %v4069
        %v4838 = vunpack.c.l.b16 %v4070
        %v4839 = vunpack.c.l.b16 %v4071
        %v4840 = vunpack.c.l.b16 %v4072
        %v4841 = vunpack.c.l.b16 %v4073
        %v4842 = vunpack.c.l.b16 %v4074
        %v4843 = vunpack.c.l.b16 %v4075
        %v4844 = vunpack.c.l.b16 %v4076
        %v4845 = vunpack.c.l.b16 %v4077
        %v4846 = vunpack.c.l.b16 %v4078
        %v4847 = vunpack.c.l.b16 %v4079
        %v4848 = vunpack.c.l.b16 %v4080
        %v4849 = vunpack.c.l.b16 %v4081
        %v4850 = vunpack.c.l.b16 %v4082
        %v4851 = vunpack.c.l.b16 %v4083
        %v4852 = vunpack.c.l.b16 %v4084
        %v4853 = vunpack.c.l.b16 %v4085
        %v4854 = vunpack.c.l.b16 %v4086
        %v4855 = vunpack.c.l.b16 %v4087
        %v4856 = vunpack.c.l.b16 %v4088
        %v4857 = vunpack.c.l.b16 %v4089
        %v4858 = vunpack.c.l.b16 %v4090
        %v4859 = vunpack.c.l.b16 %v4091
        %v4860 = vunpack.c.l.b16 %v4092
        %v4861 = vunpack.c.l.b16 %v4093
        %v4862 = vpack.c.b16 %v4831, %v4830
        %v4863 = vpack.c.b16 %v4833, %v4832
        %v4864 = vpack.c.b16 %v4835, %v4834
        %v4865 = vpack.c.b16 %v4837, %v4836
        %v4866 = vpack.c.b16 %v4839, %v4838
        %v4867 = vpack.c.b16 %v4841, %v4840
        %v4868 = vpack.c.b16 %v4843, %v4842
        %v4869 = vpack.c.b16 %v4845, %v4844
        %v4870 = vpack.c.b16 %v4847, %v4846
        %v4871 = vpack.c.b16 %v4849, %v4848
        %v4872 = vpack.c.b16 %v4851, %v4850
        %v4873 = vpack.c.b16 %v4853, %v4852
        %v4874 = vpack.c.b16 %v4855, %v4854
        %v4875 = vpack.c.b16 %v4857, %v4856
        %v4876 = vpack.c.b16 %v4859, %v4858
        %v4877 = vpack.c.b16 %v4861, %v4860
        %v4926 = vunpack.c.l.b16 %v4126
        %v4927 = vunpack.c.l.b16 %v4127
        %v4928 = vunpack.c.l.b16 %v4128
        %v4929 = vunpack.c.l.b16 %v4129
        %v4930 = vunpack.c.l.b16 %v4130
        %v4931 = vunpack.c.l.b16 %v4131
        %v4932 = vunpack.c.l.b16 %v4132
        %v4933 = vunpack.c.l.b16 %v4133
        %v4934 = vunpack.c.l.b16 %v4134
        %v4935 = vunpack.c.l.b16 %v4135
        %v4936 = vunpack.c.l.b16 %v4136
        %v4937 = vunpack.c.l.b16 %v4137
        %v4938 = vunpack.c.l.b16 %v4138
        %v4939 = vunpack.c.l.b16 %v4139
        %v4940 = vunpack.c.l.b16 %v4140
        %v4941 = vunpack.c.l.b16 %v4141
        %v4942 = vunpack.c.l.b16 %v4142
        %v4943 = vunpack.c.l.b16 %v4143
        %v4944 = vunpack.c.l.b16 %v4144
        %v4945 = vunpack.c.l.b16 %v4145
        %v4946 = vunpack.c.l.b16 %v4146
        %v4947 = vunpack.c.l.b16 %v4147
        %v4948 = vunpack.c.l.b16 %v4148
        %v4949 = vunpack.c.l.b16 %v4149
        %v4950 = vunpack.c.l.b16 %v4150
        %v4951 = vunpack.c.l.b16 %v4151
        %v4952 = vunpack.c.l.b16 %v4152
        %v4953 = vunpack.c.l.b16 %v4153
        %v4954 = vunpack.c.l.b16 %v4154
        %v4955 = vunpack.c.l.b16 %v4155
        %v4956 = vunpack.c.l.b16 %v4156
        %v4957 = vunpack.c.l.b16 %v4157
        %v4958 = vpack.c.b16 %v4927, %v4926
        %v4959 = vpack.c.b16 %v4929, %v4928
        %v4960 = vpack.c.b16 %v4931, %v4930
        %v4961 = vpack.c.b16 %v4933, %v4932
        %v4962 = vpack.c.b16 %v4935, %v4934
        %v4963 = vpack.c.b16 %v4937, %v4936
        %v4964 = vpack.c.b16 %v4939, %v4938
        %v4965 = vpack.c.b16 %v4941, %v4940
        %v4966 = vpack.c.b16 %v4943, %v4942
        %v4967 = vpack.c.b16 %v4945, %v4944
        %v4968 = vpack.c.b16 %v4947, %v4946
        %v4969 = vpack.c.b16 %v4949, %v4948
        %v4970 = vpack.c.b16 %v4951, %v4950
        %v4971 = vpack.c.b16 %v4953, %v4952
        %v4972 = vpack.c.b16 %v4955, %v4954
        %v4973 = vpack.c.b16 %v4957, %v4956
        %v5022 = vunpack.c.l.b16 %v4190
        %v5023 = vunpack.c.l.b16 %v4191
        %v5024 = vunpack.c.l.b16 %v4192
        %v5025 = vunpack.c.l.b16 %v4193
        %v5026 = vunpack.c.l.b16 %v4194
        %v5027 = vunpack.c.l.b16 %v4195
        %v5028 = vunpack.c.l.b16 %v4196
        %v5029 = vunpack.c.l.b16 %v4197
        %v5030 = vunpack.c.l.b16 %v4198
        %v5031 = vunpack.c.l.b16 %v4199
        %v5032 = vunpack.c.l.b16 %v4200
        %v5033 = vunpack.c.l.b16 %v4201
        %v5034 = vunpack.c.l.b16 %v4202
        %v5035 = vunpack.c.l.b16 %v4203
        %v5036 = vunpack.c.l.b16 %v4204
        %v5037 = vunpack.c.l.b16 %v4205
        %v5038 = vunpack.c.l.b16 %v4206
        %v5039 = vunpack.c.l.b16 %v4207
        %v5040 = vunpack.c.l.b16 %v4208
        %v5041 = vunpack.c.l.b16 %v4209
        %v5042 = vunpack.c.l.b16 %v4210
        %v5043 = vunpack.c.l.b16 %v4211
        %v5044 = vunpack.c.l.b16 %v4212
        %v5045 = vunpack.c.l.b16 %v4213
        %v5046 = vunpack.c.l.b16 %v4214
        %v5047 = vunpack.c.l.b16 %v4215
        %v5048 = vunpack.c.l.b16 %v4216
        %v5049 = vunpack.c.l.b16 %v4217
        %v5050 = vunpack.c.l.b16 %v4218
        %v5051 = vunpack.c.l.b16 %v4219
        %v5052 = vunpack.c.l.b16 %v4220
        %v5053 = vunpack.c.l.b16 %v4221
        %v5054 = vpack.c.b16 %v5023, %v5022
        %v5055 = vpack.c.b16 %v5025, %v5024
        %v5056 = vpack.c.b16 %v5027, %v5026
        %v5057 = vpack.c.b16 %v5029, %v5028
        %v5058 = vpack.c.b16 %v5031, %v5030
        %v5059 = vpack.c.b16 %v5033, %v5032
        %v5060 = vpack.c.b16 %v5035, %v5034
        %v5061 = vpack.c.b16 %v5037, %v5036
        %v5062 = vpack.c.b16 %v5039, %v5038
        %v5063 = vpack.c.b16 %v5041, %v5040
        %v5064 = vpack.c.b16 %v5043, %v5042
        %v5065 = vpack.c.b16 %v5045, %v5044
        %v5066 = vpack.c.b16 %v5047, %v5046
        %v5067 = vpack.c.b16 %v5049, %v5048
        %v5068 = vpack.c.b16 %v5051, %v5050
        %v5069 = vpack.c.b16 %v5053, %v5052
        %v5086 = vld [vmem:[%s417] sm:$0xf]
        %v5087 = vld [vmem:[%s417 + $0x4] sm:$0xf]
        %v5088 = vld [vmem:[%s417 + $0x8] sm:$0xf]
        %v5089 = vld [vmem:[%s417 + $0xc] sm:$0xf]
        %v5090 = vld [vmem:[%s417 + $0x10] sm:$0xf]
        %v5091 = vld [vmem:[%s417 + $0x14] sm:$0xf]
        %v5092 = vld [vmem:[%s417 + $0x18] sm:$0xf]
        %v5093 = vld [vmem:[%s417 + $0x1c] sm:$0xf]
        %v5094 = vld [vmem:[%s417 + $0x20] sm:$0xf]
        %v5095 = vld [vmem:[%s417 + $0x24] sm:$0xf]
        %v5096 = vld [vmem:[%s417 + $0x28] sm:$0xf]
        %v5097 = vld [vmem:[%s417 + $0x2c] sm:$0xf]
        %v5098 = vld [vmem:[%s417 + $0x30] sm:$0xf]
        %v5099 = vld [vmem:[%s417 + $0x34] sm:$0xf]
        %v5100 = vld [vmem:[%s417 + $0x38] sm:$0xf]
        %v5101 = vld [vmem:[%s417 + $0x3c] sm:$0xf]
        %v5102 = vld [vmem:[%s417 + $0x40] sm:$0xf]
        %v5103 = vld [vmem:[%s417 + $0x44] sm:$0xf]
        %v5104 = vld [vmem:[%s417 + $0x48] sm:$0xf]
        %v5105 = vld [vmem:[%s417 + $0x4c] sm:$0xf]
        %v5106 = vld [vmem:[%s417 + $0x50] sm:$0xf]
        %v5107 = vld [vmem:[%s417 + $0x54] sm:$0xf]
        %v5108 = vld [vmem:[%s417 + $0x58] sm:$0xf]
        %v5109 = vld [vmem:[%s417 + $0x5c] sm:$0xf]
        %v5110 = vld [vmem:[%s417 + $0x60] sm:$0xf]
        %v5111 = vld [vmem:[%s417 + $0x64] sm:$0xf]
        %v5112 = vld [vmem:[%s417 + $0x68] sm:$0xf]
        %v5113 = vld [vmem:[%s417 + $0x6c] sm:$0xf]
        %v5114 = vld [vmem:[%s417 + $0x70] sm:$0xf]
        %v5115 = vld [vmem:[%s417 + $0x74] sm:$0xf]
        %v5116 = vld [vmem:[%s417 + $0x78] sm:$0xf]
        %v5117 = vld [vmem:[%s417 + $0x7c] sm:$0xf]
        %v5118 = vld [vmem:[%s417 + $0x80] sm:$0xf]
        %v5119 = vld [vmem:[%s417 + $0x84] sm:$0xf]
        %v5120 = vld [vmem:[%s417 + $0x88] sm:$0xf]
        %v5121 = vld [vmem:[%s417 + $0x8c] sm:$0xf]
        %v5122 = vld [vmem:[%s417 + $0x90] sm:$0xf]
        %v5123 = vld [vmem:[%s417 + $0x94] sm:$0xf]
        %v5124 = vld [vmem:[%s417 + $0x98] sm:$0xf]
        %v5125 = vld [vmem:[%s417 + $0x9c] sm:$0xf]
        %v5126 = vld [vmem:[%s417 + $0xa0] sm:$0xf]
        %v5127 = vld [vmem:[%s417 + $0xa4] sm:$0xf]
        %v5128 = vld [vmem:[%s417 + $0xa8] sm:$0xf]
        %v5129 = vld [vmem:[%s417 + $0xac] sm:$0xf]
        %v5130 = vld [vmem:[%s417 + $0xb0] sm:$0xf]
        %v5131 = vld [vmem:[%s417 + $0xb4] sm:$0xf]
        %v5132 = vld [vmem:[%s417 + $0xb8] sm:$0xf]
        %v5133 = vld [vmem:[%s417 + $0xbc] sm:$0xf]
        %v5134 = vld [vmem:[%s417 + $0xc0] sm:$0xf]
        %v5135 = vld [vmem:[%s417 + $0xc4] sm:$0xf]
        %v5136 = vld [vmem:[%s417 + $0xc8] sm:$0xf]
        %v5137 = vld [vmem:[%s417 + $0xcc] sm:$0xf]
        %v5138 = vld [vmem:[%s417 + $0xd0] sm:$0xf]
        %v5139 = vld [vmem:[%s417 + $0xd4] sm:$0xf]
        %v5140 = vld [vmem:[%s417 + $0xd8] sm:$0xf]
        %v5141 = vld [vmem:[%s417 + $0xdc] sm:$0xf]
        %v5142 = vld [vmem:[%s417 + $0xe0] sm:$0xf]
        %v5143 = vld [vmem:[%s417 + $0xe4] sm:$0xf]
        %v5144 = vld [vmem:[%s417 + $0xe8] sm:$0xf]
        %v5145 = vld [vmem:[%s417 + $0xec] sm:$0xf]
        %v5146 = vld [vmem:[%s417 + $0xf0] sm:$0xf]
        %v5147 = vld [vmem:[%s417 + $0xf4] sm:$0xf]
        %v5148 = vld [vmem:[%s417 + $0xf8] sm:$0xf]
        %v5149 = vld [vmem:[%s417 + $0xfc] sm:$0xf]
        %v5150 = vld [vmem:[%s417 + $0x100] sm:$0xf]
        %v5151 = vld [vmem:[%s417 + $0x104] sm:$0xf]
        %v5152 = vld [vmem:[%s417 + $0x108] sm:$0xf]
        %v5153 = vld [vmem:[%s417 + $0x10c] sm:$0xf]
        %v5154 = vld [vmem:[%s417 + $0x110] sm:$0xf]
        %v5155 = vld [vmem:[%s417 + $0x114] sm:$0xf]
        %v5156 = vld [vmem:[%s417 + $0x118] sm:$0xf]
        %v5157 = vld [vmem:[%s417 + $0x11c] sm:$0xf]
        %v5158 = vld [vmem:[%s417 + $0x120] sm:$0xf]
        %v5159 = vld [vmem:[%s417 + $0x124] sm:$0xf]
        %v5160 = vld [vmem:[%s417 + $0x128] sm:$0xf]
        %v5161 = vld [vmem:[%s417 + $0x12c] sm:$0xf]
        %v5162 = vld [vmem:[%s417 + $0x130] sm:$0xf]
        %v5163 = vld [vmem:[%s417 + $0x134] sm:$0xf]
        %v5164 = vld [vmem:[%s417 + $0x138] sm:$0xf]
        %v5165 = vld [vmem:[%s417 + $0x13c] sm:$0xf]
        %v5166 = vld [vmem:[%s417 + $0x140] sm:$0xf]
        %v5167 = vld [vmem:[%s417 + $0x144] sm:$0xf]
        %v5168 = vld [vmem:[%s417 + $0x148] sm:$0xf]
        %v5169 = vld [vmem:[%s417 + $0x14c] sm:$0xf]
        %v5170 = vld [vmem:[%s417 + $0x150] sm:$0xf]
        %v5171 = vld [vmem:[%s417 + $0x154] sm:$0xf]
        %v5172 = vld [vmem:[%s417 + $0x158] sm:$0xf]
        %v5173 = vld [vmem:[%s417 + $0x15c] sm:$0xf]
        %v5174 = vld [vmem:[%s417 + $0x160] sm:$0xf]
        %v5175 = vld [vmem:[%s417 + $0x164] sm:$0xf]
        %v5176 = vld [vmem:[%s417 + $0x168] sm:$0xf]
        %v5177 = vld [vmem:[%s417 + $0x16c] sm:$0xf]
        %v5178 = vld [vmem:[%s417 + $0x170] sm:$0xf]
        %v5179 = vld [vmem:[%s417 + $0x174] sm:$0xf]
        %v5180 = vld [vmem:[%s417 + $0x178] sm:$0xf]
        %v5181 = vld [vmem:[%s417 + $0x17c] sm:$0xf]
        %v5182 = vld [vmem:[%s417 + $0x180] sm:$0xf]
        %v5183 = vld [vmem:[%s417 + $0x184] sm:$0xf]
        %v5184 = vld [vmem:[%s417 + $0x188] sm:$0xf]
        %v5185 = vld [vmem:[%s417 + $0x18c] sm:$0xf]
        %v5186 = vld [vmem:[%s417 + $0x190] sm:$0xf]
        %v5187 = vld [vmem:[%s417 + $0x194] sm:$0xf]
        %v5188 = vld [vmem:[%s417 + $0x198] sm:$0xf]
        %v5189 = vld [vmem:[%s417 + $0x19c] sm:$0xf]
        %v5190 = vld [vmem:[%s417 + $0x1a0] sm:$0xf]
        %v5191 = vld [vmem:[%s417 + $0x1a4] sm:$0xf]
        %v5192 = vld [vmem:[%s417 + $0x1a8] sm:$0xf]
        %v5193 = vld [vmem:[%s417 + $0x1ac] sm:$0xf]
        %v5194 = vld [vmem:[%s417 + $0x1b0] sm:$0xf]
        %v5195 = vld [vmem:[%s417 + $0x1b4] sm:$0xf]
        %v5196 = vld [vmem:[%s417 + $0x1b8] sm:$0xf]
        %v5197 = vld [vmem:[%s417 + $0x1bc] sm:$0xf]
        %v5198 = vld [vmem:[%s417 + $0x1c0] sm:$0xf]
        %v5199 = vld [vmem:[%s417 + $0x1c4] sm:$0xf]
        %v5200 = vld [vmem:[%s417 + $0x1c8] sm:$0xf]
        %v5201 = vld [vmem:[%s417 + $0x1cc] sm:$0xf]
        %v5202 = vld [vmem:[%s417 + $0x1d0] sm:$0xf]
        %v5203 = vld [vmem:[%s417 + $0x1d4] sm:$0xf]
        %v5204 = vld [vmem:[%s417 + $0x1d8] sm:$0xf]
        %v5205 = vld [vmem:[%s417 + $0x1dc] sm:$0xf]
        %v5206 = vld [vmem:[%s417 + $0x1e0] sm:$0xf]
        %v5207 = vld [vmem:[%s417 + $0x1e4] sm:$0xf]
        %v5208 = vld [vmem:[%s417 + $0x1e8] sm:$0xf]
        %v5209 = vld [vmem:[%s417 + $0x1ec] sm:$0xf]
        %v5210 = vld [vmem:[%s417 + $0x1f0] sm:$0xf]
        %v5211 = vld [vmem:[%s417 + $0x1f4] sm:$0xf]
        %v5212 = vld [vmem:[%s417 + $0x1f8] sm:$0xf]
        %v5213 = vld [vmem:[%s417 + $0x1fc] sm:$0xf]
        %v5214 = vld [vmem:[%s417 + $0x200] sm:$0xf]
        %v5215 = vld [vmem:[%s417 + $0x204] sm:$0xf]
        %v5216 = vld [vmem:[%s417 + $0x208] sm:$0xf]
        %v5217 = vld [vmem:[%s417 + $0x20c] sm:$0xf]
        %v5218 = vld [vmem:[%s417 + $0x210] sm:$0xf]
        %v5219 = vld [vmem:[%s417 + $0x214] sm:$0xf]
        %v5220 = vld [vmem:[%s417 + $0x218] sm:$0xf]
        %v5221 = vld [vmem:[%s417 + $0x21c] sm:$0xf]
        %v5222 = vld [vmem:[%s417 + $0x220] sm:$0xf]
        %v5223 = vld [vmem:[%s417 + $0x224] sm:$0xf]
        %v5224 = vld [vmem:[%s417 + $0x228] sm:$0xf]
        %v5225 = vld [vmem:[%s417 + $0x22c] sm:$0xf]
        %v5226 = vld [vmem:[%s417 + $0x230] sm:$0xf]
        %v5227 = vld [vmem:[%s417 + $0x234] sm:$0xf]
        %v5228 = vld [vmem:[%s417 + $0x238] sm:$0xf]
        %v5229 = vld [vmem:[%s417 + $0x23c] sm:$0xf]
        %v5374 = vunpack.c.l.b16 %v5086
        %v5375 = vunpack.c.l.b16 %v5087
        %v5376 = vunpack.c.l.b16 %v5088
        %v5377 = vunpack.c.l.b16 %v5089
        %v5378 = vunpack.c.l.b16 %v5090
        %v5379 = vunpack.c.l.b16 %v5091
        %v5380 = vunpack.c.l.b16 %v5092
        %v5381 = vunpack.c.l.b16 %v5093
        %v5382 = vunpack.c.l.b16 %v5094
        %v5383 = vunpack.c.l.b16 %v5095
        %v5384 = vunpack.c.l.b16 %v5096
        %v5385 = vunpack.c.l.b16 %v5097
        %v5386 = vunpack.c.l.b16 %v5098
        %v5387 = vunpack.c.l.b16 %v5099
        %v5388 = vunpack.c.l.b16 %v5100
        %v5389 = vunpack.c.l.b16 %v5101
        %v5390 = vunpack.c.l.b16 %v5102
        %v5391 = vunpack.c.l.b16 %v5103
        %v5392 = vunpack.c.l.b16 %v5104
        %v5393 = vunpack.c.l.b16 %v5105
        %v5394 = vunpack.c.l.b16 %v5106
        %v5395 = vunpack.c.l.b16 %v5107
        %v5396 = vunpack.c.l.b16 %v5108
        %v5397 = vunpack.c.l.b16 %v5109
        %v5398 = vunpack.c.l.b16 %v5110
        %v5399 = vunpack.c.l.b16 %v5111
        %v5400 = vunpack.c.l.b16 %v5112
        %v5401 = vunpack.c.l.b16 %v5113
        %v5402 = vunpack.c.l.b16 %v5114
        %v5403 = vunpack.c.l.b16 %v5115
        %v5404 = vunpack.c.l.b16 %v5116
        %v5405 = vunpack.c.l.b16 %v5117
        %v5406 = vunpack.c.l.b16 %v5118
        %v5407 = vunpack.c.l.b16 %v5119
        %v5408 = vunpack.c.l.b16 %v5120
        %v5409 = vunpack.c.l.b16 %v5121
        %v5410 = vunpack.c.l.b16 %v5122
        %v5411 = vunpack.c.l.b16 %v5123
        %v5412 = vunpack.c.l.b16 %v5124
        %v5413 = vunpack.c.l.b16 %v5125
        %v5414 = vunpack.c.l.b16 %v5126
        %v5415 = vunpack.c.l.b16 %v5127
        %v5416 = vunpack.c.l.b16 %v5128
        %v5417 = vunpack.c.l.b16 %v5129
        %v5418 = vunpack.c.l.b16 %v5130
        %v5419 = vunpack.c.l.b16 %v5131
        %v5420 = vunpack.c.l.b16 %v5132
        %v5421 = vunpack.c.l.b16 %v5133
        %v5422 = vunpack.c.l.b16 %v5134
        %v5423 = vunpack.c.l.b16 %v5135
        %v5424 = vunpack.c.l.b16 %v5136
        %v5425 = vunpack.c.l.b16 %v5137
        %v5426 = vunpack.c.l.b16 %v5138
        %v5427 = vunpack.c.l.b16 %v5139
        %v5428 = vunpack.c.l.b16 %v5140
        %v5429 = vunpack.c.l.b16 %v5141
        %v5430 = vunpack.c.l.b16 %v5142
        %v5431 = vunpack.c.l.b16 %v5143
        %v5432 = vunpack.c.l.b16 %v5144
        %v5433 = vunpack.c.l.b16 %v5145
        %v5434 = vunpack.c.l.b16 %v5146
        %v5435 = vunpack.c.l.b16 %v5147
        %v5436 = vunpack.c.l.b16 %v5148
        %v5437 = vunpack.c.l.b16 %v5149
        %v5438 = vunpack.c.l.b16 %v5150
        %v5439 = vunpack.c.l.b16 %v5151
        %v5440 = vunpack.c.l.b16 %v5152
        %v5441 = vunpack.c.l.b16 %v5153
        %v5442 = vunpack.c.l.b16 %v5154
        %v5443 = vunpack.c.l.b16 %v5155
        %v5444 = vunpack.c.l.b16 %v5156
        %v5445 = vunpack.c.l.b16 %v5157
        %v5446 = vunpack.c.l.b16 %v5158
        %v5447 = vunpack.c.l.b16 %v5159
        %v5448 = vunpack.c.l.b16 %v5160
        %v5449 = vunpack.c.l.b16 %v5161
        %v5450 = vunpack.c.l.b16 %v5162
        %v5451 = vunpack.c.l.b16 %v5163
        %v5452 = vunpack.c.l.b16 %v5164
        %v5453 = vunpack.c.l.b16 %v5165
        %v5454 = vunpack.c.l.b16 %v5166
        %v5455 = vunpack.c.l.b16 %v5167
        %v5456 = vunpack.c.l.b16 %v5168
        %v5457 = vunpack.c.l.b16 %v5169
        %v5458 = vunpack.c.l.b16 %v5170
        %v5459 = vunpack.c.l.b16 %v5171
        %v5460 = vunpack.c.l.b16 %v5172
        %v5461 = vunpack.c.l.b16 %v5173
        %v5462 = vunpack.c.l.b16 %v5174
        %v5463 = vunpack.c.l.b16 %v5175
        %v5464 = vunpack.c.l.b16 %v5176
        %v5465 = vunpack.c.l.b16 %v5177
        %v5466 = vunpack.c.l.b16 %v5178
        %v5467 = vunpack.c.l.b16 %v5179
        %v5468 = vunpack.c.l.b16 %v5180
        %v5469 = vunpack.c.l.b16 %v5181
        %v5470 = vunpack.c.l.b16 %v5182
        %v5471 = vunpack.c.l.b16 %v5183
        %v5472 = vunpack.c.l.b16 %v5184
        %v5473 = vunpack.c.l.b16 %v5185
        %v5474 = vunpack.c.l.b16 %v5186
        %v5475 = vunpack.c.l.b16 %v5187
        %v5476 = vunpack.c.l.b16 %v5188
        %v5477 = vunpack.c.l.b16 %v5189
        %v5478 = vunpack.c.l.b16 %v5190
        %v5479 = vunpack.c.l.b16 %v5191
        %v5480 = vunpack.c.l.b16 %v5192
        %v5481 = vunpack.c.l.b16 %v5193
        %v5482 = vunpack.c.l.b16 %v5194
        %v5483 = vunpack.c.l.b16 %v5195
        %v5484 = vunpack.c.l.b16 %v5196
        %v5485 = vunpack.c.l.b16 %v5197
        %v5486 = vunpack.c.l.b16 %v5198
        %v5487 = vunpack.c.l.b16 %v5199
        %v5488 = vunpack.c.l.b16 %v5200
        %v5489 = vunpack.c.l.b16 %v5201
        %v5490 = vunpack.c.l.b16 %v5202
        %v5491 = vunpack.c.l.b16 %v5203
        %v5492 = vunpack.c.l.b16 %v5204
        %v5493 = vunpack.c.l.b16 %v5205
        %v5494 = vunpack.c.l.b16 %v5206
        %v5495 = vunpack.c.l.b16 %v5207
        %v5496 = vunpack.c.l.b16 %v5208
        %v5497 = vunpack.c.l.b16 %v5209
        %v5498 = vunpack.c.l.b16 %v5210
        %v5499 = vunpack.c.l.b16 %v5211
        %v5500 = vunpack.c.l.b16 %v5212
        %v5501 = vunpack.c.l.b16 %v5213
        %v5502 = vunpack.c.l.b16 %v5214
        %v5503 = vunpack.c.l.b16 %v5215
        %v5504 = vunpack.c.l.b16 %v5216
        %v5505 = vunpack.c.l.b16 %v5217
        %v5506 = vunpack.c.l.b16 %v5218
        %v5507 = vunpack.c.l.b16 %v5219
        %v5508 = vunpack.c.l.b16 %v5220
        %v5509 = vunpack.c.l.b16 %v5221
        %v5510 = vunpack.c.l.b16 %v5222
        %v5511 = vunpack.c.l.b16 %v5223
        %v5512 = vunpack.c.l.b16 %v5224
        %v5513 = vunpack.c.l.b16 %v5225
        %v5514 = vunpack.c.l.b16 %v5226
        %v5515 = vunpack.c.l.b16 %v5227
        %v5516 = vunpack.c.l.b16 %v5228
        %v5517 = vunpack.c.l.b16 %v5229
        %v5518 = vpack.c.b16 %v5375, %v5374
        %v5519 = vpack.c.b16 %v5377, %v5376
        %v5520 = vpack.c.b16 %v5379, %v5378
        %v5521 = vpack.c.b16 %v5381, %v5380
        %v5522 = vpack.c.b16 %v5383, %v5382
        %v5523 = vpack.c.b16 %v5385, %v5384
        %v5524 = vpack.c.b16 %v5387, %v5386
        %v5525 = vpack.c.b16 %v5389, %v5388
        %v5526 = vpack.c.b16 %v5391, %v5390
        %v5527 = vpack.c.b16 %v5393, %v5392
        %v5528 = vpack.c.b16 %v5395, %v5394
        %v5529 = vpack.c.b16 %v5397, %v5396
        %v5530 = vpack.c.b16 %v5399, %v5398
        %v5531 = vpack.c.b16 %v5401, %v5400
        %v5532 = vpack.c.b16 %v5403, %v5402
        %v5533 = vpack.c.b16 %v5405, %v5404
        %v5534 = vpack.c.b16 %v5407, %v5406
        %v5535 = vpack.c.b16 %v5409, %v5408
        %v5536 = vpack.c.b16 %v5411, %v5410
        %v5537 = vpack.c.b16 %v5413, %v5412
        %v5538 = vpack.c.b16 %v5415, %v5414
        %v5539 = vpack.c.b16 %v5417, %v5416
        %v5540 = vpack.c.b16 %v5419, %v5418
        %v5541 = vpack.c.b16 %v5421, %v5420
        %v5542 = vpack.c.b16 %v5423, %v5422
        %v5543 = vpack.c.b16 %v5425, %v5424
        %v5544 = vpack.c.b16 %v5427, %v5426
        %v5545 = vpack.c.b16 %v5429, %v5428
        %v5546 = vpack.c.b16 %v5431, %v5430
        %v5547 = vpack.c.b16 %v5433, %v5432
        %v5548 = vpack.c.b16 %v5435, %v5434
        %v5549 = vpack.c.b16 %v5437, %v5436
        %v5550 = vpack.c.b16 %v5439, %v5438
        %v5551 = vpack.c.b16 %v5441, %v5440
        %v5552 = vpack.c.b16 %v5443, %v5442
        %v5553 = vpack.c.b16 %v5445, %v5444
        %v5554 = vpack.c.b16 %v5447, %v5446
        %v5555 = vpack.c.b16 %v5449, %v5448
        %v5556 = vpack.c.b16 %v5451, %v5450
        %v5557 = vpack.c.b16 %v5453, %v5452
        %v5558 = vpack.c.b16 %v5455, %v5454
        %v5559 = vpack.c.b16 %v5457, %v5456
        %v5560 = vpack.c.b16 %v5459, %v5458
        %v5561 = vpack.c.b16 %v5461, %v5460
        %v5562 = vpack.c.b16 %v5463, %v5462
        %v5563 = vpack.c.b16 %v5465, %v5464
        %v5564 = vpack.c.b16 %v5467, %v5466
        %v5565 = vpack.c.b16 %v5469, %v5468
        %v5566 = vpack.c.b16 %v5471, %v5470
        %v5567 = vpack.c.b16 %v5473, %v5472
        %v5568 = vpack.c.b16 %v5475, %v5474
        %v5569 = vpack.c.b16 %v5477, %v5476
        %v5570 = vpack.c.b16 %v5479, %v5478
        %v5571 = vpack.c.b16 %v5481, %v5480
        %v5572 = vpack.c.b16 %v5483, %v5482
        %v5573 = vpack.c.b16 %v5485, %v5484
        %v5574 = vpack.c.b16 %v5487, %v5486
        %v5575 = vpack.c.b16 %v5489, %v5488
        %v5576 = vpack.c.b16 %v5491, %v5490
        %v5577 = vpack.c.b16 %v5493, %v5492
        %v5578 = vpack.c.b16 %v5495, %v5494
        %v5579 = vpack.c.b16 %v5497, %v5496
        %v5580 = vpack.c.b16 %v5499, %v5498
        %v5581 = vpack.c.b16 %v5501, %v5500
        %v5582 = vpack.c.b16 %v5503, %v5502
        %v5583 = vpack.c.b16 %v5505, %v5504
        %v5584 = vpack.c.b16 %v5507, %v5506
        %v5585 = vpack.c.b16 %v5509, %v5508
        %v5586 = vpack.c.b16 %v5511, %v5510
        %v5587 = vpack.c.b16 %v5513, %v5512
        %v5588 = vpack.c.b16 %v5515, %v5514
        %v5589 = vpack.c.b16 %v5517, %v5516
        %5662 = vmatpush.bf16.msra.mxu0 %v5525
        %5663 = vmatpush.bf16.msra.mxu0 %v5524
        %5664 = vmatpush.bf16.msra.mxu0 %v5523
        %5665 = vmatpush.bf16.msra.mxu0 %v5522
        %5666 = vmatpush.bf16.msra.mxu0 %v5521
        %5667 = vmatpush.bf16.msra.mxu0 %v5520
        %5668 = vmatpush.bf16.msra.mxu0 %v5519
        %5669 = vmatpush.bf16.msra.mxu0 %v5518
        %5670 = vmatmul.bf16.gmra.mxu0 %v4286
        %v5671 = vpop.f32.mrf.mxu0
        %v5672 = vadd.f32 0.0, %v5671
        %v5673 = vpop.f32.mrf.mxu0
        %v5674 = vadd.f32 0.0, %v5673
        %5675 = vmatmul.bf16.gmra.mxu0 %v4287
        %v5676 = vpop.f32.mrf.mxu0
        %v5677 = vadd.f32 0.0, %v5676
        %v5678 = vpop.f32.mrf.mxu0
        %v5679 = vadd.f32 0.0, %v5678
        %5680 = vmatmul.bf16.gmra.mxu0 %v4288
        %v5681 = vpop.f32.mrf.mxu0
        %v5682 = vadd.f32 0.0, %v5681
        %v5683 = vpop.f32.mrf.mxu0
        %v5684 = vadd.f32 0.0, %v5683
        %5685 = vmatmul.bf16.gmra.mxu0 %v4289
        %v5686 = vpop.f32.mrf.mxu0
        %v5687 = vadd.f32 0.0, %v5686
        %v5688 = vpop.f32.mrf.mxu0
        %v5689 = vadd.f32 0.0, %v5688
        %5690 = vmatmul.bf16.gmra.mxu0 %v4290
        %v5691 = vpop.f32.mrf.mxu0
        %v5692 = vadd.f32 0.0, %v5691
        %v5693 = vpop.f32.mrf.mxu0
        %v5694 = vadd.f32 0.0, %v5693
        %5695 = vmatmul.bf16.gmra.mxu0 %v4291
        %v5696 = vpop.f32.mrf.mxu0
        %v5697 = vadd.f32 0.0, %v5696
        %v5698 = vpop.f32.mrf.mxu0
        %v5699 = vadd.f32 0.0, %v5698
        %5700 = vmatmul.bf16.gmra.mxu0 %v4292
        %v5701 = vpop.f32.mrf.mxu0
        %v5702 = vadd.f32 0.0, %v5701
        %v5703 = vpop.f32.mrf.mxu0
        %v5704 = vadd.f32 0.0, %v5703
        %5705 = vmatmul.bf16.gmra.mxu0 %v4293
        %v5706 = vpop.f32.mrf.mxu0
        %v5707 = vadd.f32 0.0, %v5706
        %v5708 = vpop.f32.mrf.mxu0
        %v5709 = vadd.f32 0.0, %v5708
        %5710 = vmatmul.bf16.gmra.mxu0 %v4294
        %v5711 = vpop.f32.mrf.mxu0
        %v5712 = vadd.f32 0.0, %v5711
        %v5713 = vpop.f32.mrf.mxu0
        %v5714 = vadd.f32 0.0, %v5713
        %5715 = vmatmul.bf16.gmra.mxu0 %v4295
        %v5716 = vpop.f32.mrf.mxu0
        %v5717 = vadd.f32 0.0, %v5716
        %v5718 = vpop.f32.mrf.mxu0
        %v5719 = vadd.f32 0.0, %v5718
        %5720 = vmatmul.bf16.gmra.mxu0 %v4296
        %v5721 = vpop.f32.mrf.mxu0
        %v5722 = vadd.f32 0.0, %v5721
        %v5723 = vpop.f32.mrf.mxu0
        %v5724 = vadd.f32 0.0, %v5723
        %5725 = vmatmul.bf16.gmra.mxu0 %v4297
        %v5726 = vpop.f32.mrf.mxu0
        %v5727 = vadd.f32 0.0, %v5726
        %v5728 = vpop.f32.mrf.mxu0
        %v5729 = vadd.f32 0.0, %v5728
        %5730 = vmatmul.bf16.gmra.mxu0 %v4298
        %v5731 = vpop.f32.mrf.mxu0
        %v5732 = vadd.f32 0.0, %v5731
        %v5733 = vpop.f32.mrf.mxu0
        %v5734 = vadd.f32 0.0, %v5733
        %5735 = vmatmul.bf16.gmra.mxu0 %v4299
        %v5736 = vpop.f32.mrf.mxu0
        %v5737 = vadd.f32 0.0, %v5736
        %v5738 = vpop.f32.mrf.mxu0
        %v5739 = vadd.f32 0.0, %v5738
        %5740 = vmatmul.bf16.gmra.mxu0 %v4300
        %v5741 = vpop.f32.mrf.mxu0
        %v5742 = vadd.f32 0.0, %v5741
        %v5743 = vpop.f32.mrf.mxu0
        %v5744 = vadd.f32 0.0, %v5743
        %5745 = vmatmul.bf16.gmra.mxu0 %v4301
        %v5746 = vpop.f32.mrf.mxu0
        %v5747 = vadd.f32 0.0, %v5746
        %v5748 = vpop.f32.mrf.mxu0
        %v5749 = vadd.f32 0.0, %v5748
        %5750 = vdwg.mxu0
        %5751 = vmatpush.bf16.msra.mxu0 %v5533
        %5752 = vmatpush.bf16.msra.mxu0 %v5532
        %5753 = vmatpush.bf16.msra.mxu0 %v5531
        %5754 = vmatpush.bf16.msra.mxu0 %v5530
        %5755 = vmatpush.bf16.msra.mxu0 %v5529
        %5756 = vmatpush.bf16.msra.mxu0 %v5528
        %5757 = vmatpush.bf16.msra.mxu0 %v5527
        %5758 = vmatpush.bf16.msra.mxu0 %v5526
        %5759 = vmatmul.bf16.gmra.mxu0 %v4382
        %v5760 = vpop.f32.mrf.mxu0
        %v5761 = vadd.f32 %v5672, %v5760
        %v5762 = vpop.f32.mrf.mxu0
        %v5763 = vadd.f32 %v5674, %v5762
        %5764 = vmatmul.bf16.gmra.mxu0 %v4383
        %v5765 = vpop.f32.mrf.mxu0
        %v5766 = vadd.f32 %v5677, %v5765
        %v5767 = vpop.f32.mrf.mxu0
        %v5768 = vadd.f32 %v5679, %v5767
        %5769 = vmatmul.bf16.gmra.mxu0 %v4384
        %v5770 = vpop.f32.mrf.mxu0
        %v5771 = vadd.f32 %v5682, %v5770
        %v5772 = vpop.f32.mrf.mxu0
        %v5773 = vadd.f32 %v5684, %v5772
        %5774 = vmatmul.bf16.gmra.mxu0 %v4385
        %v5775 = vpop.f32.mrf.mxu0
        %v5776 = vadd.f32 %v5687, %v5775
        %v5777 = vpop.f32.mrf.mxu0
        %v5778 = vadd.f32 %v5689, %v5777
        %5779 = vmatmul.bf16.gmra.mxu0 %v4386
        %v5780 = vpop.f32.mrf.mxu0
        %v5781 = vadd.f32 %v5692, %v5780
        %v5782 = vpop.f32.mrf.mxu0
        %v5783 = vadd.f32 %v5694, %v5782
        %5784 = vmatmul.bf16.gmra.mxu0 %v4387
        %v5785 = vpop.f32.mrf.mxu0
        %v5786 = vadd.f32 %v5697, %v5785
        %v5787 = vpop.f32.mrf.mxu0
        %v5788 = vadd.f32 %v5699, %v5787
        %5789 = vmatmul.bf16.gmra.mxu0 %v4388
        %v5790 = vpop.f32.mrf.mxu0
        %v5791 = vadd.f32 %v5702, %v5790
        %v5792 = vpop.f32.mrf.mxu0
        %v5793 = vadd.f32 %v5704, %v5792
        %5794 = vmatmul.bf16.gmra.mxu0 %v4389
        %v5795 = vpop.f32.mrf.mxu0
        %v5796 = vadd.f32 %v5707, %v5795
        %v5797 = vpop.f32.mrf.mxu0
        %v5798 = vadd.f32 %v5709, %v5797
        %5799 = vmatmul.bf16.gmra.mxu0 %v4390
        %v5800 = vpop.f32.mrf.mxu0
        %v5801 = vadd.f32 %v5712, %v5800
        %v5802 = vpop.f32.mrf.mxu0
        %v5803 = vadd.f32 %v5714, %v5802
        %5804 = vmatmul.bf16.gmra.mxu0 %v4391
        %v5805 = vpop.f32.mrf.mxu0
        %v5806 = vadd.f32 %v5717, %v5805
        %v5807 = vpop.f32.mrf.mxu0
        %v5808 = vadd.f32 %v5719, %v5807
        %5809 = vmatmul.bf16.gmra.mxu0 %v4392
        %v5810 = vpop.f32.mrf.mxu0
        %v5811 = vadd.f32 %v5722, %v5810
        %v5812 = vpop.f32.mrf.mxu0
        %v5813 = vadd.f32 %v5724, %v5812
        %5814 = vmatmul.bf16.gmra.mxu0 %v4393
        %v5815 = vpop.f32.mrf.mxu0
        %v5816 = vadd.f32 %v5727, %v5815
        %v5817 = vpop.f32.mrf.mxu0
        %v5818 = vadd.f32 %v5729, %v5817
        %5819 = vmatmul.bf16.gmra.mxu0 %v4394
        %v5820 = vpop.f32.mrf.mxu0
        %v5821 = vadd.f32 %v5732, %v5820
        %v5822 = vpop.f32.mrf.mxu0
        %v5823 = vadd.f32 %v5734, %v5822
        %5824 = vmatmul.bf16.gmra.mxu0 %v4395
        %v5825 = vpop.f32.mrf.mxu0
        %v5826 = vadd.f32 %v5737, %v5825
        %v5827 = vpop.f32.mrf.mxu0
        %v5828 = vadd.f32 %v5739, %v5827
        %5829 = vmatmul.bf16.gmra.mxu0 %v4396
        %v5830 = vpop.f32.mrf.mxu0
        %v5831 = vadd.f32 %v5742, %v5830
        %v5832 = vpop.f32.mrf.mxu0
        %v5833 = vadd.f32 %v5744, %v5832
        %5834 = vmatmul.bf16.gmra.mxu0 %v4397
        %v5835 = vpop.f32.mrf.mxu0
        %v5836 = vadd.f32 %v5747, %v5835
        %v5837 = vpop.f32.mrf.mxu0
        %v5838 = vadd.f32 %v5749, %v5837
        %5839 = vdwg.mxu0
        %5840 = vmatpush.bf16.msra.mxu0 %v5541
        %5841 = vmatpush.bf16.msra.mxu0 %v5540
        %5842 = vmatpush.bf16.msra.mxu0 %v5539
        %5843 = vmatpush.bf16.msra.mxu0 %v5538
        %5844 = vmatpush.bf16.msra.mxu0 %v5537
        %5845 = vmatpush.bf16.msra.mxu0 %v5536
        %5846 = vmatpush.bf16.msra.mxu0 %v5535
        %5847 = vmatpush.bf16.msra.mxu0 %v5534
        %5848 = vmatmul.bf16.gmra.mxu0 %v4478
        %v5849 = vpop.f32.mrf.mxu0
        %v5850 = vadd.f32 %v5761, %v5849
        %v5851 = vpop.f32.mrf.mxu0
        %v5852 = vadd.f32 %v5763, %v5851
        %5853 = vmatmul.bf16.gmra.mxu0 %v4479
        %v5854 = vpop.f32.mrf.mxu0
        %v5855 = vadd.f32 %v5766, %v5854
        %v5856 = vpop.f32.mrf.mxu0
        %v5857 = vadd.f32 %v5768, %v5856
        %5858 = vmatmul.bf16.gmra.mxu0 %v4480
        %v5859 = vpop.f32.mrf.mxu0
        %v5860 = vadd.f32 %v5771, %v5859
        %v5861 = vpop.f32.mrf.mxu0
        %v5862 = vadd.f32 %v5773, %v5861
        %5863 = vmatmul.bf16.gmra.mxu0 %v4481
        %v5864 = vpop.f32.mrf.mxu0
        %v5865 = vadd.f32 %v5776, %v5864
        %v5866 = vpop.f32.mrf.mxu0
        %v5867 = vadd.f32 %v5778, %v5866
        %5868 = vmatmul.bf16.gmra.mxu0 %v4482
        %v5869 = vpop.f32.mrf.mxu0
        %v5870 = vadd.f32 %v5781, %v5869
        %v5871 = vpop.f32.mrf.mxu0
        %v5872 = vadd.f32 %v5783, %v5871
        %5873 = vmatmul.bf16.gmra.mxu0 %v4483
        %v5874 = vpop.f32.mrf.mxu0
        %v5875 = vadd.f32 %v5786, %v5874
        %v5876 = vpop.f32.mrf.mxu0
        %v5877 = vadd.f32 %v5788, %v5876
        %5878 = vmatmul.bf16.gmra.mxu0 %v4484
        %v5879 = vpop.f32.mrf.mxu0
        %v5880 = vadd.f32 %v5791, %v5879
        %v5881 = vpop.f32.mrf.mxu0
        %v5882 = vadd.f32 %v5793, %v5881
        %5883 = vmatmul.bf16.gmra.mxu0 %v4485
        %v5884 = vpop.f32.mrf.mxu0
        %v5885 = vadd.f32 %v5796, %v5884
        %v5886 = vpop.f32.mrf.mxu0
        %v5887 = vadd.f32 %v5798, %v5886
        %5888 = vmatmul.bf16.gmra.mxu0 %v4486
        %v5889 = vpop.f32.mrf.mxu0
        %v5890 = vadd.f32 %v5801, %v5889
        %v5891 = vpop.f32.mrf.mxu0
        %v5892 = vadd.f32 %v5803, %v5891
        %5893 = vmatmul.bf16.gmra.mxu0 %v4487
        %v5894 = vpop.f32.mrf.mxu0
        %v5895 = vadd.f32 %v5806, %v5894
        %v5896 = vpop.f32.mrf.mxu0
        %v5897 = vadd.f32 %v5808, %v5896
        %5898 = vmatmul.bf16.gmra.mxu0 %v4488
        %v5899 = vpop.f32.mrf.mxu0
        %v5900 = vadd.f32 %v5811, %v5899
        %v5901 = vpop.f32.mrf.mxu0
        %v5902 = vadd.f32 %v5813, %v5901
        %5903 = vmatmul.bf16.gmra.mxu0 %v4489
        %v5904 = vpop.f32.mrf.mxu0
        %v5905 = vadd.f32 %v5816, %v5904
        %v5906 = vpop.f32.mrf.mxu0
        %v5907 = vadd.f32 %v5818, %v5906
        %5908 = vmatmul.bf16.gmra.mxu0 %v4490
        %v5909 = vpop.f32.mrf.mxu0
        %v5910 = vadd.f32 %v5821, %v5909
        %v5911 = vpop.f32.mrf.mxu0
        %v5912 = vadd.f32 %v5823, %v5911
        %5913 = vmatmul.bf16.gmra.mxu0 %v4491
        %v5914 = vpop.f32.mrf.mxu0
        %v5915 = vadd.f32 %v5826, %v5914
        %v5916 = vpop.f32.mrf.mxu0
        %v5917 = vadd.f32 %v5828, %v5916
        %5918 = vmatmul.bf16.gmra.mxu0 %v4492
        %v5919 = vpop.f32.mrf.mxu0
        %v5920 = vadd.f32 %v5831, %v5919
        %v5921 = vpop.f32.mrf.mxu0
        %v5922 = vadd.f32 %v5833, %v5921
        %5923 = vmatmul.bf16.gmra.mxu0 %v4493
        %v5924 = vpop.f32.mrf.mxu0
        %v5925 = vadd.f32 %v5836, %v5924
        %v5926 = vpop.f32.mrf.mxu0
        %v5927 = vadd.f32 %v5838, %v5926
        %5928 = vdwg.mxu0
        %5929 = vmatpush.bf16.msra.mxu0 %v5549
        %5930 = vmatpush.bf16.msra.mxu0 %v5548
        %5931 = vmatpush.bf16.msra.mxu0 %v5547
        %5932 = vmatpush.bf16.msra.mxu0 %v5546
        %5933 = vmatpush.bf16.msra.mxu0 %v5545
        %5934 = vmatpush.bf16.msra.mxu0 %v5544
        %5935 = vmatpush.bf16.msra.mxu0 %v5543
        %5936 = vmatpush.bf16.msra.mxu0 %v5542
        %5937 = vmatmul.bf16.gmra.mxu0 %v4574
        %v5938 = vpop.f32.mrf.mxu0
        %v5939 = vadd.f32 %v5850, %v5938
        %v5940 = vpop.f32.mrf.mxu0
        %v5941 = vadd.f32 %v5852, %v5940
        %5942 = vmatmul.bf16.gmra.mxu0 %v4575
        %v5943 = vpop.f32.mrf.mxu0
        %v5944 = vadd.f32 %v5855, %v5943
        %v5945 = vpop.f32.mrf.mxu0
        %v5946 = vadd.f32 %v5857, %v5945
        %5947 = vmatmul.bf16.gmra.mxu0 %v4576
        %v5948 = vpop.f32.mrf.mxu0
        %v5949 = vadd.f32 %v5860, %v5948
        %v5950 = vpop.f32.mrf.mxu0
        %v5951 = vadd.f32 %v5862, %v5950
        %5952 = vmatmul.bf16.gmra.mxu0 %v4577
        %v5953 = vpop.f32.mrf.mxu0
        %v5954 = vadd.f32 %v5865, %v5953
        %v5955 = vpop.f32.mrf.mxu0
        %v5956 = vadd.f32 %v5867, %v5955
        %5957 = vmatmul.bf16.gmra.mxu0 %v4578
        %v5958 = vpop.f32.mrf.mxu0
        %v5959 = vadd.f32 %v5870, %v5958
        %v5960 = vpop.f32.mrf.mxu0
        %v5961 = vadd.f32 %v5872, %v5960
        %5962 = vmatmul.bf16.gmra.mxu0 %v4579
        %v5963 = vpop.f32.mrf.mxu0
        %v5964 = vadd.f32 %v5875, %v5963
        %v5965 = vpop.f32.mrf.mxu0
        %v5966 = vadd.f32 %v5877, %v5965
        %5967 = vmatmul.bf16.gmra.mxu0 %v4580
        %v5968 = vpop.f32.mrf.mxu0
        %v5969 = vadd.f32 %v5880, %v5968
        %v5970 = vpop.f32.mrf.mxu0
        %v5971 = vadd.f32 %v5882, %v5970
        %5972 = vmatmul.bf16.gmra.mxu0 %v4581
        %v5973 = vpop.f32.mrf.mxu0
        %v5974 = vadd.f32 %v5885, %v5973
        %v5975 = vpop.f32.mrf.mxu0
        %v5976 = vadd.f32 %v5887, %v5975
        %5977 = vmatmul.bf16.gmra.mxu0 %v4582
        %v5978 = vpop.f32.mrf.mxu0
        %v5979 = vadd.f32 %v5890, %v5978
        %v5980 = vpop.f32.mrf.mxu0
        %v5981 = vadd.f32 %v5892, %v5980
        %5982 = vmatmul.bf16.gmra.mxu0 %v4583
        %v5983 = vpop.f32.mrf.mxu0
        %v5984 = vadd.f32 %v5895, %v5983
        %v5985 = vpop.f32.mrf.mxu0
        %v5986 = vadd.f32 %v5897, %v5985
        %5987 = vmatmul.bf16.gmra.mxu0 %v4584
        %v5988 = vpop.f32.mrf.mxu0
        %v5989 = vadd.f32 %v5900, %v5988
        %v5990 = vpop.f32.mrf.mxu0
        %v5991 = vadd.f32 %v5902, %v5990
        %5992 = vmatmul.bf16.gmra.mxu0 %v4585
        %v5993 = vpop.f32.mrf.mxu0
        %v5994 = vadd.f32 %v5905, %v5993
        %v5995 = vpop.f32.mrf.mxu0
        %v5996 = vadd.f32 %v5907, %v5995
        %5997 = vmatmul.bf16.gmra.mxu0 %v4586
        %v5998 = vpop.f32.mrf.mxu0
        %v5999 = vadd.f32 %v5910, %v5998
        %v6000 = vpop.f32.mrf.mxu0
        %v6001 = vadd.f32 %v5912, %v6000
        %6002 = vmatmul.bf16.gmra.mxu0 %v4587
        %v6003 = vpop.f32.mrf.mxu0
        %v6004 = vadd.f32 %v5915, %v6003
        %v6005 = vpop.f32.mrf.mxu0
        %v6006 = vadd.f32 %v5917, %v6005
        %6007 = vmatmul.bf16.gmra.mxu0 %v4588
        %v6008 = vpop.f32.mrf.mxu0
        %v6009 = vadd.f32 %v5920, %v6008
        %v6010 = vpop.f32.mrf.mxu0
        %v6011 = vadd.f32 %v5922, %v6010
        %6012 = vmatmul.bf16.gmra.mxu0 %v4589
        %v6013 = vpop.f32.mrf.mxu0
        %v6014 = vadd.f32 %v5925, %v6013
        %v6015 = vpop.f32.mrf.mxu0
        %v6016 = vadd.f32 %v5927, %v6015
        %6017 = vdwg.mxu0
        %6018 = vmatpush.bf16.msra.mxu0 %v5557
        %6019 = vmatpush.bf16.msra.mxu0 %v5556
        %6020 = vmatpush.bf16.msra.mxu0 %v5555
        %6021 = vmatpush.bf16.msra.mxu0 %v5554
        %6022 = vmatpush.bf16.msra.mxu0 %v5553
        %6023 = vmatpush.bf16.msra.mxu0 %v5552
        %6024 = vmatpush.bf16.msra.mxu0 %v5551
        %6025 = vmatpush.bf16.msra.mxu0 %v5550
        %6026 = vmatmul.bf16.gmra.mxu0 %v4670
        %v6027 = vpop.f32.mrf.mxu0
        %v6028 = vadd.f32 %v5939, %v6027
        %v6029 = vpop.f32.mrf.mxu0
        %v6030 = vadd.f32 %v5941, %v6029
        %6031 = vmatmul.bf16.gmra.mxu0 %v4671
        %v6032 = vpop.f32.mrf.mxu0
        %v6033 = vadd.f32 %v5944, %v6032
        %v6034 = vpop.f32.mrf.mxu0
        %v6035 = vadd.f32 %v5946, %v6034
        %6036 = vmatmul.bf16.gmra.mxu0 %v4672
        %v6037 = vpop.f32.mrf.mxu0
        %v6038 = vadd.f32 %v5949, %v6037
        %v6039 = vpop.f32.mrf.mxu0
        %v6040 = vadd.f32 %v5951, %v6039
        %6041 = vmatmul.bf16.gmra.mxu0 %v4673
        %v6042 = vpop.f32.mrf.mxu0
        %v6043 = vadd.f32 %v5954, %v6042
        %v6044 = vpop.f32.mrf.mxu0
        %v6045 = vadd.f32 %v5956, %v6044
        %6046 = vmatmul.bf16.gmra.mxu0 %v4674
        %v6047 = vpop.f32.mrf.mxu0
        %v6048 = vadd.f32 %v5959, %v6047
        %v6049 = vpop.f32.mrf.mxu0
        %v6050 = vadd.f32 %v5961, %v6049
        %6051 = vmatmul.bf16.gmra.mxu0 %v4675
        %v6052 = vpop.f32.mrf.mxu0
        %v6053 = vadd.f32 %v5964, %v6052
        %v6054 = vpop.f32.mrf.mxu0
        %v6055 = vadd.f32 %v5966, %v6054
        %6056 = vmatmul.bf16.gmra.mxu0 %v4676
        %v6057 = vpop.f32.mrf.mxu0
        %v6058 = vadd.f32 %v5969, %v6057
        %v6059 = vpop.f32.mrf.mxu0
        %v6060 = vadd.f32 %v5971, %v6059
        %6061 = vmatmul.bf16.gmra.mxu0 %v4677
        %v6062 = vpop.f32.mrf.mxu0
        %v6063 = vadd.f32 %v5974, %v6062
        %v6064 = vpop.f32.mrf.mxu0
        %v6065 = vadd.f32 %v5976, %v6064
        %6066 = vmatmul.bf16.gmra.mxu0 %v4678
        %v6067 = vpop.f32.mrf.mxu0
        %v6068 = vadd.f32 %v5979, %v6067
        %v6069 = vpop.f32.mrf.mxu0
        %v6070 = vadd.f32 %v5981, %v6069
        %6071 = vmatmul.bf16.gmra.mxu0 %v4679
        %v6072 = vpop.f32.mrf.mxu0
        %v6073 = vadd.f32 %v5984, %v6072
        %v6074 = vpop.f32.mrf.mxu0
        %v6075 = vadd.f32 %v5986, %v6074
        %6076 = vmatmul.bf16.gmra.mxu0 %v4680
        %v6077 = vpop.f32.mrf.mxu0
        %v6078 = vadd.f32 %v5989, %v6077
        %v6079 = vpop.f32.mrf.mxu0
        %v6080 = vadd.f32 %v5991, %v6079
        %6081 = vmatmul.bf16.gmra.mxu0 %v4681
        %v6082 = vpop.f32.mrf.mxu0
        %v6083 = vadd.f32 %v5994, %v6082
        %v6084 = vpop.f32.mrf.mxu0
        %v6085 = vadd.f32 %v5996, %v6084
        %6086 = vmatmul.bf16.gmra.mxu0 %v4682
        %v6087 = vpop.f32.mrf.mxu0
        %v6088 = vadd.f32 %v5999, %v6087
        %v6089 = vpop.f32.mrf.mxu0
        %v6090 = vadd.f32 %v6001, %v6089
        %6091 = vmatmul.bf16.gmra.mxu0 %v4683
        %v6092 = vpop.f32.mrf.mxu0
        %v6093 = vadd.f32 %v6004, %v6092
        %v6094 = vpop.f32.mrf.mxu0
        %v6095 = vadd.f32 %v6006, %v6094
        %6096 = vmatmul.bf16.gmra.mxu0 %v4684
        %v6097 = vpop.f32.mrf.mxu0
        %v6098 = vadd.f32 %v6009, %v6097
        %v6099 = vpop.f32.mrf.mxu0
        %v6100 = vadd.f32 %v6011, %v6099
        %6101 = vmatmul.bf16.gmra.mxu0 %v4685
        %v6102 = vpop.f32.mrf.mxu0
        %v6103 = vadd.f32 %v6014, %v6102
        %v6104 = vpop.f32.mrf.mxu0
        %v6105 = vadd.f32 %v6016, %v6104
        %6106 = vdwg.mxu0
        %6107 = vmatpush.bf16.msra.mxu0 %v5565
        %6108 = vmatpush.bf16.msra.mxu0 %v5564
        %6109 = vmatpush.bf16.msra.mxu0 %v5563
        %6110 = vmatpush.bf16.msra.mxu0 %v5562
        %6111 = vmatpush.bf16.msra.mxu0 %v5561
        %6112 = vmatpush.bf16.msra.mxu0 %v5560
        %6113 = vmatpush.bf16.msra.mxu0 %v5559
        %6114 = vmatpush.bf16.msra.mxu0 %v5558
        %6115 = vmatmul.bf16.gmra.mxu0 %v4766
        %v6116 = vpop.f32.mrf.mxu0
        %v6117 = vadd.f32 %v6028, %v6116
        %v6118 = vpop.f32.mrf.mxu0
        %v6119 = vadd.f32 %v6030, %v6118
        %6120 = vmatmul.bf16.gmra.mxu0 %v4767
        %v6121 = vpop.f32.mrf.mxu0
        %v6122 = vadd.f32 %v6033, %v6121
        %v6123 = vpop.f32.mrf.mxu0
        %v6124 = vadd.f32 %v6035, %v6123
        %6125 = vmatmul.bf16.gmra.mxu0 %v4768
        %v6126 = vpop.f32.mrf.mxu0
        %v6127 = vadd.f32 %v6038, %v6126
        %v6128 = vpop.f32.mrf.mxu0
        %v6129 = vadd.f32 %v6040, %v6128
        %6130 = vmatmul.bf16.gmra.mxu0 %v4769
        %v6131 = vpop.f32.mrf.mxu0
        %v6132 = vadd.f32 %v6043, %v6131
        %v6133 = vpop.f32.mrf.mxu0
        %v6134 = vadd.f32 %v6045, %v6133
        %6135 = vmatmul.bf16.gmra.mxu0 %v4770
        %v6136 = vpop.f32.mrf.mxu0
        %v6137 = vadd.f32 %v6048, %v6136
        %v6138 = vpop.f32.mrf.mxu0
        %v6139 = vadd.f32 %v6050, %v6138
        %6140 = vmatmul.bf16.gmra.mxu0 %v4771
        %v6141 = vpop.f32.mrf.mxu0
        %v6142 = vadd.f32 %v6053, %v6141
        %v6143 = vpop.f32.mrf.mxu0
        %v6144 = vadd.f32 %v6055, %v6143
        %6145 = vmatmul.bf16.gmra.mxu0 %v4772
        %v6146 = vpop.f32.mrf.mxu0
        %v6147 = vadd.f32 %v6058, %v6146
        %v6148 = vpop.f32.mrf.mxu0
        %v6149 = vadd.f32 %v6060, %v6148
        %6150 = vmatmul.bf16.gmra.mxu0 %v4773
        %v6151 = vpop.f32.mrf.mxu0
        %v6152 = vadd.f32 %v6063, %v6151
        %v6153 = vpop.f32.mrf.mxu0
        %v6154 = vadd.f32 %v6065, %v6153
        %6155 = vmatmul.bf16.gmra.mxu0 %v4774
        %v6156 = vpop.f32.mrf.mxu0
        %v6157 = vadd.f32 %v6068, %v6156
        %v6158 = vpop.f32.mrf.mxu0
        %v6159 = vadd.f32 %v6070, %v6158
        %6160 = vmatmul.bf16.gmra.mxu0 %v4775
        %v6161 = vpop.f32.mrf.mxu0
        %v6162 = vadd.f32 %v6073, %v6161
        %v6163 = vpop.f32.mrf.mxu0
        %v6164 = vadd.f32 %v6075, %v6163
        %6165 = vmatmul.bf16.gmra.mxu0 %v4776
        %v6166 = vpop.f32.mrf.mxu0
        %v6167 = vadd.f32 %v6078, %v6166
        %v6168 = vpop.f32.mrf.mxu0
        %v6169 = vadd.f32 %v6080, %v6168
        %6170 = vmatmul.bf16.gmra.mxu0 %v4777
        %v6171 = vpop.f32.mrf.mxu0
        %v6172 = vadd.f32 %v6083, %v6171
        %v6173 = vpop.f32.mrf.mxu0
        %v6174 = vadd.f32 %v6085, %v6173
        %6175 = vmatmul.bf16.gmra.mxu0 %v4778
        %v6176 = vpop.f32.mrf.mxu0
        %v6177 = vadd.f32 %v6088, %v6176
        %v6178 = vpop.f32.mrf.mxu0
        %v6179 = vadd.f32 %v6090, %v6178
        %6180 = vmatmul.bf16.gmra.mxu0 %v4779
        %v6181 = vpop.f32.mrf.mxu0
        %v6182 = vadd.f32 %v6093, %v6181
        %v6183 = vpop.f32.mrf.mxu0
        %v6184 = vadd.f32 %v6095, %v6183
        %6185 = vmatmul.bf16.gmra.mxu0 %v4780
        %v6186 = vpop.f32.mrf.mxu0
        %v6187 = vadd.f32 %v6098, %v6186
        %v6188 = vpop.f32.mrf.mxu0
        %v6189 = vadd.f32 %v6100, %v6188
        %6190 = vmatmul.bf16.gmra.mxu0 %v4781
        %v6191 = vpop.f32.mrf.mxu0
        %v6192 = vadd.f32 %v6103, %v6191
        %v6193 = vpop.f32.mrf.mxu0
        %v6194 = vadd.f32 %v6105, %v6193
        %6195 = vdwg.mxu0
        %6196 = vmatpush.bf16.msra.mxu0 %v5573
        %6197 = vmatpush.bf16.msra.mxu0 %v5572
        %6198 = vmatpush.bf16.msra.mxu0 %v5571
        %6199 = vmatpush.bf16.msra.mxu0 %v5570
        %6200 = vmatpush.bf16.msra.mxu0 %v5569
        %6201 = vmatpush.bf16.msra.mxu0 %v5568
        %6202 = vmatpush.bf16.msra.mxu0 %v5567
        %6203 = vmatpush.bf16.msra.mxu0 %v5566
        %6204 = vmatmul.bf16.gmra.mxu0 %v4862
        %v6205 = vpop.f32.mrf.mxu0
        %v6206 = vadd.f32 %v6117, %v6205
        %v6207 = vpop.f32.mrf.mxu0
        %v6208 = vadd.f32 %v6119, %v6207
        %6209 = vmatmul.bf16.gmra.mxu0 %v4863
        %v6210 = vpop.f32.mrf.mxu0
        %v6211 = vadd.f32 %v6122, %v6210
        %v6212 = vpop.f32.mrf.mxu0
        %v6213 = vadd.f32 %v6124, %v6212
        %6214 = vmatmul.bf16.gmra.mxu0 %v4864
        %v6215 = vpop.f32.mrf.mxu0
        %v6216 = vadd.f32 %v6127, %v6215
        %v6217 = vpop.f32.mrf.mxu0
        %v6218 = vadd.f32 %v6129, %v6217
        %6219 = vmatmul.bf16.gmra.mxu0 %v4865
        %v6220 = vpop.f32.mrf.mxu0
        %v6221 = vadd.f32 %v6132, %v6220
        %v6222 = vpop.f32.mrf.mxu0
        %v6223 = vadd.f32 %v6134, %v6222
        %6224 = vmatmul.bf16.gmra.mxu0 %v4866
        %v6225 = vpop.f32.mrf.mxu0
        %v6226 = vadd.f32 %v6137, %v6225
        %v6227 = vpop.f32.mrf.mxu0
        %v6228 = vadd.f32 %v6139, %v6227
        %6229 = vmatmul.bf16.gmra.mxu0 %v4867
        %v6230 = vpop.f32.mrf.mxu0
        %v6231 = vadd.f32 %v6142, %v6230
        %v6232 = vpop.f32.mrf.mxu0
        %v6233 = vadd.f32 %v6144, %v6232
        %6234 = vmatmul.bf16.gmra.mxu0 %v4868
        %v6235 = vpop.f32.mrf.mxu0
        %v6236 = vadd.f32 %v6147, %v6235
        %v6237 = vpop.f32.mrf.mxu0
        %v6238 = vadd.f32 %v6149, %v6237
        %6239 = vmatmul.bf16.gmra.mxu0 %v4869
        %v6240 = vpop.f32.mrf.mxu0
        %v6241 = vadd.f32 %v6152, %v6240
        %v6242 = vpop.f32.mrf.mxu0
        %v6243 = vadd.f32 %v6154, %v6242
        %6244 = vmatmul.bf16.gmra.mxu0 %v4870
        %v6245 = vpop.f32.mrf.mxu0
        %v6246 = vadd.f32 %v6157, %v6245
        %v6247 = vpop.f32.mrf.mxu0
        %v6248 = vadd.f32 %v6159, %v6247
        %6249 = vmatmul.bf16.gmra.mxu0 %v4871
        %v6250 = vpop.f32.mrf.mxu0
        %v6251 = vadd.f32 %v6162, %v6250
        %v6252 = vpop.f32.mrf.mxu0
        %v6253 = vadd.f32 %v6164, %v6252
        %6254 = vmatmul.bf16.gmra.mxu0 %v4872
        %v6255 = vpop.f32.mrf.mxu0
        %v6256 = vadd.f32 %v6167, %v6255
        %v6257 = vpop.f32.mrf.mxu0
        %v6258 = vadd.f32 %v6169, %v6257
        %6259 = vmatmul.bf16.gmra.mxu0 %v4873
        %v6260 = vpop.f32.mrf.mxu0
        %v6261 = vadd.f32 %v6172, %v6260
        %v6262 = vpop.f32.mrf.mxu0
        %v6263 = vadd.f32 %v6174, %v6262
        %6264 = vmatmul.bf16.gmra.mxu0 %v4874
        %v6265 = vpop.f32.mrf.mxu0
        %v6266 = vadd.f32 %v6177, %v6265
        %v6267 = vpop.f32.mrf.mxu0
        %v6268 = vadd.f32 %v6179, %v6267
        %6269 = vmatmul.bf16.gmra.mxu0 %v4875
        %v6270 = vpop.f32.mrf.mxu0
        %v6271 = vadd.f32 %v6182, %v6270
        %v6272 = vpop.f32.mrf.mxu0
        %v6273 = vadd.f32 %v6184, %v6272
        %6274 = vmatmul.bf16.gmra.mxu0 %v4876
        %v6275 = vpop.f32.mrf.mxu0
        %v6276 = vadd.f32 %v6187, %v6275
        %v6277 = vpop.f32.mrf.mxu0
        %v6278 = vadd.f32 %v6189, %v6277
        %6279 = vmatmul.bf16.gmra.mxu0 %v4877
        %v6280 = vpop.f32.mrf.mxu0
        %v6281 = vadd.f32 %v6192, %v6280
        %v6282 = vpop.f32.mrf.mxu0
        %v6283 = vadd.f32 %v6194, %v6282
        %6284 = vdwg.mxu0
        %6285 = vmatpush.bf16.msra.mxu0 %v5581
        %6286 = vmatpush.bf16.msra.mxu0 %v5580
        %6287 = vmatpush.bf16.msra.mxu0 %v5579
        %6288 = vmatpush.bf16.msra.mxu0 %v5578
        %6289 = vmatpush.bf16.msra.mxu0 %v5577
        %6290 = vmatpush.bf16.msra.mxu0 %v5576
        %6291 = vmatpush.bf16.msra.mxu0 %v5575
        %6292 = vmatpush.bf16.msra.mxu0 %v5574
        %6293 = vmatmul.bf16.gmra.mxu0 %v4958
        %v6294 = vpop.f32.mrf.mxu0
        %v6295 = vadd.f32 %v6206, %v6294
        %v6296 = vpop.f32.mrf.mxu0
        %v6297 = vadd.f32 %v6208, %v6296
        %6298 = vmatmul.bf16.gmra.mxu0 %v4959
        %v6299 = vpop.f32.mrf.mxu0
        %v6300 = vadd.f32 %v6211, %v6299
        %v6301 = vpop.f32.mrf.mxu0
        %v6302 = vadd.f32 %v6213, %v6301
        %6303 = vmatmul.bf16.gmra.mxu0 %v4960
        %v6304 = vpop.f32.mrf.mxu0
        %v6305 = vadd.f32 %v6216, %v6304
        %v6306 = vpop.f32.mrf.mxu0
        %v6307 = vadd.f32 %v6218, %v6306
        %6308 = vmatmul.bf16.gmra.mxu0 %v4961
        %v6309 = vpop.f32.mrf.mxu0
        %v6310 = vadd.f32 %v6221, %v6309
        %v6311 = vpop.f32.mrf.mxu0
        %v6312 = vadd.f32 %v6223, %v6311
        %6313 = vmatmul.bf16.gmra.mxu0 %v4962
        %v6314 = vpop.f32.mrf.mxu0
        %v6315 = vadd.f32 %v6226, %v6314
        %v6316 = vpop.f32.mrf.mxu0
        %v6317 = vadd.f32 %v6228, %v6316
        %6318 = vmatmul.bf16.gmra.mxu0 %v4963
        %v6319 = vpop.f32.mrf.mxu0
        %v6320 = vadd.f32 %v6231, %v6319
        %v6321 = vpop.f32.mrf.mxu0
        %v6322 = vadd.f32 %v6233, %v6321
        %6323 = vmatmul.bf16.gmra.mxu0 %v4964
        %v6324 = vpop.f32.mrf.mxu0
        %v6325 = vadd.f32 %v6236, %v6324
        %v6326 = vpop.f32.mrf.mxu0
        %v6327 = vadd.f32 %v6238, %v6326
        %6328 = vmatmul.bf16.gmra.mxu0 %v4965
        %v6329 = vpop.f32.mrf.mxu0
        %v6330 = vadd.f32 %v6241, %v6329
        %v6331 = vpop.f32.mrf.mxu0
        %v6332 = vadd.f32 %v6243, %v6331
        %6333 = vmatmul.bf16.gmra.mxu0 %v4966
        %v6334 = vpop.f32.mrf.mxu0
        %v6335 = vadd.f32 %v6246, %v6334
        %v6336 = vpop.f32.mrf.mxu0
        %v6337 = vadd.f32 %v6248, %v6336
        %6338 = vmatmul.bf16.gmra.mxu0 %v4967
        %v6339 = vpop.f32.mrf.mxu0
        %v6340 = vadd.f32 %v6251, %v6339
        %v6341 = vpop.f32.mrf.mxu0
        %v6342 = vadd.f32 %v6253, %v6341
        %6343 = vmatmul.bf16.gmra.mxu0 %v4968
        %v6344 = vpop.f32.mrf.mxu0
        %v6345 = vadd.f32 %v6256, %v6344
        %v6346 = vpop.f32.mrf.mxu0
        %v6347 = vadd.f32 %v6258, %v6346
        %6348 = vmatmul.bf16.gmra.mxu0 %v4969
        %v6349 = vpop.f32.mrf.mxu0
        %v6350 = vadd.f32 %v6261, %v6349
        %v6351 = vpop.f32.mrf.mxu0
        %v6352 = vadd.f32 %v6263, %v6351
        %6353 = vmatmul.bf16.gmra.mxu0 %v4970
        %v6354 = vpop.f32.mrf.mxu0
        %v6355 = vadd.f32 %v6266, %v6354
        %v6356 = vpop.f32.mrf.mxu0
        %v6357 = vadd.f32 %v6268, %v6356
        %6358 = vmatmul.bf16.gmra.mxu0 %v4971
        %v6359 = vpop.f32.mrf.mxu0
        %v6360 = vadd.f32 %v6271, %v6359
        %v6361 = vpop.f32.mrf.mxu0
        %v6362 = vadd.f32 %v6273, %v6361
        %6363 = vmatmul.bf16.gmra.mxu0 %v4972
        %v6364 = vpop.f32.mrf.mxu0
        %v6365 = vadd.f32 %v6276, %v6364
        %v6366 = vpop.f32.mrf.mxu0
        %v6367 = vadd.f32 %v6278, %v6366
        %6368 = vmatmul.bf16.gmra.mxu0 %v4973
        %v6369 = vpop.f32.mrf.mxu0
        %v6370 = vadd.f32 %v6281, %v6369
        %v6371 = vpop.f32.mrf.mxu0
        %v6372 = vadd.f32 %v6283, %v6371
        %6373 = vdwg.mxu0
        %6374 = vmatpush.bf16.msra.mxu0 %v5589
        %6375 = vmatpush.bf16.msra.mxu0 %v5588
        %6376 = vmatpush.bf16.msra.mxu0 %v5587
        %6377 = vmatpush.bf16.msra.mxu0 %v5586
        %6378 = vmatpush.bf16.msra.mxu0 %v5585
        %6379 = vmatpush.bf16.msra.mxu0 %v5584
        %6380 = vmatpush.bf16.msra.mxu0 %v5583
        %6381 = vmatpush.bf16.msra.mxu0 %v5582
        %6382 = vmatmul.bf16.gmra.mxu0 %v5054
        %v6383 = vpop.f32.mrf.mxu0
        %v6384 = vadd.f32 %v6295, %v6383
        %v6385 = vpop.f32.mrf.mxu0
        %v6386 = vadd.f32 %v6297, %v6385
        %6387 = vmatmul.bf16.gmra.mxu0 %v5055
        %v6388 = vpop.f32.mrf.mxu0
        %v6389 = vadd.f32 %v6300, %v6388
        %v6390 = vpop.f32.mrf.mxu0
        %v6391 = vadd.f32 %v6302, %v6390
        %6392 = vmatmul.bf16.gmra.mxu0 %v5056
        %v6393 = vpop.f32.mrf.mxu0
        %v6394 = vadd.f32 %v6305, %v6393
        %v6395 = vpop.f32.mrf.mxu0
        %v6396 = vadd.f32 %v6307, %v6395
        %6397 = vmatmul.bf16.gmra.mxu0 %v5057
        %v6398 = vpop.f32.mrf.mxu0
        %v6399 = vadd.f32 %v6310, %v6398
        %v6400 = vpop.f32.mrf.mxu0
        %v6401 = vadd.f32 %v6312, %v6400
        %6402 = vmatmul.bf16.gmra.mxu0 %v5058
        %v6403 = vpop.f32.mrf.mxu0
        %v6404 = vadd.f32 %v6315, %v6403
        %v6405 = vpop.f32.mrf.mxu0
        %v6406 = vadd.f32 %v6317, %v6405
        %6407 = vmatmul.bf16.gmra.mxu0 %v5059
        %v6408 = vpop.f32.mrf.mxu0
        %v6409 = vadd.f32 %v6320, %v6408
        %v6410 = vpop.f32.mrf.mxu0
        %v6411 = vadd.f32 %v6322, %v6410
        %6412 = vmatmul.bf16.gmra.mxu0 %v5060
        %v6413 = vpop.f32.mrf.mxu0
        %v6414 = vadd.f32 %v6325, %v6413
        %v6415 = vpop.f32.mrf.mxu0
        %v6416 = vadd.f32 %v6327, %v6415
        %6417 = vmatmul.bf16.gmra.mxu0 %v5061
        %v6418 = vpop.f32.mrf.mxu0
        %v6419 = vadd.f32 %v6330, %v6418
        %v6420 = vpop.f32.mrf.mxu0
        %v6421 = vadd.f32 %v6332, %v6420
        %6422 = vmatmul.bf16.gmra.mxu0 %v5062
        %v6423 = vpop.f32.mrf.mxu0
        %v6424 = vadd.f32 %v6335, %v6423
        %v6425 = vpop.f32.mrf.mxu0
        %v6426 = vadd.f32 %v6337, %v6425
        %6427 = vmatmul.bf16.gmra.mxu0 %v5063
        %v6428 = vpop.f32.mrf.mxu0
        %v6429 = vadd.f32 %v6340, %v6428
        %v6430 = vpop.f32.mrf.mxu0
        %v6431 = vadd.f32 %v6342, %v6430
        %6432 = vmatmul.bf16.gmra.mxu0 %v5064
        %v6433 = vpop.f32.mrf.mxu0
        %v6434 = vadd.f32 %v6345, %v6433
        %v6435 = vpop.f32.mrf.mxu0
        %v6436 = vadd.f32 %v6347, %v6435
        %6437 = vmatmul.bf16.gmra.mxu0 %v5065
        %v6438 = vpop.f32.mrf.mxu0
        %v6439 = vadd.f32 %v6350, %v6438
        %v6440 = vpop.f32.mrf.mxu0
        %v6441 = vadd.f32 %v6352, %v6440
        %6442 = vmatmul.bf16.gmra.mxu0 %v5066
        %v6443 = vpop.f32.mrf.mxu0
        %v6444 = vadd.f32 %v6355, %v6443
        %v6445 = vpop.f32.mrf.mxu0
        %v6446 = vadd.f32 %v6357, %v6445
        %6447 = vmatmul.bf16.gmra.mxu0 %v5067
        %v6448 = vpop.f32.mrf.mxu0
        %v6449 = vadd.f32 %v6360, %v6448
        %v6450 = vpop.f32.mrf.mxu0
        %v6451 = vadd.f32 %v6362, %v6450
        %6452 = vmatmul.bf16.gmra.mxu0 %v5068
        %v6453 = vpop.f32.mrf.mxu0
        %v6454 = vadd.f32 %v6365, %v6453
        %v6455 = vpop.f32.mrf.mxu0
        %v6456 = vadd.f32 %v6367, %v6455
        %6457 = vmatmul.bf16.gmra.mxu0 %v5069
        %v6458 = vpop.f32.mrf.mxu0
        %v6459 = vadd.f32 %v6370, %v6458
        %v6460 = vpop.f32.mrf.mxu0
        %v6461 = vadd.f32 %v6372, %v6460
        %6462 = vdwg.mxu0
        %v6463 = vperm.slane %v3644, 0
        %v6464 = vmul.f32 %v6384, %v6463
        %v6465 = vmul.f32 %v6386, %v6463
        %v6466 = vmul.f32 %v6389, %v6463
        %v6467 = vmul.f32 %v6391, %v6463
        %v6468 = vmul.f32 %v6394, %v6463
        %v6469 = vmul.f32 %v6396, %v6463
        %v6470 = vmul.f32 %v6399, %v6463
        %v6471 = vmul.f32 %v6401, %v6463
        %v6472 = vmul.f32 %v6404, %v6463
        %v6473 = vmul.f32 %v6406, %v6463
        %v6474 = vmul.f32 %v6409, %v6463
        %v6475 = vmul.f32 %v6411, %v6463
        %v6476 = vmul.f32 %v6414, %v6463
        %v6477 = vmul.f32 %v6416, %v6463
        %v6478 = vmul.f32 %v6419, %v6463
        %v6479 = vmul.f32 %v6421, %v6463
        %v6480 = vmul.f32 %v6424, %v6463
        %v6481 = vmul.f32 %v6426, %v6463
        %v6482 = vmul.f32 %v6429, %v6463
        %v6483 = vmul.f32 %v6431, %v6463
        %v6484 = vmul.f32 %v6434, %v6463
        %v6485 = vmul.f32 %v6436, %v6463
        %v6486 = vmul.f32 %v6439, %v6463
        %v6487 = vmul.f32 %v6441, %v6463
        %v6488 = vmul.f32 %v6444, %v6463
        %v6489 = vmul.f32 %v6446, %v6463
        %v6490 = vmul.f32 %v6449, %v6463
        %v6491 = vmul.f32 %v6451, %v6463
        %v6492 = vmul.f32 %v6454, %v6463
        %v6493 = vmul.f32 %v6456, %v6463
        %v6494 = vmul.f32 %v6459, %v6463
        %v6495 = vmul.f32 %v6461, %v6463
        %v6496 = vperm.slane %v3644, 1
        %v6497 = vadd.f32 %v6464, %v6496
        %v6498 = vadd.f32 %v6465, %v6496
        %v6499 = vadd.f32 %v6466, %v6496
        %v6500 = vadd.f32 %v6467, %v6496
        %v6501 = vadd.f32 %v6468, %v6496
        %v6502 = vadd.f32 %v6469, %v6496
        %v6503 = vadd.f32 %v6470, %v6496
        %v6504 = vadd.f32 %v6471, %v6496
        %v6505 = vadd.f32 %v6472, %v6496
        %v6506 = vadd.f32 %v6473, %v6496
        %v6507 = vadd.f32 %v6474, %v6496
        %v6508 = vadd.f32 %v6475, %v6496
        %v6509 = vadd.f32 %v6476, %v6496
        %v6510 = vadd.f32 %v6477, %v6496
        %v6511 = vadd.f32 %v6478, %v6496
        %v6512 = vadd.f32 %v6479, %v6496
        %v6513 = vadd.f32 %v6480, %v6496
        %v6514 = vadd.f32 %v6481, %v6496
        %v6515 = vadd.f32 %v6482, %v6496
        %v6516 = vadd.f32 %v6483, %v6496
        %v6517 = vadd.f32 %v6484, %v6496
        %v6518 = vadd.f32 %v6485, %v6496
        %v6519 = vadd.f32 %v6486, %v6496
        %v6520 = vadd.f32 %v6487, %v6496
        %v6521 = vadd.f32 %v6488, %v6496
        %v6522 = vadd.f32 %v6489, %v6496
        %v6523 = vadd.f32 %v6490, %v6496
        %v6524 = vadd.f32 %v6491, %v6496
        %v6525 = vadd.f32 %v6492, %v6496
        %v6526 = vadd.f32 %v6493, %v6496
        %v6527 = vadd.f32 %v6494, %v6496
        %v6528 = vadd.f32 %v6495, %v6496
        %v6529 = vld [vmem:[#allocation13] sm:$0xf]
        %v6530 = vld [vmem:[#allocation13 + $0x4] sm:$0xf]
        %v6531 = vld [vmem:[#allocation13 + $0x8] sm:$0xf]
        %v6532 = vld [vmem:[#allocation13 + $0xc] sm:$0xf]
        %v6533 = vld [vmem:[#allocation13 + $0x10] sm:$0xf]
        %v6534 = vld [vmem:[#allocation13 + $0x14] sm:$0xf]
        %v6535 = vld [vmem:[#allocation13 + $0x18] sm:$0xf]
        %v6536 = vld [vmem:[#allocation13 + $0x1c] sm:$0xf]
        %v6537 = vld [vmem:[#allocation13 + $0x20] sm:$0xf]
        %v6538 = vld [vmem:[#allocation13 + $0x24] sm:$0xf]
        %v6539 = vld [vmem:[#allocation13 + $0x28] sm:$0xf]
        %v6540 = vld [vmem:[#allocation13 + $0x2c] sm:$0xf]
        %v6541 = vld [vmem:[#allocation13 + $0x30] sm:$0xf]
        %v6542 = vld [vmem:[#allocation13 + $0x34] sm:$0xf]
        %v6543 = vld [vmem:[#allocation13 + $0x38] sm:$0xf]
        %v6544 = vld [vmem:[#allocation13 + $0x3c] sm:$0xf]
        %v6561 = vunpack.c.l.b16 %v6529
        %v6562 = vunpack.c.l.b16 %v6530
        %v6563 = vunpack.c.l.b16 %v6531
        %v6564 = vunpack.c.l.b16 %v6532
        %v6565 = vunpack.c.l.b16 %v6533
        %v6566 = vunpack.c.l.b16 %v6534
        %v6567 = vunpack.c.l.b16 %v6535
        %v6568 = vunpack.c.l.b16 %v6536
        %v6569 = vunpack.c.l.b16 %v6537
        %v6570 = vunpack.c.l.b16 %v6538
        %v6571 = vunpack.c.l.b16 %v6539
        %v6572 = vunpack.c.l.b16 %v6540
        %v6573 = vunpack.c.l.b16 %v6541
        %v6574 = vunpack.c.l.b16 %v6542
        %v6575 = vunpack.c.l.b16 %v6543
        %v6576 = vunpack.c.l.b16 %v6544
        %v6577 = vpack.c.b16 %v6562, %v6561
        %v6578 = vpack.c.b16 %v6564, %v6563
        %v6579 = vpack.c.b16 %v6566, %v6565
        %v6580 = vpack.c.b16 %v6568, %v6567
        %v6581 = vpack.c.b16 %v6570, %v6569
        %v6582 = vpack.c.b16 %v6572, %v6571
        %v6583 = vpack.c.b16 %v6574, %v6573
        %v6584 = vpack.c.b16 %v6576, %v6575
        %6593 = vmatpush.bf16.msra.mxu0 %v6584
        %6594 = vmatpush.bf16.msra.mxu0 %v6583
        %6595 = vmatpush.bf16.msra.mxu0 %v6582
        %6596 = vmatpush.bf16.msra.mxu0 %v6581
        %6597 = vmatpush.bf16.msra.mxu0 %v6580
        %6598 = vmatpush.bf16.msra.mxu0 %v6579
        %6599 = vmatpush.bf16.msra.mxu0 %v6578
        %6600 = vmatpush.bf16.msra.mxu0 %v6577
        %6601 = vmatmul.bf16.gmra.mxu0 %v1720
        %v6602 = vpop.f32.mrf.mxu0
        %v6603 = vadd.f32 0.0, %v6602
        %v6604 = vpop.f32.mrf.mxu0
        %v6605 = vadd.f32 0.0, %v6604
        %6606 = vmatmul.bf16.gmra.mxu0 %v1721
        %v6607 = vpop.f32.mrf.mxu0
        %v6608 = vadd.f32 0.0, %v6607
        %v6609 = vpop.f32.mrf.mxu0
        %v6610 = vadd.f32 0.0, %v6609
        %6611 = vmatmul.bf16.gmra.mxu0 %v1722
        %v6612 = vpop.f32.mrf.mxu0
        %v6613 = vadd.f32 0.0, %v6612
        %v6614 = vpop.f32.mrf.mxu0
        %v6615 = vadd.f32 0.0, %v6614
        %6616 = vmatmul.bf16.gmra.mxu0 %v1723
        %v6617 = vpop.f32.mrf.mxu0
        %v6618 = vadd.f32 0.0, %v6617
        %v6619 = vpop.f32.mrf.mxu0
        %v6620 = vadd.f32 0.0, %v6619
        %6621 = vmatmul.bf16.gmra.mxu0 %v1724
        %v6622 = vpop.f32.mrf.mxu0
        %v6623 = vadd.f32 0.0, %v6622
        %v6624 = vpop.f32.mrf.mxu0
        %v6625 = vadd.f32 0.0, %v6624
        %6626 = vmatmul.bf16.gmra.mxu0 %v1725
        %v6627 = vpop.f32.mrf.mxu0
        %v6628 = vadd.f32 0.0, %v6627
        %v6629 = vpop.f32.mrf.mxu0
        %v6630 = vadd.f32 0.0, %v6629
        %6631 = vmatmul.bf16.gmra.mxu0 %v1726
        %v6632 = vpop.f32.mrf.mxu0
        %v6633 = vadd.f32 0.0, %v6632
        %v6634 = vpop.f32.mrf.mxu0
        %v6635 = vadd.f32 0.0, %v6634
        %6636 = vmatmul.bf16.gmra.mxu0 %v1727
        %v6637 = vpop.f32.mrf.mxu0
        %v6638 = vadd.f32 0.0, %v6637
        %v6639 = vpop.f32.mrf.mxu0
        %v6640 = vadd.f32 0.0, %v6639
        %6641 = vmatmul.bf16.gmra.mxu0 %v1728
        %v6642 = vpop.f32.mrf.mxu0
        %v6643 = vadd.f32 0.0, %v6642
        %v6644 = vpop.f32.mrf.mxu0
        %v6645 = vadd.f32 0.0, %v6644
        %6646 = vmatmul.bf16.gmra.mxu0 %v1729
        %v6647 = vpop.f32.mrf.mxu0
        %v6648 = vadd.f32 0.0, %v6647
        %v6649 = vpop.f32.mrf.mxu0
        %v6650 = vadd.f32 0.0, %v6649
        %6651 = vmatmul.bf16.gmra.mxu0 %v1730
        %v6652 = vpop.f32.mrf.mxu0
        %v6653 = vadd.f32 0.0, %v6652
        %v6654 = vpop.f32.mrf.mxu0
        %v6655 = vadd.f32 0.0, %v6654
        %6656 = vmatmul.bf16.gmra.mxu0 %v1731
        %v6657 = vpop.f32.mrf.mxu0
        %v6658 = vadd.f32 0.0, %v6657
        %v6659 = vpop.f32.mrf.mxu0
        %v6660 = vadd.f32 0.0, %v6659
        %6661 = vmatmul.bf16.gmra.mxu0 %v1732
        %v6662 = vpop.f32.mrf.mxu0
        %v6663 = vadd.f32 0.0, %v6662
        %v6664 = vpop.f32.mrf.mxu0
        %v6665 = vadd.f32 0.0, %v6664
        %6666 = vmatmul.bf16.gmra.mxu0 %v1733
        %v6667 = vpop.f32.mrf.mxu0
        %v6668 = vadd.f32 0.0, %v6667
        %v6669 = vpop.f32.mrf.mxu0
        %v6670 = vadd.f32 0.0, %v6669
        %6671 = vmatmul.bf16.gmra.mxu0 %v1734
        %v6672 = vpop.f32.mrf.mxu0
        %v6673 = vadd.f32 0.0, %v6672
        %v6674 = vpop.f32.mrf.mxu0
        %v6675 = vadd.f32 0.0, %v6674
        %6676 = vmatmul.bf16.gmra.mxu0 %v1735
        %v6677 = vpop.f32.mrf.mxu0
        %v6678 = vadd.f32 0.0, %v6677
        %v6679 = vpop.f32.mrf.mxu0
        %v6680 = vadd.f32 0.0, %v6679
        %6681 = vdwg.mxu0
        %v6682 = vld [vmem:[%s6] sm:$0x1]
        %v6683 = vperm.slane %v6682, 0
        %v6684 = vmul.f32 %v6603, %v6683
        %v6685 = vmul.f32 %v6605, %v6683
        %v6686 = vmul.f32 %v6608, %v6683
        %v6687 = vmul.f32 %v6610, %v6683
        %v6688 = vmul.f32 %v6613, %v6683
        %v6689 = vmul.f32 %v6615, %v6683
        %v6690 = vmul.f32 %v6618, %v6683
        %v6691 = vmul.f32 %v6620, %v6683
        %v6692 = vmul.f32 %v6623, %v6683
        %v6693 = vmul.f32 %v6625, %v6683
        %v6694 = vmul.f32 %v6628, %v6683
        %v6695 = vmul.f32 %v6630, %v6683
        %v6696 = vmul.f32 %v6633, %v6683
        %v6697 = vmul.f32 %v6635, %v6683
        %v6698 = vmul.f32 %v6638, %v6683
        %v6699 = vmul.f32 %v6640, %v6683
        %v6700 = vmul.f32 %v6643, %v6683
        %v6701 = vmul.f32 %v6645, %v6683
        %v6702 = vmul.f32 %v6648, %v6683
        %v6703 = vmul.f32 %v6650, %v6683
        %v6704 = vmul.f32 %v6653, %v6683
        %v6705 = vmul.f32 %v6655, %v6683
        %v6706 = vmul.f32 %v6658, %v6683
        %v6707 = vmul.f32 %v6660, %v6683
        %v6708 = vmul.f32 %v6663, %v6683
        %v6709 = vmul.f32 %v6665, %v6683
        %v6710 = vmul.f32 %v6668, %v6683
        %v6711 = vmul.f32 %v6670, %v6683
        %v6712 = vmul.f32 %v6673, %v6683
        %v6713 = vmul.f32 %v6675, %v6683
        %v6714 = vmul.f32 %v6678, %v6683
        %v6715 = vmul.f32 %v6680, %v6683
        %v6716 = vld [vmem:[%s6 + $0x1] sm:$0x1]
        %v6717 = vperm.slane %v6716, 0
        %v6718 = vadd.f32 %v6684, %v6717
        %v6719 = vadd.f32 %v6685, %v6717
        %v6720 = vadd.f32 %v6686, %v6717
        %v6721 = vadd.f32 %v6687, %v6717
        %v6722 = vadd.f32 %v6688, %v6717
        %v6723 = vadd.f32 %v6689, %v6717
        %v6724 = vadd.f32 %v6690, %v6717
        %v6725 = vadd.f32 %v6691, %v6717
        %v6726 = vadd.f32 %v6692, %v6717
        %v6727 = vadd.f32 %v6693, %v6717
        %v6728 = vadd.f32 %v6694, %v6717
        %v6729 = vadd.f32 %v6695, %v6717
        %v6730 = vadd.f32 %v6696, %v6717
        %v6731 = vadd.f32 %v6697, %v6717
        %v6732 = vadd.f32 %v6698, %v6717
        %v6733 = vadd.f32 %v6699, %v6717
        %v6734 = vadd.f32 %v6700, %v6717
        %v6735 = vadd.f32 %v6701, %v6717
        %v6736 = vadd.f32 %v6702, %v6717
        %v6737 = vadd.f32 %v6703, %v6717
        %v6738 = vadd.f32 %v6704, %v6717
        %v6739 = vadd.f32 %v6705, %v6717
        %v6740 = vadd.f32 %v6706, %v6717
        %v6741 = vadd.f32 %v6707, %v6717
        %v6742 = vadd.f32 %v6708, %v6717
        %v6743 = vadd.f32 %v6709, %v6717
        %v6744 = vadd.f32 %v6710, %v6717
        %v6745 = vadd.f32 %v6711, %v6717
        %v6746 = vadd.f32 %v6712, %v6717
        %v6747 = vadd.f32 %v6713, %v6717
        %v6748 = vadd.f32 %v6714, %v6717
        %v6749 = vadd.f32 %v6715, %v6717
        %s6750 = scalar_select %p484, 1, 0
        %s6751 = scvt.s32.f32 %s6750
        %v6752 = vstv %s6751
        %v6753 = vmul.f32 %v6752, %v6718
        %v6754 = vmul.f32 %v6752, %v6719
        %v6755 = vmul.f32 %v6752, %v6720
        %v6756 = vmul.f32 %v6752, %v6721
        %v6757 = vmul.f32 %v6752, %v6722
        %v6758 = vmul.f32 %v6752, %v6723
        %v6759 = vmul.f32 %v6752, %v6724
        %v6760 = vmul.f32 %v6752, %v6725
        %v6761 = vmul.f32 %v6752, %v6726
        %v6762 = vmul.f32 %v6752, %v6727
        %v6763 = vmul.f32 %v6752, %v6728
        %v6764 = vmul.f32 %v6752, %v6729
        %v6765 = vmul.f32 %v6752, %v6730
        %v6766 = vmul.f32 %v6752, %v6731
        %v6767 = vmul.f32 %v6752, %v6732
        %v6768 = vmul.f32 %v6752, %v6733
        %v6769 = vmul.f32 %v6752, %v6734
        %v6770 = vmul.f32 %v6752, %v6735
        %v6771 = vmul.f32 %v6752, %v6736
        %v6772 = vmul.f32 %v6752, %v6737
        %v6773 = vmul.f32 %v6752, %v6738
        %v6774 = vmul.f32 %v6752, %v6739
        %v6775 = vmul.f32 %v6752, %v6740
        %v6776 = vmul.f32 %v6752, %v6741
        %v6777 = vmul.f32 %v6752, %v6742
        %v6778 = vmul.f32 %v6752, %v6743
        %v6779 = vmul.f32 %v6752, %v6744
        %v6780 = vmul.f32 %v6752, %v6745
        %v6781 = vmul.f32 %v6752, %v6746
        %v6782 = vmul.f32 %v6752, %v6747
        %v6783 = vmul.f32 %v6752, %v6748
        %v6784 = vmul.f32 %v6752, %v6749
        %s6785 = ssub.f32 1.0, %s6751
        %v6786 = vstv %s6785
        %v6787 = vmul.f32 %v6786, %v694
        %v6788 = vmul.f32 %v6786, %v695
        %v6789 = vmul.f32 %v6786, %v696
        %v6790 = vmul.f32 %v6786, %v697
        %v6791 = vmul.f32 %v6786, %v698
        %v6792 = vmul.f32 %v6786, %v699
        %v6793 = vmul.f32 %v6786, %v700
        %v6794 = vmul.f32 %v6786, %v701
        %v6795 = vmul.f32 %v6786, %v702
        %v6796 = vmul.f32 %v6786, %v703
        %v6797 = vmul.f32 %v6786, %v704
        %v6798 = vmul.f32 %v6786, %v705
        %v6799 = vmul.f32 %v6786, %v706
        %v6800 = vmul.f32 %v6786, %v707
        %v6801 = vmul.f32 %v6786, %v708
        %v6802 = vmul.f32 %v6786, %v709
        %v6803 = vmul.f32 %v6786, %v710
        %v6804 = vmul.f32 %v6786, %v711
        %v6805 = vmul.f32 %v6786, %v712
        %v6806 = vmul.f32 %v6786, %v713
        %v6807 = vmul.f32 %v6786, %v714
        %v6808 = vmul.f32 %v6786, %v715
        %v6809 = vmul.f32 %v6786, %v716
        %v6810 = vmul.f32 %v6786, %v717
        %v6811 = vmul.f32 %v6786, %v718
        %v6812 = vmul.f32 %v6786, %v719
        %v6813 = vmul.f32 %v6786, %v720
        %v6814 = vmul.f32 %v6786, %v721
        %v6815 = vmul.f32 %v6786, %v722
        %v6816 = vmul.f32 %v6786, %v723
        %v6817 = vmul.f32 %v6786, %v724
        %v6818 = vmul.f32 %v6786, %v725
        %v6819 = vadd.f32 %v6753, %v6787
        %v6820 = vadd.f32 %v6754, %v6788
        %v6821 = vadd.f32 %v6755, %v6789
        %v6822 = vadd.f32 %v6756, %v6790
        %v6823 = vadd.f32 %v6757, %v6791
        %v6824 = vadd.f32 %v6758, %v6792
        %v6825 = vadd.f32 %v6759, %v6793
        %v6826 = vadd.f32 %v6760, %v6794
        %v6827 = vadd.f32 %v6761, %v6795
        %v6828 = vadd.f32 %v6762, %v6796
        %v6829 = vadd.f32 %v6763, %v6797
        %v6830 = vadd.f32 %v6764, %v6798
        %v6831 = vadd.f32 %v6765, %v6799
        %v6832 = vadd.f32 %v6766, %v6800
        %v6833 = vadd.f32 %v6767, %v6801
        %v6834 = vadd.f32 %v6768, %v6802
        %v6835 = vadd.f32 %v6769, %v6803
        %v6836 = vadd.f32 %v6770, %v6804
        %v6837 = vadd.f32 %v6771, %v6805
        %v6838 = vadd.f32 %v6772, %v6806
        %v6839 = vadd.f32 %v6773, %v6807
        %v6840 = vadd.f32 %v6774, %v6808
        %v6841 = vadd.f32 %v6775, %v6809
        %v6842 = vadd.f32 %v6776, %v6810
        %v6843 = vadd.f32 %v6777, %v6811
        %v6844 = vadd.f32 %v6778, %v6812
        %v6845 = vadd.f32 %v6779, %v6813
        %v6846 = vadd.f32 %v6780, %v6814
        %v6847 = vadd.f32 %v6781, %v6815
        %v6848 = vadd.f32 %v6782, %v6816
        %v6849 = vadd.f32 %v6783, %v6817
        %v6850 = vadd.f32 %v6784, %v6818
        %v6851 = vadd.f32 %v6497, %v6819
        %v6852 = vadd.f32 %v6498, %v6820
        %v6853 = vadd.f32 %v6499, %v6821
        %v6854 = vadd.f32 %v6500, %v6822
        %v6855 = vadd.f32 %v6501, %v6823
        %v6856 = vadd.f32 %v6502, %v6824
        %v6857 = vadd.f32 %v6503, %v6825
        %v6858 = vadd.f32 %v6504, %v6826
        %v6859 = vadd.f32 %v6505, %v6827
        %v6860 = vadd.f32 %v6506, %v6828
        %v6861 = vadd.f32 %v6507, %v6829
        %v6862 = vadd.f32 %v6508, %v6830
        %v6863 = vadd.f32 %v6509, %v6831
        %v6864 = vadd.f32 %v6510, %v6832
        %v6865 = vadd.f32 %v6511, %v6833
        %v6866 = vadd.f32 %v6512, %v6834
        %v6867 = vadd.f32 %v6513, %v6835
        %v6868 = vadd.f32 %v6514, %v6836
        %v6869 = vadd.f32 %v6515, %v6837
        %v6870 = vadd.f32 %v6516, %v6838
        %v6871 = vadd.f32 %v6517, %v6839
        %v6872 = vadd.f32 %v6518, %v6840
        %v6873 = vadd.f32 %v6519, %v6841
        %v6874 = vadd.f32 %v6520, %v6842
        %v6875 = vadd.f32 %v6521, %v6843
        %v6876 = vadd.f32 %v6522, %v6844
        %v6877 = vadd.f32 %v6523, %v6845
        %v6878 = vadd.f32 %v6524, %v6846
        %v6879 = vadd.f32 %v6525, %v6847
        %v6880 = vadd.f32 %v6526, %v6848
        %v6881 = vadd.f32 %v6527, %v6849
        %v6882 = vadd.f32 %v6528, %v6850
        %v6883 = vmax.f32 %v6851, 0.0
        %v6884 = vmax.f32 %v6852, 0.0
        %v6885 = vmax.f32 %v6853, 0.0
        %v6886 = vmax.f32 %v6854, 0.0
        %v6887 = vmax.f32 %v6855, 0.0
        %v6888 = vmax.f32 %v6856, 0.0
        %v6889 = vmax.f32 %v6857, 0.0
        %v6890 = vmax.f32 %v6858, 0.0
        %v6891 = vmax.f32 %v6859, 0.0
        %v6892 = vmax.f32 %v6860, 0.0
        %v6893 = vmax.f32 %v6861, 0.0
        %v6894 = vmax.f32 %v6862, 0.0
        %v6895 = vmax.f32 %v6863, 0.0
        %v6896 = vmax.f32 %v6864, 0.0
        %v6897 = vmax.f32 %v6865, 0.0
        %v6898 = vmax.f32 %v6866, 0.0
        %v6899 = vmax.f32 %v6867, 0.0
        %v6900 = vmax.f32 %v6868, 0.0
        %v6901 = vmax.f32 %v6869, 0.0
        %v6902 = vmax.f32 %v6870, 0.0
        %v6903 = vmax.f32 %v6871, 0.0
        %v6904 = vmax.f32 %v6872, 0.0
        %v6905 = vmax.f32 %v6873, 0.0
        %v6906 = vmax.f32 %v6874, 0.0
        %v6907 = vmax.f32 %v6875, 0.0
        %v6908 = vmax.f32 %v6876, 0.0
        %v6909 = vmax.f32 %v6877, 0.0
        %v6910 = vmax.f32 %v6878, 0.0
        %v6911 = vmax.f32 %v6879, 0.0
        %v6912 = vmax.f32 %v6880, 0.0
        %v6913 = vmax.f32 %v6881, 0.0
        %v6914 = vmax.f32 %v6882, 0.0
        %p6915 = scmp.lt.s32.totalorder %s36, 1
        // Predicated region
        $region77: #{tpu_custom_call.1} parent=47 // pred_check
          %p6916 = pneg %p6915
        $region78: #{tpu_custom_call.1} parent=47 // pred_check_branch
          %6918 = sbr.rel (%p6916) target = $region80
        $region79: #{tpu_custom_call.1} parent=47 // pred_region
          %6919 = vst [vmem:[%s693 + $0x1] sm:$0xff] %v6883
          %6920 = vst [vmem:[%s693 + $0x9] sm:$0xff] %v6884
          %6921 = vst [vmem:[%s693 + $0x19] sm:$0xff] %v6885
          %6922 = vst [vmem:[%s693 + $0x21] sm:$0xff] %v6886
          %6923 = vst [vmem:[%s693 + $0x31] sm:$0xff] %v6887
          %6924 = vst [vmem:[%s693 + $0x39] sm:$0xff] %v6888
          %6925 = vst [vmem:[%s693 + $0x49] sm:$0xff] %v6889
          %6926 = vst [vmem:[%s693 + $0x51] sm:$0xff] %v6890
          %6927 = vst [vmem:[%s693 + $0x61] sm:$0xff] %v6891
          %6928 = vst [vmem:[%s693 + $0x69] sm:$0xff] %v6892
          %6929 = vst [vmem:[%s693 + $0x79] sm:$0xff] %v6893
          %6930 = vst [vmem:[%s693 + $0x81] sm:$0xff] %v6894
          %6931 = vst [vmem:[%s693 + $0x91] sm:$0xff] %v6895
          %6932 = vst [vmem:[%s693 + $0x99] sm:$0xff] %v6896
          %6933 = vst [vmem:[%s693 + $0xa9] sm:$0xff] %v6897
          %6934 = vst [vmem:[%s693 + $0xb1] sm:$0xff] %v6898
          %6935 = vst [vmem:[%s693 + $0xc1] sm:$0xff] %v6899
          %6936 = vst [vmem:[%s693 + $0xc9] sm:$0xff] %v6900
          %6937 = vst [vmem:[%s693 + $0xd9] sm:$0xff] %v6901
          %6938 = vst [vmem:[%s693 + $0xe1] sm:$0xff] %v6902
          %6939 = vst [vmem:[%s693 + $0xf1] sm:$0xff] %v6903
          %6940 = vst [vmem:[%s693 + $0xf9] sm:$0xff] %v6904
          %6941 = vst [vmem:[%s693 + $0x109] sm:$0xff] %v6905
          %6942 = vst [vmem:[%s693 + $0x111] sm:$0xff] %v6906
          %6943 = vst [vmem:[%s693 + $0x121] sm:$0xff] %v6907
          %6944 = vst [vmem:[%s693 + $0x129] sm:$0xff] %v6908
          %6945 = vst [vmem:[%s693 + $0x139] sm:$0xff] %v6909
          %6946 = vst [vmem:[%s693 + $0x141] sm:$0xff] %v6910
          %6947 = vst [vmem:[%s693 + $0x151] sm:$0xff] %v6911
          %6948 = vst [vmem:[%s693 + $0x159] sm:$0xff] %v6912
          %6949 = vst [vmem:[%s693 + $0x169] sm:$0xff] %v6913
          %6950 = vst [vmem:[%s693 + $0x171] sm:$0xff] %v6914
        $region80: #{tpu_custom_call.1} parent=47 // pred_fallthru
          _
        // Predicated region
        $region81: #{tpu_custom_call.1} parent=47 // pred_check
          %p6951 = pneg %p484
        $region82: #{tpu_custom_call.1} parent=47 // pred_check_branch
          %6953 = sbr.rel (%p6951) target = $region84
        $region83: #{tpu_custom_call.1} parent=47 // pred_region
          %6954 = vst [vmem:[%s483] sm:$0xff] %v6883
          %6955 = vst [vmem:[%s483 + $0x8] sm:$0xff] %v6884
          %6956 = vst [vmem:[%s483 + $0x10] sm:$0xff] %v6885
          %6957 = vst [vmem:[%s483 + $0x18] sm:$0xff] %v6886
          %6958 = vst [vmem:[%s483 + $0x20] sm:$0xff] %v6887
          %6959 = vst [vmem:[%s483 + $0x28] sm:$0xff] %v6888
          %6960 = vst [vmem:[%s483 + $0x30] sm:$0xff] %v6889
          %6961 = vst [vmem:[%s483 + $0x38] sm:$0xff] %v6890
          %6962 = vst [vmem:[%s483 + $0x40] sm:$0xff] %v6891
          %6963 = vst [vmem:[%s483 + $0x48] sm:$0xff] %v6892
          %6964 = vst [vmem:[%s483 + $0x50] sm:$0xff] %v6893
          %6965 = vst [vmem:[%s483 + $0x58] sm:$0xff] %v6894
          %6966 = vst [vmem:[%s483 + $0x60] sm:$0xff] %v6895
          %6967 = vst [vmem:[%s483 + $0x68] sm:$0xff] %v6896
          %6968 = vst [vmem:[%s483 + $0x70] sm:$0xff] %v6897
          %6969 = vst [vmem:[%s483 + $0x78] sm:$0xff] %v6898
          %6970 = vst [vmem:[%s483 + $0x80] sm:$0xff] %v6899
          %6971 = vst [vmem:[%s483 + $0x88] sm:$0xff] %v6900
          %6972 = vst [vmem:[%s483 + $0x90] sm:$0xff] %v6901
          %6973 = vst [vmem:[%s483 + $0x98] sm:$0xff] %v6902
          %6974 = vst [vmem:[%s483 + $0xa0] sm:$0xff] %v6903
          %6975 = vst [vmem:[%s483 + $0xa8] sm:$0xff] %v6904
          %6976 = vst [vmem:[%s483 + $0xb0] sm:$0xff] %v6905
          %6977 = vst [vmem:[%s483 + $0xb8] sm:$0xff] %v6906
          %6978 = vst [vmem:[%s483 + $0xc0] sm:$0xff] %v6907
          %6979 = vst [vmem:[%s483 + $0xc8] sm:$0xff] %v6908
          %6980 = vst [vmem:[%s483 + $0xd0] sm:$0xff] %v6909
          %6981 = vst [vmem:[%s483 + $0xd8] sm:$0xff] %v6910
          %6982 = vst [vmem:[%s483 + $0xe0] sm:$0xff] %v6911
          %6983 = vst [vmem:[%s483 + $0xe8] sm:$0xff] %v6912
          %6984 = vst [vmem:[%s483 + $0xf0] sm:$0xff] %v6913
          %6985 = vst [vmem:[%s483 + $0xf8] sm:$0xff] %v6914
        $region84: #{tpu_custom_call.1} parent=47 // pred_fallthru
          _
        %p6986 = scmp.gt.s32.totalorder %s36, 0
        // Predicated region
        $region85: #{tpu_custom_call.1} parent=47 // pred_check
          %p6987 = pneg %p6986
        $region86: #{tpu_custom_call.1} parent=47 // pred_check_branch
          %6989 = sbr.rel (%p6987) target = $region88
        $region87: #{tpu_custom_call.1} parent=47 // pred_region
          %v6990 = vld [vmem:[%s483] sm:$0xff]
          %v6991 = vld [vmem:[%s483 + $0x8] sm:$0xff]
          %v6992 = vld [vmem:[%s483 + $0x10] sm:$0xff]
          %v6993 = vld [vmem:[%s483 + $0x18] sm:$0xff]
          %v6994 = vld [vmem:[%s483 + $0x20] sm:$0xff]
          %v6995 = vld [vmem:[%s483 + $0x28] sm:$0xff]
          %v6996 = vld [vmem:[%s483 + $0x30] sm:$0xff]
          %v6997 = vld [vmem:[%s483 + $0x38] sm:$0xff]
          %v6998 = vld [vmem:[%s483 + $0x40] sm:$0xff]
          %v6999 = vld [vmem:[%s483 + $0x48] sm:$0xff]
          %v7000 = vld [vmem:[%s483 + $0x50] sm:$0xff]
          %v7001 = vld [vmem:[%s483 + $0x58] sm:$0xff]
          %v7002 = vld [vmem:[%s483 + $0x60] sm:$0xff]
          %v7003 = vld [vmem:[%s483 + $0x68] sm:$0xff]
          %v7004 = vld [vmem:[%s483 + $0x70] sm:$0xff]
          %v7005 = vld [vmem:[%s483 + $0x78] sm:$0xff]
          %v7006 = vld [vmem:[%s483 + $0x80] sm:$0xff]
          %v7007 = vld [vmem:[%s483 + $0x88] sm:$0xff]
          %v7008 = vld [vmem:[%s483 + $0x90] sm:$0xff]
          %v7009 = vld [vmem:[%s483 + $0x98] sm:$0xff]
          %v7010 = vld [vmem:[%s483 + $0xa0] sm:$0xff]
          %v7011 = vld [vmem:[%s483 + $0xa8] sm:$0xff]
          %v7012 = vld [vmem:[%s483 + $0xb0] sm:$0xff]
          %v7013 = vld [vmem:[%s483 + $0xb8] sm:$0xff]
          %v7014 = vld [vmem:[%s483 + $0xc0] sm:$0xff]
          %v7015 = vld [vmem:[%s483 + $0xc8] sm:$0xff]
          %v7016 = vld [vmem:[%s483 + $0xd0] sm:$0xff]
          %v7017 = vld [vmem:[%s483 + $0xd8] sm:$0xff]
          %v7018 = vld [vmem:[%s483 + $0xe0] sm:$0xff]
          %v7019 = vld [vmem:[%s483 + $0xe8] sm:$0xff]
          %v7020 = vld [vmem:[%s483 + $0xf0] sm:$0xff]
          %v7021 = vld [vmem:[%s483 + $0xf8] sm:$0xff]
          %v7022 = vadd.f32 %v6990, %v6883
          %v7023 = vadd.f32 %v6991, %v6884
          %v7024 = vadd.f32 %v6992, %v6885
          %v7025 = vadd.f32 %v6993, %v6886
          %v7026 = vadd.f32 %v6994, %v6887
          %v7027 = vadd.f32 %v6995, %v6888
          %v7028 = vadd.f32 %v6996, %v6889
          %v7029 = vadd.f32 %v6997, %v6890
          %v7030 = vadd.f32 %v6998, %v6891
          %v7031 = vadd.f32 %v6999, %v6892
          %v7032 = vadd.f32 %v7000, %v6893
          %v7033 = vadd.f32 %v7001, %v6894
          %v7034 = vadd.f32 %v7002, %v6895
          %v7035 = vadd.f32 %v7003, %v6896
          %v7036 = vadd.f32 %v7004, %v6897
          %v7037 = vadd.f32 %v7005, %v6898
          %v7038 = vadd.f32 %v7006, %v6899
          %v7039 = vadd.f32 %v7007, %v6900
          %v7040 = vadd.f32 %v7008, %v6901
          %v7041 = vadd.f32 %v7009, %v6902
          %v7042 = vadd.f32 %v7010, %v6903
          %v7043 = vadd.f32 %v7011, %v6904
          %v7044 = vadd.f32 %v7012, %v6905
          %v7045 = vadd.f32 %v7013, %v6906
          %v7046 = vadd.f32 %v7014, %v6907
          %v7047 = vadd.f32 %v7015, %v6908
          %v7048 = vadd.f32 %v7016, %v6909
          %v7049 = vadd.f32 %v7017, %v6910
          %v7050 = vadd.f32 %v7018, %v6911
          %v7051 = vadd.f32 %v7019, %v6912
          %v7052 = vadd.f32 %v7020, %v6913
          %v7053 = vadd.f32 %v7021, %v6914
          %7054 = vst [vmem:[%s483] sm:$0xff] %v7022
          %7055 = vst [vmem:[%s483 + $0x8] sm:$0xff] %v7023
          %7056 = vst [vmem:[%s483 + $0x10] sm:$0xff] %v7024
          %7057 = vst [vmem:[%s483 + $0x18] sm:$0xff] %v7025
          %7058 = vst [vmem:[%s483 + $0x20] sm:$0xff] %v7026
          %7059 = vst [vmem:[%s483 + $0x28] sm:$0xff] %v7027
          %7060 = vst [vmem:[%s483 + $0x30] sm:$0xff] %v7028
          %7061 = vst [vmem:[%s483 + $0x38] sm:$0xff] %v7029
          %7062 = vst [vmem:[%s483 + $0x40] sm:$0xff] %v7030
          %7063 = vst [vmem:[%s483 + $0x48] sm:$0xff] %v7031
          %7064 = vst [vmem:[%s483 + $0x50] sm:$0xff] %v7032
          %7065 = vst [vmem:[%s483 + $0x58] sm:$0xff] %v7033
          %7066 = vst [vmem:[%s483 + $0x60] sm:$0xff] %v7034
          %7067 = vst [vmem:[%s483 + $0x68] sm:$0xff] %v7035
          %7068 = vst [vmem:[%s483 + $0x70] sm:$0xff] %v7036
          %7069 = vst [vmem:[%s483 + $0x78] sm:$0xff] %v7037
          %7070 = vst [vmem:[%s483 + $0x80] sm:$0xff] %v7038
          %7071 = vst [vmem:[%s483 + $0x88] sm:$0xff] %v7039
          %7072 = vst [vmem:[%s483 + $0x90] sm:$0xff] %v7040
          %7073 = vst [vmem:[%s483 + $0x98] sm:$0xff] %v7041
          %7074 = vst [vmem:[%s483 + $0xa0] sm:$0xff] %v7042
          %7075 = vst [vmem:[%s483 + $0xa8] sm:$0xff] %v7043
          %7076 = vst [vmem:[%s483 + $0xb0] sm:$0xff] %v7044
          %7077 = vst [vmem:[%s483 + $0xb8] sm:$0xff] %v7045
          %7078 = vst [vmem:[%s483 + $0xc0] sm:$0xff] %v7046
          %7079 = vst [vmem:[%s483 + $0xc8] sm:$0xff] %v7047
          %7080 = vst [vmem:[%s483 + $0xd0] sm:$0xff] %v7048
          %7081 = vst [vmem:[%s483 + $0xd8] sm:$0xff] %v7049
          %7082 = vst [vmem:[%s483 + $0xe0] sm:$0xff] %v7050
          %7083 = vst [vmem:[%s483 + $0xe8] sm:$0xff] %v7051
          %7084 = vst [vmem:[%s483 + $0xf0] sm:$0xff] %v7052
          %7085 = vst [vmem:[%s483 + $0xf8] sm:$0xff] %v7053
        $region88: #{tpu_custom_call.1} parent=47 // pred_fallthru
          _
        %s7086 = sand.u32 %s223, 1
        %s7087 = scalar_lea.sflag [#allocation6], %s7086
        %s7088 = sand.u32 %s223, 1
        %s7089 = smul.addr %s7088, 256
        %s7090 = scalar_lea.vmem [#allocation15], %s7089
        // Predicated region
        $region89: #{tpu_custom_call.1} parent=47 // pred_check
          %p7091 = pneg %p233
        $region90: #{tpu_custom_call.1} parent=47 // pred_check_branch
          %7093 = sbr.rel (%p7091) target = $region92
        $region91: #{tpu_custom_call.1} parent=47 // pred_region
          %7095 = vsyncadd %s7087, 0
          %s7096 = smul.addr %s35, 32
          %s7097 = smul.addr %s7096, 8
          %s7098 = scalar_lea.hbm %s7, %s7097
          %s7099 = sshll.u32 %s7090, 4
          %s7100 = int_to_ptr.vmem [resolvable:$true] %s7099
          %s7101 = sshll.u32 %s7098, 4
          %s7102 = int_to_ptr.hbm [resolvable:$true] %s7101
          %7107 = dma.vmem_to_hbm [thread:$0]  %s7100, 4096, %s7102, %s7087, 128, 128, 8
        $region92: #{tpu_custom_call.1} parent=47 // pred_fallthru
          _
      $region48: #{tpu_custom_call.1} parent=5 // pred_fallthru
        _
      %p7108 = scmp.le.s32.totalorder 2, %s26
      // Predicated region
      $region93: #{tpu_custom_call.1} parent=5 // pred_check
        %p7109 = pneg %p7108
      $region94: #{tpu_custom_call.1} parent=5 // pred_check_branch
        %7111 = sbr.rel (%p7109) target = $region96
      $region95: #{tpu_custom_call.1} parent=5 // pred_region
        %s7112 = ssub.s32 %s26, 2
        // Predicated region
        $region97: #{tpu_custom_call.1} parent=95 // pred_check
          %p7113 = pneg %p239
        $region98: #{tpu_custom_call.1} parent=95 // pred_check_branch
          %7115 = sbr.rel (%p7113) target = $region100
        $region99: #{tpu_custom_call.1} parent=95 // pred_region
          %s7116 = sand.u32 %s224, 1
          %s7117 = scalar_lea.sflag [#allocation6], %s7116
          %s7118 = sand.u32 %s224, 1
          %s7119 = smul.addr %s7118, 256
          %s7120 = scalar_lea.vmem [#allocation15], %s7119
          %7122 = dma.done %s7117, 4096
        $region100: #{tpu_custom_call.1} parent=95 // pred_fallthru
          _
      $region96: #{tpu_custom_call.1} parent=5 // pred_fallthru
        _
    $region6: #{tpu_custom_call.1} parent=1 // loop_footer
      %s30 = sadd.s32 1, %s26
    $region7: #{tpu_custom_call.1} parent=1 // loop_footer_branch
      %25 = sbr.rel target = $region3
    $region8: #{tpu_custom_call.1} parent=1 // loop_exit
      _
    %7123 = vsyncpa [#allocation5], 1
    %s7124 = scalar_lea.sflag [#allocation5], 1
    %7125 = vsyncpa %s7124, 1
    %7126 = vsyncpa [#allocation8], 1
    %s7127 = scalar_lea.sflag [#allocation8], 1
    %7128 = vsyncpa %s7127, 1
    %7129 = vsyncpa [#allocation11], 1
    %s7130 = scalar_lea.sflag [#allocation11], 1
    %7131 = vsyncpa %s7130, 1
    %7132 = vsyncpa [#allocation14], 1
    %7133 = vsyncpa [#allocation6], 1
    %s7134 = scalar_lea.sflag [#allocation6], 1
    %7135 = vsyncpa %s7134, 1

</llo_original>
